<compile_context>
chip_gen: v7x
topology: tpu7x:2x2x1
jax: 0.10.0
libtpu: 0.0.40
codegen_flags: <defaults>
</compile_context>

<pallas_src>
import jax
import jax.numpy as jnp
from jax import lax
from jax.experimental import pallas as pl
from jax.experimental.pallas import tpu as pltpu


# --------------------------------------------------------------------------
# Pallas kernel
# --------------------------------------------------------------------------
def _make_decoder_layer_kernel(*, nhead, d_model, n_batch, has_qpos, has_pos,
                               compute_dtype, approx_softmax):
    E = d_model
    dh = E // nhead
    scale = 1.0 / float(dh) ** 0.5
    cd = compute_dtype

    def mm(a, b):
        # a @ b, MXU operands in compute_dtype, f32 accumulation.
        return jnp.dot(a.astype(cd), b.astype(cd),
                       preferred_element_type=jnp.float32)

    def mm_nt(a, b):
        # a @ b.T (contract last dims) without materializing a transpose.
        return lax.dot_general(a.astype(cd), b.astype(cd),
                               dimension_numbers=(((1,), (1,)), ((), ())),
                               preferred_element_type=jnp.float32)

    def layer_norm(v, g, b):
        mu = jnp.mean(v, axis=-1, keepdims=True)
        var = jnp.mean((v - mu) ** 2, axis=-1, keepdims=True)
        return (v - mu) * lax.rsqrt(var + 1e-5) * g + b

    def softmax(s):
        s = s - jnp.max(s, axis=-1, keepdims=True)
        e = jnp.exp(s)
        denom = jnp.sum(e, axis=-1, keepdims=True)
        if approx_softmax:
            return e * pl.reciprocal(denom, approx=True)   # EUP, not VALU
        return e / denom

    def attention(q_p, k_p, v_p, wo, bo):
        # q_p already scaled by 1/sqrt(dh).
        # Per-head scores, then ONE fused out-projection over the full ctx.
        ctxs = []
        for h in range(nhead):
            sl = slice(h * dh, (h + 1) * dh)
            s = mm_nt(q_p[:, sl], k_p[:, sl])          # (Lq, Lk)
            p = softmax(s)
            ctxs.append(mm(p, v_p[:, sl]))             # (Lq, dh)
        ctx = jnp.concatenate(ctxs, axis=-1)           # (Lq, E)
        return mm(ctx, wo) + bo

    def kernel(*refs):
        it = iter(refs)
        tgt_ref = next(it)
        mem_ref = next(it)
        qpos_ref = next(it) if has_qpos else None
        pos_ref = next(it) if has_pos else None
        (sa_wqk, sa_bqk, sa_wv, sa_bv, sa_wo, sa_bo,
         ca_wq, ca_bq, ca_wk, ca_bk, ca_wv, ca_bv, ca_wo, ca_bo,
         w1, b1, w2, b2,
         g1, be1, g2, be2, g3, be3) = [next(it)[...] for _ in range(24)]
        out_ref = next(it)

        # Load the whole (seq, batch_block, E) blocks once; hoist positional
        # adds out of the per-batch loop.
        x3 = tgt_ref[...].astype(jnp.float32)          # (L, NB, E)
        mem3 = mem_ref[...].astype(jnp.float32)        # (S, NB, E)
        qp3 = qpos_ref[...].astype(jnp.float32) if has_qpos else None
        sa_q3 = x3 + qp3 if has_qpos else x3
        keys3 = mem3 + pos_ref[...].astype(jnp.float32) if has_pos else mem3

        for b in range(n_batch):                       # static unroll
            x = x3[:, b, :]                            # (L, E)
            mem = mem3[:, b, :]                        # (S, E)
            keys = keys3[:, b, :]

            # ---- self-attention: q = k = tgt + query_pos, v = tgt ----
            qk = mm(sa_q3[:, b, :], sa_wqk) + sa_bqk   # fused Q/K proj (L, 2E)
            q_p = qk[:, :E] * scale
            k_p = qk[:, E:]
            v_p = mm(x, sa_wv) + sa_bv
            sa = attention(q_p, k_p, v_p, sa_wo, sa_bo)
            x = layer_norm(x + sa, g1, be1)

            # ---- cross-attention: q = tgt + query_pos, k = mem + pos, v = mem
            q_in = x + qp3[:, b, :] if has_qpos else x
            q_p = (mm(q_in, ca_wq) + ca_bq) * scale
            k_p = mm(keys, ca_wk) + ca_bk
            v_p = mm(mem, ca_wv) + ca_bv
            ca = attention(q_p, k_p, v_p, ca_wo, ca_bo)
            x = layer_norm(x + ca, g2, be2)

            # ---- feed-forward (ReLU) ----
            h = jnp.maximum(mm(x, w1) + b1, 0.0)
            ff = mm(h, w2) + b2
            x = layer_norm(x + ff, g3, be3)

            out_ref[:, b, :] = x.astype(out_ref.dtype)

    return kernel


# --------------------------------------------------------------------------
# Wrapper (PyTorch seq-first convention: tgt (L, N, E), memory (S, N, E))
# --------------------------------------------------------------------------
def transformer_decoder_layer(tgt, memory, params, *, nhead,
                              pos=None, query_pos=None,
                              compute_dtype=jnp.bfloat16,
                              approx_softmax=None,
                              batch_block=None,
                              vmem_limit_bytes=None):
    L, N, E = tgt.shape
    S = memory.shape[0]
    assert memory.shape[1] == N and memory.shape[2] == E
    assert E % nhead == 0, "d_model must be divisible by nhead"

    if approx_softmax is None:
        approx_softmax = (compute_dtype != jnp.float32)

    # Batch elements per grid step. Default: whole batch in one fat step.
    # On v7x, pick NB = N // 2 (multiple of 8) for large N so both
    # TensorCores get a grid step.
    NB = N if batch_block is None else batch_block
    assert NB == N or (NB % 8 == 0 and N % NB == 0), \
        "batch_block must be N or a multiple of 8 dividing N (sublane tiling)"

    cd = compute_dtype
    f32 = jnp.float32

    def wT(w):  # pre-transpose once -> kernel does x @ wT, never .T
        return jnp.asarray(w, f32).T.astype(cd)

    def row(v):
        return jnp.asarray(v, f32).reshape(1, -1)

    sa_iw = jnp.asarray(params["sa_in_w"], f32)   # (3E, E) packed [Wq;Wk;Wv]
    sa_ib = jnp.asarray(params["sa_in_b"], f32)   # (3E,)
    ca_iw = jnp.asarray(params["ca_in_w"], f32)
    ca_ib = jnp.asarray(params["ca_in_b"], f32)

    param_arrays = [
        # self-attn: fused Q/K projection (q_in == k_in), separate V
        jnp.concatenate([sa_iw[0:E].T, sa_iw[E:2 * E].T], axis=1).astype(cd),
        row(jnp.concatenate([sa_ib[0:E], sa_ib[E:2 * E]])),
        wT(sa_iw[2 * E:3 * E]), row(sa_ib[2 * E:3 * E]),
        wT(params["sa_out_w"]), row(params["sa_out_b"]),
        # cross-attn: q/k/v have distinct inputs -> separate projections
        wT(ca_iw[0:E]), row(ca_ib[0:E]),
        wT(ca_iw[E:2 * E]), row(ca_ib[E:2 * E]),
        wT(ca_iw[2 * E:3 * E]), row(ca_ib[2 * E:3 * E]),
        wT(params["ca_out_w"]), row(params["ca_out_b"]),
        # FFN
        wT(params["w1"]), row(params["b1"]),
        wT(params["w2"]), row(params["b2"]),
        # LayerNorms (f32)
        row(params["g1"]), row(params["be1"]),
        row(params["g2"]), row(params["be2"]),
        row(params["g3"]), row(params["be3"]),
    ]

    has_qpos = query_pos is not None
    has_pos = pos is not None

    tgt_spec = pl.BlockSpec((L, NB, E), lambda i: (0, i, 0))
    mem_spec = pl.BlockSpec((S, NB, E), lambda i: (0, i, 0))

    inputs = [tgt, memory]
    in_specs = [tgt_spec, mem_spec]
    if has_qpos:
        inputs.append(query_pos)
        in_specs.append(tgt_spec)
    if has_pos:
        inputs.append(pos)
        in_specs.append(mem_spec)

    def full_spec(a):
        nd = a.ndim
        return pl.BlockSpec(a.shape, lambda i, _nd=nd: (0,) * _nd)

    inputs += param_arrays
    in_specs += [full_spec(a) for a in param_arrays]

    kernel = _make_decoder_layer_kernel(
        nhead=nhead, d_model=E, n_batch=NB,
        has_qpos=has_qpos, has_pos=has_pos,
        compute_dtype=cd, approx_softmax=approx_softmax)

    return pl.pallas_call(
        kernel,
        out_shape=jax.ShapeDtypeStruct((L, N, E), tgt.dtype),
        grid_spec=pltpu.PrefetchScalarGridSpec(
            num_scalar_prefetch=0,
            grid=(N // NB,),
            in_specs=in_specs,
            out_specs=pl.BlockSpec((L, NB, E), lambda i: (0, i, 0)),
        ),
        compiler_params=pltpu.CompilerParams(
            dimension_semantics=("parallel",),
            vmem_limit_bytes=vmem_limit_bytes),
    )(*inputs)


# --------------------------------------------------------------------------
# Pure-JAX f32 reference (same math as PyTorch forward_post, eval mode)
# --------------------------------------------------------------------------
def reference_decoder_layer(tgt, memory, params, *, nhead, pos, query_pos):
    x = jnp.transpose(tgt, (1, 0, 2)).astype(jnp.float32)
    mem = jnp.transpose(memory, (1, 0, 2)).astype(jnp.float32)
    qp = jnp.transpose(query_pos, (1, 0, 2)).astype(jnp.float32)
    pp = jnp.transpose(pos, (1, 0, 2)).astype(jnp.float32)
    E = x.shape[-1]
    dh = E // nhead

    def ln(v, g, b):
        mu = jnp.mean(v, -1, keepdims=True)
        var = jnp.mean((v - mu) ** 2, -1, keepdims=True)
        return (v - mu) / jnp.sqrt(var + 1e-5) * g + b

    def mha(q, k, v, iw, ib, ow, ob):
        qp_ = q @ iw[0:E].T + ib[0:E]
        kp_ = k @ iw[E:2 * E].T + ib[E:2 * E]
        vp_ = v @ iw[2 * E:3 * E].T + ib[2 * E:3 * E]
        B, Lq, _ = qp_.shape
        Lk = kp_.shape[1]
        qh = qp_.reshape(B, Lq, nhead, dh).transpose(0, 2, 1, 3)
        kh = kp_.reshape(B, Lk, nhead, dh).transpose(0, 2, 1, 3)
        vh = vp_.reshape(B, Lk, nhead, dh).transpose(0, 2, 1, 3)
        s = jnp.einsum("bhqd,bhkd->bhqk", qh, kh) / jnp.sqrt(dh)
        a = jax.nn.softmax(s, axis=-1)
        o = jnp.einsum("bhqk,bhkd->bhqd", a, vh)
        o = o.transpose(0, 2, 1, 3).reshape(B, Lq, E)
        return o @ ow.T + ob

    sa = mha(x + qp, x + qp, x, params["sa_in_w"], params["sa_in_b"],
             params["sa_out_w"], params["sa_out_b"])
    x = ln(x + sa, params["g1"], params["be1"])
    ca = mha(x + qp, mem + pp, mem, params["ca_in_w"], params["ca_in_b"],
             params["ca_out_w"], params["ca_out_b"])
    x = ln(x + ca, params["g2"], params["be2"])
    ff = jnp.maximum(x @ params["w1"].T + params["b1"], 0.0) @ params["w2"].T \
        + params["b2"]
    x = ln(x + ff, params["g3"], params["be3"])
    return jnp.transpose(x, (1, 0, 2))


# --------------------------------------------------------------------------
if __name__ == "__main__":
    d_model, nhead, dim_ff = 32, 4, 64
    L, S, N = 8, 16, 2   # target len, memory len, batch

    key = jax.random.PRNGKey(0)
    ks = jax.random.split(key, 16)

    def init(k, shape, scale=0.1):
        return (scale * jax.random.normal(k, shape)).astype(jnp.float32)

    params = {
        "sa_in_w": init(ks[0], (3 * d_model, d_model)),
        "sa_in_b": init(ks[1], (3 * d_model,)),
        "sa_out_w": init(ks[2], (d_model, d_model)),
        "sa_out_b": init(ks[3], (d_model,)),
        "ca_in_w": init(ks[4], (3 * d_model, d_model)),
        "ca_in_b": init(ks[5], (3 * d_model,)),
        "ca_out_w": init(ks[6], (d_model, d_model)),
        "ca_out_b": init(ks[7], (d_model,)),
        "w1": init(ks[8], (dim_ff, d_model)),
        "b1": init(ks[9], (dim_ff,)),
        "w2": init(ks[10], (d_model, dim_ff)),
        "b2": init(ks[11], (d_model,)),
        "g1": jnp.ones((d_model,), jnp.float32),
        "be1": jnp.zeros((d_model,), jnp.float32),
        "g2": jnp.ones((d_model,), jnp.float32),
        "be2": jnp.zeros((d_model,), jnp.float32),
        "g3": jnp.ones((d_model,), jnp.float32),
        "be3": jnp.zeros((d_model,), jnp.float32),
    }

    tgt = init(ks[12], (L, N, d_model), scale=1.0)
    memory = init(ks[13], (S, N, d_model), scale=1.0)
    query_pos = init(ks[14], (L, N, d_model), scale=0.5)
    pos = init(ks[15], (S, N, d_model), scale=0.5)

    ref = reference_decoder_layer(tgt, memory, params, nhead=nhead,
                                  pos=pos, query_pos=query_pos)

    # Exact path: f32 MXU operands + exact softmax divide.
    out_f32 = transformer_decoder_layer(tgt, memory, params, nhead=nhead,
                                        pos=pos, query_pos=query_pos,
                                        compute_dtype=jnp.float32)
    out_f32 = jax.block_until_ready(out_f32)
    assert out_f32.shape == (L, N, d_model)
    err = float(jnp.max(jnp.abs(out_f32 - ref)))
    assert jnp.allclose(out_f32, ref, atol=1e-4, rtol=1e-4), err

    # Fast path (default): bf16 MXU operands + EUP approx-reciprocal softmax.
    out_fast = transformer_decoder_layer(tgt, memory, params, nhead=nhead,
                                         pos=pos, query_pos=query_pos,
                                         compute_dtype=jnp.bfloat16)
    out_fast = jax.block_until_ready(out_fast)
    err_fast = float(jnp.max(jnp.abs(out_fast - ref)))
    assert jnp.allclose(out_fast, ref, atol=5e-2, rtol=5e-2), err_fast

    print("KERNEL_OK")
</pallas_src>

<mosaic_0001>
module attributes {stable_mosaic.version = 11 : i64} {
  func.func @kernel(%arg0: i32, %arg1: memref<8x2x32xf32, #tpu.memory_space<vmem>>, %arg2: memref<16x2x32xf32, #tpu.memory_space<vmem>>, %arg3: memref<8x2x32xf32, #tpu.memory_space<vmem>>, %arg4: memref<16x2x32xf32, #tpu.memory_space<vmem>>, %arg5: memref<32x64xf32, #tpu.memory_space<vmem>>, %arg6: memref<1x64xf32, #tpu.memory_space<vmem>>, %arg7: memref<32x32xf32, #tpu.memory_space<vmem>>, %arg8: memref<1x32xf32, #tpu.memory_space<vmem>>, %arg9: memref<32x32xf32, #tpu.memory_space<vmem>>, %arg10: memref<1x32xf32, #tpu.memory_space<vmem>>, %arg11: memref<32x32xf32, #tpu.memory_space<vmem>>, %arg12: memref<1x32xf32, #tpu.memory_space<vmem>>, %arg13: memref<32x32xf32, #tpu.memory_space<vmem>>, %arg14: memref<1x32xf32, #tpu.memory_space<vmem>>, %arg15: memref<32x32xf32, #tpu.memory_space<vmem>>, %arg16: memref<1x32xf32, #tpu.memory_space<vmem>>, %arg17: memref<32x32xf32, #tpu.memory_space<vmem>>, %arg18: memref<1x32xf32, #tpu.memory_space<vmem>>, %arg19: memref<32x64xf32, #tpu.memory_space<vmem>>, %arg20: memref<1x64xf32, #tpu.memory_space<vmem>>, %arg21: memref<64x32xf32, #tpu.memory_space<vmem>>, %arg22: memref<1x32xf32, #tpu.memory_space<vmem>>, %arg23: memref<1x32xf32, #tpu.memory_space<vmem>>, %arg24: memref<1x32xf32, #tpu.memory_space<vmem>>, %arg25: memref<1x32xf32, #tpu.memory_space<vmem>>, %arg26: memref<1x32xf32, #tpu.memory_space<vmem>>, %arg27: memref<1x32xf32, #tpu.memory_space<vmem>>, %arg28: memref<1x32xf32, #tpu.memory_space<vmem>>, %arg29: memref<8x2x32xf32, #tpu.memory_space<vmem>>) attributes {dimension_semantics = [#tpu.dimension_semantics<parallel>], iteration_bounds = array<i64: 1>, scalar_prefetch = 0 : i64, scratch_operands = 0 : i64, tpu.core_type = #tpu.core_type<tc>, window_params = [{transform_indices = @transform_0, window_bounds = array<i64: 8, 2, 32>}, {transform_indices = @transform_1, window_bounds = array<i64: 16, 2, 32>}, {transform_indices = @transform_2, window_bounds = array<i64: 8, 2, 32>}, {transform_indices = @transform_3, window_bounds = array<i64: 16, 2, 32>}, {pipeline_mode = #tpu.pipeline_mode<synchronous>, transform_indices = @transform_4, window_bounds = array<i64: 32, 64>}, {pipeline_mode = #tpu.pipeline_mode<synchronous>, transform_indices = @transform_5, window_bounds = array<i64: 1, 64>}, {pipeline_mode = #tpu.pipeline_mode<synchronous>, transform_indices = @transform_6, window_bounds = array<i64: 32, 32>}, {pipeline_mode = #tpu.pipeline_mode<synchronous>, transform_indices = @transform_7, window_bounds = array<i64: 1, 32>}, {pipeline_mode = #tpu.pipeline_mode<synchronous>, transform_indices = @transform_8, window_bounds = array<i64: 32, 32>}, {pipeline_mode = #tpu.pipeline_mode<synchronous>, transform_indices = @transform_9, window_bounds = array<i64: 1, 32>}, {pipeline_mode = #tpu.pipeline_mode<synchronous>, transform_indices = @transform_10, window_bounds = array<i64: 32, 32>}, {pipeline_mode = #tpu.pipeline_mode<synchronous>, transform_indices = @transform_11, window_bounds = array<i64: 1, 32>}, {pipeline_mode = #tpu.pipeline_mode<synchronous>, transform_indices = @transform_12, window_bounds = array<i64: 32, 32>}, {pipeline_mode = #tpu.pipeline_mode<synchronous>, transform_indices = @transform_13, window_bounds = array<i64: 1, 32>}, {pipeline_mode = #tpu.pipeline_mode<synchronous>, transform_indices = @transform_14, window_bounds = array<i64: 32, 32>}, {pipeline_mode = #tpu.pipeline_mode<synchronous>, transform_indices = @transform_15, window_bounds = array<i64: 1, 32>}, {pipeline_mode = #tpu.pipeline_mode<synchronous>, transform_indices = @transform_16, window_bounds = array<i64: 32, 32>}, {pipeline_mode = #tpu.pipeline_mode<synchronous>, transform_indices = @transform_17, window_bounds = array<i64: 1, 32>}, {pipeline_mode = #tpu.pipeline_mode<synchronous>, transform_indices = @transform_18, window_bounds = array<i64: 32, 64>}, {pipeline_mode = #tpu.pipeline_mode<synchronous>, transform_indices = @transform_19, window_bounds = array<i64: 1, 64>}, {pipeline_mode = #tpu.pipeline_mode<synchronous>, transform_indices = @transform_20, window_bounds = array<i64: 64, 32>}, {pipeline_mode = #tpu.pipeline_mode<synchronous>, transform_indices = @transform_21, window_bounds = array<i64: 1, 32>}, {pipeline_mode = #tpu.pipeline_mode<synchronous>, transform_indices = @transform_22, window_bounds = array<i64: 1, 32>}, {pipeline_mode = #tpu.pipeline_mode<synchronous>, transform_indices = @transform_23, window_bounds = array<i64: 1, 32>}, {pipeline_mode = #tpu.pipeline_mode<synchronous>, transform_indices = @transform_24, window_bounds = array<i64: 1, 32>}, {pipeline_mode = #tpu.pipeline_mode<synchronous>, transform_indices = @transform_25, window_bounds = array<i64: 1, 32>}, {pipeline_mode = #tpu.pipeline_mode<synchronous>, transform_indices = @transform_26, window_bounds = array<i64: 1, 32>}, {pipeline_mode = #tpu.pipeline_mode<synchronous>, transform_indices = @transform_27, window_bounds = array<i64: 1, 32>}, {transform_indices = @transform_28, window_bounds = array<i64: 8, 2, 32>}]} {
    %c0 = arith.constant 0 : index
    %c0_0 = arith.constant 0 : index
    %0 = vector.load %arg5[%c0, %c0_0] : memref<32x64xf32, #tpu.memory_space<vmem>>, vector<32x64xf32>
    %c0_1 = arith.constant 0 : index
    %c0_2 = arith.constant 0 : index
    %1 = vector.load %arg6[%c0_1, %c0_2] : memref<1x64xf32, #tpu.memory_space<vmem>>, vector<1x64xf32>
    %c0_3 = arith.constant 0 : index
    %c0_4 = arith.constant 0 : index
    %2 = vector.load %arg7[%c0_3, %c0_4] : memref<32x32xf32, #tpu.memory_space<vmem>>, vector<32x32xf32>
    %c0_5 = arith.constant 0 : index
    %c0_6 = arith.constant 0 : index
    %3 = vector.load %arg8[%c0_5, %c0_6] : memref<1x32xf32, #tpu.memory_space<vmem>>, vector<1x32xf32>
    %c0_7 = arith.constant 0 : index
    %c0_8 = arith.constant 0 : index
    %4 = vector.load %arg9[%c0_7, %c0_8] : memref<32x32xf32, #tpu.memory_space<vmem>>, vector<32x32xf32>
    %c0_9 = arith.constant 0 : index
    %c0_10 = arith.constant 0 : index
    %5 = vector.load %arg10[%c0_9, %c0_10] : memref<1x32xf32, #tpu.memory_space<vmem>>, vector<1x32xf32>
    %c0_11 = arith.constant 0 : index
    %c0_12 = arith.constant 0 : index
    %6 = vector.load %arg11[%c0_11, %c0_12] : memref<32x32xf32, #tpu.memory_space<vmem>>, vector<32x32xf32>
    %c0_13 = arith.constant 0 : index
    %c0_14 = arith.constant 0 : index
    %7 = vector.load %arg12[%c0_13, %c0_14] : memref<1x32xf32, #tpu.memory_space<vmem>>, vector<1x32xf32>
    %c0_15 = arith.constant 0 : index
    %c0_16 = arith.constant 0 : index
    %8 = vector.load %arg13[%c0_15, %c0_16] : memref<32x32xf32, #tpu.memory_space<vmem>>, vector<32x32xf32>
    %c0_17 = arith.constant 0 : index
    %c0_18 = arith.constant 0 : index
    %9 = vector.load %arg14[%c0_17, %c0_18] : memref<1x32xf32, #tpu.memory_space<vmem>>, vector<1x32xf32>
    %c0_19 = arith.constant 0 : index
    %c0_20 = arith.constant 0 : index
    %10 = vector.load %arg15[%c0_19, %c0_20] : memref<32x32xf32, #tpu.memory_space<vmem>>, vector<32x32xf32>
    %c0_21 = arith.constant 0 : index
    %c0_22 = arith.constant 0 : index
    %11 = vector.load %arg16[%c0_21, %c0_22] : memref<1x32xf32, #tpu.memory_space<vmem>>, vector<1x32xf32>
    %c0_23 = arith.constant 0 : index
    %c0_24 = arith.constant 0 : index
    %12 = vector.load %arg17[%c0_23, %c0_24] : memref<32x32xf32, #tpu.memory_space<vmem>>, vector<32x32xf32>
    %c0_25 = arith.constant 0 : index
    %c0_26 = arith.constant 0 : index
    %13 = vector.load %arg18[%c0_25, %c0_26] : memref<1x32xf32, #tpu.memory_space<vmem>>, vector<1x32xf32>
    %c0_27 = arith.constant 0 : index
    %c0_28 = arith.constant 0 : index
    %14 = vector.load %arg19[%c0_27, %c0_28] : memref<32x64xf32, #tpu.memory_space<vmem>>, vector<32x64xf32>
    %c0_29 = arith.constant 0 : index
    %c0_30 = arith.constant 0 : index
    %15 = vector.load %arg20[%c0_29, %c0_30] : memref<1x64xf32, #tpu.memory_space<vmem>>, vector<1x64xf32>
    %c0_31 = arith.constant 0 : index
    %c0_32 = arith.constant 0 : index
    %16 = vector.load %arg21[%c0_31, %c0_32] : memref<64x32xf32, #tpu.memory_space<vmem>>, vector<64x32xf32>
    %c0_33 = arith.constant 0 : index
    %c0_34 = arith.constant 0 : index
    %17 = vector.load %arg22[%c0_33, %c0_34] : memref<1x32xf32, #tpu.memory_space<vmem>>, vector<1x32xf32>
    %c0_35 = arith.constant 0 : index
    %c0_36 = arith.constant 0 : index
    %18 = vector.load %arg23[%c0_35, %c0_36] : memref<1x32xf32, #tpu.memory_space<vmem>>, vector<1x32xf32>
    %c0_37 = arith.constant 0 : index
    %c0_38 = arith.constant 0 : index
    %19 = vector.load %arg24[%c0_37, %c0_38] : memref<1x32xf32, #tpu.memory_space<vmem>>, vector<1x32xf32>
    %c0_39 = arith.constant 0 : index
    %c0_40 = arith.constant 0 : index
    %20 = vector.load %arg25[%c0_39, %c0_40] : memref<1x32xf32, #tpu.memory_space<vmem>>, vector<1x32xf32>
    %c0_41 = arith.constant 0 : index
    %c0_42 = arith.constant 0 : index
    %21 = vector.load %arg26[%c0_41, %c0_42] : memref<1x32xf32, #tpu.memory_space<vmem>>, vector<1x32xf32>
    %c0_43 = arith.constant 0 : index
    %c0_44 = arith.constant 0 : index
    %22 = vector.load %arg27[%c0_43, %c0_44] : memref<1x32xf32, #tpu.memory_space<vmem>>, vector<1x32xf32>
    %c0_45 = arith.constant 0 : index
    %c0_46 = arith.constant 0 : index
    %23 = vector.load %arg28[%c0_45, %c0_46] : memref<1x32xf32, #tpu.memory_space<vmem>>, vector<1x32xf32>
    %c0_47 = arith.constant 0 : index
    %c0_48 = arith.constant 0 : index
    %c0_49 = arith.constant 0 : index
    %24 = vector.load %arg1[%c0_47, %c0_48, %c0_49] : memref<8x2x32xf32, #tpu.memory_space<vmem>>, vector<8x2x32xf32>
    %c0_50 = arith.constant 0 : index
    %c0_51 = arith.constant 0 : index
    %c0_52 = arith.constant 0 : index
    %25 = vector.load %arg2[%c0_50, %c0_51, %c0_52] : memref<16x2x32xf32, #tpu.memory_space<vmem>>, vector<16x2x32xf32>
    %c0_53 = arith.constant 0 : index
    %c0_54 = arith.constant 0 : index
    %c0_55 = arith.constant 0 : index
    %26 = vector.load %arg3[%c0_53, %c0_54, %c0_55] : memref<8x2x32xf32, #tpu.memory_space<vmem>>, vector<8x2x32xf32>
    %27 = arith.addf %24, %26 : vector<8x2x32xf32>
    %c0_56 = arith.constant 0 : index
    %c0_57 = arith.constant 0 : index
    %c0_58 = arith.constant 0 : index
    %28 = vector.load %arg4[%c0_56, %c0_57, %c0_58] : memref<16x2x32xf32, #tpu.memory_space<vmem>>, vector<16x2x32xf32>
    %29 = arith.addf %25, %28 : vector<16x2x32xf32>
    %30 = vector.extract_strided_slice %24 {offsets = [0, 0, 0], sizes = [8, 1, 32], strides = [1, 1, 1]} : vector<8x2x32xf32> to vector<8x1x32xf32>
    %31 = vector.shape_cast %30 : vector<8x1x32xf32> to vector<8x32xf32>
    %32 = vector.extract_strided_slice %25 {offsets = [0, 0, 0], sizes = [16, 1, 32], strides = [1, 1, 1]} : vector<16x2x32xf32> to vector<16x1x32xf32>
    %33 = vector.shape_cast %32 : vector<16x1x32xf32> to vector<16x32xf32>
    %34 = vector.extract_strided_slice %29 {offsets = [0, 0, 0], sizes = [16, 1, 32], strides = [1, 1, 1]} : vector<16x2x32xf32> to vector<16x1x32xf32>
    %35 = vector.shape_cast %34 : vector<16x1x32xf32> to vector<16x32xf32>
    %36 = vector.extract_strided_slice %27 {offsets = [0, 0, 0], sizes = [8, 1, 32], strides = [1, 1, 1]} : vector<8x2x32xf32> to vector<8x1x32xf32>
    %37 = vector.shape_cast %36 : vector<8x1x32xf32> to vector<8x32xf32>
    %cst = arith.constant dense<0.000000e+00> : vector<8x64xf32>
    %38 = tpu.matmul %37, %0, %cst {dimension_numbers = #tpu.dot_dimension_numbers<[1], [0], [0], [1], [0, 0, 1, 1], [], []>} : vector<8x32xf32>, vector<32x64xf32>, vector<8x64xf32> -> vector<8x64xf32>
    %39 = vector.broadcast %1 : vector<1x64xf32> to vector<8x64xf32>
    %40 = arith.addf %38, %39 : vector<8x64xf32>
    %41 = vector.extract_strided_slice %40 {offsets = [0, 0], sizes = [8, 32], strides = [1, 1]} : vector<8x64xf32> to vector<8x32xf32>
    %cst_59 = arith.constant 0.353553385 : f32
    %42 = vector.broadcast %cst_59 : f32 to vector<8x32xf32>
    %43 = arith.mulf %41, %42 : vector<8x32xf32>
    %44 = vector.extract_strided_slice %40 {offsets = [0, 32], sizes = [8, 32], strides = [1, 1]} : vector<8x64xf32> to vector<8x32xf32>
    %cst_60 = arith.constant dense<0.000000e+00> : vector<8x32xf32>
    %45 = tpu.matmul %31, %2, %cst_60 {dimension_numbers = #tpu.dot_dimension_numbers<[1], [0], [0], [1], [0, 0, 1, 1], [], []>} : vector<8x32xf32>, vector<32x32xf32>, vector<8x32xf32> -> vector<8x32xf32>
    %46 = vector.broadcast %3 : vector<1x32xf32> to vector<8x32xf32>
    %47 = arith.addf %45, %46 : vector<8x32xf32>
    %48 = vector.extract_strided_slice %43 {offsets = [0, 0], sizes = [8, 8], strides = [1, 1]} : vector<8x32xf32> to vector<8x8xf32>
    %49 = vector.extract_strided_slice %44 {offsets = [0, 0], sizes = [8, 8], strides = [1, 1]} : vector<8x32xf32> to vector<8x8xf32>
    %cst_61 = arith.constant dense<0.000000e+00> : vector<8x8xf32>
    %50 = tpu.matmul %48, %49, %cst_61 {dimension_numbers = #tpu.dot_dimension_numbers<[1], [1], [0], [0], [0, 0, 1, 0], [], []>} : vector<8x8xf32>, vector<8x8xf32>, vector<8x8xf32> -> vector<8x8xf32>
    %cst_62 = arith.constant dense<0xFF800000> : vector<8xf32>
    %51 = vector.multi_reduction <maximumf>, %50, %cst_62 [1] : vector<8x8xf32> to vector<8xf32>
    %52 = vector.shape_cast %51 : vector<8xf32> to vector<8x1xf32>
    %53 = vector.broadcast %52 : vector<8x1xf32> to vector<8x8xf32>
    %54 = arith.subf %50, %53 : vector<8x8xf32>
    %55 = math.exp %54 : vector<8x8xf32>
    %cst_63 = arith.constant dense<0.000000e+00> : vector<8xf32>
    %56 = vector.multi_reduction <add>, %55, %cst_63 [1] : vector<8x8xf32> to vector<8xf32>
    %57 = vector.shape_cast %56 : vector<8xf32> to vector<8x1xf32>
    %58 = vector.broadcast %57 : vector<8x1xf32> to vector<8x8xf32>
    %59 = arith.divf %55, %58 : vector<8x8xf32>
    %60 = vector.extract_strided_slice %47 {offsets = [0, 0], sizes = [8, 8], strides = [1, 1]} : vector<8x32xf32> to vector<8x8xf32>
    %cst_64 = arith.constant dense<0.000000e+00> : vector<8x8xf32>
    %61 = tpu.matmul %59, %60, %cst_64 {dimension_numbers = #tpu.dot_dimension_numbers<[1], [0], [0], [1], [0, 0, 1, 1], [], []>} : vector<8x8xf32>, vector<8x8xf32>, vector<8x8xf32> -> vector<8x8xf32>
    %62 = vector.extract_strided_slice %43 {offsets = [0, 8], sizes = [8, 8], strides = [1, 1]} : vector<8x32xf32> to vector<8x8xf32>
    %63 = vector.extract_strided_slice %44 {offsets = [0, 8], sizes = [8, 8], strides = [1, 1]} : vector<8x32xf32> to vector<8x8xf32>
    %cst_65 = arith.constant dense<0.000000e+00> : vector<8x8xf32>
    %64 = tpu.matmul %62, %63, %cst_65 {dimension_numbers = #tpu.dot_dimension_numbers<[1], [1], [0], [0], [0, 0, 1, 0], [], []>} : vector<8x8xf32>, vector<8x8xf32>, vector<8x8xf32> -> vector<8x8xf32>
    %cst_66 = arith.constant dense<0xFF800000> : vector<8xf32>
    %65 = vector.multi_reduction <maximumf>, %64, %cst_66 [1] : vector<8x8xf32> to vector<8xf32>
    %66 = vector.shape_cast %65 : vector<8xf32> to vector<8x1xf32>
    %67 = vector.broadcast %66 : vector<8x1xf32> to vector<8x8xf32>
    %68 = arith.subf %64, %67 : vector<8x8xf32>
    %69 = math.exp %68 : vector<8x8xf32>
    %cst_67 = arith.constant dense<0.000000e+00> : vector<8xf32>
    %70 = vector.multi_reduction <add>, %69, %cst_67 [1] : vector<8x8xf32> to vector<8xf32>
    %71 = vector.shape_cast %70 : vector<8xf32> to vector<8x1xf32>
    %72 = vector.broadcast %71 : vector<8x1xf32> to vector<8x8xf32>
    %73 = arith.divf %69, %72 : vector<8x8xf32>
    %74 = vector.extract_strided_slice %47 {offsets = [0, 8], sizes = [8, 8], strides = [1, 1]} : vector<8x32xf32> to vector<8x8xf32>
    %cst_68 = arith.constant dense<0.000000e+00> : vector<8x8xf32>
    %75 = tpu.matmul %73, %74, %cst_68 {dimension_numbers = #tpu.dot_dimension_numbers<[1], [0], [0], [1], [0, 0, 1, 1], [], []>} : vector<8x8xf32>, vector<8x8xf32>, vector<8x8xf32> -> vector<8x8xf32>
    %76 = vector.extract_strided_slice %43 {offsets = [0, 16], sizes = [8, 8], strides = [1, 1]} : vector<8x32xf32> to vector<8x8xf32>
    %77 = vector.extract_strided_slice %44 {offsets = [0, 16], sizes = [8, 8], strides = [1, 1]} : vector<8x32xf32> to vector<8x8xf32>
    %cst_69 = arith.constant dense<0.000000e+00> : vector<8x8xf32>
    %78 = tpu.matmul %76, %77, %cst_69 {dimension_numbers = #tpu.dot_dimension_numbers<[1], [1], [0], [0], [0, 0, 1, 0], [], []>} : vector<8x8xf32>, vector<8x8xf32>, vector<8x8xf32> -> vector<8x8xf32>
    %cst_70 = arith.constant dense<0xFF800000> : vector<8xf32>
    %79 = vector.multi_reduction <maximumf>, %78, %cst_70 [1] : vector<8x8xf32> to vector<8xf32>
    %80 = vector.shape_cast %79 : vector<8xf32> to vector<8x1xf32>
    %81 = vector.broadcast %80 : vector<8x1xf32> to vector<8x8xf32>
    %82 = arith.subf %78, %81 : vector<8x8xf32>
    %83 = math.exp %82 : vector<8x8xf32>
    %cst_71 = arith.constant dense<0.000000e+00> : vector<8xf32>
    %84 = vector.multi_reduction <add>, %83, %cst_71 [1] : vector<8x8xf32> to vector<8xf32>
    %85 = vector.shape_cast %84 : vector<8xf32> to vector<8x1xf32>
    %86 = vector.broadcast %85 : vector<8x1xf32> to vector<8x8xf32>
    %87 = arith.divf %83, %86 : vector<8x8xf32>
    %88 = vector.extract_strided_slice %47 {offsets = [0, 16], sizes = [8, 8], strides = [1, 1]} : vector<8x32xf32> to vector<8x8xf32>
    %cst_72 = arith.constant dense<0.000000e+00> : vector<8x8xf32>
    %89 = tpu.matmul %87, %88, %cst_72 {dimension_numbers = #tpu.dot_dimension_numbers<[1], [0], [0], [1], [0, 0, 1, 1], [], []>} : vector<8x8xf32>, vector<8x8xf32>, vector<8x8xf32> -> vector<8x8xf32>
    %90 = vector.extract_strided_slice %43 {offsets = [0, 24], sizes = [8, 8], strides = [1, 1]} : vector<8x32xf32> to vector<8x8xf32>
    %91 = vector.extract_strided_slice %44 {offsets = [0, 24], sizes = [8, 8], strides = [1, 1]} : vector<8x32xf32> to vector<8x8xf32>
    %cst_73 = arith.constant dense<0.000000e+00> : vector<8x8xf32>
    %92 = tpu.matmul %90, %91, %cst_73 {dimension_numbers = #tpu.dot_dimension_numbers<[1], [1], [0], [0], [0, 0, 1, 0], [], []>} : vector<8x8xf32>, vector<8x8xf32>, vector<8x8xf32> -> vector<8x8xf32>
    %cst_74 = arith.constant dense<0xFF800000> : vector<8xf32>
    %93 = vector.multi_reduction <maximumf>, %92, %cst_74 [1] : vector<8x8xf32> to vector<8xf32>
    %94 = vector.shape_cast %93 : vector<8xf32> to vector<8x1xf32>
    %95 = vector.broadcast %94 : vector<8x1xf32> to vector<8x8xf32>
    %96 = arith.subf %92, %95 : vector<8x8xf32>
    %97 = math.exp %96 : vector<8x8xf32>
    %cst_75 = arith.constant dense<0.000000e+00> : vector<8xf32>
    %98 = vector.multi_reduction <add>, %97, %cst_75 [1] : vector<8x8xf32> to vector<8xf32>
    %99 = vector.shape_cast %98 : vector<8xf32> to vector<8x1xf32>
    %100 = vector.broadcast %99 : vector<8x1xf32> to vector<8x8xf32>
    %101 = arith.divf %97, %100 : vector<8x8xf32>
    %102 = vector.extract_strided_slice %47 {offsets = [0, 24], sizes = [8, 8], strides = [1, 1]} : vector<8x32xf32> to vector<8x8xf32>
    %cst_76 = arith.constant dense<0.000000e+00> : vector<8x8xf32>
    %103 = tpu.matmul %101, %102, %cst_76 {dimension_numbers = #tpu.dot_dimension_numbers<[1], [0], [0], [1], [0, 0, 1, 1], [], []>} : vector<8x8xf32>, vector<8x8xf32>, vector<8x8xf32> -> vector<8x8xf32>
    %104 = tpu.concatenate %61, %75, %89, %103 in 1 : vector<8x8xf32>, vector<8x8xf32>, vector<8x8xf32>, vector<8x8xf32> -> vector<8x32xf32>
    %cst_77 = arith.constant dense<0.000000e+00> : vector<8x32xf32>
    %105 = tpu.matmul %104, %4, %cst_77 {dimension_numbers = #tpu.dot_dimension_numbers<[1], [0], [0], [1], [0, 0, 1, 1], [], []>} : vector<8x32xf32>, vector<32x32xf32>, vector<8x32xf32> -> vector<8x32xf32>
    %106 = vector.broadcast %5 : vector<1x32xf32> to vector<8x32xf32>
    %107 = arith.addf %105, %106 : vector<8x32xf32>
    %108 = arith.addf %31, %107 : vector<8x32xf32>
    %cst_78 = arith.constant dense<0.000000e+00> : vector<8xf32>
    %109 = vector.multi_reduction <add>, %108, %cst_78 [1] : vector<8x32xf32> to vector<8xf32>
    %110 = vector.shape_cast %109 : vector<8xf32> to vector<8x1xf32>
    %cst_79 = arith.constant 3.200000e+01 : f32
    %111 = vector.broadcast %cst_79 : f32 to vector<8x1xf32>
    %112 = arith.divf %110, %111 : vector<8x1xf32>
    %113 = vector.broadcast %112 : vector<8x1xf32> to vector<8x32xf32>
    %114 = arith.subf %108, %113 : vector<8x32xf32>
    %115 = arith.mulf %114, %114 : vector<8x32xf32>
    %cst_80 = arith.constant dense<0.000000e+00> : vector<8xf32>
    %116 = vector.multi_reduction <add>, %115, %cst_80 [1] : vector<8x32xf32> to vector<8xf32>
    %117 = vector.shape_cast %116 : vector<8xf32> to vector<8x1xf32>
    %cst_81 = arith.constant 3.200000e+01 : f32
    %118 = vector.broadcast %cst_81 : f32 to vector<8x1xf32>
    %119 = arith.divf %117, %118 : vector<8x1xf32>
    %120 = vector.broadcast %112 : vector<8x1xf32> to vector<8x32xf32>
    %121 = arith.subf %108, %120 : vector<8x32xf32>
    %cst_82 = arith.constant 9.99999974E-6 : f32
    %122 = vector.broadcast %cst_82 : f32 to vector<8x1xf32>
    %123 = arith.addf %119, %122 : vector<8x1xf32>
    %124 = math.rsqrt %123 : vector<8x1xf32>
    %125 = vector.broadcast %124 : vector<8x1xf32> to vector<8x32xf32>
    %126 = arith.mulf %121, %125 : vector<8x32xf32>
    %127 = vector.broadcast %18 : vector<1x32xf32> to vector<8x32xf32>
    %128 = arith.mulf %126, %127 : vector<8x32xf32>
    %129 = vector.broadcast %19 : vector<1x32xf32> to vector<8x32xf32>
    %130 = arith.addf %128, %129 : vector<8x32xf32>
    %131 = vector.extract_strided_slice %26 {offsets = [0, 0, 0], sizes = [8, 1, 32], strides = [1, 1, 1]} : vector<8x2x32xf32> to vector<8x1x32xf32>
    %132 = vector.shape_cast %131 : vector<8x1x32xf32> to vector<8x32xf32>
    %133 = arith.addf %130, %132 : vector<8x32xf32>
    %cst_83 = arith.constant dense<0.000000e+00> : vector<8x32xf32>
    %134 = tpu.matmul %133, %6, %cst_83 {dimension_numbers = #tpu.dot_dimension_numbers<[1], [0], [0], [1], [0, 0, 1, 1], [], []>} : vector<8x32xf32>, vector<32x32xf32>, vector<8x32xf32> -> vector<8x32xf32>
    %135 = vector.broadcast %7 : vector<1x32xf32> to vector<8x32xf32>
    %136 = arith.addf %134, %135 : vector<8x32xf32>
    %cst_84 = arith.constant 0.353553385 : f32
    %137 = vector.broadcast %cst_84 : f32 to vector<8x32xf32>
    %138 = arith.mulf %136, %137 : vector<8x32xf32>
    %cst_85 = arith.constant dense<0.000000e+00> : vector<16x32xf32>
    %139 = tpu.matmul %35, %8, %cst_85 {dimension_numbers = #tpu.dot_dimension_numbers<[1], [0], [0], [1], [0, 0, 1, 1], [], []>} : vector<16x32xf32>, vector<32x32xf32>, vector<16x32xf32> -> vector<16x32xf32>
    %140 = vector.broadcast %9 : vector<1x32xf32> to vector<16x32xf32>
    %141 = arith.addf %139, %140 : vector<16x32xf32>
    %cst_86 = arith.constant dense<0.000000e+00> : vector<16x32xf32>
    %142 = tpu.matmul %33, %10, %cst_86 {dimension_numbers = #tpu.dot_dimension_numbers<[1], [0], [0], [1], [0, 0, 1, 1], [], []>} : vector<16x32xf32>, vector<32x32xf32>, vector<16x32xf32> -> vector<16x32xf32>
    %143 = vector.broadcast %11 : vector<1x32xf32> to vector<16x32xf32>
    %144 = arith.addf %142, %143 : vector<16x32xf32>
    %145 = vector.extract_strided_slice %138 {offsets = [0, 0], sizes = [8, 8], strides = [1, 1]} : vector<8x32xf32> to vector<8x8xf32>
    %146 = vector.extract_strided_slice %141 {offsets = [0, 0], sizes = [16, 8], strides = [1, 1]} : vector<16x32xf32> to vector<16x8xf32>
    %cst_87 = arith.constant dense<0.000000e+00> : vector<8x16xf32>
    %147 = tpu.matmul %145, %146, %cst_87 {dimension_numbers = #tpu.dot_dimension_numbers<[1], [1], [0], [0], [0, 0, 1, 0], [], []>} : vector<8x8xf32>, vector<16x8xf32>, vector<8x16xf32> -> vector<8x16xf32>
    %cst_88 = arith.constant dense<0xFF800000> : vector<8xf32>
    %148 = vector.multi_reduction <maximumf>, %147, %cst_88 [1] : vector<8x16xf32> to vector<8xf32>
    %149 = vector.shape_cast %148 : vector<8xf32> to vector<8x1xf32>
    %150 = vector.broadcast %149 : vector<8x1xf32> to vector<8x16xf32>
    %151 = arith.subf %147, %150 : vector<8x16xf32>
    %152 = math.exp %151 : vector<8x16xf32>
    %cst_89 = arith.constant dense<0.000000e+00> : vector<8xf32>
    %153 = vector.multi_reduction <add>, %152, %cst_89 [1] : vector<8x16xf32> to vector<8xf32>
    %154 = vector.shape_cast %153 : vector<8xf32> to vector<8x1xf32>
    %155 = vector.broadcast %154 : vector<8x1xf32> to vector<8x16xf32>
    %156 = arith.divf %152, %155 : vector<8x16xf32>
    %157 = vector.extract_strided_slice %144 {offsets = [0, 0], sizes = [16, 8], strides = [1, 1]} : vector<16x32xf32> to vector<16x8xf32>
    %cst_90 = arith.constant dense<0.000000e+00> : vector<8x8xf32>
    %158 = tpu.matmul %156, %157, %cst_90 {dimension_numbers = #tpu.dot_dimension_numbers<[1], [0], [0], [1], [0, 0, 1, 1], [], []>} : vector<8x16xf32>, vector<16x8xf32>, vector<8x8xf32> -> vector<8x8xf32>
    %159 = vector.extract_strided_slice %138 {offsets = [0, 8], sizes = [8, 8], strides = [1, 1]} : vector<8x32xf32> to vector<8x8xf32>
    %160 = vector.extract_strided_slice %141 {offsets = [0, 8], sizes = [16, 8], strides = [1, 1]} : vector<16x32xf32> to vector<16x8xf32>
    %cst_91 = arith.constant dense<0.000000e+00> : vector<8x16xf32>
    %161 = tpu.matmul %159, %160, %cst_91 {dimension_numbers = #tpu.dot_dimension_numbers<[1], [1], [0], [0], [0, 0, 1, 0], [], []>} : vector<8x8xf32>, vector<16x8xf32>, vector<8x16xf32> -> vector<8x16xf32>
    %cst_92 = arith.constant dense<0xFF800000> : vector<8xf32>
    %162 = vector.multi_reduction <maximumf>, %161, %cst_92 [1] : vector<8x16xf32> to vector<8xf32>
    %163 = vector.shape_cast %162 : vector<8xf32> to vector<8x1xf32>
    %164 = vector.broadcast %163 : vector<8x1xf32> to vector<8x16xf32>
    %165 = arith.subf %161, %164 : vector<8x16xf32>
    %166 = math.exp %165 : vector<8x16xf32>
    %cst_93 = arith.constant dense<0.000000e+00> : vector<8xf32>
    %167 = vector.multi_reduction <add>, %166, %cst_93 [1] : vector<8x16xf32> to vector<8xf32>
    %168 = vector.shape_cast %167 : vector<8xf32> to vector<8x1xf32>
    %169 = vector.broadcast %168 : vector<8x1xf32> to vector<8x16xf32>
    %170 = arith.divf %166, %169 : vector<8x16xf32>
    %171 = vector.extract_strided_slice %144 {offsets = [0, 8], sizes = [16, 8], strides = [1, 1]} : vector<16x32xf32> to vector<16x8xf32>
    %cst_94 = arith.constant dense<0.000000e+00> : vector<8x8xf32>
    %172 = tpu.matmul %170, %171, %cst_94 {dimension_numbers = #tpu.dot_dimension_numbers<[1], [0], [0], [1], [0, 0, 1, 1], [], []>} : vector<8x16xf32>, vector<16x8xf32>, vector<8x8xf32> -> vector<8x8xf32>
    %173 = vector.extract_strided_slice %138 {offsets = [0, 16], sizes = [8, 8], strides = [1, 1]} : vector<8x32xf32> to vector<8x8xf32>
    %174 = vector.extract_strided_slice %141 {offsets = [0, 16], sizes = [16, 8], strides = [1, 1]} : vector<16x32xf32> to vector<16x8xf32>
    %cst_95 = arith.constant dense<0.000000e+00> : vector<8x16xf32>
    %175 = tpu.matmul %173, %174, %cst_95 {dimension_numbers = #tpu.dot_dimension_numbers<[1], [1], [0], [0], [0, 0, 1, 0], [], []>} : vector<8x8xf32>, vector<16x8xf32>, vector<8x16xf32> -> vector<8x16xf32>
    %cst_96 = arith.constant dense<0xFF800000> : vector<8xf32>
    %176 = vector.multi_reduction <maximumf>, %175, %cst_96 [1] : vector<8x16xf32> to vector<8xf32>
    %177 = vector.shape_cast %176 : vector<8xf32> to vector<8x1xf32>
    %178 = vector.broadcast %177 : vector<8x1xf32> to vector<8x16xf32>
    %179 = arith.subf %175, %178 : vector<8x16xf32>
    %180 = math.exp %179 : vector<8x16xf32>
    %cst_97 = arith.constant dense<0.000000e+00> : vector<8xf32>
    %181 = vector.multi_reduction <add>, %180, %cst_97 [1] : vector<8x16xf32> to vector<8xf32>
    %182 = vector.shape_cast %181 : vector<8xf32> to vector<8x1xf32>
    %183 = vector.broadcast %182 : vector<8x1xf32> to vector<8x16xf32>
    %184 = arith.divf %180, %183 : vector<8x16xf32>
    %185 = vector.extract_strided_slice %144 {offsets = [0, 16], sizes = [16, 8], strides = [1, 1]} : vector<16x32xf32> to vector<16x8xf32>
    %cst_98 = arith.constant dense<0.000000e+00> : vector<8x8xf32>
    %186 = tpu.matmul %184, %185, %cst_98 {dimension_numbers = #tpu.dot_dimension_numbers<[1], [0], [0], [1], [0, 0, 1, 1], [], []>} : vector<8x16xf32>, vector<16x8xf32>, vector<8x8xf32> -> vector<8x8xf32>
    %187 = vector.extract_strided_slice %138 {offsets = [0, 24], sizes = [8, 8], strides = [1, 1]} : vector<8x32xf32> to vector<8x8xf32>
    %188 = vector.extract_strided_slice %141 {offsets = [0, 24], sizes = [16, 8], strides = [1, 1]} : vector<16x32xf32> to vector<16x8xf32>
    %cst_99 = arith.constant dense<0.000000e+00> : vector<8x16xf32>
    %189 = tpu.matmul %187, %188, %cst_99 {dimension_numbers = #tpu.dot_dimension_numbers<[1], [1], [0], [0], [0, 0, 1, 0], [], []>} : vector<8x8xf32>, vector<16x8xf32>, vector<8x16xf32> -> vector<8x16xf32>
    %cst_100 = arith.constant dense<0xFF800000> : vector<8xf32>
    %190 = vector.multi_reduction <maximumf>, %189, %cst_100 [1] : vector<8x16xf32> to vector<8xf32>
    %191 = vector.shape_cast %190 : vector<8xf32> to vector<8x1xf32>
    %192 = vector.broadcast %191 : vector<8x1xf32> to vector<8x16xf32>
    %193 = arith.subf %189, %192 : vector<8x16xf32>
    %194 = math.exp %193 : vector<8x16xf32>
    %cst_101 = arith.constant dense<0.000000e+00> : vector<8xf32>
    %195 = vector.multi_reduction <add>, %194, %cst_101 [1] : vector<8x16xf32> to vector<8xf32>
    %196 = vector.shape_cast %195 : vector<8xf32> to vector<8x1xf32>
    %197 = vector.broadcast %196 : vector<8x1xf32> to vector<8x16xf32>
    %198 = arith.divf %194, %197 : vector<8x16xf32>
    %199 = vector.extract_strided_slice %144 {offsets = [0, 24], sizes = [16, 8], strides = [1, 1]} : vector<16x32xf32> to vector<16x8xf32>
    %cst_102 = arith.constant dense<0.000000e+00> : vector<8x8xf32>
    %200 = tpu.matmul %198, %199, %cst_102 {dimension_numbers = #tpu.dot_dimension_numbers<[1], [0], [0], [1], [0, 0, 1, 1], [], []>} : vector<8x16xf32>, vector<16x8xf32>, vector<8x8xf32> -> vector<8x8xf32>
    %201 = tpu.concatenate %158, %172, %186, %200 in 1 : vector<8x8xf32>, vector<8x8xf32>, vector<8x8xf32>, vector<8x8xf32> -> vector<8x32xf32>
    %cst_103 = arith.constant dense<0.000000e+00> : vector<8x32xf32>
    %202 = tpu.matmul %201, %12, %cst_103 {dimension_numbers = #tpu.dot_dimension_numbers<[1], [0], [0], [1], [0, 0, 1, 1], [], []>} : vector<8x32xf32>, vector<32x32xf32>, vector<8x32xf32> -> vector<8x32xf32>
    %203 = vector.broadcast %13 : vector<1x32xf32> to vector<8x32xf32>
    %204 = arith.addf %202, %203 : vector<8x32xf32>
    %205 = arith.addf %130, %204 : vector<8x32xf32>
    %cst_104 = arith.constant dense<0.000000e+00> : vector<8xf32>
    %206 = vector.multi_reduction <add>, %205, %cst_104 [1] : vector<8x32xf32> to vector<8xf32>
    %207 = vector.shape_cast %206 : vector<8xf32> to vector<8x1xf32>
    %cst_105 = arith.constant 3.200000e+01 : f32
    %208 = vector.broadcast %cst_105 : f32 to vector<8x1xf32>
    %209 = arith.divf %207, %208 : vector<8x1xf32>
    %210 = vector.broadcast %209 : vector<8x1xf32> to vector<8x32xf32>
    %211 = arith.subf %205, %210 : vector<8x32xf32>
    %212 = arith.mulf %211, %211 : vector<8x32xf32>
    %cst_106 = arith.constant dense<0.000000e+00> : vector<8xf32>
    %213 = vector.multi_reduction <add>, %212, %cst_106 [1] : vector<8x32xf32> to vector<8xf32>
    %214 = vector.shape_cast %213 : vector<8xf32> to vector<8x1xf32>
    %cst_107 = arith.constant 3.200000e+01 : f32
    %215 = vector.broadcast %cst_107 : f32 to vector<8x1xf32>
    %216 = arith.divf %214, %215 : vector<8x1xf32>
    %217 = vector.broadcast %209 : vector<8x1xf32> to vector<8x32xf32>
    %218 = arith.subf %205, %217 : vector<8x32xf32>
    %cst_108 = arith.constant 9.99999974E-6 : f32
    %219 = vector.broadcast %cst_108 : f32 to vector<8x1xf32>
    %220 = arith.addf %216, %219 : vector<8x1xf32>
    %221 = math.rsqrt %220 : vector<8x1xf32>
    %222 = vector.broadcast %221 : vector<8x1xf32> to vector<8x32xf32>
    %223 = arith.mulf %218, %222 : vector<8x32xf32>
    %224 = vector.broadcast %20 : vector<1x32xf32> to vector<8x32xf32>
    %225 = arith.mulf %223, %224 : vector<8x32xf32>
    %226 = vector.broadcast %21 : vector<1x32xf32> to vector<8x32xf32>
    %227 = arith.addf %225, %226 : vector<8x32xf32>
    %cst_109 = arith.constant dense<0.000000e+00> : vector<8x64xf32>
    %228 = tpu.matmul %227, %14, %cst_109 {dimension_numbers = #tpu.dot_dimension_numbers<[1], [0], [0], [1], [0, 0, 1, 1], [], []>} : vector<8x32xf32>, vector<32x64xf32>, vector<8x64xf32> -> vector<8x64xf32>
    %229 = vector.broadcast %15 : vector<1x64xf32> to vector<8x64xf32>
    %230 = arith.addf %228, %229 : vector<8x64xf32>
    %cst_110 = arith.constant 0.000000e+00 : f32
    %231 = vector.broadcast %cst_110 : f32 to vector<8x64xf32>
    %232 = arith.maximumf %230, %231 : vector<8x64xf32>
    %cst_111 = arith.constant dense<0.000000e+00> : vector<8x32xf32>
    %233 = tpu.matmul %232, %16, %cst_111 {dimension_numbers = #tpu.dot_dimension_numbers<[1], [0], [0], [1], [0, 0, 1, 1], [], []>} : vector<8x64xf32>, vector<64x32xf32>, vector<8x32xf32> -> vector<8x32xf32>
    %234 = vector.broadcast %17 : vector<1x32xf32> to vector<8x32xf32>
    %235 = arith.addf %233, %234 : vector<8x32xf32>
    %236 = arith.addf %227, %235 : vector<8x32xf32>
    %cst_112 = arith.constant dense<0.000000e+00> : vector<8xf32>
    %237 = vector.multi_reduction <add>, %236, %cst_112 [1] : vector<8x32xf32> to vector<8xf32>
    %238 = vector.shape_cast %237 : vector<8xf32> to vector<8x1xf32>
    %cst_113 = arith.constant 3.200000e+01 : f32
    %239 = vector.broadcast %cst_113 : f32 to vector<8x1xf32>
    %240 = arith.divf %238, %239 : vector<8x1xf32>
    %241 = vector.broadcast %240 : vector<8x1xf32> to vector<8x32xf32>
    %242 = arith.subf %236, %241 : vector<8x32xf32>
    %243 = arith.mulf %242, %242 : vector<8x32xf32>
    %cst_114 = arith.constant dense<0.000000e+00> : vector<8xf32>
    %244 = vector.multi_reduction <add>, %243, %cst_114 [1] : vector<8x32xf32> to vector<8xf32>
    %245 = vector.shape_cast %244 : vector<8xf32> to vector<8x1xf32>
    %cst_115 = arith.constant 3.200000e+01 : f32
    %246 = vector.broadcast %cst_115 : f32 to vector<8x1xf32>
    %247 = arith.divf %245, %246 : vector<8x1xf32>
    %248 = vector.broadcast %240 : vector<8x1xf32> to vector<8x32xf32>
    %249 = arith.subf %236, %248 : vector<8x32xf32>
    %cst_116 = arith.constant 9.99999974E-6 : f32
    %250 = vector.broadcast %cst_116 : f32 to vector<8x1xf32>
    %251 = arith.addf %247, %250 : vector<8x1xf32>
    %252 = math.rsqrt %251 : vector<8x1xf32>
    %253 = vector.broadcast %252 : vector<8x1xf32> to vector<8x32xf32>
    %254 = arith.mulf %249, %253 : vector<8x32xf32>
    %255 = vector.broadcast %22 : vector<1x32xf32> to vector<8x32xf32>
    %256 = arith.mulf %254, %255 : vector<8x32xf32>
    %257 = vector.broadcast %23 : vector<1x32xf32> to vector<8x32xf32>
    %258 = arith.addf %256, %257 : vector<8x32xf32>
    %c0_117 = arith.constant 0 : index
    %c0_118 = arith.constant 0 : index
    %c0_119 = arith.constant 0 : index
    %259 = vector.load %arg29[%c0_117, %c0_118, %c0_119] : memref<8x2x32xf32, #tpu.memory_space<vmem>>, vector<8x1x32xf32>
    %260 = vector.shape_cast %259 : vector<8x1x32xf32> to vector<8x32xf32>
    %261 = vector.shape_cast %258 : vector<8x32xf32> to vector<8x1x32xf32>
    tpu.vector_store %arg29[%c0_117, %c0_118, %c0_119], %261 {strides = array<i32>} : memref<8x2x32xf32, #tpu.memory_space<vmem>>, vector<8x1x32xf32>,
    %262 = vector.extract_strided_slice %24 {offsets = [0, 1, 0], sizes = [8, 1, 32], strides = [1, 1, 1]} : vector<8x2x32xf32> to vector<8x1x32xf32>
    %263 = vector.shape_cast %262 : vector<8x1x32xf32> to vector<8x32xf32>
    %264 = vector.extract_strided_slice %25 {offsets = [0, 1, 0], sizes = [16, 1, 32], strides = [1, 1, 1]} : vector<16x2x32xf32> to vector<16x1x32xf32>
    %265 = vector.shape_cast %264 : vector<16x1x32xf32> to vector<16x32xf32>
    %266 = vector.extract_strided_slice %29 {offsets = [0, 1, 0], sizes = [16, 1, 32], strides = [1, 1, 1]} : vector<16x2x32xf32> to vector<16x1x32xf32>
    %267 = vector.shape_cast %266 : vector<16x1x32xf32> to vector<16x32xf32>
    %268 = vector.extract_strided_slice %27 {offsets = [0, 1, 0], sizes = [8, 1, 32], strides = [1, 1, 1]} : vector<8x2x32xf32> to vector<8x1x32xf32>
    %269 = vector.shape_cast %268 : vector<8x1x32xf32> to vector<8x32xf32>
    %cst_120 = arith.constant dense<0.000000e+00> : vector<8x64xf32>
    %270 = tpu.matmul %269, %0, %cst_120 {dimension_numbers = #tpu.dot_dimension_numbers<[1], [0], [0], [1], [0, 0, 1, 1], [], []>} : vector<8x32xf32>, vector<32x64xf32>, vector<8x64xf32> -> vector<8x64xf32>
    %271 = vector.broadcast %1 : vector<1x64xf32> to vector<8x64xf32>
    %272 = arith.addf %270, %271 : vector<8x64xf32>
    %273 = vector.extract_strided_slice %272 {offsets = [0, 0], sizes = [8, 32], strides = [1, 1]} : vector<8x64xf32> to vector<8x32xf32>
    %cst_121 = arith.constant 0.353553385 : f32
    %274 = vector.broadcast %cst_121 : f32 to vector<8x32xf32>
    %275 = arith.mulf %273, %274 : vector<8x32xf32>
    %276 = vector.extract_strided_slice %272 {offsets = [0, 32], sizes = [8, 32], strides = [1, 1]} : vector<8x64xf32> to vector<8x32xf32>
    %cst_122 = arith.constant dense<0.000000e+00> : vector<8x32xf32>
    %277 = tpu.matmul %263, %2, %cst_122 {dimension_numbers = #tpu.dot_dimension_numbers<[1], [0], [0], [1], [0, 0, 1, 1], [], []>} : vector<8x32xf32>, vector<32x32xf32>, vector<8x32xf32> -> vector<8x32xf32>
    %278 = vector.broadcast %3 : vector<1x32xf32> to vector<8x32xf32>
    %279 = arith.addf %277, %278 : vector<8x32xf32>
    %280 = vector.extract_strided_slice %275 {offsets = [0, 0], sizes = [8, 8], strides = [1, 1]} : vector<8x32xf32> to vector<8x8xf32>
    %281 = vector.extract_strided_slice %276 {offsets = [0, 0], sizes = [8, 8], strides = [1, 1]} : vector<8x32xf32> to vector<8x8xf32>
    %cst_123 = arith.constant dense<0.000000e+00> : vector<8x8xf32>
    %282 = tpu.matmul %280, %281, %cst_123 {dimension_numbers = #tpu.dot_dimension_numbers<[1], [1], [0], [0], [0, 0, 1, 0], [], []>} : vector<8x8xf32>, vector<8x8xf32>, vector<8x8xf32> -> vector<8x8xf32>
    %cst_124 = arith.constant dense<0xFF800000> : vector<8xf32>
    %283 = vector.multi_reduction <maximumf>, %282, %cst_124 [1] : vector<8x8xf32> to vector<8xf32>
    %284 = vector.shape_cast %283 : vector<8xf32> to vector<8x1xf32>
    %285 = vector.broadcast %284 : vector<8x1xf32> to vector<8x8xf32>
    %286 = arith.subf %282, %285 : vector<8x8xf32>
    %287 = math.exp %286 : vector<8x8xf32>
    %cst_125 = arith.constant dense<0.000000e+00> : vector<8xf32>
    %288 = vector.multi_reduction <add>, %287, %cst_125 [1] : vector<8x8xf32> to vector<8xf32>
    %289 = vector.shape_cast %288 : vector<8xf32> to vector<8x1xf32>
    %290 = vector.broadcast %289 : vector<8x1xf32> to vector<8x8xf32>
    %291 = arith.divf %287, %290 : vector<8x8xf32>
    %292 = vector.extract_strided_slice %279 {offsets = [0, 0], sizes = [8, 8], strides = [1, 1]} : vector<8x32xf32> to vector<8x8xf32>
    %cst_126 = arith.constant dense<0.000000e+00> : vector<8x8xf32>
    %293 = tpu.matmul %291, %292, %cst_126 {dimension_numbers = #tpu.dot_dimension_numbers<[1], [0], [0], [1], [0, 0, 1, 1], [], []>} : vector<8x8xf32>, vector<8x8xf32>, vector<8x8xf32> -> vector<8x8xf32>
    %294 = vector.extract_strided_slice %275 {offsets = [0, 8], sizes = [8, 8], strides = [1, 1]} : vector<8x32xf32> to vector<8x8xf32>
    %295 = vector.extract_strided_slice %276 {offsets = [0, 8], sizes = [8, 8], strides = [1, 1]} : vector<8x32xf32> to vector<8x8xf32>
    %cst_127 = arith.constant dense<0.000000e+00> : vector<8x8xf32>
    %296 = tpu.matmul %294, %295, %cst_127 {dimension_numbers = #tpu.dot_dimension_numbers<[1], [1], [0], [0], [0, 0, 1, 0], [], []>} : vector<8x8xf32>, vector<8x8xf32>, vector<8x8xf32> -> vector<8x8xf32>
    %cst_128 = arith.constant dense<0xFF800000> : vector<8xf32>
    %297 = vector.multi_reduction <maximumf>, %296, %cst_128 [1] : vector<8x8xf32> to vector<8xf32>
    %298 = vector.shape_cast %297 : vector<8xf32> to vector<8x1xf32>
    %299 = vector.broadcast %298 : vector<8x1xf32> to vector<8x8xf32>
    %300 = arith.subf %296, %299 : vector<8x8xf32>
    %301 = math.exp %300 : vector<8x8xf32>
    %cst_129 = arith.constant dense<0.000000e+00> : vector<8xf32>
    %302 = vector.multi_reduction <add>, %301, %cst_129 [1] : vector<8x8xf32> to vector<8xf32>
    %303 = vector.shape_cast %302 : vector<8xf32> to vector<8x1xf32>
    %304 = vector.broadcast %303 : vector<8x1xf32> to vector<8x8xf32>
    %305 = arith.divf %301, %304 : vector<8x8xf32>
    %306 = vector.extract_strided_slice %279 {offsets = [0, 8], sizes = [8, 8], strides = [1, 1]} : vector<8x32xf32> to vector<8x8xf32>
    %cst_130 = arith.constant dense<0.000000e+00> : vector<8x8xf32>
    %307 = tpu.matmul %305, %306, %cst_130 {dimension_numbers = #tpu.dot_dimension_numbers<[1], [0], [0], [1], [0, 0, 1, 1], [], []>} : vector<8x8xf32>, vector<8x8xf32>, vector<8x8xf32> -> vector<8x8xf32>
    %308 = vector.extract_strided_slice %275 {offsets = [0, 16], sizes = [8, 8], strides = [1, 1]} : vector<8x32xf32> to vector<8x8xf32>
    %309 = vector.extract_strided_slice %276 {offsets = [0, 16], sizes = [8, 8], strides = [1, 1]} : vector<8x32xf32> to vector<8x8xf32>
    %cst_131 = arith.constant dense<0.000000e+00> : vector<8x8xf32>
    %310 = tpu.matmul %308, %309, %cst_131 {dimension_numbers = #tpu.dot_dimension_numbers<[1], [1], [0], [0], [0, 0, 1, 0], [], []>} : vector<8x8xf32>, vector<8x8xf32>, vector<8x8xf32> -> vector<8x8xf32>
    %cst_132 = arith.constant dense<0xFF800000> : vector<8xf32>
    %311 = vector.multi_reduction <maximumf>, %310, %cst_132 [1] : vector<8x8xf32> to vector<8xf32>
    %312 = vector.shape_cast %311 : vector<8xf32> to vector<8x1xf32>
    %313 = vector.broadcast %312 : vector<8x1xf32> to vector<8x8xf32>
    %314 = arith.subf %310, %313 : vector<8x8xf32>
    %315 = math.exp %314 : vector<8x8xf32>
    %cst_133 = arith.constant dense<0.000000e+00> : vector<8xf32>
    %316 = vector.multi_reduction <add>, %315, %cst_133 [1] : vector<8x8xf32> to vector<8xf32>
    %317 = vector.shape_cast %316 : vector<8xf32> to vector<8x1xf32>
    %318 = vector.broadcast %317 : vector<8x1xf32> to vector<8x8xf32>
    %319 = arith.divf %315, %318 : vector<8x8xf32>
    %320 = vector.extract_strided_slice %279 {offsets = [0, 16], sizes = [8, 8], strides = [1, 1]} : vector<8x32xf32> to vector<8x8xf32>
    %cst_134 = arith.constant dense<0.000000e+00> : vector<8x8xf32>
    %321 = tpu.matmul %319, %320, %cst_134 {dimension_numbers = #tpu.dot_dimension_numbers<[1], [0], [0], [1], [0, 0, 1, 1], [], []>} : vector<8x8xf32>, vector<8x8xf32>, vector<8x8xf32> -> vector<8x8xf32>
    %322 = vector.extract_strided_slice %275 {offsets = [0, 24], sizes = [8, 8], strides = [1, 1]} : vector<8x32xf32> to vector<8x8xf32>
    %323 = vector.extract_strided_slice %276 {offsets = [0, 24], sizes = [8, 8], strides = [1, 1]} : vector<8x32xf32> to vector<8x8xf32>
    %cst_135 = arith.constant dense<0.000000e+00> : vector<8x8xf32>
    %324 = tpu.matmul %322, %323, %cst_135 {dimension_numbers = #tpu.dot_dimension_numbers<[1], [1], [0], [0], [0, 0, 1, 0], [], []>} : vector<8x8xf32>, vector<8x8xf32>, vector<8x8xf32> -> vector<8x8xf32>
    %cst_136 = arith.constant dense<0xFF800000> : vector<8xf32>
    %325 = vector.multi_reduction <maximumf>, %324, %cst_136 [1] : vector<8x8xf32> to vector<8xf32>
    %326 = vector.shape_cast %325 : vector<8xf32> to vector<8x1xf32>
    %327 = vector.broadcast %326 : vector<8x1xf32> to vector<8x8xf32>
    %328 = arith.subf %324, %327 : vector<8x8xf32>
    %329 = math.exp %328 : vector<8x8xf32>
    %cst_137 = arith.constant dense<0.000000e+00> : vector<8xf32>
    %330 = vector.multi_reduction <add>, %329, %cst_137 [1] : vector<8x8xf32> to vector<8xf32>
    %331 = vector.shape_cast %330 : vector<8xf32> to vector<8x1xf32>
    %332 = vector.broadcast %331 : vector<8x1xf32> to vector<8x8xf32>
    %333 = arith.divf %329, %332 : vector<8x8xf32>
    %334 = vector.extract_strided_slice %279 {offsets = [0, 24], sizes = [8, 8], strides = [1, 1]} : vector<8x32xf32> to vector<8x8xf32>
    %cst_138 = arith.constant dense<0.000000e+00> : vector<8x8xf32>
    %335 = tpu.matmul %333, %334, %cst_138 {dimension_numbers = #tpu.dot_dimension_numbers<[1], [0], [0], [1], [0, 0, 1, 1], [], []>} : vector<8x8xf32>, vector<8x8xf32>, vector<8x8xf32> -> vector<8x8xf32>
    %336 = tpu.concatenate %293, %307, %321, %335 in 1 : vector<8x8xf32>, vector<8x8xf32>, vector<8x8xf32>, vector<8x8xf32> -> vector<8x32xf32>
    %cst_139 = arith.constant dense<0.000000e+00> : vector<8x32xf32>
    %337 = tpu.matmul %336, %4, %cst_139 {dimension_numbers = #tpu.dot_dimension_numbers<[1], [0], [0], [1], [0, 0, 1, 1], [], []>} : vector<8x32xf32>, vector<32x32xf32>, vector<8x32xf32> -> vector<8x32xf32>
    %338 = vector.broadcast %5 : vector<1x32xf32> to vector<8x32xf32>
    %339 = arith.addf %337, %338 : vector<8x32xf32>
    %340 = arith.addf %263, %339 : vector<8x32xf32>
    %cst_140 = arith.constant dense<0.000000e+00> : vector<8xf32>
    %341 = vector.multi_reduction <add>, %340, %cst_140 [1] : vector<8x32xf32> to vector<8xf32>
    %342 = vector.shape_cast %341 : vector<8xf32> to vector<8x1xf32>
    %cst_141 = arith.constant 3.200000e+01 : f32
    %343 = vector.broadcast %cst_141 : f32 to vector<8x1xf32>
    %344 = arith.divf %342, %343 : vector<8x1xf32>
    %345 = vector.broadcast %344 : vector<8x1xf32> to vector<8x32xf32>
    %346 = arith.subf %340, %345 : vector<8x32xf32>
    %347 = arith.mulf %346, %346 : vector<8x32xf32>
    %cst_142 = arith.constant dense<0.000000e+00> : vector<8xf32>
    %348 = vector.multi_reduction <add>, %347, %cst_142 [1] : vector<8x32xf32> to vector<8xf32>
    %349 = vector.shape_cast %348 : vector<8xf32> to vector<8x1xf32>
    %cst_143 = arith.constant 3.200000e+01 : f32
    %350 = vector.broadcast %cst_143 : f32 to vector<8x1xf32>
    %351 = arith.divf %349, %350 : vector<8x1xf32>
    %352 = vector.broadcast %344 : vector<8x1xf32> to vector<8x32xf32>
    %353 = arith.subf %340, %352 : vector<8x32xf32>
    %cst_144 = arith.constant 9.99999974E-6 : f32
    %354 = vector.broadcast %cst_144 : f32 to vector<8x1xf32>
    %355 = arith.addf %351, %354 : vector<8x1xf32>
    %356 = math.rsqrt %355 : vector<8x1xf32>
    %357 = vector.broadcast %356 : vector<8x1xf32> to vector<8x32xf32>
    %358 = arith.mulf %353, %357 : vector<8x32xf32>
    %359 = vector.broadcast %18 : vector<1x32xf32> to vector<8x32xf32>
    %360 = arith.mulf %358, %359 : vector<8x32xf32>
    %361 = vector.broadcast %19 : vector<1x32xf32> to vector<8x32xf32>
    %362 = arith.addf %360, %361 : vector<8x32xf32>
    %363 = vector.extract_strided_slice %26 {offsets = [0, 1, 0], sizes = [8, 1, 32], strides = [1, 1, 1]} : vector<8x2x32xf32> to vector<8x1x32xf32>
    %364 = vector.shape_cast %363 : vector<8x1x32xf32> to vector<8x32xf32>
    %365 = arith.addf %362, %364 : vector<8x32xf32>
    %cst_145 = arith.constant dense<0.000000e+00> : vector<8x32xf32>
    %366 = tpu.matmul %365, %6, %cst_145 {dimension_numbers = #tpu.dot_dimension_numbers<[1], [0], [0], [1], [0, 0, 1, 1], [], []>} : vector<8x32xf32>, vector<32x32xf32>, vector<8x32xf32> -> vector<8x32xf32>
    %367 = vector.broadcast %7 : vector<1x32xf32> to vector<8x32xf32>
    %368 = arith.addf %366, %367 : vector<8x32xf32>
    %cst_146 = arith.constant 0.353553385 : f32
    %369 = vector.broadcast %cst_146 : f32 to vector<8x32xf32>
    %370 = arith.mulf %368, %369 : vector<8x32xf32>
    %cst_147 = arith.constant dense<0.000000e+00> : vector<16x32xf32>
    %371 = tpu.matmul %267, %8, %cst_147 {dimension_numbers = #tpu.dot_dimension_numbers<[1], [0], [0], [1], [0, 0, 1, 1], [], []>} : vector<16x32xf32>, vector<32x32xf32>, vector<16x32xf32> -> vector<16x32xf32>
    %372 = vector.broadcast %9 : vector<1x32xf32> to vector<16x32xf32>
    %373 = arith.addf %371, %372 : vector<16x32xf32>
    %cst_148 = arith.constant dense<0.000000e+00> : vector<16x32xf32>
    %374 = tpu.matmul %265, %10, %cst_148 {dimension_numbers = #tpu.dot_dimension_numbers<[1], [0], [0], [1], [0, 0, 1, 1], [], []>} : vector<16x32xf32>, vector<32x32xf32>, vector<16x32xf32> -> vector<16x32xf32>
    %375 = vector.broadcast %11 : vector<1x32xf32> to vector<16x32xf32>
    %376 = arith.addf %374, %375 : vector<16x32xf32>
    %377 = vector.extract_strided_slice %370 {offsets = [0, 0], sizes = [8, 8], strides = [1, 1]} : vector<8x32xf32> to vector<8x8xf32>
    %378 = vector.extract_strided_slice %373 {offsets = [0, 0], sizes = [16, 8], strides = [1, 1]} : vector<16x32xf32> to vector<16x8xf32>
    %cst_149 = arith.constant dense<0.000000e+00> : vector<8x16xf32>
    %379 = tpu.matmul %377, %378, %cst_149 {dimension_numbers = #tpu.dot_dimension_numbers<[1], [1], [0], [0], [0, 0, 1, 0], [], []>} : vector<8x8xf32>, vector<16x8xf32>, vector<8x16xf32> -> vector<8x16xf32>
    %cst_150 = arith.constant dense<0xFF800000> : vector<8xf32>
    %380 = vector.multi_reduction <maximumf>, %379, %cst_150 [1] : vector<8x16xf32> to vector<8xf32>
    %381 = vector.shape_cast %380 : vector<8xf32> to vector<8x1xf32>
    %382 = vector.broadcast %381 : vector<8x1xf32> to vector<8x16xf32>
    %383 = arith.subf %379, %382 : vector<8x16xf32>
    %384 = math.exp %383 : vector<8x16xf32>
    %cst_151 = arith.constant dense<0.000000e+00> : vector<8xf32>
    %385 = vector.multi_reduction <add>, %384, %cst_151 [1] : vector<8x16xf32> to vector<8xf32>
    %386 = vector.shape_cast %385 : vector<8xf32> to vector<8x1xf32>
    %387 = vector.broadcast %386 : vector<8x1xf32> to vector<8x16xf32>
    %388 = arith.divf %384, %387 : vector<8x16xf32>
    %389 = vector.extract_strided_slice %376 {offsets = [0, 0], sizes = [16, 8], strides = [1, 1]} : vector<16x32xf32> to vector<16x8xf32>
    %cst_152 = arith.constant dense<0.000000e+00> : vector<8x8xf32>
    %390 = tpu.matmul %388, %389, %cst_152 {dimension_numbers = #tpu.dot_dimension_numbers<[1], [0], [0], [1], [0, 0, 1, 1], [], []>} : vector<8x16xf32>, vector<16x8xf32>, vector<8x8xf32> -> vector<8x8xf32>
    %391 = vector.extract_strided_slice %370 {offsets = [0, 8], sizes = [8, 8], strides = [1, 1]} : vector<8x32xf32> to vector<8x8xf32>
    %392 = vector.extract_strided_slice %373 {offsets = [0, 8], sizes = [16, 8], strides = [1, 1]} : vector<16x32xf32> to vector<16x8xf32>
    %cst_153 = arith.constant dense<0.000000e+00> : vector<8x16xf32>
    %393 = tpu.matmul %391, %392, %cst_153 {dimension_numbers = #tpu.dot_dimension_numbers<[1], [1], [0], [0], [0, 0, 1, 0], [], []>} : vector<8x8xf32>, vector<16x8xf32>, vector<8x16xf32> -> vector<8x16xf32>
    %cst_154 = arith.constant dense<0xFF800000> : vector<8xf32>
    %394 = vector.multi_reduction <maximumf>, %393, %cst_154 [1] : vector<8x16xf32> to vector<8xf32>
    %395 = vector.shape_cast %394 : vector<8xf32> to vector<8x1xf32>
    %396 = vector.broadcast %395 : vector<8x1xf32> to vector<8x16xf32>
    %397 = arith.subf %393, %396 : vector<8x16xf32>
    %398 = math.exp %397 : vector<8x16xf32>
    %cst_155 = arith.constant dense<0.000000e+00> : vector<8xf32>
    %399 = vector.multi_reduction <add>, %398, %cst_155 [1] : vector<8x16xf32> to vector<8xf32>
    %400 = vector.shape_cast %399 : vector<8xf32> to vector<8x1xf32>
    %401 = vector.broadcast %400 : vector<8x1xf32> to vector<8x16xf32>
    %402 = arith.divf %398, %401 : vector<8x16xf32>
    %403 = vector.extract_strided_slice %376 {offsets = [0, 8], sizes = [16, 8], strides = [1, 1]} : vector<16x32xf32> to vector<16x8xf32>
    %cst_156 = arith.constant dense<0.000000e+00> : vector<8x8xf32>
    %404 = tpu.matmul %402, %403, %cst_156 {dimension_numbers = #tpu.dot_dimension_numbers<[1], [0], [0], [1], [0, 0, 1, 1], [], []>} : vector<8x16xf32>, vector<16x8xf32>, vector<8x8xf32> -> vector<8x8xf32>
    %405 = vector.extract_strided_slice %370 {offsets = [0, 16], sizes = [8, 8], strides = [1, 1]} : vector<8x32xf32> to vector<8x8xf32>
    %406 = vector.extract_strided_slice %373 {offsets = [0, 16], sizes = [16, 8], strides = [1, 1]} : vector<16x32xf32> to vector<16x8xf32>
    %cst_157 = arith.constant dense<0.000000e+00> : vector<8x16xf32>
    %407 = tpu.matmul %405, %406, %cst_157 {dimension_numbers = #tpu.dot_dimension_numbers<[1], [1], [0], [0], [0, 0, 1, 0], [], []>} : vector<8x8xf32>, vector<16x8xf32>, vector<8x16xf32> -> vector<8x16xf32>
    %cst_158 = arith.constant dense<0xFF800000> : vector<8xf32>
    %408 = vector.multi_reduction <maximumf>, %407, %cst_158 [1] : vector<8x16xf32> to vector<8xf32>
    %409 = vector.shape_cast %408 : vector<8xf32> to vector<8x1xf32>
    %410 = vector.broadcast %409 : vector<8x1xf32> to vector<8x16xf32>
    %411 = arith.subf %407, %410 : vector<8x16xf32>
    %412 = math.exp %411 : vector<8x16xf32>
    %cst_159 = arith.constant dense<0.000000e+00> : vector<8xf32>
    %413 = vector.multi_reduction <add>, %412, %cst_159 [1] : vector<8x16xf32> to vector<8xf32>
    %414 = vector.shape_cast %413 : vector<8xf32> to vector<8x1xf32>
    %415 = vector.broadcast %414 : vector<8x1xf32> to vector<8x16xf32>
    %416 = arith.divf %412, %415 : vector<8x16xf32>
    %417 = vector.extract_strided_slice %376 {offsets = [0, 16], sizes = [16, 8], strides = [1, 1]} : vector<16x32xf32> to vector<16x8xf32>
    %cst_160 = arith.constant dense<0.000000e+00> : vector<8x8xf32>
    %418 = tpu.matmul %416, %417, %cst_160 {dimension_numbers = #tpu.dot_dimension_numbers<[1], [0], [0], [1], [0, 0, 1, 1], [], []>} : vector<8x16xf32>, vector<16x8xf32>, vector<8x8xf32> -> vector<8x8xf32>
    %419 = vector.extract_strided_slice %370 {offsets = [0, 24], sizes = [8, 8], strides = [1, 1]} : vector<8x32xf32> to vector<8x8xf32>
    %420 = vector.extract_strided_slice %373 {offsets = [0, 24], sizes = [16, 8], strides = [1, 1]} : vector<16x32xf32> to vector<16x8xf32>
    %cst_161 = arith.constant dense<0.000000e+00> : vector<8x16xf32>
    %421 = tpu.matmul %419, %420, %cst_161 {dimension_numbers = #tpu.dot_dimension_numbers<[1], [1], [0], [0], [0, 0, 1, 0], [], []>} : vector<8x8xf32>, vector<16x8xf32>, vector<8x16xf32> -> vector<8x16xf32>
    %cst_162 = arith.constant dense<0xFF800000> : vector<8xf32>
    %422 = vector.multi_reduction <maximumf>, %421, %cst_162 [1] : vector<8x16xf32> to vector<8xf32>
    %423 = vector.shape_cast %422 : vector<8xf32> to vector<8x1xf32>
    %424 = vector.broadcast %423 : vector<8x1xf32> to vector<8x16xf32>
    %425 = arith.subf %421, %424 : vector<8x16xf32>
    %426 = math.exp %425 : vector<8x16xf32>
    %cst_163 = arith.constant dense<0.000000e+00> : vector<8xf32>
    %427 = vector.multi_reduction <add>, %426, %cst_163 [1] : vector<8x16xf32> to vector<8xf32>
    %428 = vector.shape_cast %427 : vector<8xf32> to vector<8x1xf32>
    %429 = vector.broadcast %428 : vector<8x1xf32> to vector<8x16xf32>
    %430 = arith.divf %426, %429 : vector<8x16xf32>
    %431 = vector.extract_strided_slice %376 {offsets = [0, 24], sizes = [16, 8], strides = [1, 1]} : vector<16x32xf32> to vector<16x8xf32>
    %cst_164 = arith.constant dense<0.000000e+00> : vector<8x8xf32>
    %432 = tpu.matmul %430, %431, %cst_164 {dimension_numbers = #tpu.dot_dimension_numbers<[1], [0], [0], [1], [0, 0, 1, 1], [], []>} : vector<8x16xf32>, vector<16x8xf32>, vector<8x8xf32> -> vector<8x8xf32>
    %433 = tpu.concatenate %390, %404, %418, %432 in 1 : vector<8x8xf32>, vector<8x8xf32>, vector<8x8xf32>, vector<8x8xf32> -> vector<8x32xf32>
    %cst_165 = arith.constant dense<0.000000e+00> : vector<8x32xf32>
    %434 = tpu.matmul %433, %12, %cst_165 {dimension_numbers = #tpu.dot_dimension_numbers<[1], [0], [0], [1], [0, 0, 1, 1], [], []>} : vector<8x32xf32>, vector<32x32xf32>, vector<8x32xf32> -> vector<8x32xf32>
    %435 = vector.broadcast %13 : vector<1x32xf32> to vector<8x32xf32>
    %436 = arith.addf %434, %435 : vector<8x32xf32>
    %437 = arith.addf %362, %436 : vector<8x32xf32>
    %cst_166 = arith.constant dense<0.000000e+00> : vector<8xf32>
    %438 = vector.multi_reduction <add>, %437, %cst_166 [1] : vector<8x32xf32> to vector<8xf32>
    %439 = vector.shape_cast %438 : vector<8xf32> to vector<8x1xf32>
    %cst_167 = arith.constant 3.200000e+01 : f32
    %440 = vector.broadcast %cst_167 : f32 to vector<8x1xf32>
    %441 = arith.divf %439, %440 : vector<8x1xf32>
    %442 = vector.broadcast %441 : vector<8x1xf32> to vector<8x32xf32>
    %443 = arith.subf %437, %442 : vector<8x32xf32>
    %444 = arith.mulf %443, %443 : vector<8x32xf32>
    %cst_168 = arith.constant dense<0.000000e+00> : vector<8xf32>
    %445 = vector.multi_reduction <add>, %444, %cst_168 [1] : vector<8x32xf32> to vector<8xf32>
    %446 = vector.shape_cast %445 : vector<8xf32> to vector<8x1xf32>
    %cst_169 = arith.constant 3.200000e+01 : f32
    %447 = vector.broadcast %cst_169 : f32 to vector<8x1xf32>
    %448 = arith.divf %446, %447 : vector<8x1xf32>
    %449 = vector.broadcast %441 : vector<8x1xf32> to vector<8x32xf32>
    %450 = arith.subf %437, %449 : vector<8x32xf32>
    %cst_170 = arith.constant 9.99999974E-6 : f32
    %451 = vector.broadcast %cst_170 : f32 to vector<8x1xf32>
    %452 = arith.addf %448, %451 : vector<8x1xf32>
    %453 = math.rsqrt %452 : vector<8x1xf32>
    %454 = vector.broadcast %453 : vector<8x1xf32> to vector<8x32xf32>
    %455 = arith.mulf %450, %454 : vector<8x32xf32>
    %456 = vector.broadcast %20 : vector<1x32xf32> to vector<8x32xf32>
    %457 = arith.mulf %455, %456 : vector<8x32xf32>
    %458 = vector.broadcast %21 : vector<1x32xf32> to vector<8x32xf32>
    %459 = arith.addf %457, %458 : vector<8x32xf32>
    %cst_171 = arith.constant dense<0.000000e+00> : vector<8x64xf32>
    %460 = tpu.matmul %459, %14, %cst_171 {dimension_numbers = #tpu.dot_dimension_numbers<[1], [0], [0], [1], [0, 0, 1, 1], [], []>} : vector<8x32xf32>, vector<32x64xf32>, vector<8x64xf32> -> vector<8x64xf32>
    %461 = vector.broadcast %15 : vector<1x64xf32> to vector<8x64xf32>
    %462 = arith.addf %460, %461 : vector<8x64xf32>
    %cst_172 = arith.constant 0.000000e+00 : f32
    %463 = vector.broadcast %cst_172 : f32 to vector<8x64xf32>
    %464 = arith.maximumf %462, %463 : vector<8x64xf32>
    %cst_173 = arith.constant dense<0.000000e+00> : vector<8x32xf32>
    %465 = tpu.matmul %464, %16, %cst_173 {dimension_numbers = #tpu.dot_dimension_numbers<[1], [0], [0], [1], [0, 0, 1, 1], [], []>} : vector<8x64xf32>, vector<64x32xf32>, vector<8x32xf32> -> vector<8x32xf32>
    %466 = vector.broadcast %17 : vector<1x32xf32> to vector<8x32xf32>
    %467 = arith.addf %465, %466 : vector<8x32xf32>
    %468 = arith.addf %459, %467 : vector<8x32xf32>
    %cst_174 = arith.constant dense<0.000000e+00> : vector<8xf32>
    %469 = vector.multi_reduction <add>, %468, %cst_174 [1] : vector<8x32xf32> to vector<8xf32>
    %470 = vector.shape_cast %469 : vector<8xf32> to vector<8x1xf32>
    %cst_175 = arith.constant 3.200000e+01 : f32
    %471 = vector.broadcast %cst_175 : f32 to vector<8x1xf32>
    %472 = arith.divf %470, %471 : vector<8x1xf32>
    %473 = vector.broadcast %472 : vector<8x1xf32> to vector<8x32xf32>
    %474 = arith.subf %468, %473 : vector<8x32xf32>
    %475 = arith.mulf %474, %474 : vector<8x32xf32>
    %cst_176 = arith.constant dense<0.000000e+00> : vector<8xf32>
    %476 = vector.multi_reduction <add>, %475, %cst_176 [1] : vector<8x32xf32> to vector<8xf32>
    %477 = vector.shape_cast %476 : vector<8xf32> to vector<8x1xf32>
    %cst_177 = arith.constant 3.200000e+01 : f32
    %478 = vector.broadcast %cst_177 : f32 to vector<8x1xf32>
    %479 = arith.divf %477, %478 : vector<8x1xf32>
    %480 = vector.broadcast %472 : vector<8x1xf32> to vector<8x32xf32>
    %481 = arith.subf %468, %480 : vector<8x32xf32>
    %cst_178 = arith.constant 9.99999974E-6 : f32
    %482 = vector.broadcast %cst_178 : f32 to vector<8x1xf32>
    %483 = arith.addf %479, %482 : vector<8x1xf32>
    %484 = math.rsqrt %483 : vector<8x1xf32>
    %485 = vector.broadcast %484 : vector<8x1xf32> to vector<8x32xf32>
    %486 = arith.mulf %481, %485 : vector<8x32xf32>
    %487 = vector.broadcast %22 : vector<1x32xf32> to vector<8x32xf32>
    %488 = arith.mulf %486, %487 : vector<8x32xf32>
    %489 = vector.broadcast %23 : vector<1x32xf32> to vector<8x32xf32>
    %490 = arith.addf %488, %489 : vector<8x32xf32>
    %c0_179 = arith.constant 0 : index
    %c1 = arith.constant 1 : index
    %c0_180 = arith.constant 0 : index
    %491 = vector.load %arg29[%c0_179, %c1, %c0_180] : memref<8x2x32xf32, #tpu.memory_space<vmem>>, vector<8x1x32xf32>
    %492 = vector.shape_cast %491 : vector<8x1x32xf32> to vector<8x32xf32>
    %493 = vector.shape_cast %490 : vector<8x32xf32> to vector<8x1x32xf32>
    tpu.vector_store %arg29[%c0_179, %c1, %c0_180], %493 {strides = array<i32>} : memref<8x2x32xf32, #tpu.memory_space<vmem>>, vector<8x1x32xf32>,
    return
  }
  func.func @transform_0(%arg0: i32) -> (i32, i32, i32) {
    %c0_i32 = arith.constant 0 : i32
    %c0_i32_0 = arith.constant 0 : i32
    %c0_i32_1 = arith.constant 0 : i32
    return %c0_i32, %arg0, %c0_i32_0 : i32, i32, i32
  }
  func.func @transform_1(%arg0: i32) -> (i32, i32, i32) {
    %c0_i32 = arith.constant 0 : i32
    %c0_i32_0 = arith.constant 0 : i32
    %c0_i32_1 = arith.constant 0 : i32
    return %c0_i32, %arg0, %c0_i32_0 : i32, i32, i32
  }
  func.func @transform_2(%arg0: i32) -> (i32, i32, i32) {
    %c0_i32 = arith.constant 0 : i32
    %c0_i32_0 = arith.constant 0 : i32
    %c0_i32_1 = arith.constant 0 : i32
    return %c0_i32, %arg0, %c0_i32_0 : i32, i32, i32
  }
  func.func @transform_3(%arg0: i32) -> (i32, i32, i32) {
    %c0_i32 = arith.constant 0 : i32
    %c0_i32_0 = arith.constant 0 : i32
    %c0_i32_1 = arith.constant 0 : i32
    return %c0_i32, %arg0, %c0_i32_0 : i32, i32, i32
  }
  func.func @transform_4(%arg0: i32) -> (i32, i32) {
    %c0_i32 = arith.constant 0 : i32
    %c0_i32_0 = arith.constant 0 : i32
    %c0_i32_1 = arith.constant 0 : i32
    return %c0_i32, %c0_i32_0 : i32, i32
  }
  func.func @transform_5(%arg0: i32) -> (i32, i32) {
    %c0_i32 = arith.constant 0 : i32
    %c0_i32_0 = arith.constant 0 : i32
    %c0_i32_1 = arith.constant 0 : i32
    return %c0_i32, %c0_i32_0 : i32, i32
  }
  func.func @transform_6(%arg0: i32) -> (i32, i32) {
    %c0_i32 = arith.constant 0 : i32
    %c0_i32_0 = arith.constant 0 : i32
    %c0_i32_1 = arith.constant 0 : i32
    return %c0_i32, %c0_i32_0 : i32, i32
  }
  func.func @transform_7(%arg0: i32) -> (i32, i32) {
    %c0_i32 = arith.constant 0 : i32
    %c0_i32_0 = arith.constant 0 : i32
    %c0_i32_1 = arith.constant 0 : i32
    return %c0_i32, %c0_i32_0 : i32, i32
  }
  func.func @transform_8(%arg0: i32) -> (i32, i32) {
    %c0_i32 = arith.constant 0 : i32
    %c0_i32_0 = arith.constant 0 : i32
    %c0_i32_1 = arith.constant 0 : i32
    return %c0_i32, %c0_i32_0 : i32, i32
  }
  func.func @transform_9(%arg0: i32) -> (i32, i32) {
    %c0_i32 = arith.constant 0 : i32
    %c0_i32_0 = arith.constant 0 : i32
    %c0_i32_1 = arith.constant 0 : i32
    return %c0_i32, %c0_i32_0 : i32, i32
  }
  func.func @transform_10(%arg0: i32) -> (i32, i32) {
    %c0_i32 = arith.constant 0 : i32
    %c0_i32_0 = arith.constant 0 : i32
    %c0_i32_1 = arith.constant 0 : i32
    return %c0_i32, %c0_i32_0 : i32, i32
  }
  func.func @transform_11(%arg0: i32) -> (i32, i32) {
    %c0_i32 = arith.constant 0 : i32
    %c0_i32_0 = arith.constant 0 : i32
    %c0_i32_1 = arith.constant 0 : i32
    return %c0_i32, %c0_i32_0 : i32, i32
  }
  func.func @transform_12(%arg0: i32) -> (i32, i32) {
    %c0_i32 = arith.constant 0 : i32
    %c0_i32_0 = arith.constant 0 : i32
    %c0_i32_1 = arith.constant 0 : i32
    return %c0_i32, %c0_i32_0 : i32, i32
  }
  func.func @transform_13(%arg0: i32) -> (i32, i32) {
    %c0_i32 = arith.constant 0 : i32
    %c0_i32_0 = arith.constant 0 : i32
    %c0_i32_1 = arith.constant 0 : i32
    return %c0_i32, %c0_i32_0 : i32, i32
  }
  func.func @transform_14(%arg0: i32) -> (i32, i32) {
    %c0_i32 = arith.constant 0 : i32
    %c0_i32_0 = arith.constant 0 : i32
    %c0_i32_1 = arith.constant 0 : i32
    return %c0_i32, %c0_i32_0 : i32, i32
  }
  func.func @transform_15(%arg0: i32) -> (i32, i32) {
    %c0_i32 = arith.constant 0 : i32
    %c0_i32_0 = arith.constant 0 : i32
    %c0_i32_1 = arith.constant 0 : i32
    return %c0_i32, %c0_i32_0 : i32, i32
  }
  func.func @transform_16(%arg0: i32) -> (i32, i32) {
    %c0_i32 = arith.constant 0 : i32
    %c0_i32_0 = arith.constant 0 : i32
    %c0_i32_1 = arith.constant 0 : i32
    return %c0_i32, %c0_i32_0 : i32, i32
  }
  func.func @transform_17(%arg0: i32) -> (i32, i32) {
    %c0_i32 = arith.constant 0 : i32
    %c0_i32_0 = arith.constant 0 : i32
    %c0_i32_1 = arith.constant 0 : i32
    return %c0_i32, %c0_i32_0 : i32, i32
  }
  func.func @transform_18(%arg0: i32) -> (i32, i32) {
    %c0_i32 = arith.constant 0 : i32
    %c0_i32_0 = arith.constant 0 : i32
    %c0_i32_1 = arith.constant 0 : i32
    return %c0_i32, %c0_i32_0 : i32, i32
  }
  func.func @transform_19(%arg0: i32) -> (i32, i32) {
    %c0_i32 = arith.constant 0 : i32
    %c0_i32_0 = arith.constant 0 : i32
    %c0_i32_1 = arith.constant 0 : i32
    return %c0_i32, %c0_i32_0 : i32, i32
  }
  func.func @transform_20(%arg0: i32) -> (i32, i32) {
    %c0_i32 = arith.constant 0 : i32
    %c0_i32_0 = arith.constant 0 : i32
    %c0_i32_1 = arith.constant 0 : i32
    return %c0_i32, %c0_i32_0 : i32, i32
  }
  func.func @transform_21(%arg0: i32) -> (i32, i32) {
    %c0_i32 = arith.constant 0 : i32
    %c0_i32_0 = arith.constant 0 : i32
    %c0_i32_1 = arith.constant 0 : i32
    return %c0_i32, %c0_i32_0 : i32, i32
  }
  func.func @transform_22(%arg0: i32) -> (i32, i32) {
    %c0_i32 = arith.constant 0 : i32
    %c0_i32_0 = arith.constant 0 : i32
    %c0_i32_1 = arith.constant 0 : i32
    return %c0_i32, %c0_i32_0 : i32, i32
  }
  func.func @transform_23(%arg0: i32) -> (i32, i32) {
    %c0_i32 = arith.constant 0 : i32
    %c0_i32_0 = arith.constant 0 : i32
    %c0_i32_1 = arith.constant 0 : i32
    return %c0_i32, %c0_i32_0 : i32, i32
  }
  func.func @transform_24(%arg0: i32) -> (i32, i32) {
    %c0_i32 = arith.constant 0 : i32
    %c0_i32_0 = arith.constant 0 : i32
    %c0_i32_1 = arith.constant 0 : i32
    return %c0_i32, %c0_i32_0 : i32, i32
  }
  func.func @transform_25(%arg0: i32) -> (i32, i32) {
    %c0_i32 = arith.constant 0 : i32
    %c0_i32_0 = arith.constant 0 : i32
    %c0_i32_1 = arith.constant 0 : i32
    return %c0_i32, %c0_i32_0 : i32, i32
  }
  func.func @transform_26(%arg0: i32) -> (i32, i32) {
    %c0_i32 = arith.constant 0 : i32
    %c0_i32_0 = arith.constant 0 : i32
    %c0_i32_1 = arith.constant 0 : i32
    return %c0_i32, %c0_i32_0 : i32, i32
  }
  func.func @transform_27(%arg0: i32) -> (i32, i32) {
    %c0_i32 = arith.constant 0 : i32
    %c0_i32_0 = arith.constant 0 : i32
    %c0_i32_1 = arith.constant 0 : i32
    return %c0_i32, %c0_i32_0 : i32, i32
  }
  func.func @transform_28(%arg0: i32) -> (i32, i32, i32) {
    %c0_i32 = arith.constant 0 : i32
    %c0_i32_0 = arith.constant 0 : i32
    %c0_i32_1 = arith.constant 0 : i32
    return %c0_i32, %arg0, %c0_i32_0 : i32, i32, i32
  }
}

</mosaic_0001>

<llo_original>
// kernel: tpu_custom_call.1
$region0: #{tpu_custom_call.1}
  #allocation0 [shape = 'u32[]', space=smem, size = 0x4, offset = 0x4, fixed_abs, tag = 'smem constant byte address 0x4 - core index']
  #allocation1 [shape = 'u32[144,128]{1,0:T(1,128)}', space=vmem, size = 0x12000, scoped, tag = 'internal scratch']
  %s0 = inlined_call_operand.hbm [shape: f32[8,2,32], index: 0, kind: input, shape index: {}]
  %s1 = inlined_call_operand.vmem [shape: f32[16,2,32], index: 1, kind: input, shape index: {}]
  %s2 = inlined_call_operand.hbm [shape: f32[8,2,32], index: 2, kind: input, shape index: {}]
  %s3 = inlined_call_operand.vmem [shape: f32[16,2,32], index: 3, kind: input, shape index: {}]
  %s4 = inlined_call_operand.vmem [shape: f32[32,64], index: 4, kind: input, shape index: {}]
  %s5 = inlined_call_operand.hbm [shape: f32[1,64], index: 5, kind: input, shape index: {}]
  %s6 = inlined_call_operand.hbm [shape: f32[32,32], index: 6, kind: input, shape index: {}]
  %s7 = inlined_call_operand.hbm [shape: f32[1,32], index: 7, kind: input, shape index: {}]
  %s8 = inlined_call_operand.hbm [shape: f32[32,32], index: 8, kind: input, shape index: {}]
  %s9 = inlined_call_operand.hbm [shape: f32[1,32], index: 9, kind: input, shape index: {}]
  %s10 = inlined_call_operand.vmem [shape: f32[32,32], index: 10, kind: input, shape index: {}]
  %s11 = inlined_call_operand.hbm [shape: f32[1,32], index: 11, kind: input, shape index: {}]
  %s12 = inlined_call_operand.hbm [shape: f32[32,32], index: 12, kind: input, shape index: {}]
  %s13 = inlined_call_operand.hbm [shape: f32[1,32], index: 13, kind: input, shape index: {}]
  %s14 = inlined_call_operand.hbm [shape: f32[32,32], index: 14, kind: input, shape index: {}]
  %s15 = inlined_call_operand.hbm [shape: f32[1,32], index: 15, kind: input, shape index: {}]
  %s16 = inlined_call_operand.hbm [shape: f32[32,32], index: 16, kind: input, shape index: {}]
  %s17 = inlined_call_operand.hbm [shape: f32[1,32], index: 17, kind: input, shape index: {}]
  %s18 = inlined_call_operand.hbm [shape: f32[32,64], index: 18, kind: input, shape index: {}]
  %s19 = inlined_call_operand.vmem [shape: f32[1,64], index: 19, kind: input, shape index: {}]
  %s20 = inlined_call_operand.vmem [shape: f32[64,32], index: 20, kind: input, shape index: {}]
  %s21 = inlined_call_operand.vmem [shape: f32[1,32], index: 21, kind: input, shape index: {}]
  %s22 = inlined_call_operand.vmem [shape: f32[1,32], index: 22, kind: input, shape index: {}]
  %s23 = inlined_call_operand.vmem [shape: f32[1,32], index: 23, kind: input, shape index: {}]
  %s24 = inlined_call_operand.vmem [shape: f32[1,32], index: 24, kind: input, shape index: {}]
  %s25 = inlined_call_operand.vmem [shape: f32[1,32], index: 25, kind: input, shape index: {}]
  %s26 = inlined_call_operand.vmem [shape: f32[1,32], index: 26, kind: input, shape index: {}]
  %s27 = inlined_call_operand.vmem [shape: f32[1,32], index: 27, kind: input, shape index: {}]
  %s28 = inlined_call_operand.hbm [shape: f32[8,2,32], index: 28, kind: output, shape index: {}]
  %s29 = sld [smem:[#allocation0]]
  $region182: #{tpu_custom_call.1} parent=0
    _
  %s31 = ssub.s32 1, %s29
  %s32 = scalar_select 0, %s31, %s29
  $region1: #{tpu_custom_call.1} parent=0
    #allocation2 [shape = 'u8[8192]{0}', space=vmem, size = 0x2000, scoped, tag = 'input window, operand 0, single buffered']
    #allocation3 [shape = 's32[1]{0}', space=sflag, size = 0x4, scoped, tag = 'scoped memory for tpu_custom_call.1']
    #allocation4 [shape = 's32[1]{0}', space=sflag, size = 0x4, scoped, tag = 'scoped memory for tpu_custom_call.1']
    #allocation5 [shape = 'u8[8192]{0}', space=vmem, size = 0x2000, scoped, tag = 'input window, operand 2, single buffered']
    #allocation6 [shape = 's32[1]{0}', space=sflag, size = 0x4, scoped, tag = 'scoped memory for tpu_custom_call.1']
    #allocation7 [shape = 'u8[512]{0}', space=vmem, size = 0x400, scoped, tag = 'input window, operand 5, single buffered']
    #allocation8 [shape = 'u8[16384]{0}', space=vmem, size = 0x4000, scoped, tag = 'input window, operand 6, single buffered']
    #allocation9 [shape = 's32[1]{0}', space=sflag, size = 0x4, scoped, tag = 'scoped memory for tpu_custom_call.1']
    #allocation10 [shape = 'u8[512]{0}', space=vmem, size = 0x400, scoped, tag = 'input window, operand 7, single buffered']
    #allocation11 [shape = 'u8[16384]{0}', space=vmem, size = 0x4000, scoped, tag = 'input window, operand 8, single buffered']
    #allocation12 [shape = 's32[1]{0}', space=sflag, size = 0x4, scoped, tag = 'scoped memory for tpu_custom_call.1']
    #allocation13 [shape = 'u8[512]{0}', space=vmem, size = 0x400, scoped, tag = 'input window, operand 9, single buffered']
    #allocation14 [shape = 'u8[512]{0}', space=vmem, size = 0x400, scoped, tag = 'input window, operand 11, single buffered']
    #allocation15 [shape = 's32[1]{0}', space=sflag, size = 0x4, scoped, tag = 'scoped memory for tpu_custom_call.1']
    #allocation16 [shape = 'u8[16384]{0}', space=vmem, size = 0x4000, scoped, tag = 'input window, operand 12, single buffered']
    #allocation17 [shape = 'u8[512]{0}', space=vmem, size = 0x400, scoped, tag = 'input window, operand 13, single buffered']
    #allocation18 [shape = 's32[1]{0}', space=sflag, size = 0x4, scoped, tag = 'scoped memory for tpu_custom_call.1']
    #allocation19 [shape = 'u8[16384]{0}', space=vmem, size = 0x4000, scoped, tag = 'input window, operand 14, single buffered']
    #allocation20 [shape = 'u8[512]{0}', space=vmem, size = 0x400, scoped, tag = 'input window, operand 15, single buffered']
    #allocation21 [shape = 's32[1]{0}', space=sflag, size = 0x4, scoped, tag = 'scoped memory for tpu_custom_call.1']
    #allocation22 [shape = 'u8[16384]{0}', space=vmem, size = 0x4000, scoped, tag = 'input window, operand 16, single buffered']
    #allocation23 [shape = 'u8[512]{0}', space=vmem, size = 0x400, scoped, tag = 'input window, operand 17, single buffered']
    #allocation24 [shape = 's32[1]{0}', space=sflag, size = 0x4, scoped, tag = 'scoped memory for tpu_custom_call.1']
    #allocation25 [shape = 'u8[16384]{0}', space=vmem, size = 0x4000, scoped, tag = 'input window, operand 18, single buffered']
    #allocation26 [shape = 'u8[8192]{0}', space=vmem, size = 0x2000, scoped, tag = 'output window, operand 0, single buffered']
    %33 = vsyncpa [#allocation3], 0
    %34 = vsyncpa [#allocation6], 0
    %35 = vsyncpa [#allocation9], 0
    %36 = vsyncpa [#allocation12], 0
    %37 = vsyncpa [#allocation15], 0
    %38 = vsyncpa [#allocation18], 0
    %39 = vsyncpa [#allocation21], 0
    %40 = vsyncpa [#allocation24], 0
    %41 = vsyncpa [#allocation4], 0
    // Predicated region
    $region2: #{tpu_custom_call.1} parent=1 // pred_check
      _
    $region3: #{tpu_custom_call.1} parent=1 // pred_check_branch
      %43 = sbr.rel (0) target = $region5
    $region4: #{tpu_custom_call.1} parent=1 // pred_region
      %s45 = ssub.s32 256, 256
      %46 = vsyncadd [#allocation3], %s45
      %s47 = sshll.u32 [#allocation2], 4
      %s48 = int_to_ptr.vmem [resolvable:$true] %s47
      %53 = dma.hbm_to_vmem [thread:$0]  %s0, 256, %s48, [#allocation3], 32, 32, 2
    $region5: #{tpu_custom_call.1} parent=1 // pred_fallthru
      _
    // Predicated region
    $region6: #{tpu_custom_call.1} parent=1 // pred_check
      _
    $region7: #{tpu_custom_call.1} parent=1 // pred_check_branch
      %55 = sbr.rel (0) target = $region9
    $region8: #{tpu_custom_call.1} parent=1 // pred_region
      _
    $region9: #{tpu_custom_call.1} parent=1 // pred_fallthru
      _
    // Predicated region
    $region10: #{tpu_custom_call.1} parent=1 // pred_check
      _
    $region11: #{tpu_custom_call.1} parent=1 // pred_check_branch
      %57 = sbr.rel (0) target = $region13
    $region12: #{tpu_custom_call.1} parent=1 // pred_region
      %s59 = ssub.s32 256, 256
      %60 = vsyncadd [#allocation6], %s59
      %s61 = sshll.u32 [#allocation5], 4
      %s62 = int_to_ptr.vmem [resolvable:$true] %s61
      %67 = dma.hbm_to_vmem [thread:$0]  %s2, 256, %s62, [#allocation6], 32, 32, 2
    $region13: #{tpu_custom_call.1} parent=1 // pred_fallthru
      _
    // Predicated region
    $region14: #{tpu_custom_call.1} parent=1 // pred_check
      _
    $region15: #{tpu_custom_call.1} parent=1 // pred_check_branch
      %69 = sbr.rel (0) target = $region17
    $region16: #{tpu_custom_call.1} parent=1 // pred_region
      _
    $region17: #{tpu_custom_call.1} parent=1 // pred_fallthru
      _
    // Predicated region
    $region18: #{tpu_custom_call.1} parent=1 // pred_check
      _
    $region19: #{tpu_custom_call.1} parent=1 // pred_check_branch
      %71 = sbr.rel (0) target = $region21
    $region20: #{tpu_custom_call.1} parent=1 // pred_region
      _
    $region21: #{tpu_custom_call.1} parent=1 // pred_fallthru
      _
    // Predicated region
    $region22: #{tpu_custom_call.1} parent=1 // pred_check
      _
    $region23: #{tpu_custom_call.1} parent=1 // pred_check_branch
      %73 = sbr.rel (0) target = $region25
    $region24: #{tpu_custom_call.1} parent=1 // pred_region
      %s75 = ssub.s32 16, 16
      %76 = vsyncadd [#allocation6], %s75
      %s78 = sshll.u32 [#allocation7], 4
      %s79 = int_to_ptr.vmem [resolvable:$true] %s78
      %81 = dma.hbm_to_vmem [thread:$0]  %s5, 16, %s79, [#allocation6]
    $region25: #{tpu_custom_call.1} parent=1 // pred_fallthru
      _
    // Predicated region
    $region26: #{tpu_custom_call.1} parent=1 // pred_check
      _
    $region27: #{tpu_custom_call.1} parent=1 // pred_check_branch
      %83 = sbr.rel (0) target = $region29
    $region28: #{tpu_custom_call.1} parent=1 // pred_region
      %s85 = ssub.s32 512, 512
      %86 = vsyncadd [#allocation9], %s85
      %s87 = sshll.u32 [#allocation8], 4
      %s88 = int_to_ptr.vmem [resolvable:$true] %s87
      %93 = dma.hbm_to_vmem [thread:$0]  %s6, 512, %s88, [#allocation9], 128, 128, 8
    $region29: #{tpu_custom_call.1} parent=1 // pred_fallthru
      _
    // Predicated region
    $region30: #{tpu_custom_call.1} parent=1 // pred_check
      _
    $region31: #{tpu_custom_call.1} parent=1 // pred_check_branch
      %95 = sbr.rel (0) target = $region33
    $region32: #{tpu_custom_call.1} parent=1 // pred_region
      %s97 = ssub.s32 16, 16
      %98 = vsyncadd [#allocation9], %s97
      %s100 = sshll.u32 [#allocation10], 4
      %s101 = int_to_ptr.vmem [resolvable:$true] %s100
      %103 = dma.hbm_to_vmem [thread:$0]  %s7, 16, %s101, [#allocation9]
    $region33: #{tpu_custom_call.1} parent=1 // pred_fallthru
      _
    // Predicated region
    $region34: #{tpu_custom_call.1} parent=1 // pred_check
      _
    $region35: #{tpu_custom_call.1} parent=1 // pred_check_branch
      %105 = sbr.rel (0) target = $region37
    $region36: #{tpu_custom_call.1} parent=1 // pred_region
      %s107 = ssub.s32 512, 512
      %108 = vsyncadd [#allocation12], %s107
      %s109 = sshll.u32 [#allocation11], 4
      %s110 = int_to_ptr.vmem [resolvable:$true] %s109
      %115 = dma.hbm_to_vmem [thread:$0]  %s8, 512, %s110, [#allocation12], 128, 128, 8
    $region37: #{tpu_custom_call.1} parent=1 // pred_fallthru
      _
    // Predicated region
    $region38: #{tpu_custom_call.1} parent=1 // pred_check
      _
    $region39: #{tpu_custom_call.1} parent=1 // pred_check_branch
      %117 = sbr.rel (0) target = $region41
    $region40: #{tpu_custom_call.1} parent=1 // pred_region
      %s119 = ssub.s32 16, 16
      %120 = vsyncadd [#allocation12], %s119
      %s122 = sshll.u32 [#allocation13], 4
      %s123 = int_to_ptr.vmem [resolvable:$true] %s122
      %125 = dma.hbm_to_vmem [thread:$0]  %s9, 16, %s123, [#allocation12]
    $region41: #{tpu_custom_call.1} parent=1 // pred_fallthru
      _
    // Predicated region
    $region42: #{tpu_custom_call.1} parent=1 // pred_check
      _
    $region43: #{tpu_custom_call.1} parent=1 // pred_check_branch
      %127 = sbr.rel (0) target = $region45
    $region44: #{tpu_custom_call.1} parent=1 // pred_region
      _
    $region45: #{tpu_custom_call.1} parent=1 // pred_fallthru
      _
    // Predicated region
    $region46: #{tpu_custom_call.1} parent=1 // pred_check
      _
    $region47: #{tpu_custom_call.1} parent=1 // pred_check_branch
      %129 = sbr.rel (0) target = $region49
    $region48: #{tpu_custom_call.1} parent=1 // pred_region
      %s131 = ssub.s32 16, 16
      %132 = vsyncadd [#allocation15], %s131
      %s134 = sshll.u32 [#allocation14], 4
      %s135 = int_to_ptr.vmem [resolvable:$true] %s134
      %137 = dma.hbm_to_vmem [thread:$0]  %s11, 16, %s135, [#allocation15]
    $region49: #{tpu_custom_call.1} parent=1 // pred_fallthru
      _
    // Predicated region
    $region50: #{tpu_custom_call.1} parent=1 // pred_check
      _
    $region51: #{tpu_custom_call.1} parent=1 // pred_check_branch
      %139 = sbr.rel (0) target = $region53
    $region52: #{tpu_custom_call.1} parent=1 // pred_region
      %s141 = ssub.s32 512, 512
      %142 = vsyncadd [#allocation15], %s141
      %s143 = sshll.u32 [#allocation16], 4
      %s144 = int_to_ptr.vmem [resolvable:$true] %s143
      %149 = dma.hbm_to_vmem [thread:$0]  %s12, 512, %s144, [#allocation15], 128, 128, 8
    $region53: #{tpu_custom_call.1} parent=1 // pred_fallthru
      _
    // Predicated region
    $region54: #{tpu_custom_call.1} parent=1 // pred_check
      _
    $region55: #{tpu_custom_call.1} parent=1 // pred_check_branch
      %151 = sbr.rel (0) target = $region57
    $region56: #{tpu_custom_call.1} parent=1 // pred_region
      %s153 = ssub.s32 16, 16
      %154 = vsyncadd [#allocation18], %s153
      %s156 = sshll.u32 [#allocation17], 4
      %s157 = int_to_ptr.vmem [resolvable:$true] %s156
      %159 = dma.hbm_to_vmem [thread:$0]  %s13, 16, %s157, [#allocation18]
    $region57: #{tpu_custom_call.1} parent=1 // pred_fallthru
      _
    // Predicated region
    $region58: #{tpu_custom_call.1} parent=1 // pred_check
      _
    $region59: #{tpu_custom_call.1} parent=1 // pred_check_branch
      %161 = sbr.rel (0) target = $region61
    $region60: #{tpu_custom_call.1} parent=1 // pred_region
      %s163 = ssub.s32 512, 512
      %164 = vsyncadd [#allocation18], %s163
      %s165 = sshll.u32 [#allocation19], 4
      %s166 = int_to_ptr.vmem [resolvable:$true] %s165
      %171 = dma.hbm_to_vmem [thread:$0]  %s14, 512, %s166, [#allocation18], 128, 128, 8
    $region61: #{tpu_custom_call.1} parent=1 // pred_fallthru
      _
    // Predicated region
    $region62: #{tpu_custom_call.1} parent=1 // pred_check
      _
    $region63: #{tpu_custom_call.1} parent=1 // pred_check_branch
      %173 = sbr.rel (0) target = $region65
    $region64: #{tpu_custom_call.1} parent=1 // pred_region
      %s175 = ssub.s32 16, 16
      %176 = vsyncadd [#allocation21], %s175
      %s178 = sshll.u32 [#allocation20], 4
      %s179 = int_to_ptr.vmem [resolvable:$true] %s178
      %181 = dma.hbm_to_vmem [thread:$0]  %s15, 16, %s179, [#allocation21]
    $region65: #{tpu_custom_call.1} parent=1 // pred_fallthru
      _
    // Predicated region
    $region66: #{tpu_custom_call.1} parent=1 // pred_check
      _
    $region67: #{tpu_custom_call.1} parent=1 // pred_check_branch
      %183 = sbr.rel (0) target = $region69
    $region68: #{tpu_custom_call.1} parent=1 // pred_region
      %s185 = ssub.s32 512, 512
      %186 = vsyncadd [#allocation21], %s185
      %s187 = sshll.u32 [#allocation22], 4
      %s188 = int_to_ptr.vmem [resolvable:$true] %s187
      %193 = dma.hbm_to_vmem [thread:$0]  %s16, 512, %s188, [#allocation21], 128, 128, 8
    $region69: #{tpu_custom_call.1} parent=1 // pred_fallthru
      _
    // Predicated region
    $region70: #{tpu_custom_call.1} parent=1 // pred_check
      _
    $region71: #{tpu_custom_call.1} parent=1 // pred_check_branch
      %195 = sbr.rel (0) target = $region73
    $region72: #{tpu_custom_call.1} parent=1 // pred_region
      %s197 = ssub.s32 16, 16
      %198 = vsyncadd [#allocation24], %s197
      %s200 = sshll.u32 [#allocation23], 4
      %s201 = int_to_ptr.vmem [resolvable:$true] %s200
      %203 = dma.hbm_to_vmem [thread:$0]  %s17, 16, %s201, [#allocation24]
    $region73: #{tpu_custom_call.1} parent=1 // pred_fallthru
      _
    // Predicated region
    $region74: #{tpu_custom_call.1} parent=1 // pred_check
      _
    $region75: #{tpu_custom_call.1} parent=1 // pred_check_branch
      %205 = sbr.rel (0) target = $region77
    $region76: #{tpu_custom_call.1} parent=1 // pred_region
      %s207 = ssub.s32 512, 512
      %208 = vsyncadd [#allocation24], %s207
      %s209 = sshll.u32 [#allocation25], 4
      %s210 = int_to_ptr.vmem [resolvable:$true] %s209
      %215 = dma.hbm_to_vmem [thread:$0]  %s18, 512, %s210, [#allocation24], 128, 128, 8
    $region77: #{tpu_custom_call.1} parent=1 // pred_fallthru
      _
    // Predicated region
    $region78: #{tpu_custom_call.1} parent=1 // pred_check
      _
    $region79: #{tpu_custom_call.1} parent=1 // pred_check_branch
      %217 = sbr.rel (0) target = $region81
    $region80: #{tpu_custom_call.1} parent=1 // pred_region
      _
    $region81: #{tpu_custom_call.1} parent=1 // pred_fallthru
      _
    // Predicated region
    $region82: #{tpu_custom_call.1} parent=1 // pred_check
      _
    $region83: #{tpu_custom_call.1} parent=1 // pred_check_branch
      %219 = sbr.rel (0) target = $region85
    $region84: #{tpu_custom_call.1} parent=1 // pred_region
      _
    $region85: #{tpu_custom_call.1} parent=1 // pred_fallthru
      _
    // Predicated region
    $region86: #{tpu_custom_call.1} parent=1 // pred_check
      _
    $region87: #{tpu_custom_call.1} parent=1 // pred_check_branch
      %221 = sbr.rel (0) target = $region89
    $region88: #{tpu_custom_call.1} parent=1 // pred_region
      _
    $region89: #{tpu_custom_call.1} parent=1 // pred_fallthru
      _
    // Predicated region
    $region90: #{tpu_custom_call.1} parent=1 // pred_check
      _
    $region91: #{tpu_custom_call.1} parent=1 // pred_check_branch
      %223 = sbr.rel (0) target = $region93
    $region92: #{tpu_custom_call.1} parent=1 // pred_region
      _
    $region93: #{tpu_custom_call.1} parent=1 // pred_fallthru
      _
    // Predicated region
    $region94: #{tpu_custom_call.1} parent=1 // pred_check
      _
    $region95: #{tpu_custom_call.1} parent=1 // pred_check_branch
      %225 = sbr.rel (0) target = $region97
    $region96: #{tpu_custom_call.1} parent=1 // pred_region
      _
    $region97: #{tpu_custom_call.1} parent=1 // pred_fallthru
      _
    // Predicated region
    $region98: #{tpu_custom_call.1} parent=1 // pred_check
      _
    $region99: #{tpu_custom_call.1} parent=1 // pred_check_branch
      %227 = sbr.rel (0) target = $region101
    $region100: #{tpu_custom_call.1} parent=1 // pred_region
      _
    $region101: #{tpu_custom_call.1} parent=1 // pred_fallthru
      _
    // Predicated region
    $region102: #{tpu_custom_call.1} parent=1 // pred_check
      _
    $region103: #{tpu_custom_call.1} parent=1 // pred_check_branch
      %229 = sbr.rel (0) target = $region105
    $region104: #{tpu_custom_call.1} parent=1 // pred_region
      _
    $region105: #{tpu_custom_call.1} parent=1 // pred_fallthru
      _
    // Predicated region
    $region106: #{tpu_custom_call.1} parent=1 // pred_check
      _
    $region107: #{tpu_custom_call.1} parent=1 // pred_check_branch
      %231 = sbr.rel (0) target = $region109
    $region108: #{tpu_custom_call.1} parent=1 // pred_region
      _
    $region109: #{tpu_custom_call.1} parent=1 // pred_fallthru
      _
    // Predicated region
    $region110: #{tpu_custom_call.1} parent=1 // pred_check
      _
    $region111: #{tpu_custom_call.1} parent=1 // pred_check_branch
      %233 = sbr.rel (0) target = $region113
    $region112: #{tpu_custom_call.1} parent=1 // pred_region
      _
    $region113: #{tpu_custom_call.1} parent=1 // pred_fallthru
      _
    // Predicated region
    $region114: #{tpu_custom_call.1} parent=1 // pred_check
      _
    $region115: #{tpu_custom_call.1} parent=1 // pred_check_branch
      %235 = sbr.rel (0) target = $region117
    $region116: #{tpu_custom_call.1} parent=1 // pred_region
      %236 = dma.done [#allocation3], 256
    $region117: #{tpu_custom_call.1} parent=1 // pred_fallthru
      _
    // Predicated region
    $region118: #{tpu_custom_call.1} parent=1 // pred_check
      _
    $region119: #{tpu_custom_call.1} parent=1 // pred_check_branch
      %238 = sbr.rel (0) target = $region121
    $region120: #{tpu_custom_call.1} parent=1 // pred_region
      %239 = dma.done [#allocation6], 256
    $region121: #{tpu_custom_call.1} parent=1 // pred_fallthru
      _
    // Predicated region
    $region122: #{tpu_custom_call.1} parent=1 // pred_check
      _
    $region123: #{tpu_custom_call.1} parent=1 // pred_check_branch
      %241 = sbr.rel (0) target = $region125
    $region124: #{tpu_custom_call.1} parent=1 // pred_region
      %242 = dma.done [#allocation6], 16
    $region125: #{tpu_custom_call.1} parent=1 // pred_fallthru
      _
    // Predicated region
    $region126: #{tpu_custom_call.1} parent=1 // pred_check
      _
    $region127: #{tpu_custom_call.1} parent=1 // pred_check_branch
      %244 = sbr.rel (0) target = $region129
    $region128: #{tpu_custom_call.1} parent=1 // pred_region
      %245 = dma.done [#allocation9], 512
    $region129: #{tpu_custom_call.1} parent=1 // pred_fallthru
      _
    // Predicated region
    $region130: #{tpu_custom_call.1} parent=1 // pred_check
      _
    $region131: #{tpu_custom_call.1} parent=1 // pred_check_branch
      %247 = sbr.rel (0) target = $region133
    $region132: #{tpu_custom_call.1} parent=1 // pred_region
      %248 = dma.done [#allocation9], 16
    $region133: #{tpu_custom_call.1} parent=1 // pred_fallthru
      _
    // Predicated region
    $region134: #{tpu_custom_call.1} parent=1 // pred_check
      _
    $region135: #{tpu_custom_call.1} parent=1 // pred_check_branch
      %250 = sbr.rel (0) target = $region137
    $region136: #{tpu_custom_call.1} parent=1 // pred_region
      %251 = dma.done [#allocation12], 512
    $region137: #{tpu_custom_call.1} parent=1 // pred_fallthru
      _
    // Predicated region
    $region138: #{tpu_custom_call.1} parent=1 // pred_check
      _
    $region139: #{tpu_custom_call.1} parent=1 // pred_check_branch
      %253 = sbr.rel (0) target = $region141
    $region140: #{tpu_custom_call.1} parent=1 // pred_region
      %254 = dma.done [#allocation12], 16
    $region141: #{tpu_custom_call.1} parent=1 // pred_fallthru
      _
    // Predicated region
    $region142: #{tpu_custom_call.1} parent=1 // pred_check
      _
    $region143: #{tpu_custom_call.1} parent=1 // pred_check_branch
      %256 = sbr.rel (0) target = $region145
    $region144: #{tpu_custom_call.1} parent=1 // pred_region
      %257 = dma.done [#allocation15], 16
    $region145: #{tpu_custom_call.1} parent=1 // pred_fallthru
      _
    // Predicated region
    $region146: #{tpu_custom_call.1} parent=1 // pred_check
      _
    $region147: #{tpu_custom_call.1} parent=1 // pred_check_branch
      %259 = sbr.rel (0) target = $region149
    $region148: #{tpu_custom_call.1} parent=1 // pred_region
      %260 = dma.done [#allocation15], 512
    $region149: #{tpu_custom_call.1} parent=1 // pred_fallthru
      _
    // Predicated region
    $region150: #{tpu_custom_call.1} parent=1 // pred_check
      _
    $region151: #{tpu_custom_call.1} parent=1 // pred_check_branch
      %262 = sbr.rel (0) target = $region153
    $region152: #{tpu_custom_call.1} parent=1 // pred_region
      %263 = dma.done [#allocation18], 16
    $region153: #{tpu_custom_call.1} parent=1 // pred_fallthru
      _
    // Predicated region
    $region154: #{tpu_custom_call.1} parent=1 // pred_check
      _
    $region155: #{tpu_custom_call.1} parent=1 // pred_check_branch
      %265 = sbr.rel (0) target = $region157
    $region156: #{tpu_custom_call.1} parent=1 // pred_region
      %266 = dma.done [#allocation18], 512
    $region157: #{tpu_custom_call.1} parent=1 // pred_fallthru
      _
    // Predicated region
    $region158: #{tpu_custom_call.1} parent=1 // pred_check
      _
    $region159: #{tpu_custom_call.1} parent=1 // pred_check_branch
      %268 = sbr.rel (0) target = $region161
    $region160: #{tpu_custom_call.1} parent=1 // pred_region
      %269 = dma.done [#allocation21], 16
    $region161: #{tpu_custom_call.1} parent=1 // pred_fallthru
      _
    // Predicated region
    $region162: #{tpu_custom_call.1} parent=1 // pred_check
      _
    $region163: #{tpu_custom_call.1} parent=1 // pred_check_branch
      %271 = sbr.rel (0) target = $region165
    $region164: #{tpu_custom_call.1} parent=1 // pred_region
      %272 = dma.done [#allocation21], 512
    $region165: #{tpu_custom_call.1} parent=1 // pred_fallthru
      _
    // Predicated region
    $region166: #{tpu_custom_call.1} parent=1 // pred_check
      _
    $region167: #{tpu_custom_call.1} parent=1 // pred_check_branch
      %274 = sbr.rel (0) target = $region169
    $region168: #{tpu_custom_call.1} parent=1 // pred_region
      %275 = dma.done [#allocation24], 16
    $region169: #{tpu_custom_call.1} parent=1 // pred_fallthru
      _
    // Predicated region
    $region170: #{tpu_custom_call.1} parent=1 // pred_check
      _
    $region171: #{tpu_custom_call.1} parent=1 // pred_check_branch
      %277 = sbr.rel (0) target = $region173
    $region172: #{tpu_custom_call.1} parent=1 // pred_region
      %278 = dma.done [#allocation24], 512
    $region173: #{tpu_custom_call.1} parent=1 // pred_fallthru
      _
    %v279 = vld [vmem:[%s4] sm:$0xff]
    %v280 = vld [vmem:[%s4 + $0x8] sm:$0xff]
    %v281 = vld [vmem:[%s4 + $0x10] sm:$0xff]
    %v282 = vld [vmem:[%s4 + $0x18] sm:$0xff]
    %v283 = vld [vmem:[#allocation7] sm:$0x1]
    %v284 = vld [vmem:[#allocation8] sm:$0xff]
    %v285 = vld [vmem:[#allocation8 + $0x8] sm:$0xff]
    %v286 = vld [vmem:[#allocation8 + $0x10] sm:$0xff]
    %v287 = vld [vmem:[#allocation8 + $0x18] sm:$0xff]
    %v288 = vld [vmem:[#allocation10] sm:$0x1]
    %v289 = vld [vmem:[#allocation11] sm:$0xff]
    %v290 = vld [vmem:[#allocation11 + $0x8] sm:$0xff]
    %v291 = vld [vmem:[#allocation11 + $0x10] sm:$0xff]
    %v292 = vld [vmem:[#allocation11 + $0x18] sm:$0xff]
    %v293 = vld [vmem:[#allocation13] sm:$0x1]
    %v294 = vld [vmem:[%s10] sm:$0xff]
    %v295 = vld [vmem:[%s10 + $0x8] sm:$0xff]
    %v296 = vld [vmem:[%s10 + $0x10] sm:$0xff]
    %v297 = vld [vmem:[%s10 + $0x18] sm:$0xff]
    %v298 = vld [vmem:[#allocation14] sm:$0x1]
    %v299 = vld [vmem:[#allocation16] sm:$0xff]
    %v300 = vld [vmem:[#allocation16 + $0x8] sm:$0xff]
    %v301 = vld [vmem:[#allocation16 + $0x10] sm:$0xff]
    %v302 = vld [vmem:[#allocation16 + $0x18] sm:$0xff]
    %v303 = vld [vmem:[#allocation17] sm:$0x1]
    %v304 = vld [vmem:[#allocation19] sm:$0xff]
    %v305 = vld [vmem:[#allocation19 + $0x8] sm:$0xff]
    %v306 = vld [vmem:[#allocation19 + $0x10] sm:$0xff]
    %v307 = vld [vmem:[#allocation19 + $0x18] sm:$0xff]
    %v308 = vld [vmem:[#allocation20] sm:$0x1]
    %v309 = vld [vmem:[#allocation22] sm:$0xff]
    %v310 = vld [vmem:[#allocation22 + $0x8] sm:$0xff]
    %v311 = vld [vmem:[#allocation22 + $0x10] sm:$0xff]
    %v312 = vld [vmem:[#allocation22 + $0x18] sm:$0xff]
    %v313 = vld [vmem:[#allocation23] sm:$0x1]
    %v314 = vld [vmem:[#allocation25] sm:$0xff]
    %v315 = vld [vmem:[#allocation25 + $0x8] sm:$0xff]
    %v316 = vld [vmem:[#allocation25 + $0x10] sm:$0xff]
    %v317 = vld [vmem:[#allocation25 + $0x18] sm:$0xff]
    %v318 = vld [vmem:[%s19] sm:$0x1]
    %v319 = vld [vmem:[%s20] sm:$0xff]
    %v320 = vld [vmem:[%s20 + $0x8] sm:$0xff]
    %v321 = vld [vmem:[%s20 + $0x10] sm:$0xff]
    %v322 = vld [vmem:[%s20 + $0x18] sm:$0xff]
    %v323 = vld [vmem:[%s20 + $0x20] sm:$0xff]
    %v324 = vld [vmem:[%s20 + $0x28] sm:$0xff]
    %v325 = vld [vmem:[%s20 + $0x30] sm:$0xff]
    %v326 = vld [vmem:[%s20 + $0x38] sm:$0xff]
    %v327 = vld [vmem:[%s21] sm:$0x1]
    %v328 = vld [vmem:[%s22] sm:$0x1]
    %v329 = vld [vmem:[%s23] sm:$0x1]
    %v330 = vld [vmem:[%s24] sm:$0x1]
    %v331 = vld [vmem:[%s25] sm:$0x1]
    %v332 = vld [vmem:[%s26] sm:$0x1]
    %v333 = vld [vmem:[%s27] sm:$0x1]
    %v334 = vld [vmem:[#allocation2] sm:$0x3]
    %v335 = vld [vmem:[#allocation2 + $0x2] sm:$0x3]
    %v336 = vld [vmem:[#allocation2 + $0x4] sm:$0x3]
    %v337 = vld [vmem:[#allocation2 + $0x6] sm:$0x3]
    %v338 = vld [vmem:[#allocation2 + $0x8] sm:$0x3]
    %v339 = vld [vmem:[#allocation2 + $0xa] sm:$0x3]
    %v340 = vld [vmem:[#allocation2 + $0xc] sm:$0x3]
    %v341 = vld [vmem:[#allocation2 + $0xe] sm:$0x3]
    %v342 = vld [vmem:[%s1] sm:$0x3]
    %v343 = vld [vmem:[%s1 + $0x2] sm:$0x3]
    %v344 = vld [vmem:[%s1 + $0x4] sm:$0x3]
    %v345 = vld [vmem:[%s1 + $0x6] sm:$0x3]
    %v346 = vld [vmem:[%s1 + $0x8] sm:$0x3]
    %v347 = vld [vmem:[%s1 + $0xa] sm:$0x3]
    %v348 = vld [vmem:[%s1 + $0xc] sm:$0x3]
    %v349 = vld [vmem:[%s1 + $0xe] sm:$0x3]
    %v350 = vld [vmem:[%s1 + $0x10] sm:$0x3]
    %v351 = vld [vmem:[%s1 + $0x12] sm:$0x3]
    %v352 = vld [vmem:[%s1 + $0x14] sm:$0x3]
    %v353 = vld [vmem:[%s1 + $0x16] sm:$0x3]
    %v354 = vld [vmem:[%s1 + $0x18] sm:$0x3]
    %v355 = vld [vmem:[%s1 + $0x1a] sm:$0x3]
    %v356 = vld [vmem:[%s1 + $0x1c] sm:$0x3]
    %v357 = vld [vmem:[%s1 + $0x1e] sm:$0x3]
    %v358 = vld [vmem:[#allocation5] sm:$0x3]
    %v359 = vld [vmem:[#allocation5 + $0x2] sm:$0x3]
    %v360 = vld [vmem:[#allocation5 + $0x4] sm:$0x3]
    %v361 = vld [vmem:[#allocation5 + $0x6] sm:$0x3]
    %v362 = vld [vmem:[#allocation5 + $0x8] sm:$0x3]
    %v363 = vld [vmem:[#allocation5 + $0xa] sm:$0x3]
    %v364 = vld [vmem:[#allocation5 + $0xc] sm:$0x3]
    %v365 = vld [vmem:[#allocation5 + $0xe] sm:$0x3]
    %v366 = vadd.f32 %v334, %v358
    %v367 = vadd.f32 %v335, %v359
    %v368 = vadd.f32 %v336, %v360
    %v369 = vadd.f32 %v337, %v361
    %v370 = vadd.f32 %v338, %v362
    %v371 = vadd.f32 %v339, %v363
    %v372 = vadd.f32 %v340, %v364
    %v373 = vadd.f32 %v341, %v365
    %v374 = vld [vmem:[%s3] sm:$0x3]
    %v375 = vld [vmem:[%s3 + $0x2] sm:$0x3]
    %v376 = vld [vmem:[%s3 + $0x4] sm:$0x3]
    %v377 = vld [vmem:[%s3 + $0x6] sm:$0x3]
    %v378 = vld [vmem:[%s3 + $0x8] sm:$0x3]
    %v379 = vld [vmem:[%s3 + $0xa] sm:$0x3]
    %v380 = vld [vmem:[%s3 + $0xc] sm:$0x3]
    %v381 = vld [vmem:[%s3 + $0xe] sm:$0x3]
    %v382 = vld [vmem:[%s3 + $0x10] sm:$0x3]
    %v383 = vld [vmem:[%s3 + $0x12] sm:$0x3]
    %v384 = vld [vmem:[%s3 + $0x14] sm:$0x3]
    %v385 = vld [vmem:[%s3 + $0x16] sm:$0x3]
    %v386 = vld [vmem:[%s3 + $0x18] sm:$0x3]
    %v387 = vld [vmem:[%s3 + $0x1a] sm:$0x3]
    %v388 = vld [vmem:[%s3 + $0x1c] sm:$0x3]
    %v389 = vld [vmem:[%s3 + $0x1e] sm:$0x3]
    %v390 = vadd.f32 %v342, %v374
    %v391 = vadd.f32 %v343, %v375
    %v392 = vadd.f32 %v344, %v376
    %v393 = vadd.f32 %v345, %v377
    %v394 = vadd.f32 %v346, %v378
    %v395 = vadd.f32 %v347, %v379
    %v396 = vadd.f32 %v348, %v380
    %v397 = vadd.f32 %v349, %v381
    %v398 = vadd.f32 %v350, %v382
    %v399 = vadd.f32 %v351, %v383
    %v400 = vadd.f32 %v352, %v384
    %v401 = vadd.f32 %v353, %v385
    %v402 = vadd.f32 %v354, %v386
    %v403 = vadd.f32 %v355, %v387
    %v404 = vadd.f32 %v356, %v388
    %v405 = vadd.f32 %v357, %v389
    %v407 = vlaneseq
    %v408 = vshrl.u32 %v407, 7
    %v409 = vsub.s32 0, %v408
    %v410 = vrot.slane %v283, %v409
    %v420 = vrot.slane %v367, 7
    %vm421 = vcmask 1041409
    %v422 = vsel %vm421, %v420, %v366
    %v423 = vrot.slane %v368, 6
    %vm424 = vcmask 1042434
    %v425 = vsel %vm424, %v423, %v422
    %v426 = vrot.slane %v369, 5
    %vm427 = vcmask 1043459
    %v428 = vsel %vm427, %v426, %v425
    %v429 = vrot.slane %v370, 4
    %vm430 = vcmask 1044484
    %v431 = vsel %vm430, %v429, %v428
    %v432 = vrot.slane %v371, 3
    %vm433 = vcmask 1045509
    %v434 = vsel %vm433, %v432, %v431
    %v435 = vrot.slane %v372, 2
    %vm436 = vcmask 1046534
    %v437 = vsel %vm436, %v435, %v434
    %v438 = vrot.slane %v373, 1
    %vm439 = vcmask 1047559
    %v440 = vsel %vm439, %v438, %v437
    %vm441 = vcmask 261120
    %v442 = vsel %vm441, %v440, 0
    %444 = vmatprep.subr.mxu0 0.0
    %445 = vmatpush1.msra.mxu0 %v279
    %446 = vmatprep.subr.mxu0 0.0
    %447 = vmatpush1.msra.mxu0 %v280
    %448 = vmatprep.subr.mxu0 0.0
    %449 = vmatpush1.msra.mxu0 %v281
    %450 = vmatprep.subr.mxu0 0.0
    %451 = vmatpush1.msra.mxu0 %v282
    %452 = vmatprep.subr.mxu0 0.0
    %453 = vmatpush1.msra.mxu0 0.0
    %454 = vmatprep.subr.mxu0 0.0
    %455 = vmatpush1.msra.mxu0 0.0
    %456 = vmatprep.subr.mxu0 0.0
    %457 = vmatpush1.msra.mxu0 0.0
    %458 = vmatprep.subr.mxu0 0.0
    %459 = vmatpush1.msra.mxu0 0.0
    %460 = vmatprep.subr.mxu0 0.0
    %461 = vmatpush1.msra.mxu0 0.0
    %462 = vmatprep.subr.mxu0 0.0
    %463 = vmatpush1.msra.mxu0 0.0
    %464 = vmatprep.subr.mxu0 0.0
    %465 = vmatpush1.msra.mxu0 0.0
    %466 = vmatprep.subr.mxu0 0.0
    %467 = vmatpush1.msra.mxu0 0.0
    %468 = vmatprep.subr.mxu0 0.0
    %469 = vmatpush1.msra.mxu0 0.0
    %470 = vmatprep.subr.mxu0 0.0
    %471 = vmatpush1.msra.mxu0 0.0
    %472 = vmatprep.subr.mxu0 0.0
    %473 = vmatpush1.msra.mxu0 0.0
    %474 = vmatprep.subr.mxu0 0.0
    %475 = vmatpush1.msra.mxu0 0.0
    %476 = vmatprep.subr.mxu0 0.0
    %477 = vmatpush1.msra.mxu0 0.0
    %478 = vmatprep.subr.mxu0 0.0
    %479 = vmatpush1.msra.mxu0 0.0
    %480 = vmatprep.subr.mxu0 0.0
    %481 = vmatpush1.msra.mxu0 0.0
    %482 = vmatprep.subr.mxu0 0.0
    %483 = vmatpush1.msra.mxu0 0.0
    %484 = vmatprep.subr.mxu0 0.0
    %485 = vmatpush1.msra.mxu0 0.0
    %486 = vmatprep.subr.mxu0 0.0
    %487 = vmatpush1.msra.mxu0 0.0
    %488 = vmatprep.subr.mxu0 0.0
    %489 = vmatpush1.msra.mxu0 0.0
    %490 = vmatprep.subr.mxu0 0.0
    %491 = vmatpush1.msra.mxu0 0.0
    %492 = vmatprep.subr.mxu0 0.0
    %493 = vmatpush1.msra.mxu0 0.0
    %494 = vmatprep.subr.mxu0 0.0
    %495 = vmatpush1.msra.mxu0 0.0
    %496 = vmatprep.subr.mxu0 0.0
    %497 = vmatpush1.msra.mxu0 0.0
    %498 = vmatprep.subr.mxu0 0.0
    %499 = vmatpush1.msra.mxu0 0.0
    %500 = vmatprep.subr.mxu0 0.0
    %501 = vmatpush1.msra.mxu0 0.0
    %502 = vmatprep.subr.mxu0 0.0
    %503 = vmatpush1.msra.mxu0 0.0
    %504 = vmatprep.subr.mxu0 0.0
    %505 = vmatpush1.msra.mxu0 0.0
    %506 = vmatprep.subr.mxu0 0.0
    %507 = vmatpush1.msra.mxu0 0.0
    %508 = vmatprep.mubr.f32.mxu0 0.0
    %509 = vmatmul.mubr.f32.gmra.mrb[0].mxu0 %v442
    %v510 = vpop.f32.mrb[0].mxu0
    %v511 = vadd.f32 %v410, %v510
    %v512 = vpop.f32.mrb[0].mxu0
    %513 = vdwg.mxu0
    %v514 = vmul.f32 %v511, 0.35355338
    %v516 = vlaneseq
    %v517 = vshrl.u32 %v516, 7
    %v518 = vsub.s32 0, %v517
    %v519 = vrot.slane %v288, %v518
    %v529 = vrot.slane %v335, 7
    %v530 = vsel %vm421, %v529, %v334
    %v531 = vrot.slane %v336, 6
    %v532 = vsel %vm424, %v531, %v530
    %v533 = vrot.slane %v337, 5
    %v534 = vsel %vm427, %v533, %v532
    %v535 = vrot.slane %v338, 4
    %v536 = vsel %vm430, %v535, %v534
    %v537 = vrot.slane %v339, 3
    %v538 = vsel %vm433, %v537, %v536
    %v539 = vrot.slane %v340, 2
    %v540 = vsel %vm436, %v539, %v538
    %v541 = vrot.slane %v341, 1
    %v542 = vsel %vm439, %v541, %v540
    %v543 = vsel %vm441, %v542, 0
    %545 = vmatprep.subr.mxu0 0.0
    %546 = vmatpush1.msra.mxu0 %v284
    %547 = vmatprep.subr.mxu0 0.0
    %548 = vmatpush1.msra.mxu0 %v285
    %549 = vmatprep.subr.mxu0 0.0
    %550 = vmatpush1.msra.mxu0 %v286
    %551 = vmatprep.subr.mxu0 0.0
    %552 = vmatpush1.msra.mxu0 %v287
    %553 = vmatprep.subr.mxu0 0.0
    %554 = vmatpush1.msra.mxu0 0.0
    %555 = vmatprep.subr.mxu0 0.0
    %556 = vmatpush1.msra.mxu0 0.0
    %557 = vmatprep.subr.mxu0 0.0
    %558 = vmatpush1.msra.mxu0 0.0
    %559 = vmatprep.subr.mxu0 0.0
    %560 = vmatpush1.msra.mxu0 0.0
    %561 = vmatprep.subr.mxu0 0.0
    %562 = vmatpush1.msra.mxu0 0.0
    %563 = vmatprep.subr.mxu0 0.0
    %564 = vmatpush1.msra.mxu0 0.0
    %565 = vmatprep.subr.mxu0 0.0
    %566 = vmatpush1.msra.mxu0 0.0
    %567 = vmatprep.subr.mxu0 0.0
    %568 = vmatpush1.msra.mxu0 0.0
    %569 = vmatprep.subr.mxu0 0.0
    %570 = vmatpush1.msra.mxu0 0.0
    %571 = vmatprep.subr.mxu0 0.0
    %572 = vmatpush1.msra.mxu0 0.0
    %573 = vmatprep.subr.mxu0 0.0
    %574 = vmatpush1.msra.mxu0 0.0
    %575 = vmatprep.subr.mxu0 0.0
    %576 = vmatpush1.msra.mxu0 0.0
    %577 = vmatprep.subr.mxu0 0.0
    %578 = vmatpush1.msra.mxu0 0.0
    %579 = vmatprep.subr.mxu0 0.0
    %580 = vmatpush1.msra.mxu0 0.0
    %581 = vmatprep.subr.mxu0 0.0
    %582 = vmatpush1.msra.mxu0 0.0
    %583 = vmatprep.subr.mxu0 0.0
    %584 = vmatpush1.msra.mxu0 0.0
    %585 = vmatprep.subr.mxu0 0.0
    %586 = vmatpush1.msra.mxu0 0.0
    %587 = vmatprep.subr.mxu0 0.0
    %588 = vmatpush1.msra.mxu0 0.0
    %589 = vmatprep.subr.mxu0 0.0
    %590 = vmatpush1.msra.mxu0 0.0
    %591 = vmatprep.subr.mxu0 0.0
    %592 = vmatpush1.msra.mxu0 0.0
    %593 = vmatprep.subr.mxu0 0.0
    %594 = vmatpush1.msra.mxu0 0.0
    %595 = vmatprep.subr.mxu0 0.0
    %596 = vmatpush1.msra.mxu0 0.0
    %597 = vmatprep.subr.mxu0 0.0
    %598 = vmatpush1.msra.mxu0 0.0
    %599 = vmatprep.subr.mxu0 0.0
    %600 = vmatpush1.msra.mxu0 0.0
    %601 = vmatprep.subr.mxu0 0.0
    %602 = vmatpush1.msra.mxu0 0.0
    %603 = vmatprep.subr.mxu0 0.0
    %604 = vmatpush1.msra.mxu0 0.0
    %605 = vmatprep.subr.mxu0 0.0
    %606 = vmatpush1.msra.mxu0 0.0
    %607 = vmatprep.subr.mxu0 0.0
    %608 = vmatpush1.msra.mxu0 0.0
    %609 = vmatprep.mubr.f32.mxu0 0.0
    %610 = vmatmul.mubr.f32.gmra.mrb[0].mxu0 %v543
    %v611 = vpop.f32.mrb[0].mxu0
    %v612 = vadd.f32 %v519, %v611
    %v613 = vpop.f32.mrb[0].mxu0
    %614 = vdwg.mxu0
    %616 = vrot.lane.b32.xlu0 %v511, 96
    %v617 = vpop.permute.xlu0 %616
    %vm618 = vcmask 64512
    %v620 = vsel %vm618, %v514, 0
    %v622 = vsel %vm618, %v617, 0
    %624 = vmatprep.subr.mxu0 0.0
    %625 = vmatpush1.xpose.msra.mxu0 %v622
    %626 = vmatprep.subr.mxu0 0.0
    %627 = vmatpush1.xpose.msra.mxu0 0.0
    %628 = vmatprep.subr.mxu0 0.0
    %629 = vmatpush1.xpose.msra.mxu0 0.0
    %630 = vmatprep.subr.mxu0 0.0
    %631 = vmatpush1.xpose.msra.mxu0 0.0
    %632 = vmatprep.subr.mxu0 0.0
    %633 = vmatpush1.xpose.msra.mxu0 0.0
    %634 = vmatprep.subr.mxu0 0.0
    %635 = vmatpush1.xpose.msra.mxu0 0.0
    %636 = vmatprep.subr.mxu0 0.0
    %637 = vmatpush1.xpose.msra.mxu0 0.0
    %638 = vmatprep.subr.mxu0 0.0
    %639 = vmatpush1.xpose.msra.mxu0 0.0
    %640 = vmatprep.subr.mxu0 0.0
    %641 = vmatpush1.xpose.msra.mxu0 0.0
    %642 = vmatprep.subr.mxu0 0.0
    %643 = vmatpush1.xpose.msra.mxu0 0.0
    %644 = vmatprep.subr.mxu0 0.0
    %645 = vmatpush1.xpose.msra.mxu0 0.0
    %646 = vmatprep.subr.mxu0 0.0
    %647 = vmatpush1.xpose.msra.mxu0 0.0
    %648 = vmatprep.subr.mxu0 0.0
    %649 = vmatpush1.xpose.msra.mxu0 0.0
    %650 = vmatprep.subr.mxu0 0.0
    %651 = vmatpush1.xpose.msra.mxu0 0.0
    %652 = vmatprep.subr.mxu0 0.0
    %653 = vmatpush1.xpose.msra.mxu0 0.0
    %654 = vmatprep.subr.mxu0 0.0
    %655 = vmatpush1.xpose.msra.mxu0 0.0
    %656 = vmatprep.subr.mxu0 0.0
    %657 = vmatpush1.xpose.msra.mxu0 0.0
    %658 = vmatprep.subr.mxu0 0.0
    %659 = vmatpush1.xpose.msra.mxu0 0.0
    %660 = vmatprep.subr.mxu0 0.0
    %661 = vmatpush1.xpose.msra.mxu0 0.0
    %662 = vmatprep.subr.mxu0 0.0
    %663 = vmatpush1.xpose.msra.mxu0 0.0
    %664 = vmatprep.subr.mxu0 0.0
    %665 = vmatpush1.xpose.msra.mxu0 0.0
    %666 = vmatprep.subr.mxu0 0.0
    %667 = vmatpush1.xpose.msra.mxu0 0.0
    %668 = vmatprep.subr.mxu0 0.0
    %669 = vmatpush1.xpose.msra.mxu0 0.0
    %670 = vmatprep.subr.mxu0 0.0
    %671 = vmatpush1.xpose.msra.mxu0 0.0
    %672 = vmatprep.subr.mxu0 0.0
    %673 = vmatpush1.xpose.msra.mxu0 0.0
    %674 = vmatprep.subr.mxu0 0.0
    %675 = vmatpush1.xpose.msra.mxu0 0.0
    %676 = vmatprep.subr.mxu0 0.0
    %677 = vmatpush1.xpose.msra.mxu0 0.0
    %678 = vmatprep.subr.mxu0 0.0
    %679 = vmatpush1.xpose.msra.mxu0 0.0
    %680 = vmatprep.subr.mxu0 0.0
    %681 = vmatpush1.xpose.msra.mxu0 0.0
    %682 = vmatprep.subr.mxu0 0.0
    %683 = vmatpush1.xpose.msra.mxu0 0.0
    %684 = vmatprep.subr.mxu0 0.0
    %685 = vmatpush1.xpose.msra.mxu0 0.0
    %686 = vmatprep.subr.mxu0 0.0
    %687 = vmatpush1.xpose.msra.mxu0 0.0
    %688 = vmatprep.mubr.f32.mxu0 0.0
    %689 = vmatmul.mubr.f32.gmra.mrb[0].mxu0 %v620
    %v690 = vpop.f32.mrb[0].mxu0
    %v691 = vadd.f32 0.0, %v690
    %v692 = vpop.f32.mrb[0].mxu0
    %693 = vdwg.mxu0
    %v694 = vsel %vm618, %v691, -inf
    %695 = vmax.xlane.f32.xlu0 %v694
    %v696 = vpop.xlane.xlu0 %695
    %v697 = vsub.f32 %v691, %v696
    %v698 = vmul.f32 %v697, 1.442695
    %v699 = vpow.pop %v698
    %v700 = vsel %vm618, %v699, 0.0
    %701 = vadd.xlane.f32.xlu0 %v700
    %v702 = vpop.xlane.xlu0 %701
    %v703 = vrcp.pop %v702
    %v704 = vmul.f32 %v699, %v703
    %v706 = vsel %vm618, %v704, 0
    %708 = vmatprep.subr.mxu0 0.0
    %709 = vmatpush1.msra.mxu0 %v612
    %710 = vmatprep.subr.mxu0 0.0
    %711 = vmatpush1.msra.mxu0 0.0
    %712 = vmatprep.subr.mxu0 0.0
    %713 = vmatpush1.msra.mxu0 0.0
    %714 = vmatprep.subr.mxu0 0.0
    %715 = vmatpush1.msra.mxu0 0.0
    %716 = vmatprep.subr.mxu0 0.0
    %717 = vmatpush1.msra.mxu0 0.0
    %718 = vmatprep.subr.mxu0 0.0
    %719 = vmatpush1.msra.mxu0 0.0
    %720 = vmatprep.subr.mxu0 0.0
    %721 = vmatpush1.msra.mxu0 0.0
    %722 = vmatprep.subr.mxu0 0.0
    %723 = vmatpush1.msra.mxu0 0.0
    %724 = vmatprep.subr.mxu0 0.0
    %725 = vmatpush1.msra.mxu0 0.0
    %726 = vmatprep.subr.mxu0 0.0
    %727 = vmatpush1.msra.mxu0 0.0
    %728 = vmatprep.subr.mxu0 0.0
    %729 = vmatpush1.msra.mxu0 0.0
    %730 = vmatprep.subr.mxu0 0.0
    %731 = vmatpush1.msra.mxu0 0.0
    %732 = vmatprep.subr.mxu0 0.0
    %733 = vmatpush1.msra.mxu0 0.0
    %734 = vmatprep.subr.mxu0 0.0
    %735 = vmatpush1.msra.mxu0 0.0
    %736 = vmatprep.subr.mxu0 0.0
    %737 = vmatpush1.msra.mxu0 0.0
    %738 = vmatprep.subr.mxu0 0.0
    %739 = vmatpush1.msra.mxu0 0.0
    %740 = vmatprep.subr.mxu0 0.0
    %741 = vmatpush1.msra.mxu0 0.0
    %742 = vmatprep.subr.mxu0 0.0
    %743 = vmatpush1.msra.mxu0 0.0
    %744 = vmatprep.subr.mxu0 0.0
    %745 = vmatpush1.msra.mxu0 0.0
    %746 = vmatprep.subr.mxu0 0.0
    %747 = vmatpush1.msra.mxu0 0.0
    %748 = vmatprep.subr.mxu0 0.0
    %749 = vmatpush1.msra.mxu0 0.0
    %750 = vmatprep.subr.mxu0 0.0
    %751 = vmatpush1.msra.mxu0 0.0
    %752 = vmatprep.subr.mxu0 0.0
    %753 = vmatpush1.msra.mxu0 0.0
    %754 = vmatprep.subr.mxu0 0.0
    %755 = vmatpush1.msra.mxu0 0.0
    %756 = vmatprep.subr.mxu0 0.0
    %757 = vmatpush1.msra.mxu0 0.0
    %758 = vmatprep.subr.mxu0 0.0
    %759 = vmatpush1.msra.mxu0 0.0
    %760 = vmatprep.subr.mxu0 0.0
    %761 = vmatpush1.msra.mxu0 0.0
    %762 = vmatprep.subr.mxu0 0.0
    %763 = vmatpush1.msra.mxu0 0.0
    %764 = vmatprep.subr.mxu0 0.0
    %765 = vmatpush1.msra.mxu0 0.0
    %766 = vmatprep.subr.mxu0 0.0
    %767 = vmatpush1.msra.mxu0 0.0
    %768 = vmatprep.subr.mxu0 0.0
    %769 = vmatpush1.msra.mxu0 0.0
    %770 = vmatprep.subr.mxu0 0.0
    %771 = vmatpush1.msra.mxu0 0.0
    %772 = vmatprep.mubr.f32.mxu0 0.0
    %773 = vmatmul.mubr.f32.gmra.mrb[0].mxu0 %v706
    %v774 = vpop.f32.mrb[0].mxu0
    %v775 = vadd.f32 0.0, %v774
    %v776 = vpop.f32.mrb[0].mxu0
    %777 = vdwg.mxu0
    %778 = vrot.lane.b32.xlu0 %v514, 120
    %v779 = vpop.permute.xlu0 %778
    %780 = vrot.lane.b32.xlu0 %v511, 88
    %v781 = vpop.permute.xlu0 %780
    %v782 = vsel %vm618, %v779, 0
    %v784 = vsel %vm618, %v781, 0
    %786 = vmatprep.subr.mxu0 0.0
    %787 = vmatpush1.xpose.msra.mxu0 %v784
    %788 = vmatprep.subr.mxu0 0.0
    %789 = vmatpush1.xpose.msra.mxu0 0.0
    %790 = vmatprep.subr.mxu0 0.0
    %791 = vmatpush1.xpose.msra.mxu0 0.0
    %792 = vmatprep.subr.mxu0 0.0
    %793 = vmatpush1.xpose.msra.mxu0 0.0
    %794 = vmatprep.subr.mxu0 0.0
    %795 = vmatpush1.xpose.msra.mxu0 0.0
    %796 = vmatprep.subr.mxu0 0.0
    %797 = vmatpush1.xpose.msra.mxu0 0.0
    %798 = vmatprep.subr.mxu0 0.0
    %799 = vmatpush1.xpose.msra.mxu0 0.0
    %800 = vmatprep.subr.mxu0 0.0
    %801 = vmatpush1.xpose.msra.mxu0 0.0
    %802 = vmatprep.subr.mxu0 0.0
    %803 = vmatpush1.xpose.msra.mxu0 0.0
    %804 = vmatprep.subr.mxu0 0.0
    %805 = vmatpush1.xpose.msra.mxu0 0.0
    %806 = vmatprep.subr.mxu0 0.0
    %807 = vmatpush1.xpose.msra.mxu0 0.0
    %808 = vmatprep.subr.mxu0 0.0
    %809 = vmatpush1.xpose.msra.mxu0 0.0
    %810 = vmatprep.subr.mxu0 0.0
    %811 = vmatpush1.xpose.msra.mxu0 0.0
    %812 = vmatprep.subr.mxu0 0.0
    %813 = vmatpush1.xpose.msra.mxu0 0.0
    %814 = vmatprep.subr.mxu0 0.0
    %815 = vmatpush1.xpose.msra.mxu0 0.0
    %816 = vmatprep.subr.mxu0 0.0
    %817 = vmatpush1.xpose.msra.mxu0 0.0
    %818 = vmatprep.subr.mxu0 0.0
    %819 = vmatpush1.xpose.msra.mxu0 0.0
    %820 = vmatprep.subr.mxu0 0.0
    %821 = vmatpush1.xpose.msra.mxu0 0.0
    %822 = vmatprep.subr.mxu0 0.0
    %823 = vmatpush1.xpose.msra.mxu0 0.0
    %824 = vmatprep.subr.mxu0 0.0
    %825 = vmatpush1.xpose.msra.mxu0 0.0
    %826 = vmatprep.subr.mxu0 0.0
    %827 = vmatpush1.xpose.msra.mxu0 0.0
    %828 = vmatprep.subr.mxu0 0.0
    %829 = vmatpush1.xpose.msra.mxu0 0.0
    %830 = vmatprep.subr.mxu0 0.0
    %831 = vmatpush1.xpose.msra.mxu0 0.0
    %832 = vmatprep.subr.mxu0 0.0
    %833 = vmatpush1.xpose.msra.mxu0 0.0
    %834 = vmatprep.subr.mxu0 0.0
    %835 = vmatpush1.xpose.msra.mxu0 0.0
    %836 = vmatprep.subr.mxu0 0.0
    %837 = vmatpush1.xpose.msra.mxu0 0.0
    %838 = vmatprep.subr.mxu0 0.0
    %839 = vmatpush1.xpose.msra.mxu0 0.0
    %840 = vmatprep.subr.mxu0 0.0
    %841 = vmatpush1.xpose.msra.mxu0 0.0
    %842 = vmatprep.subr.mxu0 0.0
    %843 = vmatpush1.xpose.msra.mxu0 0.0
    %844 = vmatprep.subr.mxu0 0.0
    %845 = vmatpush1.xpose.msra.mxu0 0.0
    %846 = vmatprep.subr.mxu0 0.0
    %847 = vmatpush1.xpose.msra.mxu0 0.0
    %848 = vmatprep.subr.mxu0 0.0
    %849 = vmatpush1.xpose.msra.mxu0 0.0
    %850 = vmatprep.mubr.f32.mxu0 0.0
    %851 = vmatmul.mubr.f32.gmra.mrb[0].mxu0 %v782
    %v852 = vpop.f32.mrb[0].mxu0
    %v853 = vadd.f32 0.0, %v852
    %v854 = vpop.f32.mrb[0].mxu0
    %855 = vdwg.mxu0
    %v856 = vsel %vm618, %v853, -inf
    %857 = vmax.xlane.f32.xlu0 %v856
    %v858 = vpop.xlane.xlu0 %857
    %v859 = vsub.f32 %v853, %v858
    %v860 = vmul.f32 %v859, 1.442695
    %v861 = vpow.pop %v860
    %v862 = vsel %vm618, %v861, 0.0
    %863 = vadd.xlane.f32.xlu0 %v862
    %v864 = vpop.xlane.xlu0 %863
    %v865 = vrcp.pop %v864
    %v866 = vmul.f32 %v861, %v865
    %868 = vrot.lane.b32.xlu0 %v612, 120
    %v869 = vpop.permute.xlu0 %868
    %v872 = vsel %vm618, %v866, 0
    %874 = vmatprep.subr.mxu0 0.0
    %875 = vmatpush1.msra.mxu0 %v869
    %876 = vmatprep.subr.mxu0 0.0
    %877 = vmatpush1.msra.mxu0 0.0
    %878 = vmatprep.subr.mxu0 0.0
    %879 = vmatpush1.msra.mxu0 0.0
    %880 = vmatprep.subr.mxu0 0.0
    %881 = vmatpush1.msra.mxu0 0.0
    %882 = vmatprep.subr.mxu0 0.0
    %883 = vmatpush1.msra.mxu0 0.0
    %884 = vmatprep.subr.mxu0 0.0
    %885 = vmatpush1.msra.mxu0 0.0
    %886 = vmatprep.subr.mxu0 0.0
    %887 = vmatpush1.msra.mxu0 0.0
    %888 = vmatprep.subr.mxu0 0.0
    %889 = vmatpush1.msra.mxu0 0.0
    %890 = vmatprep.subr.mxu0 0.0
    %891 = vmatpush1.msra.mxu0 0.0
    %892 = vmatprep.subr.mxu0 0.0
    %893 = vmatpush1.msra.mxu0 0.0
    %894 = vmatprep.subr.mxu0 0.0
    %895 = vmatpush1.msra.mxu0 0.0
    %896 = vmatprep.subr.mxu0 0.0
    %897 = vmatpush1.msra.mxu0 0.0
    %898 = vmatprep.subr.mxu0 0.0
    %899 = vmatpush1.msra.mxu0 0.0
    %900 = vmatprep.subr.mxu0 0.0
    %901 = vmatpush1.msra.mxu0 0.0
    %902 = vmatprep.subr.mxu0 0.0
    %903 = vmatpush1.msra.mxu0 0.0
    %904 = vmatprep.subr.mxu0 0.0
    %905 = vmatpush1.msra.mxu0 0.0
    %906 = vmatprep.subr.mxu0 0.0
    %907 = vmatpush1.msra.mxu0 0.0
    %908 = vmatprep.subr.mxu0 0.0
    %909 = vmatpush1.msra.mxu0 0.0
    %910 = vmatprep.subr.mxu0 0.0
    %911 = vmatpush1.msra.mxu0 0.0
    %912 = vmatprep.subr.mxu0 0.0
    %913 = vmatpush1.msra.mxu0 0.0
    %914 = vmatprep.subr.mxu0 0.0
    %915 = vmatpush1.msra.mxu0 0.0
    %916 = vmatprep.subr.mxu0 0.0
    %917 = vmatpush1.msra.mxu0 0.0
    %918 = vmatprep.subr.mxu0 0.0
    %919 = vmatpush1.msra.mxu0 0.0
    %920 = vmatprep.subr.mxu0 0.0
    %921 = vmatpush1.msra.mxu0 0.0
    %922 = vmatprep.subr.mxu0 0.0
    %923 = vmatpush1.msra.mxu0 0.0
    %924 = vmatprep.subr.mxu0 0.0
    %925 = vmatpush1.msra.mxu0 0.0
    %926 = vmatprep.subr.mxu0 0.0
    %927 = vmatpush1.msra.mxu0 0.0
    %928 = vmatprep.subr.mxu0 0.0
    %929 = vmatpush1.msra.mxu0 0.0
    %930 = vmatprep.subr.mxu0 0.0
    %931 = vmatpush1.msra.mxu0 0.0
    %932 = vmatprep.subr.mxu0 0.0
    %933 = vmatpush1.msra.mxu0 0.0
    %934 = vmatprep.subr.mxu0 0.0
    %935 = vmatpush1.msra.mxu0 0.0
    %936 = vmatprep.subr.mxu0 0.0
    %937 = vmatpush1.msra.mxu0 0.0
    %938 = vmatprep.mubr.f32.mxu0 0.0
    %939 = vmatmul.mubr.f32.gmra.mrb[0].mxu0 %v872
    %v940 = vpop.f32.mrb[0].mxu0
    %v941 = vadd.f32 0.0, %v940
    %v942 = vpop.f32.mrb[0].mxu0
    %943 = vdwg.mxu0
    %944 = vrot.lane.b32.xlu0 %v514, 112
    %v945 = vpop.permute.xlu0 %944
    %946 = vrot.lane.b32.xlu0 %v511, 80
    %v947 = vpop.permute.xlu0 %946
    %v948 = vsel %vm618, %v945, 0
    %v950 = vsel %vm618, %v947, 0
    %952 = vmatprep.subr.mxu0 0.0
    %953 = vmatpush1.xpose.msra.mxu0 %v950
    %954 = vmatprep.subr.mxu0 0.0
    %955 = vmatpush1.xpose.msra.mxu0 0.0
    %956 = vmatprep.subr.mxu0 0.0
    %957 = vmatpush1.xpose.msra.mxu0 0.0
    %958 = vmatprep.subr.mxu0 0.0
    %959 = vmatpush1.xpose.msra.mxu0 0.0
    %960 = vmatprep.subr.mxu0 0.0
    %961 = vmatpush1.xpose.msra.mxu0 0.0
    %962 = vmatprep.subr.mxu0 0.0
    %963 = vmatpush1.xpose.msra.mxu0 0.0
    %964 = vmatprep.subr.mxu0 0.0
    %965 = vmatpush1.xpose.msra.mxu0 0.0
    %966 = vmatprep.subr.mxu0 0.0
    %967 = vmatpush1.xpose.msra.mxu0 0.0
    %968 = vmatprep.subr.mxu0 0.0
    %969 = vmatpush1.xpose.msra.mxu0 0.0
    %970 = vmatprep.subr.mxu0 0.0
    %971 = vmatpush1.xpose.msra.mxu0 0.0
    %972 = vmatprep.subr.mxu0 0.0
    %973 = vmatpush1.xpose.msra.mxu0 0.0
    %974 = vmatprep.subr.mxu0 0.0
    %975 = vmatpush1.xpose.msra.mxu0 0.0
    %976 = vmatprep.subr.mxu0 0.0
    %977 = vmatpush1.xpose.msra.mxu0 0.0
    %978 = vmatprep.subr.mxu0 0.0
    %979 = vmatpush1.xpose.msra.mxu0 0.0
    %980 = vmatprep.subr.mxu0 0.0
    %981 = vmatpush1.xpose.msra.mxu0 0.0
    %982 = vmatprep.subr.mxu0 0.0
    %983 = vmatpush1.xpose.msra.mxu0 0.0
    %984 = vmatprep.subr.mxu0 0.0
    %985 = vmatpush1.xpose.msra.mxu0 0.0
    %986 = vmatprep.subr.mxu0 0.0
    %987 = vmatpush1.xpose.msra.mxu0 0.0
    %988 = vmatprep.subr.mxu0 0.0
    %989 = vmatpush1.xpose.msra.mxu0 0.0
    %990 = vmatprep.subr.mxu0 0.0
    %991 = vmatpush1.xpose.msra.mxu0 0.0
    %992 = vmatprep.subr.mxu0 0.0
    %993 = vmatpush1.xpose.msra.mxu0 0.0
    %994 = vmatprep.subr.mxu0 0.0
    %995 = vmatpush1.xpose.msra.mxu0 0.0
    %996 = vmatprep.subr.mxu0 0.0
    %997 = vmatpush1.xpose.msra.mxu0 0.0
    %998 = vmatprep.subr.mxu0 0.0
    %999 = vmatpush1.xpose.msra.mxu0 0.0
    %1000 = vmatprep.subr.mxu0 0.0
    %1001 = vmatpush1.xpose.msra.mxu0 0.0
    %1002 = vmatprep.subr.mxu0 0.0
    %1003 = vmatpush1.xpose.msra.mxu0 0.0
    %1004 = vmatprep.subr.mxu0 0.0
    %1005 = vmatpush1.xpose.msra.mxu0 0.0
    %1006 = vmatprep.subr.mxu0 0.0
    %1007 = vmatpush1.xpose.msra.mxu0 0.0
    %1008 = vmatprep.subr.mxu0 0.0
    %1009 = vmatpush1.xpose.msra.mxu0 0.0
    %1010 = vmatprep.subr.mxu0 0.0
    %1011 = vmatpush1.xpose.msra.mxu0 0.0
    %1012 = vmatprep.subr.mxu0 0.0
    %1013 = vmatpush1.xpose.msra.mxu0 0.0
    %1014 = vmatprep.subr.mxu0 0.0
    %1015 = vmatpush1.xpose.msra.mxu0 0.0
    %1016 = vmatprep.mubr.f32.mxu0 0.0
    %1017 = vmatmul.mubr.f32.gmra.mrb[0].mxu0 %v948
    %v1018 = vpop.f32.mrb[0].mxu0
    %v1019 = vadd.f32 0.0, %v1018
    %v1020 = vpop.f32.mrb[0].mxu0
    %1021 = vdwg.mxu0
    %v1022 = vsel %vm618, %v1019, -inf
    %1023 = vmax.xlane.f32.xlu0 %v1022
    %v1024 = vpop.xlane.xlu0 %1023
    %v1025 = vsub.f32 %v1019, %v1024
    %v1026 = vmul.f32 %v1025, 1.442695
    %v1027 = vpow.pop %v1026
    %v1028 = vsel %vm618, %v1027, 0.0
    %1029 = vadd.xlane.f32.xlu0 %v1028
    %v1030 = vpop.xlane.xlu0 %1029
    %v1031 = vrcp.pop %v1030
    %v1032 = vmul.f32 %v1027, %v1031
    %1033 = vrot.lane.b32.xlu0 %v612, 112
    %v1034 = vpop.permute.xlu0 %1033
    %v1037 = vsel %vm618, %v1032, 0
    %1039 = vmatprep.subr.mxu0 0.0
    %1040 = vmatpush1.msra.mxu0 %v1034
    %1041 = vmatprep.subr.mxu0 0.0
    %1042 = vmatpush1.msra.mxu0 0.0
    %1043 = vmatprep.subr.mxu0 0.0
    %1044 = vmatpush1.msra.mxu0 0.0
    %1045 = vmatprep.subr.mxu0 0.0
    %1046 = vmatpush1.msra.mxu0 0.0
    %1047 = vmatprep.subr.mxu0 0.0
    %1048 = vmatpush1.msra.mxu0 0.0
    %1049 = vmatprep.subr.mxu0 0.0
    %1050 = vmatpush1.msra.mxu0 0.0
    %1051 = vmatprep.subr.mxu0 0.0
    %1052 = vmatpush1.msra.mxu0 0.0
    %1053 = vmatprep.subr.mxu0 0.0
    %1054 = vmatpush1.msra.mxu0 0.0
    %1055 = vmatprep.subr.mxu0 0.0
    %1056 = vmatpush1.msra.mxu0 0.0
    %1057 = vmatprep.subr.mxu0 0.0
    %1058 = vmatpush1.msra.mxu0 0.0
    %1059 = vmatprep.subr.mxu0 0.0
    %1060 = vmatpush1.msra.mxu0 0.0
    %1061 = vmatprep.subr.mxu0 0.0
    %1062 = vmatpush1.msra.mxu0 0.0
    %1063 = vmatprep.subr.mxu0 0.0
    %1064 = vmatpush1.msra.mxu0 0.0
    %1065 = vmatprep.subr.mxu0 0.0
    %1066 = vmatpush1.msra.mxu0 0.0
    %1067 = vmatprep.subr.mxu0 0.0
    %1068 = vmatpush1.msra.mxu0 0.0
    %1069 = vmatprep.subr.mxu0 0.0
    %1070 = vmatpush1.msra.mxu0 0.0
    %1071 = vmatprep.subr.mxu0 0.0
    %1072 = vmatpush1.msra.mxu0 0.0
    %1073 = vmatprep.subr.mxu0 0.0
    %1074 = vmatpush1.msra.mxu0 0.0
    %1075 = vmatprep.subr.mxu0 0.0
    %1076 = vmatpush1.msra.mxu0 0.0
    %1077 = vmatprep.subr.mxu0 0.0
    %1078 = vmatpush1.msra.mxu0 0.0
    %1079 = vmatprep.subr.mxu0 0.0
    %1080 = vmatpush1.msra.mxu0 0.0
    %1081 = vmatprep.subr.mxu0 0.0
    %1082 = vmatpush1.msra.mxu0 0.0
    %1083 = vmatprep.subr.mxu0 0.0
    %1084 = vmatpush1.msra.mxu0 0.0
    %1085 = vmatprep.subr.mxu0 0.0
    %1086 = vmatpush1.msra.mxu0 0.0
    %1087 = vmatprep.subr.mxu0 0.0
    %1088 = vmatpush1.msra.mxu0 0.0
    %1089 = vmatprep.subr.mxu0 0.0
    %1090 = vmatpush1.msra.mxu0 0.0
    %1091 = vmatprep.subr.mxu0 0.0
    %1092 = vmatpush1.msra.mxu0 0.0
    %1093 = vmatprep.subr.mxu0 0.0
    %1094 = vmatpush1.msra.mxu0 0.0
    %1095 = vmatprep.subr.mxu0 0.0
    %1096 = vmatpush1.msra.mxu0 0.0
    %1097 = vmatprep.subr.mxu0 0.0
    %1098 = vmatpush1.msra.mxu0 0.0
    %1099 = vmatprep.subr.mxu0 0.0
    %1100 = vmatpush1.msra.mxu0 0.0
    %1101 = vmatprep.subr.mxu0 0.0
    %1102 = vmatpush1.msra.mxu0 0.0
    %1103 = vmatprep.mubr.f32.mxu0 0.0
    %1104 = vmatmul.mubr.f32.gmra.mrb[0].mxu0 %v1037
    %v1105 = vpop.f32.mrb[0].mxu0
    %v1106 = vadd.f32 0.0, %v1105
    %v1107 = vpop.f32.mrb[0].mxu0
    %1108 = vdwg.mxu0
    %1109 = vrot.lane.b32.xlu0 %v514, 104
    %v1110 = vpop.permute.xlu0 %1109
    %1111 = vrot.lane.b32.xlu0 %v511, 72
    %v1112 = vpop.permute.xlu0 %1111
    %v1113 = vsel %vm618, %v1110, 0
    %v1115 = vsel %vm618, %v1112, 0
    %1117 = vmatprep.subr.mxu0 0.0
    %1118 = vmatpush1.xpose.msra.mxu0 %v1115
    %1119 = vmatprep.subr.mxu0 0.0
    %1120 = vmatpush1.xpose.msra.mxu0 0.0
    %1121 = vmatprep.subr.mxu0 0.0
    %1122 = vmatpush1.xpose.msra.mxu0 0.0
    %1123 = vmatprep.subr.mxu0 0.0
    %1124 = vmatpush1.xpose.msra.mxu0 0.0
    %1125 = vmatprep.subr.mxu0 0.0
    %1126 = vmatpush1.xpose.msra.mxu0 0.0
    %1127 = vmatprep.subr.mxu0 0.0
    %1128 = vmatpush1.xpose.msra.mxu0 0.0
    %1129 = vmatprep.subr.mxu0 0.0
    %1130 = vmatpush1.xpose.msra.mxu0 0.0
    %1131 = vmatprep.subr.mxu0 0.0
    %1132 = vmatpush1.xpose.msra.mxu0 0.0
    %1133 = vmatprep.subr.mxu0 0.0
    %1134 = vmatpush1.xpose.msra.mxu0 0.0
    %1135 = vmatprep.subr.mxu0 0.0
    %1136 = vmatpush1.xpose.msra.mxu0 0.0
    %1137 = vmatprep.subr.mxu0 0.0
    %1138 = vmatpush1.xpose.msra.mxu0 0.0
    %1139 = vmatprep.subr.mxu0 0.0
    %1140 = vmatpush1.xpose.msra.mxu0 0.0
    %1141 = vmatprep.subr.mxu0 0.0
    %1142 = vmatpush1.xpose.msra.mxu0 0.0
    %1143 = vmatprep.subr.mxu0 0.0
    %1144 = vmatpush1.xpose.msra.mxu0 0.0
    %1145 = vmatprep.subr.mxu0 0.0
    %1146 = vmatpush1.xpose.msra.mxu0 0.0
    %1147 = vmatprep.subr.mxu0 0.0
    %1148 = vmatpush1.xpose.msra.mxu0 0.0
    %1149 = vmatprep.subr.mxu0 0.0
    %1150 = vmatpush1.xpose.msra.mxu0 0.0
    %1151 = vmatprep.subr.mxu0 0.0
    %1152 = vmatpush1.xpose.msra.mxu0 0.0
    %1153 = vmatprep.subr.mxu0 0.0
    %1154 = vmatpush1.xpose.msra.mxu0 0.0
    %1155 = vmatprep.subr.mxu0 0.0
    %1156 = vmatpush1.xpose.msra.mxu0 0.0
    %1157 = vmatprep.subr.mxu0 0.0
    %1158 = vmatpush1.xpose.msra.mxu0 0.0
    %1159 = vmatprep.subr.mxu0 0.0
    %1160 = vmatpush1.xpose.msra.mxu0 0.0
    %1161 = vmatprep.subr.mxu0 0.0
    %1162 = vmatpush1.xpose.msra.mxu0 0.0
    %1163 = vmatprep.subr.mxu0 0.0
    %1164 = vmatpush1.xpose.msra.mxu0 0.0
    %1165 = vmatprep.subr.mxu0 0.0
    %1166 = vmatpush1.xpose.msra.mxu0 0.0
    %1167 = vmatprep.subr.mxu0 0.0
    %1168 = vmatpush1.xpose.msra.mxu0 0.0
    %1169 = vmatprep.subr.mxu0 0.0
    %1170 = vmatpush1.xpose.msra.mxu0 0.0
    %1171 = vmatprep.subr.mxu0 0.0
    %1172 = vmatpush1.xpose.msra.mxu0 0.0
    %1173 = vmatprep.subr.mxu0 0.0
    %1174 = vmatpush1.xpose.msra.mxu0 0.0
    %1175 = vmatprep.subr.mxu0 0.0
    %1176 = vmatpush1.xpose.msra.mxu0 0.0
    %1177 = vmatprep.subr.mxu0 0.0
    %1178 = vmatpush1.xpose.msra.mxu0 0.0
    %1179 = vmatprep.subr.mxu0 0.0
    %1180 = vmatpush1.xpose.msra.mxu0 0.0
    %1181 = vmatprep.mubr.f32.mxu0 0.0
    %1182 = vmatmul.mubr.f32.gmra.mrb[0].mxu0 %v1113
    %v1183 = vpop.f32.mrb[0].mxu0
    %v1184 = vadd.f32 0.0, %v1183
    %v1185 = vpop.f32.mrb[0].mxu0
    %1186 = vdwg.mxu0
    %v1187 = vsel %vm618, %v1184, -inf
    %1188 = vmax.xlane.f32.xlu0 %v1187
    %v1189 = vpop.xlane.xlu0 %1188
    %v1190 = vsub.f32 %v1184, %v1189
    %v1191 = vmul.f32 %v1190, 1.442695
    %v1192 = vpow.pop %v1191
    %v1193 = vsel %vm618, %v1192, 0.0
    %1194 = vadd.xlane.f32.xlu0 %v1193
    %v1195 = vpop.xlane.xlu0 %1194
    %v1196 = vrcp.pop %v1195
    %v1197 = vmul.f32 %v1192, %v1196
    %1198 = vrot.lane.b32.xlu0 %v612, 104
    %v1199 = vpop.permute.xlu0 %1198
    %v1202 = vsel %vm618, %v1197, 0
    %1204 = vmatprep.subr.mxu0 0.0
    %1205 = vmatpush1.msra.mxu0 %v1199
    %1206 = vmatprep.subr.mxu0 0.0
    %1207 = vmatpush1.msra.mxu0 0.0
    %1208 = vmatprep.subr.mxu0 0.0
    %1209 = vmatpush1.msra.mxu0 0.0
    %1210 = vmatprep.subr.mxu0 0.0
    %1211 = vmatpush1.msra.mxu0 0.0
    %1212 = vmatprep.subr.mxu0 0.0
    %1213 = vmatpush1.msra.mxu0 0.0
    %1214 = vmatprep.subr.mxu0 0.0
    %1215 = vmatpush1.msra.mxu0 0.0
    %1216 = vmatprep.subr.mxu0 0.0
    %1217 = vmatpush1.msra.mxu0 0.0
    %1218 = vmatprep.subr.mxu0 0.0
    %1219 = vmatpush1.msra.mxu0 0.0
    %1220 = vmatprep.subr.mxu0 0.0
    %1221 = vmatpush1.msra.mxu0 0.0
    %1222 = vmatprep.subr.mxu0 0.0
    %1223 = vmatpush1.msra.mxu0 0.0
    %1224 = vmatprep.subr.mxu0 0.0
    %1225 = vmatpush1.msra.mxu0 0.0
    %1226 = vmatprep.subr.mxu0 0.0
    %1227 = vmatpush1.msra.mxu0 0.0
    %1228 = vmatprep.subr.mxu0 0.0
    %1229 = vmatpush1.msra.mxu0 0.0
    %1230 = vmatprep.subr.mxu0 0.0
    %1231 = vmatpush1.msra.mxu0 0.0
    %1232 = vmatprep.subr.mxu0 0.0
    %1233 = vmatpush1.msra.mxu0 0.0
    %1234 = vmatprep.subr.mxu0 0.0
    %1235 = vmatpush1.msra.mxu0 0.0
    %1236 = vmatprep.subr.mxu0 0.0
    %1237 = vmatpush1.msra.mxu0 0.0
    %1238 = vmatprep.subr.mxu0 0.0
    %1239 = vmatpush1.msra.mxu0 0.0
    %1240 = vmatprep.subr.mxu0 0.0
    %1241 = vmatpush1.msra.mxu0 0.0
    %1242 = vmatprep.subr.mxu0 0.0
    %1243 = vmatpush1.msra.mxu0 0.0
    %1244 = vmatprep.subr.mxu0 0.0
    %1245 = vmatpush1.msra.mxu0 0.0
    %1246 = vmatprep.subr.mxu0 0.0
    %1247 = vmatpush1.msra.mxu0 0.0
    %1248 = vmatprep.subr.mxu0 0.0
    %1249 = vmatpush1.msra.mxu0 0.0
    %1250 = vmatprep.subr.mxu0 0.0
    %1251 = vmatpush1.msra.mxu0 0.0
    %1252 = vmatprep.subr.mxu0 0.0
    %1253 = vmatpush1.msra.mxu0 0.0
    %1254 = vmatprep.subr.mxu0 0.0
    %1255 = vmatpush1.msra.mxu0 0.0
    %1256 = vmatprep.subr.mxu0 0.0
    %1257 = vmatpush1.msra.mxu0 0.0
    %1258 = vmatprep.subr.mxu0 0.0
    %1259 = vmatpush1.msra.mxu0 0.0
    %1260 = vmatprep.subr.mxu0 0.0
    %1261 = vmatpush1.msra.mxu0 0.0
    %1262 = vmatprep.subr.mxu0 0.0
    %1263 = vmatpush1.msra.mxu0 0.0
    %1264 = vmatprep.subr.mxu0 0.0
    %1265 = vmatpush1.msra.mxu0 0.0
    %1266 = vmatprep.subr.mxu0 0.0
    %1267 = vmatpush1.msra.mxu0 0.0
    %1268 = vmatprep.mubr.f32.mxu0 0.0
    %1269 = vmatmul.mubr.f32.gmra.mrb[0].mxu0 %v1202
    %v1270 = vpop.f32.mrb[0].mxu0
    %v1271 = vadd.f32 0.0, %v1270
    %v1272 = vpop.f32.mrb[0].mxu0
    %1273 = vdwg.mxu0
    %1275 = vrot.lane.b32.xlu0 %v941, 8
    %v1276 = vpop.permute.xlu0 %1275
    %1279 = vrot.lane.b32.xlu0 %v1106, 16
    %v1280 = vpop.permute.xlu0 %1279
    %1283 = vrot.lane.b32.xlu0 %v1271, 24
    %v1284 = vpop.permute.xlu0 %1283
    %v1286 = vsel %vm618, %v775, %v1276
    %vm1287 = vcmask 130048
    %v1288 = vsel %vm1287, %v1286, %v1280
    %vm1289 = vcmask 195584
    %v1290 = vsel %vm1289, %v1288, %v1284
    %v1292 = vlaneseq
    %v1293 = vshrl.u32 %v1292, 7
    %v1294 = vsub.s32 0, %v1293
    %v1295 = vrot.slane %v293, %v1294
    %v1298 = vsel %vm441, %v1290, 0
    %1300 = vmatprep.subr.mxu0 0.0
    %1301 = vmatpush1.msra.mxu0 %v289
    %1302 = vmatprep.subr.mxu0 0.0
    %1303 = vmatpush1.msra.mxu0 %v290
    %1304 = vmatprep.subr.mxu0 0.0
    %1305 = vmatpush1.msra.mxu0 %v291
    %1306 = vmatprep.subr.mxu0 0.0
    %1307 = vmatpush1.msra.mxu0 %v292
    %1308 = vmatprep.subr.mxu0 0.0
    %1309 = vmatpush1.msra.mxu0 0.0
    %1310 = vmatprep.subr.mxu0 0.0
    %1311 = vmatpush1.msra.mxu0 0.0
    %1312 = vmatprep.subr.mxu0 0.0
    %1313 = vmatpush1.msra.mxu0 0.0
    %1314 = vmatprep.subr.mxu0 0.0
    %1315 = vmatpush1.msra.mxu0 0.0
    %1316 = vmatprep.subr.mxu0 0.0
    %1317 = vmatpush1.msra.mxu0 0.0
    %1318 = vmatprep.subr.mxu0 0.0
    %1319 = vmatpush1.msra.mxu0 0.0
    %1320 = vmatprep.subr.mxu0 0.0
    %1321 = vmatpush1.msra.mxu0 0.0
    %1322 = vmatprep.subr.mxu0 0.0
    %1323 = vmatpush1.msra.mxu0 0.0
    %1324 = vmatprep.subr.mxu0 0.0
    %1325 = vmatpush1.msra.mxu0 0.0
    %1326 = vmatprep.subr.mxu0 0.0
    %1327 = vmatpush1.msra.mxu0 0.0
    %1328 = vmatprep.subr.mxu0 0.0
    %1329 = vmatpush1.msra.mxu0 0.0
    %1330 = vmatprep.subr.mxu0 0.0
    %1331 = vmatpush1.msra.mxu0 0.0
    %1332 = vmatprep.subr.mxu0 0.0
    %1333 = vmatpush1.msra.mxu0 0.0
    %1334 = vmatprep.subr.mxu0 0.0
    %1335 = vmatpush1.msra.mxu0 0.0
    %1336 = vmatprep.subr.mxu0 0.0
    %1337 = vmatpush1.msra.mxu0 0.0
    %1338 = vmatprep.subr.mxu0 0.0
    %1339 = vmatpush1.msra.mxu0 0.0
    %1340 = vmatprep.subr.mxu0 0.0
    %1341 = vmatpush1.msra.mxu0 0.0
    %1342 = vmatprep.subr.mxu0 0.0
    %1343 = vmatpush1.msra.mxu0 0.0
    %1344 = vmatprep.subr.mxu0 0.0
    %1345 = vmatpush1.msra.mxu0 0.0
    %1346 = vmatprep.subr.mxu0 0.0
    %1347 = vmatpush1.msra.mxu0 0.0
    %1348 = vmatprep.subr.mxu0 0.0
    %1349 = vmatpush1.msra.mxu0 0.0
    %1350 = vmatprep.subr.mxu0 0.0
    %1351 = vmatpush1.msra.mxu0 0.0
    %1352 = vmatprep.subr.mxu0 0.0
    %1353 = vmatpush1.msra.mxu0 0.0
    %1354 = vmatprep.subr.mxu0 0.0
    %1355 = vmatpush1.msra.mxu0 0.0
    %1356 = vmatprep.subr.mxu0 0.0
    %1357 = vmatpush1.msra.mxu0 0.0
    %1358 = vmatprep.subr.mxu0 0.0
    %1359 = vmatpush1.msra.mxu0 0.0
    %1360 = vmatprep.subr.mxu0 0.0
    %1361 = vmatpush1.msra.mxu0 0.0
    %1362 = vmatprep.subr.mxu0 0.0
    %1363 = vmatpush1.msra.mxu0 0.0
    %1364 = vmatprep.mubr.f32.mxu0 0.0
    %1365 = vmatmul.mubr.f32.gmra.mrb[0].mxu0 %v1298
    %v1366 = vpop.f32.mrb[0].mxu0
    %v1367 = vadd.f32 %v1295, %v1366
    %v1368 = vpop.f32.mrb[0].mxu0
    %1369 = vdwg.mxu0
    %v1371 = vrot.slane %v1367, 1
    %v1372 = vrot.slane %v1367, 2
    %v1373 = vrot.slane %v1367, 3
    %v1374 = vrot.slane %v1367, 4
    %v1375 = vrot.slane %v1367, 5
    %v1376 = vrot.slane %v1367, 6
    %v1377 = vrot.slane %v1367, 7
    %v1386 = vadd.f32 %v334, %v1367
    %v1387 = vadd.f32 %v335, %v1371
    %v1388 = vadd.f32 %v336, %v1372
    %v1389 = vadd.f32 %v337, %v1373
    %v1390 = vadd.f32 %v338, %v1374
    %v1391 = vadd.f32 %v339, %v1375
    %v1392 = vadd.f32 %v340, %v1376
    %v1393 = vadd.f32 %v341, %v1377
    %v1402 = vrot.slane %v1387, 7
    %v1403 = vsel %vm421, %v1402, %v1386
    %v1404 = vrot.slane %v1388, 6
    %v1405 = vsel %vm424, %v1404, %v1403
    %v1406 = vrot.slane %v1389, 5
    %v1407 = vsel %vm427, %v1406, %v1405
    %v1408 = vrot.slane %v1390, 4
    %v1409 = vsel %vm430, %v1408, %v1407
    %v1410 = vrot.slane %v1391, 3
    %v1411 = vsel %vm433, %v1410, %v1409
    %v1412 = vrot.slane %v1392, 2
    %v1413 = vsel %vm436, %v1412, %v1411
    %v1414 = vrot.slane %v1393, 1
    %v1415 = vsel %vm439, %v1414, %v1413
    %v1417 = vsel %vm441, %v1415, 0.0
    %1418 = vadd.xlane.f32.xlu0 %v1417
    %v1419 = vpop.xlane.xlu0 %1418
    %v1420 = vrcp.pop 32.0
    %v1421 = vmul.f32 %v1419, %v1420
    %v1423 = vrot.slane %v1421, 1
    %v1424 = vrot.slane %v1421, 2
    %v1425 = vrot.slane %v1421, 3
    %v1426 = vrot.slane %v1421, 4
    %v1427 = vrot.slane %v1421, 5
    %v1428 = vrot.slane %v1421, 6
    %v1429 = vrot.slane %v1421, 7
    %v1438 = vsub.f32 %v1386, %v1421
    %v1439 = vsub.f32 %v1387, %v1423
    %v1440 = vsub.f32 %v1388, %v1424
    %v1441 = vsub.f32 %v1389, %v1425
    %v1442 = vsub.f32 %v1390, %v1426
    %v1443 = vsub.f32 %v1391, %v1427
    %v1444 = vsub.f32 %v1392, %v1428
    %v1445 = vsub.f32 %v1393, %v1429
    %v1446 = vmul.f32 %v1438, %v1438
    %v1447 = vmul.f32 %v1439, %v1439
    %v1448 = vmul.f32 %v1440, %v1440
    %v1449 = vmul.f32 %v1441, %v1441
    %v1450 = vmul.f32 %v1442, %v1442
    %v1451 = vmul.f32 %v1443, %v1443
    %v1452 = vmul.f32 %v1444, %v1444
    %v1453 = vmul.f32 %v1445, %v1445
    %v1462 = vrot.slane %v1447, 7
    %v1463 = vsel %vm421, %v1462, %v1446
    %v1464 = vrot.slane %v1448, 6
    %v1465 = vsel %vm424, %v1464, %v1463
    %v1466 = vrot.slane %v1449, 5
    %v1467 = vsel %vm427, %v1466, %v1465
    %v1468 = vrot.slane %v1450, 4
    %v1469 = vsel %vm430, %v1468, %v1467
    %v1470 = vrot.slane %v1451, 3
    %v1471 = vsel %vm433, %v1470, %v1469
    %v1472 = vrot.slane %v1452, 2
    %v1473 = vsel %vm436, %v1472, %v1471
    %v1474 = vrot.slane %v1453, 1
    %v1475 = vsel %vm439, %v1474, %v1473
    %v1477 = vsel %vm441, %v1475, 0.0
    %1478 = vadd.xlane.f32.xlu0 %v1477
    %v1479 = vpop.xlane.xlu0 %1478
    %v1480 = vmul.f32 %v1479, %v1420
    %v1481 = vadd.f32 %v1480, 1e-05
    %v1482 = vrsqrt.pop %v1481
    %v1484 = vrot.slane %v1482, 1
    %v1485 = vrot.slane %v1482, 2
    %v1486 = vrot.slane %v1482, 3
    %v1487 = vrot.slane %v1482, 4
    %v1488 = vrot.slane %v1482, 5
    %v1489 = vrot.slane %v1482, 6
    %v1490 = vrot.slane %v1482, 7
    %v1499 = vmul.f32 %v1438, %v1482
    %v1500 = vmul.f32 %v1439, %v1484
    %v1501 = vmul.f32 %v1440, %v1485
    %v1502 = vmul.f32 %v1441, %v1486
    %v1503 = vmul.f32 %v1442, %v1487
    %v1504 = vmul.f32 %v1443, %v1488
    %v1505 = vmul.f32 %v1444, %v1489
    %v1506 = vmul.f32 %v1445, %v1490
    %v1508 = vlaneseq
    %v1509 = vshrl.u32 %v1508, 7
    %v1510 = vsub.s32 0, %v1509
    %v1511 = vrot.slane %v328, %v1510
    %v1513 = vmul.f32 %v1499, %v1511
    %v1514 = vmul.f32 %v1500, %v1511
    %v1515 = vmul.f32 %v1501, %v1511
    %v1516 = vmul.f32 %v1502, %v1511
    %v1517 = vmul.f32 %v1503, %v1511
    %v1518 = vmul.f32 %v1504, %v1511
    %v1519 = vmul.f32 %v1505, %v1511
    %v1520 = vmul.f32 %v1506, %v1511
    %v1522 = vlaneseq
    %v1523 = vshrl.u32 %v1522, 7
    %v1524 = vsub.s32 0, %v1523
    %v1525 = vrot.slane %v329, %v1524
    %v1527 = vadd.f32 %v1513, %v1525
    %v1528 = vadd.f32 %v1514, %v1525
    %v1529 = vadd.f32 %v1515, %v1525
    %v1530 = vadd.f32 %v1516, %v1525
    %v1531 = vadd.f32 %v1517, %v1525
    %v1532 = vadd.f32 %v1518, %v1525
    %v1533 = vadd.f32 %v1519, %v1525
    %v1534 = vadd.f32 %v1520, %v1525
    %v1535 = vadd.f32 %v1527, %v358
    %v1536 = vadd.f32 %v1528, %v359
    %v1537 = vadd.f32 %v1529, %v360
    %v1538 = vadd.f32 %v1530, %v361
    %v1539 = vadd.f32 %v1531, %v362
    %v1540 = vadd.f32 %v1532, %v363
    %v1541 = vadd.f32 %v1533, %v364
    %v1542 = vadd.f32 %v1534, %v365
    %v1544 = vlaneseq
    %v1545 = vshrl.u32 %v1544, 7
    %v1546 = vsub.s32 0, %v1545
    %v1547 = vrot.slane %v298, %v1546
    %v1557 = vrot.slane %v1536, 7
    %v1558 = vsel %vm421, %v1557, %v1535
    %v1559 = vrot.slane %v1537, 6
    %v1560 = vsel %vm424, %v1559, %v1558
    %v1561 = vrot.slane %v1538, 5
    %v1562 = vsel %vm427, %v1561, %v1560
    %v1563 = vrot.slane %v1539, 4
    %v1564 = vsel %vm430, %v1563, %v1562
    %v1565 = vrot.slane %v1540, 3
    %v1566 = vsel %vm433, %v1565, %v1564
    %v1567 = vrot.slane %v1541, 2
    %v1568 = vsel %vm436, %v1567, %v1566
    %v1569 = vrot.slane %v1542, 1
    %v1570 = vsel %vm439, %v1569, %v1568
    %v1571 = vsel %vm441, %v1570, 0
    %1573 = vmatprep.subr.mxu0 0.0
    %1574 = vmatpush1.msra.mxu0 %v294
    %1575 = vmatprep.subr.mxu0 0.0
    %1576 = vmatpush1.msra.mxu0 %v295
    %1577 = vmatprep.subr.mxu0 0.0
    %1578 = vmatpush1.msra.mxu0 %v296
    %1579 = vmatprep.subr.mxu0 0.0
    %1580 = vmatpush1.msra.mxu0 %v297
    %1581 = vmatprep.subr.mxu0 0.0
    %1582 = vmatpush1.msra.mxu0 0.0
    %1583 = vmatprep.subr.mxu0 0.0
    %1584 = vmatpush1.msra.mxu0 0.0
    %1585 = vmatprep.subr.mxu0 0.0
    %1586 = vmatpush1.msra.mxu0 0.0
    %1587 = vmatprep.subr.mxu0 0.0
    %1588 = vmatpush1.msra.mxu0 0.0
    %1589 = vmatprep.subr.mxu0 0.0
    %1590 = vmatpush1.msra.mxu0 0.0
    %1591 = vmatprep.subr.mxu0 0.0
    %1592 = vmatpush1.msra.mxu0 0.0
    %1593 = vmatprep.subr.mxu0 0.0
    %1594 = vmatpush1.msra.mxu0 0.0
    %1595 = vmatprep.subr.mxu0 0.0
    %1596 = vmatpush1.msra.mxu0 0.0
    %1597 = vmatprep.subr.mxu0 0.0
    %1598 = vmatpush1.msra.mxu0 0.0
    %1599 = vmatprep.subr.mxu0 0.0
    %1600 = vmatpush1.msra.mxu0 0.0
    %1601 = vmatprep.subr.mxu0 0.0
    %1602 = vmatpush1.msra.mxu0 0.0
    %1603 = vmatprep.subr.mxu0 0.0
    %1604 = vmatpush1.msra.mxu0 0.0
    %1605 = vmatprep.subr.mxu0 0.0
    %1606 = vmatpush1.msra.mxu0 0.0
    %1607 = vmatprep.subr.mxu0 0.0
    %1608 = vmatpush1.msra.mxu0 0.0
    %1609 = vmatprep.subr.mxu0 0.0
    %1610 = vmatpush1.msra.mxu0 0.0
    %1611 = vmatprep.subr.mxu0 0.0
    %1612 = vmatpush1.msra.mxu0 0.0
    %1613 = vmatprep.subr.mxu0 0.0
    %1614 = vmatpush1.msra.mxu0 0.0
    %1615 = vmatprep.subr.mxu0 0.0
    %1616 = vmatpush1.msra.mxu0 0.0
    %1617 = vmatprep.subr.mxu0 0.0
    %1618 = vmatpush1.msra.mxu0 0.0
    %1619 = vmatprep.subr.mxu0 0.0
    %1620 = vmatpush1.msra.mxu0 0.0
    %1621 = vmatprep.subr.mxu0 0.0
    %1622 = vmatpush1.msra.mxu0 0.0
    %1623 = vmatprep.subr.mxu0 0.0
    %1624 = vmatpush1.msra.mxu0 0.0
    %1625 = vmatprep.subr.mxu0 0.0
    %1626 = vmatpush1.msra.mxu0 0.0
    %1627 = vmatprep.subr.mxu0 0.0
    %1628 = vmatpush1.msra.mxu0 0.0
    %1629 = vmatprep.subr.mxu0 0.0
    %1630 = vmatpush1.msra.mxu0 0.0
    %1631 = vmatprep.subr.mxu0 0.0
    %1632 = vmatpush1.msra.mxu0 0.0
    %1633 = vmatprep.subr.mxu0 0.0
    %1634 = vmatpush1.msra.mxu0 0.0
    %1635 = vmatprep.subr.mxu0 0.0
    %1636 = vmatpush1.msra.mxu0 0.0
    %1637 = vmatprep.mubr.f32.mxu0 0.0
    %1638 = vmatmul.mubr.f32.gmra.mrb[0].mxu0 %v1571
    %v1639 = vpop.f32.mrb[0].mxu0
    %v1640 = vadd.f32 %v1547, %v1639
    %v1641 = vpop.f32.mrb[0].mxu0
    %1642 = vdwg.mxu0
    %v1643 = vmul.f32 %v1640, 0.35355338
    %v1645 = vlaneseq
    %v1646 = vshrl.u32 %v1645, 7
    %v1647 = vsub.s32 0, %v1646
    %v1648 = vrot.slane %v303, %v1647
    %v1666 = vrot.slane %v391, 7
    %v1667 = vsel %vm421, %v1666, %v390
    %v1668 = vrot.slane %v392, 6
    %v1669 = vsel %vm424, %v1668, %v1667
    %v1670 = vrot.slane %v393, 5
    %v1671 = vsel %vm427, %v1670, %v1669
    %v1672 = vrot.slane %v394, 4
    %v1673 = vsel %vm430, %v1672, %v1671
    %v1674 = vrot.slane %v395, 3
    %v1675 = vsel %vm433, %v1674, %v1673
    %v1676 = vrot.slane %v396, 2
    %v1677 = vsel %vm436, %v1676, %v1675
    %v1678 = vrot.slane %v397, 1
    %v1679 = vsel %vm439, %v1678, %v1677
    %v1680 = vrot.slane %v399, 7
    %v1681 = vsel %vm421, %v1680, %v398
    %v1682 = vrot.slane %v400, 6
    %v1683 = vsel %vm424, %v1682, %v1681
    %v1684 = vrot.slane %v401, 5
    %v1685 = vsel %vm427, %v1684, %v1683
    %v1686 = vrot.slane %v402, 4
    %v1687 = vsel %vm430, %v1686, %v1685
    %v1688 = vrot.slane %v403, 3
    %v1689 = vsel %vm433, %v1688, %v1687
    %v1690 = vrot.slane %v404, 2
    %v1691 = vsel %vm436, %v1690, %v1689
    %v1692 = vrot.slane %v405, 1
    %v1693 = vsel %vm439, %v1692, %v1691
    %v1694 = vsel %vm441, %v1679, 0
    %v1696 = vsel %vm441, %v1693, 0
    %1698 = vmatprep.subr.mxu0 0.0
    %1699 = vmatpush1.msra.mxu0 %v299
    %1700 = vmatprep.subr.mxu0 0.0
    %1701 = vmatpush1.msra.mxu0 %v300
    %1702 = vmatprep.subr.mxu0 0.0
    %1703 = vmatpush1.msra.mxu0 %v301
    %1704 = vmatprep.subr.mxu0 0.0
    %1705 = vmatpush1.msra.mxu0 %v302
    %1706 = vmatprep.subr.mxu0 0.0
    %1707 = vmatpush1.msra.mxu0 0.0
    %1708 = vmatprep.subr.mxu0 0.0
    %1709 = vmatpush1.msra.mxu0 0.0
    %1710 = vmatprep.subr.mxu0 0.0
    %1711 = vmatpush1.msra.mxu0 0.0
    %1712 = vmatprep.subr.mxu0 0.0
    %1713 = vmatpush1.msra.mxu0 0.0
    %1714 = vmatprep.subr.mxu0 0.0
    %1715 = vmatpush1.msra.mxu0 0.0
    %1716 = vmatprep.subr.mxu0 0.0
    %1717 = vmatpush1.msra.mxu0 0.0
    %1718 = vmatprep.subr.mxu0 0.0
    %1719 = vmatpush1.msra.mxu0 0.0
    %1720 = vmatprep.subr.mxu0 0.0
    %1721 = vmatpush1.msra.mxu0 0.0
    %1722 = vmatprep.subr.mxu0 0.0
    %1723 = vmatpush1.msra.mxu0 0.0
    %1724 = vmatprep.subr.mxu0 0.0
    %1725 = vmatpush1.msra.mxu0 0.0
    %1726 = vmatprep.subr.mxu0 0.0
    %1727 = vmatpush1.msra.mxu0 0.0
    %1728 = vmatprep.subr.mxu0 0.0
    %1729 = vmatpush1.msra.mxu0 0.0
    %1730 = vmatprep.subr.mxu0 0.0
    %1731 = vmatpush1.msra.mxu0 0.0
    %1732 = vmatprep.subr.mxu0 0.0
    %1733 = vmatpush1.msra.mxu0 0.0
    %1734 = vmatprep.subr.mxu0 0.0
    %1735 = vmatpush1.msra.mxu0 0.0
    %1736 = vmatprep.subr.mxu0 0.0
    %1737 = vmatpush1.msra.mxu0 0.0
    %1738 = vmatprep.subr.mxu0 0.0
    %1739 = vmatpush1.msra.mxu0 0.0
    %1740 = vmatprep.subr.mxu0 0.0
    %1741 = vmatpush1.msra.mxu0 0.0
    %1742 = vmatprep.subr.mxu0 0.0
    %1743 = vmatpush1.msra.mxu0 0.0
    %1744 = vmatprep.subr.mxu0 0.0
    %1745 = vmatpush1.msra.mxu0 0.0
    %1746 = vmatprep.subr.mxu0 0.0
    %1747 = vmatpush1.msra.mxu0 0.0
    %1748 = vmatprep.subr.mxu0 0.0
    %1749 = vmatpush1.msra.mxu0 0.0
    %1750 = vmatprep.subr.mxu0 0.0
    %1751 = vmatpush1.msra.mxu0 0.0
    %1752 = vmatprep.subr.mxu0 0.0
    %1753 = vmatpush1.msra.mxu0 0.0
    %1754 = vmatprep.subr.mxu0 0.0
    %1755 = vmatpush1.msra.mxu0 0.0
    %1756 = vmatprep.subr.mxu0 0.0
    %1757 = vmatpush1.msra.mxu0 0.0
    %1758 = vmatprep.subr.mxu0 0.0
    %1759 = vmatpush1.msra.mxu0 0.0
    %1760 = vmatprep.subr.mxu0 0.0
    %1761 = vmatpush1.msra.mxu0 0.0
    %1762 = vmatprep.mubr.f32.mxu0 0.0
    %1763 = vmatmul.mubr.f32.gmra.mrb[0].mxu0 %v1694
    %v1764 = vpop.f32.mrb[0].mxu0
    %v1765 = vadd.f32 %v1648, %v1764
    %v1766 = vpop.f32.mrb[0].mxu0
    %1767 = vmatprep.mubr.f32.mxu0 0.0
    %1768 = vmatmul.mubr.f32.gmra.mrb[0].mxu0 %v1696
    %v1769 = vpop.f32.mrb[0].mxu0
    %v1770 = vadd.f32 %v1648, %v1769
    %v1771 = vpop.f32.mrb[0].mxu0
    %1772 = vdwg.mxu0
    %v1774 = vlaneseq
    %v1775 = vshrl.u32 %v1774, 7
    %v1776 = vsub.s32 0, %v1775
    %v1777 = vrot.slane %v308, %v1776
    %v1795 = vrot.slane %v343, 7
    %v1796 = vsel %vm421, %v1795, %v342
    %v1797 = vrot.slane %v344, 6
    %v1798 = vsel %vm424, %v1797, %v1796
    %v1799 = vrot.slane %v345, 5
    %v1800 = vsel %vm427, %v1799, %v1798
    %v1801 = vrot.slane %v346, 4
    %v1802 = vsel %vm430, %v1801, %v1800
    %v1803 = vrot.slane %v347, 3
    %v1804 = vsel %vm433, %v1803, %v1802
    %v1805 = vrot.slane %v348, 2
    %v1806 = vsel %vm436, %v1805, %v1804
    %v1807 = vrot.slane %v349, 1
    %v1808 = vsel %vm439, %v1807, %v1806
    %v1809 = vrot.slane %v351, 7
    %v1810 = vsel %vm421, %v1809, %v350
    %v1811 = vrot.slane %v352, 6
    %v1812 = vsel %vm424, %v1811, %v1810
    %v1813 = vrot.slane %v353, 5
    %v1814 = vsel %vm427, %v1813, %v1812
    %v1815 = vrot.slane %v354, 4
    %v1816 = vsel %vm430, %v1815, %v1814
    %v1817 = vrot.slane %v355, 3
    %v1818 = vsel %vm433, %v1817, %v1816
    %v1819 = vrot.slane %v356, 2
    %v1820 = vsel %vm436, %v1819, %v1818
    %v1821 = vrot.slane %v357, 1
    %v1822 = vsel %vm439, %v1821, %v1820
    %v1823 = vsel %vm441, %v1808, 0
    %v1825 = vsel %vm441, %v1822, 0
    %1827 = vmatprep.subr.mxu0 0.0
    %1828 = vmatpush1.msra.mxu0 %v304
    %1829 = vmatprep.subr.mxu0 0.0
    %1830 = vmatpush1.msra.mxu0 %v305
    %1831 = vmatprep.subr.mxu0 0.0
    %1832 = vmatpush1.msra.mxu0 %v306
    %1833 = vmatprep.subr.mxu0 0.0
    %1834 = vmatpush1.msra.mxu0 %v307
    %1835 = vmatprep.subr.mxu0 0.0
    %1836 = vmatpush1.msra.mxu0 0.0
    %1837 = vmatprep.subr.mxu0 0.0
    %1838 = vmatpush1.msra.mxu0 0.0
    %1839 = vmatprep.subr.mxu0 0.0
    %1840 = vmatpush1.msra.mxu0 0.0
    %1841 = vmatprep.subr.mxu0 0.0
    %1842 = vmatpush1.msra.mxu0 0.0
    %1843 = vmatprep.subr.mxu0 0.0
    %1844 = vmatpush1.msra.mxu0 0.0
    %1845 = vmatprep.subr.mxu0 0.0
    %1846 = vmatpush1.msra.mxu0 0.0
    %1847 = vmatprep.subr.mxu0 0.0
    %1848 = vmatpush1.msra.mxu0 0.0
    %1849 = vmatprep.subr.mxu0 0.0
    %1850 = vmatpush1.msra.mxu0 0.0
    %1851 = vmatprep.subr.mxu0 0.0
    %1852 = vmatpush1.msra.mxu0 0.0
    %1853 = vmatprep.subr.mxu0 0.0
    %1854 = vmatpush1.msra.mxu0 0.0
    %1855 = vmatprep.subr.mxu0 0.0
    %1856 = vmatpush1.msra.mxu0 0.0
    %1857 = vmatprep.subr.mxu0 0.0
    %1858 = vmatpush1.msra.mxu0 0.0
    %1859 = vmatprep.subr.mxu0 0.0
    %1860 = vmatpush1.msra.mxu0 0.0
    %1861 = vmatprep.subr.mxu0 0.0
    %1862 = vmatpush1.msra.mxu0 0.0
    %1863 = vmatprep.subr.mxu0 0.0
    %1864 = vmatpush1.msra.mxu0 0.0
    %1865 = vmatprep.subr.mxu0 0.0
    %1866 = vmatpush1.msra.mxu0 0.0
    %1867 = vmatprep.subr.mxu0 0.0
    %1868 = vmatpush1.msra.mxu0 0.0
    %1869 = vmatprep.subr.mxu0 0.0
    %1870 = vmatpush1.msra.mxu0 0.0
    %1871 = vmatprep.subr.mxu0 0.0
    %1872 = vmatpush1.msra.mxu0 0.0
    %1873 = vmatprep.subr.mxu0 0.0
    %1874 = vmatpush1.msra.mxu0 0.0
    %1875 = vmatprep.subr.mxu0 0.0
    %1876 = vmatpush1.msra.mxu0 0.0
    %1877 = vmatprep.subr.mxu0 0.0
    %1878 = vmatpush1.msra.mxu0 0.0
    %1879 = vmatprep.subr.mxu0 0.0
    %1880 = vmatpush1.msra.mxu0 0.0
    %1881 = vmatprep.subr.mxu0 0.0
    %1882 = vmatpush1.msra.mxu0 0.0
    %1883 = vmatprep.subr.mxu0 0.0
    %1884 = vmatpush1.msra.mxu0 0.0
    %1885 = vmatprep.subr.mxu0 0.0
    %1886 = vmatpush1.msra.mxu0 0.0
    %1887 = vmatprep.subr.mxu0 0.0
    %1888 = vmatpush1.msra.mxu0 0.0
    %1889 = vmatprep.subr.mxu0 0.0
    %1890 = vmatpush1.msra.mxu0 0.0
    %1891 = vmatprep.mubr.f32.mxu0 0.0
    %1892 = vmatmul.mubr.f32.gmra.mrb[0].mxu0 %v1823
    %v1893 = vpop.f32.mrb[0].mxu0
    %v1894 = vadd.f32 %v1777, %v1893
    %v1895 = vpop.f32.mrb[0].mxu0
    %1896 = vmatprep.mubr.f32.mxu0 0.0
    %1897 = vmatmul.mubr.f32.gmra.mrb[0].mxu0 %v1825
    %v1898 = vpop.f32.mrb[0].mxu0
    %v1899 = vadd.f32 %v1777, %v1898
    %v1900 = vpop.f32.mrb[0].mxu0
    %1901 = vdwg.mxu0
    %v1903 = vsel %vm618, %v1643, 0
    %v1906 = vsel %vm618, %v1765, 0
    %v1909 = vsel %vm618, %v1770, 0
    %1911 = vmatprep.subr.mxu0 0.0
    %1912 = vmatpush1.xpose.msra.mxu0 %v1906
    %1913 = vmatprep.subr.mxu0 0.0
    %1914 = vmatpush1.xpose.msra.mxu0 %v1909
    %1915 = vmatprep.subr.mxu0 0.0
    %1916 = vmatpush1.xpose.msra.mxu0 0.0
    %1917 = vmatprep.subr.mxu0 0.0
    %1918 = vmatpush1.xpose.msra.mxu0 0.0
    %1919 = vmatprep.subr.mxu0 0.0
    %1920 = vmatpush1.xpose.msra.mxu0 0.0
    %1921 = vmatprep.subr.mxu0 0.0
    %1922 = vmatpush1.xpose.msra.mxu0 0.0
    %1923 = vmatprep.subr.mxu0 0.0
    %1924 = vmatpush1.xpose.msra.mxu0 0.0
    %1925 = vmatprep.subr.mxu0 0.0
    %1926 = vmatpush1.xpose.msra.mxu0 0.0
    %1927 = vmatprep.subr.mxu0 0.0
    %1928 = vmatpush1.xpose.msra.mxu0 0.0
    %1929 = vmatprep.subr.mxu0 0.0
    %1930 = vmatpush1.xpose.msra.mxu0 0.0
    %1931 = vmatprep.subr.mxu0 0.0
    %1932 = vmatpush1.xpose.msra.mxu0 0.0
    %1933 = vmatprep.subr.mxu0 0.0
    %1934 = vmatpush1.xpose.msra.mxu0 0.0
    %1935 = vmatprep.subr.mxu0 0.0
    %1936 = vmatpush1.xpose.msra.mxu0 0.0
    %1937 = vmatprep.subr.mxu0 0.0
    %1938 = vmatpush1.xpose.msra.mxu0 0.0
    %1939 = vmatprep.subr.mxu0 0.0
    %1940 = vmatpush1.xpose.msra.mxu0 0.0
    %1941 = vmatprep.subr.mxu0 0.0
    %1942 = vmatpush1.xpose.msra.mxu0 0.0
    %1943 = vmatprep.subr.mxu0 0.0
    %1944 = vmatpush1.xpose.msra.mxu0 0.0
    %1945 = vmatprep.subr.mxu0 0.0
    %1946 = vmatpush1.xpose.msra.mxu0 0.0
    %1947 = vmatprep.subr.mxu0 0.0
    %1948 = vmatpush1.xpose.msra.mxu0 0.0
    %1949 = vmatprep.subr.mxu0 0.0
    %1950 = vmatpush1.xpose.msra.mxu0 0.0
    %1951 = vmatprep.subr.mxu0 0.0
    %1952 = vmatpush1.xpose.msra.mxu0 0.0
    %1953 = vmatprep.subr.mxu0 0.0
    %1954 = vmatpush1.xpose.msra.mxu0 0.0
    %1955 = vmatprep.subr.mxu0 0.0
    %1956 = vmatpush1.xpose.msra.mxu0 0.0
    %1957 = vmatprep.subr.mxu0 0.0
    %1958 = vmatpush1.xpose.msra.mxu0 0.0
    %1959 = vmatprep.subr.mxu0 0.0
    %1960 = vmatpush1.xpose.msra.mxu0 0.0
    %1961 = vmatprep.subr.mxu0 0.0
    %1962 = vmatpush1.xpose.msra.mxu0 0.0
    %1963 = vmatprep.subr.mxu0 0.0
    %1964 = vmatpush1.xpose.msra.mxu0 0.0
    %1965 = vmatprep.subr.mxu0 0.0
    %1966 = vmatpush1.xpose.msra.mxu0 0.0
    %1967 = vmatprep.subr.mxu0 0.0
    %1968 = vmatpush1.xpose.msra.mxu0 0.0
    %1969 = vmatprep.subr.mxu0 0.0
    %1970 = vmatpush1.xpose.msra.mxu0 0.0
    %1971 = vmatprep.subr.mxu0 0.0
    %1972 = vmatpush1.xpose.msra.mxu0 0.0
    %1973 = vmatprep.subr.mxu0 0.0
    %1974 = vmatpush1.xpose.msra.mxu0 0.0
    %1975 = vmatprep.mubr.f32.mxu0 0.0
    %1976 = vmatmul.mubr.f32.gmra.mrb[0].mxu0 %v1903
    %v1977 = vpop.f32.mrb[0].mxu0
    %v1978 = vadd.f32 0.0, %v1977
    %v1979 = vpop.f32.mrb[0].mxu0
    %1980 = vdwg.mxu0
    %v1981 = vsel %vm1287, %v1978, -inf
    %1982 = vmax.xlane.f32.xlu0 %v1981
    %v1983 = vpop.xlane.xlu0 %1982
    %v1984 = vsub.f32 %v1978, %v1983
    %v1985 = vmul.f32 %v1984, 1.442695
    %v1986 = vpow.pop %v1985
    %v1987 = vsel %vm1287, %v1986, 0.0
    %1988 = vadd.xlane.f32.xlu0 %v1987
    %v1989 = vpop.xlane.xlu0 %1988
    %v1990 = vrcp.pop %v1989
    %v1991 = vmul.f32 %v1986, %v1990
    %v1993 = vsel %vm1287, %v1991, 0
    %1995 = vmatprep.subr.mxu0 0.0
    %1996 = vmatpush1.msra.mxu0 %v1894
    %1997 = vmatprep.subr.mxu0 0.0
    %1998 = vmatpush1.msra.mxu0 %v1899
    %1999 = vmatprep.subr.mxu0 0.0
    %2000 = vmatpush1.msra.mxu0 0.0
    %2001 = vmatprep.subr.mxu0 0.0
    %2002 = vmatpush1.msra.mxu0 0.0
    %2003 = vmatprep.subr.mxu0 0.0
    %2004 = vmatpush1.msra.mxu0 0.0
    %2005 = vmatprep.subr.mxu0 0.0
    %2006 = vmatpush1.msra.mxu0 0.0
    %2007 = vmatprep.subr.mxu0 0.0
    %2008 = vmatpush1.msra.mxu0 0.0
    %2009 = vmatprep.subr.mxu0 0.0
    %2010 = vmatpush1.msra.mxu0 0.0
    %2011 = vmatprep.subr.mxu0 0.0
    %2012 = vmatpush1.msra.mxu0 0.0
    %2013 = vmatprep.subr.mxu0 0.0
    %2014 = vmatpush1.msra.mxu0 0.0
    %2015 = vmatprep.subr.mxu0 0.0
    %2016 = vmatpush1.msra.mxu0 0.0
    %2017 = vmatprep.subr.mxu0 0.0
    %2018 = vmatpush1.msra.mxu0 0.0
    %2019 = vmatprep.subr.mxu0 0.0
    %2020 = vmatpush1.msra.mxu0 0.0
    %2021 = vmatprep.subr.mxu0 0.0
    %2022 = vmatpush1.msra.mxu0 0.0
    %2023 = vmatprep.subr.mxu0 0.0
    %2024 = vmatpush1.msra.mxu0 0.0
    %2025 = vmatprep.subr.mxu0 0.0
    %2026 = vmatpush1.msra.mxu0 0.0
    %2027 = vmatprep.subr.mxu0 0.0
    %2028 = vmatpush1.msra.mxu0 0.0
    %2029 = vmatprep.subr.mxu0 0.0
    %2030 = vmatpush1.msra.mxu0 0.0
    %2031 = vmatprep.subr.mxu0 0.0
    %2032 = vmatpush1.msra.mxu0 0.0
    %2033 = vmatprep.subr.mxu0 0.0
    %2034 = vmatpush1.msra.mxu0 0.0
    %2035 = vmatprep.subr.mxu0 0.0
    %2036 = vmatpush1.msra.mxu0 0.0
    %2037 = vmatprep.subr.mxu0 0.0
    %2038 = vmatpush1.msra.mxu0 0.0
    %2039 = vmatprep.subr.mxu0 0.0
    %2040 = vmatpush1.msra.mxu0 0.0
    %2041 = vmatprep.subr.mxu0 0.0
    %2042 = vmatpush1.msra.mxu0 0.0
    %2043 = vmatprep.subr.mxu0 0.0
    %2044 = vmatpush1.msra.mxu0 0.0
    %2045 = vmatprep.subr.mxu0 0.0
    %2046 = vmatpush1.msra.mxu0 0.0
    %2047 = vmatprep.subr.mxu0 0.0
    %2048 = vmatpush1.msra.mxu0 0.0
    %2049 = vmatprep.subr.mxu0 0.0
    %2050 = vmatpush1.msra.mxu0 0.0
    %2051 = vmatprep.subr.mxu0 0.0
    %2052 = vmatpush1.msra.mxu0 0.0
    %2053 = vmatprep.subr.mxu0 0.0
    %2054 = vmatpush1.msra.mxu0 0.0
    %2055 = vmatprep.subr.mxu0 0.0
    %2056 = vmatpush1.msra.mxu0 0.0
    %2057 = vmatprep.subr.mxu0 0.0
    %2058 = vmatpush1.msra.mxu0 0.0
    %2059 = vmatprep.mubr.f32.mxu0 0.0
    %2060 = vmatmul.mubr.f32.gmra.mrb[0].mxu0 %v1993
    %v2061 = vpop.f32.mrb[0].mxu0
    %v2062 = vadd.f32 0.0, %v2061
    %v2063 = vpop.f32.mrb[0].mxu0
    %2064 = vdwg.mxu0
    %2065 = vrot.lane.b32.xlu0 %v1643, 120
    %v2066 = vpop.permute.xlu0 %2065
    %2067 = vrot.lane.b32.xlu0 %v1765, 120
    %v2068 = vpop.permute.xlu0 %2067
    %2069 = vrot.lane.b32.xlu0 %v1770, 120
    %v2070 = vpop.permute.xlu0 %2069
    %v2071 = vsel %vm618, %v2066, 0
    %v2073 = vsel %vm618, %v2068, 0
    %v2075 = vsel %vm618, %v2070, 0
    %2077 = vmatprep.subr.mxu0 0.0
    %2078 = vmatpush1.xpose.msra.mxu0 %v2073
    %2079 = vmatprep.subr.mxu0 0.0
    %2080 = vmatpush1.xpose.msra.mxu0 %v2075
    %2081 = vmatprep.subr.mxu0 0.0
    %2082 = vmatpush1.xpose.msra.mxu0 0.0
    %2083 = vmatprep.subr.mxu0 0.0
    %2084 = vmatpush1.xpose.msra.mxu0 0.0
    %2085 = vmatprep.subr.mxu0 0.0
    %2086 = vmatpush1.xpose.msra.mxu0 0.0
    %2087 = vmatprep.subr.mxu0 0.0
    %2088 = vmatpush1.xpose.msra.mxu0 0.0
    %2089 = vmatprep.subr.mxu0 0.0
    %2090 = vmatpush1.xpose.msra.mxu0 0.0
    %2091 = vmatprep.subr.mxu0 0.0
    %2092 = vmatpush1.xpose.msra.mxu0 0.0
    %2093 = vmatprep.subr.mxu0 0.0
    %2094 = vmatpush1.xpose.msra.mxu0 0.0
    %2095 = vmatprep.subr.mxu0 0.0
    %2096 = vmatpush1.xpose.msra.mxu0 0.0
    %2097 = vmatprep.subr.mxu0 0.0
    %2098 = vmatpush1.xpose.msra.mxu0 0.0
    %2099 = vmatprep.subr.mxu0 0.0
    %2100 = vmatpush1.xpose.msra.mxu0 0.0
    %2101 = vmatprep.subr.mxu0 0.0
    %2102 = vmatpush1.xpose.msra.mxu0 0.0
    %2103 = vmatprep.subr.mxu0 0.0
    %2104 = vmatpush1.xpose.msra.mxu0 0.0
    %2105 = vmatprep.subr.mxu0 0.0
    %2106 = vmatpush1.xpose.msra.mxu0 0.0
    %2107 = vmatprep.subr.mxu0 0.0
    %2108 = vmatpush1.xpose.msra.mxu0 0.0
    %2109 = vmatprep.subr.mxu0 0.0
    %2110 = vmatpush1.xpose.msra.mxu0 0.0
    %2111 = vmatprep.subr.mxu0 0.0
    %2112 = vmatpush1.xpose.msra.mxu0 0.0
    %2113 = vmatprep.subr.mxu0 0.0
    %2114 = vmatpush1.xpose.msra.mxu0 0.0
    %2115 = vmatprep.subr.mxu0 0.0
    %2116 = vmatpush1.xpose.msra.mxu0 0.0
    %2117 = vmatprep.subr.mxu0 0.0
    %2118 = vmatpush1.xpose.msra.mxu0 0.0
    %2119 = vmatprep.subr.mxu0 0.0
    %2120 = vmatpush1.xpose.msra.mxu0 0.0
    %2121 = vmatprep.subr.mxu0 0.0
    %2122 = vmatpush1.xpose.msra.mxu0 0.0
    %2123 = vmatprep.subr.mxu0 0.0
    %2124 = vmatpush1.xpose.msra.mxu0 0.0
    %2125 = vmatprep.subr.mxu0 0.0
    %2126 = vmatpush1.xpose.msra.mxu0 0.0
    %2127 = vmatprep.subr.mxu0 0.0
    %2128 = vmatpush1.xpose.msra.mxu0 0.0
    %2129 = vmatprep.subr.mxu0 0.0
    %2130 = vmatpush1.xpose.msra.mxu0 0.0
    %2131 = vmatprep.subr.mxu0 0.0
    %2132 = vmatpush1.xpose.msra.mxu0 0.0
    %2133 = vmatprep.subr.mxu0 0.0
    %2134 = vmatpush1.xpose.msra.mxu0 0.0
    %2135 = vmatprep.subr.mxu0 0.0
    %2136 = vmatpush1.xpose.msra.mxu0 0.0
    %2137 = vmatprep.subr.mxu0 0.0
    %2138 = vmatpush1.xpose.msra.mxu0 0.0
    %2139 = vmatprep.subr.mxu0 0.0
    %2140 = vmatpush1.xpose.msra.mxu0 0.0
    %2141 = vmatprep.mubr.f32.mxu0 0.0
    %2142 = vmatmul.mubr.f32.gmra.mrb[0].mxu0 %v2071
    %v2143 = vpop.f32.mrb[0].mxu0
    %v2144 = vadd.f32 0.0, %v2143
    %v2145 = vpop.f32.mrb[0].mxu0
    %2146 = vdwg.mxu0
    %v2147 = vsel %vm1287, %v2144, -inf
    %2148 = vmax.xlane.f32.xlu0 %v2147
    %v2149 = vpop.xlane.xlu0 %2148
    %v2150 = vsub.f32 %v2144, %v2149
    %v2151 = vmul.f32 %v2150, 1.442695
    %v2152 = vpow.pop %v2151
    %v2153 = vsel %vm1287, %v2152, 0.0
    %2154 = vadd.xlane.f32.xlu0 %v2153
    %v2155 = vpop.xlane.xlu0 %2154
    %v2156 = vrcp.pop %v2155
    %v2157 = vmul.f32 %v2152, %v2156
    %2160 = vrot.lane.b32.xlu0 %v1894, 120
    %v2161 = vpop.permute.xlu0 %2160
    %2162 = vrot.lane.b32.xlu0 %v1899, 120
    %v2163 = vpop.permute.xlu0 %2162
    %v2167 = vsel %vm1287, %v2157, 0
    %2169 = vmatprep.subr.mxu0 0.0
    %2170 = vmatpush1.msra.mxu0 %v2161
    %2171 = vmatprep.subr.mxu0 0.0
    %2172 = vmatpush1.msra.mxu0 %v2163
    %2173 = vmatprep.subr.mxu0 0.0
    %2174 = vmatpush1.msra.mxu0 0.0
    %2175 = vmatprep.subr.mxu0 0.0
    %2176 = vmatpush1.msra.mxu0 0.0
    %2177 = vmatprep.subr.mxu0 0.0
    %2178 = vmatpush1.msra.mxu0 0.0
    %2179 = vmatprep.subr.mxu0 0.0
    %2180 = vmatpush1.msra.mxu0 0.0
    %2181 = vmatprep.subr.mxu0 0.0
    %2182 = vmatpush1.msra.mxu0 0.0
    %2183 = vmatprep.subr.mxu0 0.0
    %2184 = vmatpush1.msra.mxu0 0.0
    %2185 = vmatprep.subr.mxu0 0.0
    %2186 = vmatpush1.msra.mxu0 0.0
    %2187 = vmatprep.subr.mxu0 0.0
    %2188 = vmatpush1.msra.mxu0 0.0
    %2189 = vmatprep.subr.mxu0 0.0
    %2190 = vmatpush1.msra.mxu0 0.0
    %2191 = vmatprep.subr.mxu0 0.0
    %2192 = vmatpush1.msra.mxu0 0.0
    %2193 = vmatprep.subr.mxu0 0.0
    %2194 = vmatpush1.msra.mxu0 0.0
    %2195 = vmatprep.subr.mxu0 0.0
    %2196 = vmatpush1.msra.mxu0 0.0
    %2197 = vmatprep.subr.mxu0 0.0
    %2198 = vmatpush1.msra.mxu0 0.0
    %2199 = vmatprep.subr.mxu0 0.0
    %2200 = vmatpush1.msra.mxu0 0.0
    %2201 = vmatprep.subr.mxu0 0.0
    %2202 = vmatpush1.msra.mxu0 0.0
    %2203 = vmatprep.subr.mxu0 0.0
    %2204 = vmatpush1.msra.mxu0 0.0
    %2205 = vmatprep.subr.mxu0 0.0
    %2206 = vmatpush1.msra.mxu0 0.0
    %2207 = vmatprep.subr.mxu0 0.0
    %2208 = vmatpush1.msra.mxu0 0.0
    %2209 = vmatprep.subr.mxu0 0.0
    %2210 = vmatpush1.msra.mxu0 0.0
    %2211 = vmatprep.subr.mxu0 0.0
    %2212 = vmatpush1.msra.mxu0 0.0
    %2213 = vmatprep.subr.mxu0 0.0
    %2214 = vmatpush1.msra.mxu0 0.0
    %2215 = vmatprep.subr.mxu0 0.0
    %2216 = vmatpush1.msra.mxu0 0.0
    %2217 = vmatprep.subr.mxu0 0.0
    %2218 = vmatpush1.msra.mxu0 0.0
    %2219 = vmatprep.subr.mxu0 0.0
    %2220 = vmatpush1.msra.mxu0 0.0
    %2221 = vmatprep.subr.mxu0 0.0
    %2222 = vmatpush1.msra.mxu0 0.0
    %2223 = vmatprep.subr.mxu0 0.0
    %2224 = vmatpush1.msra.mxu0 0.0
    %2225 = vmatprep.subr.mxu0 0.0
    %2226 = vmatpush1.msra.mxu0 0.0
    %2227 = vmatprep.subr.mxu0 0.0
    %2228 = vmatpush1.msra.mxu0 0.0
    %2229 = vmatprep.subr.mxu0 0.0
    %2230 = vmatpush1.msra.mxu0 0.0
    %2231 = vmatprep.subr.mxu0 0.0
    %2232 = vmatpush1.msra.mxu0 0.0
    %2233 = vmatprep.mubr.f32.mxu0 0.0
    %2234 = vmatmul.mubr.f32.gmra.mrb[0].mxu0 %v2167
    %v2235 = vpop.f32.mrb[0].mxu0
    %v2236 = vadd.f32 0.0, %v2235
    %v2237 = vpop.f32.mrb[0].mxu0
    %2238 = vdwg.mxu0
    %2239 = vrot.lane.b32.xlu0 %v1643, 112
    %v2240 = vpop.permute.xlu0 %2239
    %2241 = vrot.lane.b32.xlu0 %v1765, 112
    %v2242 = vpop.permute.xlu0 %2241
    %2243 = vrot.lane.b32.xlu0 %v1770, 112
    %v2244 = vpop.permute.xlu0 %2243
    %v2245 = vsel %vm618, %v2240, 0
    %v2247 = vsel %vm618, %v2242, 0
    %v2249 = vsel %vm618, %v2244, 0
    %2251 = vmatprep.subr.mxu0 0.0
    %2252 = vmatpush1.xpose.msra.mxu0 %v2247
    %2253 = vmatprep.subr.mxu0 0.0
    %2254 = vmatpush1.xpose.msra.mxu0 %v2249
    %2255 = vmatprep.subr.mxu0 0.0
    %2256 = vmatpush1.xpose.msra.mxu0 0.0
    %2257 = vmatprep.subr.mxu0 0.0
    %2258 = vmatpush1.xpose.msra.mxu0 0.0
    %2259 = vmatprep.subr.mxu0 0.0
    %2260 = vmatpush1.xpose.msra.mxu0 0.0
    %2261 = vmatprep.subr.mxu0 0.0
    %2262 = vmatpush1.xpose.msra.mxu0 0.0
    %2263 = vmatprep.subr.mxu0 0.0
    %2264 = vmatpush1.xpose.msra.mxu0 0.0
    %2265 = vmatprep.subr.mxu0 0.0
    %2266 = vmatpush1.xpose.msra.mxu0 0.0
    %2267 = vmatprep.subr.mxu0 0.0
    %2268 = vmatpush1.xpose.msra.mxu0 0.0
    %2269 = vmatprep.subr.mxu0 0.0
    %2270 = vmatpush1.xpose.msra.mxu0 0.0
    %2271 = vmatprep.subr.mxu0 0.0
    %2272 = vmatpush1.xpose.msra.mxu0 0.0
    %2273 = vmatprep.subr.mxu0 0.0
    %2274 = vmatpush1.xpose.msra.mxu0 0.0
    %2275 = vmatprep.subr.mxu0 0.0
    %2276 = vmatpush1.xpose.msra.mxu0 0.0
    %2277 = vmatprep.subr.mxu0 0.0
    %2278 = vmatpush1.xpose.msra.mxu0 0.0
    %2279 = vmatprep.subr.mxu0 0.0
    %2280 = vmatpush1.xpose.msra.mxu0 0.0
    %2281 = vmatprep.subr.mxu0 0.0
    %2282 = vmatpush1.xpose.msra.mxu0 0.0
    %2283 = vmatprep.subr.mxu0 0.0
    %2284 = vmatpush1.xpose.msra.mxu0 0.0
    %2285 = vmatprep.subr.mxu0 0.0
    %2286 = vmatpush1.xpose.msra.mxu0 0.0
    %2287 = vmatprep.subr.mxu0 0.0
    %2288 = vmatpush1.xpose.msra.mxu0 0.0
    %2289 = vmatprep.subr.mxu0 0.0
    %2290 = vmatpush1.xpose.msra.mxu0 0.0
    %2291 = vmatprep.subr.mxu0 0.0
    %2292 = vmatpush1.xpose.msra.mxu0 0.0
    %2293 = vmatprep.subr.mxu0 0.0
    %2294 = vmatpush1.xpose.msra.mxu0 0.0
    %2295 = vmatprep.subr.mxu0 0.0
    %2296 = vmatpush1.xpose.msra.mxu0 0.0
    %2297 = vmatprep.subr.mxu0 0.0
    %2298 = vmatpush1.xpose.msra.mxu0 0.0
    %2299 = vmatprep.subr.mxu0 0.0
    %2300 = vmatpush1.xpose.msra.mxu0 0.0
    %2301 = vmatprep.subr.mxu0 0.0
    %2302 = vmatpush1.xpose.msra.mxu0 0.0
    %2303 = vmatprep.subr.mxu0 0.0
    %2304 = vmatpush1.xpose.msra.mxu0 0.0
    %2305 = vmatprep.subr.mxu0 0.0
    %2306 = vmatpush1.xpose.msra.mxu0 0.0
    %2307 = vmatprep.subr.mxu0 0.0
    %2308 = vmatpush1.xpose.msra.mxu0 0.0
    %2309 = vmatprep.subr.mxu0 0.0
    %2310 = vmatpush1.xpose.msra.mxu0 0.0
    %2311 = vmatprep.subr.mxu0 0.0
    %2312 = vmatpush1.xpose.msra.mxu0 0.0
    %2313 = vmatprep.subr.mxu0 0.0
    %2314 = vmatpush1.xpose.msra.mxu0 0.0
    %2315 = vmatprep.mubr.f32.mxu0 0.0
    %2316 = vmatmul.mubr.f32.gmra.mrb[0].mxu0 %v2245
    %v2317 = vpop.f32.mrb[0].mxu0
    %v2318 = vadd.f32 0.0, %v2317
    %v2319 = vpop.f32.mrb[0].mxu0
    %2320 = vdwg.mxu0
    %v2321 = vsel %vm1287, %v2318, -inf
    %2322 = vmax.xlane.f32.xlu0 %v2321
    %v2323 = vpop.xlane.xlu0 %2322
    %v2324 = vsub.f32 %v2318, %v2323
    %v2325 = vmul.f32 %v2324, 1.442695
    %v2326 = vpow.pop %v2325
    %v2327 = vsel %vm1287, %v2326, 0.0
    %2328 = vadd.xlane.f32.xlu0 %v2327
    %v2329 = vpop.xlane.xlu0 %2328
    %v2330 = vrcp.pop %v2329
    %v2331 = vmul.f32 %v2326, %v2330
    %2332 = vrot.lane.b32.xlu0 %v1894, 112
    %v2333 = vpop.permute.xlu0 %2332
    %2334 = vrot.lane.b32.xlu0 %v1899, 112
    %v2335 = vpop.permute.xlu0 %2334
    %v2339 = vsel %vm1287, %v2331, 0
    %2341 = vmatprep.subr.mxu0 0.0
    %2342 = vmatpush1.msra.mxu0 %v2333
    %2343 = vmatprep.subr.mxu0 0.0
    %2344 = vmatpush1.msra.mxu0 %v2335
    %2345 = vmatprep.subr.mxu0 0.0
    %2346 = vmatpush1.msra.mxu0 0.0
    %2347 = vmatprep.subr.mxu0 0.0
    %2348 = vmatpush1.msra.mxu0 0.0
    %2349 = vmatprep.subr.mxu0 0.0
    %2350 = vmatpush1.msra.mxu0 0.0
    %2351 = vmatprep.subr.mxu0 0.0
    %2352 = vmatpush1.msra.mxu0 0.0
    %2353 = vmatprep.subr.mxu0 0.0
    %2354 = vmatpush1.msra.mxu0 0.0
    %2355 = vmatprep.subr.mxu0 0.0
    %2356 = vmatpush1.msra.mxu0 0.0
    %2357 = vmatprep.subr.mxu0 0.0
    %2358 = vmatpush1.msra.mxu0 0.0
    %2359 = vmatprep.subr.mxu0 0.0
    %2360 = vmatpush1.msra.mxu0 0.0
    %2361 = vmatprep.subr.mxu0 0.0
    %2362 = vmatpush1.msra.mxu0 0.0
    %2363 = vmatprep.subr.mxu0 0.0
    %2364 = vmatpush1.msra.mxu0 0.0
    %2365 = vmatprep.subr.mxu0 0.0
    %2366 = vmatpush1.msra.mxu0 0.0
    %2367 = vmatprep.subr.mxu0 0.0
    %2368 = vmatpush1.msra.mxu0 0.0
    %2369 = vmatprep.subr.mxu0 0.0
    %2370 = vmatpush1.msra.mxu0 0.0
    %2371 = vmatprep.subr.mxu0 0.0
    %2372 = vmatpush1.msra.mxu0 0.0
    %2373 = vmatprep.subr.mxu0 0.0
    %2374 = vmatpush1.msra.mxu0 0.0
    %2375 = vmatprep.subr.mxu0 0.0
    %2376 = vmatpush1.msra.mxu0 0.0
    %2377 = vmatprep.subr.mxu0 0.0
    %2378 = vmatpush1.msra.mxu0 0.0
    %2379 = vmatprep.subr.mxu0 0.0
    %2380 = vmatpush1.msra.mxu0 0.0
    %2381 = vmatprep.subr.mxu0 0.0
    %2382 = vmatpush1.msra.mxu0 0.0
    %2383 = vmatprep.subr.mxu0 0.0
    %2384 = vmatpush1.msra.mxu0 0.0
    %2385 = vmatprep.subr.mxu0 0.0
    %2386 = vmatpush1.msra.mxu0 0.0
    %2387 = vmatprep.subr.mxu0 0.0
    %2388 = vmatpush1.msra.mxu0 0.0
    %2389 = vmatprep.subr.mxu0 0.0
    %2390 = vmatpush1.msra.mxu0 0.0
    %2391 = vmatprep.subr.mxu0 0.0
    %2392 = vmatpush1.msra.mxu0 0.0
    %2393 = vmatprep.subr.mxu0 0.0
    %2394 = vmatpush1.msra.mxu0 0.0
    %2395 = vmatprep.subr.mxu0 0.0
    %2396 = vmatpush1.msra.mxu0 0.0
    %2397 = vmatprep.subr.mxu0 0.0
    %2398 = vmatpush1.msra.mxu0 0.0
    %2399 = vmatprep.subr.mxu0 0.0
    %2400 = vmatpush1.msra.mxu0 0.0
    %2401 = vmatprep.subr.mxu0 0.0
    %2402 = vmatpush1.msra.mxu0 0.0
    %2403 = vmatprep.subr.mxu0 0.0
    %2404 = vmatpush1.msra.mxu0 0.0
    %2405 = vmatprep.mubr.f32.mxu0 0.0
    %2406 = vmatmul.mubr.f32.gmra.mrb[0].mxu0 %v2339
    %v2407 = vpop.f32.mrb[0].mxu0
    %v2408 = vadd.f32 0.0, %v2407
    %v2409 = vpop.f32.mrb[0].mxu0
    %2410 = vdwg.mxu0
    %2411 = vrot.lane.b32.xlu0 %v1643, 104
    %v2412 = vpop.permute.xlu0 %2411
    %2413 = vrot.lane.b32.xlu0 %v1765, 104
    %v2414 = vpop.permute.xlu0 %2413
    %2415 = vrot.lane.b32.xlu0 %v1770, 104
    %v2416 = vpop.permute.xlu0 %2415
    %v2417 = vsel %vm618, %v2412, 0
    %v2419 = vsel %vm618, %v2414, 0
    %v2421 = vsel %vm618, %v2416, 0
    %2423 = vmatprep.subr.mxu0 0.0
    %2424 = vmatpush1.xpose.msra.mxu0 %v2419
    %2425 = vmatprep.subr.mxu0 0.0
    %2426 = vmatpush1.xpose.msra.mxu0 %v2421
    %2427 = vmatprep.subr.mxu0 0.0
    %2428 = vmatpush1.xpose.msra.mxu0 0.0
    %2429 = vmatprep.subr.mxu0 0.0
    %2430 = vmatpush1.xpose.msra.mxu0 0.0
    %2431 = vmatprep.subr.mxu0 0.0
    %2432 = vmatpush1.xpose.msra.mxu0 0.0
    %2433 = vmatprep.subr.mxu0 0.0
    %2434 = vmatpush1.xpose.msra.mxu0 0.0
    %2435 = vmatprep.subr.mxu0 0.0
    %2436 = vmatpush1.xpose.msra.mxu0 0.0
    %2437 = vmatprep.subr.mxu0 0.0
    %2438 = vmatpush1.xpose.msra.mxu0 0.0
    %2439 = vmatprep.subr.mxu0 0.0
    %2440 = vmatpush1.xpose.msra.mxu0 0.0
    %2441 = vmatprep.subr.mxu0 0.0
    %2442 = vmatpush1.xpose.msra.mxu0 0.0
    %2443 = vmatprep.subr.mxu0 0.0
    %2444 = vmatpush1.xpose.msra.mxu0 0.0
    %2445 = vmatprep.subr.mxu0 0.0
    %2446 = vmatpush1.xpose.msra.mxu0 0.0
    %2447 = vmatprep.subr.mxu0 0.0
    %2448 = vmatpush1.xpose.msra.mxu0 0.0
    %2449 = vmatprep.subr.mxu0 0.0
    %2450 = vmatpush1.xpose.msra.mxu0 0.0
    %2451 = vmatprep.subr.mxu0 0.0
    %2452 = vmatpush1.xpose.msra.mxu0 0.0
    %2453 = vmatprep.subr.mxu0 0.0
    %2454 = vmatpush1.xpose.msra.mxu0 0.0
    %2455 = vmatprep.subr.mxu0 0.0
    %2456 = vmatpush1.xpose.msra.mxu0 0.0
    %2457 = vmatprep.subr.mxu0 0.0
    %2458 = vmatpush1.xpose.msra.mxu0 0.0
    %2459 = vmatprep.subr.mxu0 0.0
    %2460 = vmatpush1.xpose.msra.mxu0 0.0
    %2461 = vmatprep.subr.mxu0 0.0
    %2462 = vmatpush1.xpose.msra.mxu0 0.0
    %2463 = vmatprep.subr.mxu0 0.0
    %2464 = vmatpush1.xpose.msra.mxu0 0.0
    %2465 = vmatprep.subr.mxu0 0.0
    %2466 = vmatpush1.xpose.msra.mxu0 0.0
    %2467 = vmatprep.subr.mxu0 0.0
    %2468 = vmatpush1.xpose.msra.mxu0 0.0
    %2469 = vmatprep.subr.mxu0 0.0
    %2470 = vmatpush1.xpose.msra.mxu0 0.0
    %2471 = vmatprep.subr.mxu0 0.0
    %2472 = vmatpush1.xpose.msra.mxu0 0.0
    %2473 = vmatprep.subr.mxu0 0.0
    %2474 = vmatpush1.xpose.msra.mxu0 0.0
    %2475 = vmatprep.subr.mxu0 0.0
    %2476 = vmatpush1.xpose.msra.mxu0 0.0
    %2477 = vmatprep.subr.mxu0 0.0
    %2478 = vmatpush1.xpose.msra.mxu0 0.0
    %2479 = vmatprep.subr.mxu0 0.0
    %2480 = vmatpush1.xpose.msra.mxu0 0.0
    %2481 = vmatprep.subr.mxu0 0.0
    %2482 = vmatpush1.xpose.msra.mxu0 0.0
    %2483 = vmatprep.subr.mxu0 0.0
    %2484 = vmatpush1.xpose.msra.mxu0 0.0
    %2485 = vmatprep.subr.mxu0 0.0
    %2486 = vmatpush1.xpose.msra.mxu0 0.0
    %2487 = vmatprep.mubr.f32.mxu0 0.0
    %2488 = vmatmul.mubr.f32.gmra.mrb[0].mxu0 %v2417
    %v2489 = vpop.f32.mrb[0].mxu0
    %v2490 = vadd.f32 0.0, %v2489
    %v2491 = vpop.f32.mrb[0].mxu0
    %2492 = vdwg.mxu0
    %v2493 = vsel %vm1287, %v2490, -inf
    %2494 = vmax.xlane.f32.xlu0 %v2493
    %v2495 = vpop.xlane.xlu0 %2494
    %v2496 = vsub.f32 %v2490, %v2495
    %v2497 = vmul.f32 %v2496, 1.442695
    %v2498 = vpow.pop %v2497
    %v2499 = vsel %vm1287, %v2498, 0.0
    %2500 = vadd.xlane.f32.xlu0 %v2499
    %v2501 = vpop.xlane.xlu0 %2500
    %v2502 = vrcp.pop %v2501
    %v2503 = vmul.f32 %v2498, %v2502
    %2504 = vrot.lane.b32.xlu0 %v1894, 104
    %v2505 = vpop.permute.xlu0 %2504
    %2506 = vrot.lane.b32.xlu0 %v1899, 104
    %v2507 = vpop.permute.xlu0 %2506
    %v2511 = vsel %vm1287, %v2503, 0
    %2513 = vmatprep.subr.mxu0 0.0
    %2514 = vmatpush1.msra.mxu0 %v2505
    %2515 = vmatprep.subr.mxu0 0.0
    %2516 = vmatpush1.msra.mxu0 %v2507
    %2517 = vmatprep.subr.mxu0 0.0
    %2518 = vmatpush1.msra.mxu0 0.0
    %2519 = vmatprep.subr.mxu0 0.0
    %2520 = vmatpush1.msra.mxu0 0.0
    %2521 = vmatprep.subr.mxu0 0.0
    %2522 = vmatpush1.msra.mxu0 0.0
    %2523 = vmatprep.subr.mxu0 0.0
    %2524 = vmatpush1.msra.mxu0 0.0
    %2525 = vmatprep.subr.mxu0 0.0
    %2526 = vmatpush1.msra.mxu0 0.0
    %2527 = vmatprep.subr.mxu0 0.0
    %2528 = vmatpush1.msra.mxu0 0.0
    %2529 = vmatprep.subr.mxu0 0.0
    %2530 = vmatpush1.msra.mxu0 0.0
    %2531 = vmatprep.subr.mxu0 0.0
    %2532 = vmatpush1.msra.mxu0 0.0
    %2533 = vmatprep.subr.mxu0 0.0
    %2534 = vmatpush1.msra.mxu0 0.0
    %2535 = vmatprep.subr.mxu0 0.0
    %2536 = vmatpush1.msra.mxu0 0.0
    %2537 = vmatprep.subr.mxu0 0.0
    %2538 = vmatpush1.msra.mxu0 0.0
    %2539 = vmatprep.subr.mxu0 0.0
    %2540 = vmatpush1.msra.mxu0 0.0
    %2541 = vmatprep.subr.mxu0 0.0
    %2542 = vmatpush1.msra.mxu0 0.0
    %2543 = vmatprep.subr.mxu0 0.0
    %2544 = vmatpush1.msra.mxu0 0.0
    %2545 = vmatprep.subr.mxu0 0.0
    %2546 = vmatpush1.msra.mxu0 0.0
    %2547 = vmatprep.subr.mxu0 0.0
    %2548 = vmatpush1.msra.mxu0 0.0
    %2549 = vmatprep.subr.mxu0 0.0
    %2550 = vmatpush1.msra.mxu0 0.0
    %2551 = vmatprep.subr.mxu0 0.0
    %2552 = vmatpush1.msra.mxu0 0.0
    %2553 = vmatprep.subr.mxu0 0.0
    %2554 = vmatpush1.msra.mxu0 0.0
    %2555 = vmatprep.subr.mxu0 0.0
    %2556 = vmatpush1.msra.mxu0 0.0
    %2557 = vmatprep.subr.mxu0 0.0
    %2558 = vmatpush1.msra.mxu0 0.0
    %2559 = vmatprep.subr.mxu0 0.0
    %2560 = vmatpush1.msra.mxu0 0.0
    %2561 = vmatprep.subr.mxu0 0.0
    %2562 = vmatpush1.msra.mxu0 0.0
    %2563 = vmatprep.subr.mxu0 0.0
    %2564 = vmatpush1.msra.mxu0 0.0
    %2565 = vmatprep.subr.mxu0 0.0
    %2566 = vmatpush1.msra.mxu0 0.0
    %2567 = vmatprep.subr.mxu0 0.0
    %2568 = vmatpush1.msra.mxu0 0.0
    %2569 = vmatprep.subr.mxu0 0.0
    %2570 = vmatpush1.msra.mxu0 0.0
    %2571 = vmatprep.subr.mxu0 0.0
    %2572 = vmatpush1.msra.mxu0 0.0
    %2573 = vmatprep.subr.mxu0 0.0
    %2574 = vmatpush1.msra.mxu0 0.0
    %2575 = vmatprep.subr.mxu0 0.0
    %2576 = vmatpush1.msra.mxu0 0.0
    %2577 = vmatprep.mubr.f32.mxu0 0.0
    %2578 = vmatmul.mubr.f32.gmra.mrb[0].mxu0 %v2511
    %v2579 = vpop.f32.mrb[0].mxu0
    %v2580 = vadd.f32 0.0, %v2579
    %v2581 = vpop.f32.mrb[0].mxu0
    %2582 = vdwg.mxu0
    %2584 = vrot.lane.b32.xlu0 %v2236, 8
    %v2585 = vpop.permute.xlu0 %2584
    %2588 = vrot.lane.b32.xlu0 %v2408, 16
    %v2589 = vpop.permute.xlu0 %2588
    %2592 = vrot.lane.b32.xlu0 %v2580, 24
    %v2593 = vpop.permute.xlu0 %2592
    %v2595 = vsel %vm618, %v2062, %v2585
    %v2596 = vsel %vm1287, %v2595, %v2589
    %v2597 = vsel %vm1289, %v2596, %v2593
    %v2599 = vlaneseq
    %v2600 = vshrl.u32 %v2599, 7
    %v2601 = vsub.s32 0, %v2600
    %v2602 = vrot.slane %v313, %v2601
    %v2605 = vsel %vm441, %v2597, 0
    %2607 = vmatprep.subr.mxu0 0.0
    %2608 = vmatpush1.msra.mxu0 %v309
    %2609 = vmatprep.subr.mxu0 0.0
    %2610 = vmatpush1.msra.mxu0 %v310
    %2611 = vmatprep.subr.mxu0 0.0
    %2612 = vmatpush1.msra.mxu0 %v311
    %2613 = vmatprep.subr.mxu0 0.0
    %2614 = vmatpush1.msra.mxu0 %v312
    %2615 = vmatprep.subr.mxu0 0.0
    %2616 = vmatpush1.msra.mxu0 0.0
    %2617 = vmatprep.subr.mxu0 0.0
    %2618 = vmatpush1.msra.mxu0 0.0
    %2619 = vmatprep.subr.mxu0 0.0
    %2620 = vmatpush1.msra.mxu0 0.0
    %2621 = vmatprep.subr.mxu0 0.0
    %2622 = vmatpush1.msra.mxu0 0.0
    %2623 = vmatprep.subr.mxu0 0.0
    %2624 = vmatpush1.msra.mxu0 0.0
    %2625 = vmatprep.subr.mxu0 0.0
    %2626 = vmatpush1.msra.mxu0 0.0
    %2627 = vmatprep.subr.mxu0 0.0
    %2628 = vmatpush1.msra.mxu0 0.0
    %2629 = vmatprep.subr.mxu0 0.0
    %2630 = vmatpush1.msra.mxu0 0.0
    %2631 = vmatprep.subr.mxu0 0.0
    %2632 = vmatpush1.msra.mxu0 0.0
    %2633 = vmatprep.subr.mxu0 0.0
    %2634 = vmatpush1.msra.mxu0 0.0
    %2635 = vmatprep.subr.mxu0 0.0
    %2636 = vmatpush1.msra.mxu0 0.0
    %2637 = vmatprep.subr.mxu0 0.0
    %2638 = vmatpush1.msra.mxu0 0.0
    %2639 = vmatprep.subr.mxu0 0.0
    %2640 = vmatpush1.msra.mxu0 0.0
    %2641 = vmatprep.subr.mxu0 0.0
    %2642 = vmatpush1.msra.mxu0 0.0
    %2643 = vmatprep.subr.mxu0 0.0
    %2644 = vmatpush1.msra.mxu0 0.0
    %2645 = vmatprep.subr.mxu0 0.0
    %2646 = vmatpush1.msra.mxu0 0.0
    %2647 = vmatprep.subr.mxu0 0.0
    %2648 = vmatpush1.msra.mxu0 0.0
    %2649 = vmatprep.subr.mxu0 0.0
    %2650 = vmatpush1.msra.mxu0 0.0
    %2651 = vmatprep.subr.mxu0 0.0
    %2652 = vmatpush1.msra.mxu0 0.0
    %2653 = vmatprep.subr.mxu0 0.0
    %2654 = vmatpush1.msra.mxu0 0.0
    %2655 = vmatprep.subr.mxu0 0.0
    %2656 = vmatpush1.msra.mxu0 0.0
    %2657 = vmatprep.subr.mxu0 0.0
    %2658 = vmatpush1.msra.mxu0 0.0
    %2659 = vmatprep.subr.mxu0 0.0
    %2660 = vmatpush1.msra.mxu0 0.0
    %2661 = vmatprep.subr.mxu0 0.0
    %2662 = vmatpush1.msra.mxu0 0.0
    %2663 = vmatprep.subr.mxu0 0.0
    %2664 = vmatpush1.msra.mxu0 0.0
    %2665 = vmatprep.subr.mxu0 0.0
    %2666 = vmatpush1.msra.mxu0 0.0
    %2667 = vmatprep.subr.mxu0 0.0
    %2668 = vmatpush1.msra.mxu0 0.0
    %2669 = vmatprep.subr.mxu0 0.0
    %2670 = vmatpush1.msra.mxu0 0.0
    %2671 = vmatprep.mubr.f32.mxu0 0.0
    %2672 = vmatmul.mubr.f32.gmra.mrb[0].mxu0 %v2605
    %v2673 = vpop.f32.mrb[0].mxu0
    %v2674 = vadd.f32 %v2602, %v2673
    %v2675 = vpop.f32.mrb[0].mxu0
    %2676 = vdwg.mxu0
    %v2678 = vrot.slane %v2674, 1
    %v2679 = vrot.slane %v2674, 2
    %v2680 = vrot.slane %v2674, 3
    %v2681 = vrot.slane %v2674, 4
    %v2682 = vrot.slane %v2674, 5
    %v2683 = vrot.slane %v2674, 6
    %v2684 = vrot.slane %v2674, 7
    %v2693 = vadd.f32 %v1527, %v2674
    %v2694 = vadd.f32 %v1528, %v2678
    %v2695 = vadd.f32 %v1529, %v2679
    %v2696 = vadd.f32 %v1530, %v2680
    %v2697 = vadd.f32 %v1531, %v2681
    %v2698 = vadd.f32 %v1532, %v2682
    %v2699 = vadd.f32 %v1533, %v2683
    %v2700 = vadd.f32 %v1534, %v2684
    %v2709 = vrot.slane %v2694, 7
    %v2710 = vsel %vm421, %v2709, %v2693
    %v2711 = vrot.slane %v2695, 6
    %v2712 = vsel %vm424, %v2711, %v2710
    %v2713 = vrot.slane %v2696, 5
    %v2714 = vsel %vm427, %v2713, %v2712
    %v2715 = vrot.slane %v2697, 4
    %v2716 = vsel %vm430, %v2715, %v2714
    %v2717 = vrot.slane %v2698, 3
    %v2718 = vsel %vm433, %v2717, %v2716
    %v2719 = vrot.slane %v2699, 2
    %v2720 = vsel %vm436, %v2719, %v2718
    %v2721 = vrot.slane %v2700, 1
    %v2722 = vsel %vm439, %v2721, %v2720
    %v2724 = vsel %vm441, %v2722, 0.0
    %2725 = vadd.xlane.f32.xlu0 %v2724
    %v2726 = vpop.xlane.xlu0 %2725
    %v2727 = vmul.f32 %v2726, %v1420
    %v2729 = vrot.slane %v2727, 1
    %v2730 = vrot.slane %v2727, 2
    %v2731 = vrot.slane %v2727, 3
    %v2732 = vrot.slane %v2727, 4
    %v2733 = vrot.slane %v2727, 5
    %v2734 = vrot.slane %v2727, 6
    %v2735 = vrot.slane %v2727, 7
    %v2744 = vsub.f32 %v2693, %v2727
    %v2745 = vsub.f32 %v2694, %v2729
    %v2746 = vsub.f32 %v2695, %v2730
    %v2747 = vsub.f32 %v2696, %v2731
    %v2748 = vsub.f32 %v2697, %v2732
    %v2749 = vsub.f32 %v2698, %v2733
    %v2750 = vsub.f32 %v2699, %v2734
    %v2751 = vsub.f32 %v2700, %v2735
    %v2752 = vmul.f32 %v2744, %v2744
    %v2753 = vmul.f32 %v2745, %v2745
    %v2754 = vmul.f32 %v2746, %v2746
    %v2755 = vmul.f32 %v2747, %v2747
    %v2756 = vmul.f32 %v2748, %v2748
    %v2757 = vmul.f32 %v2749, %v2749
    %v2758 = vmul.f32 %v2750, %v2750
    %v2759 = vmul.f32 %v2751, %v2751
    %v2768 = vrot.slane %v2753, 7
    %v2769 = vsel %vm421, %v2768, %v2752
    %v2770 = vrot.slane %v2754, 6
    %v2771 = vsel %vm424, %v2770, %v2769
    %v2772 = vrot.slane %v2755, 5
    %v2773 = vsel %vm427, %v2772, %v2771
    %v2774 = vrot.slane %v2756, 4
    %v2775 = vsel %vm430, %v2774, %v2773
    %v2776 = vrot.slane %v2757, 3
    %v2777 = vsel %vm433, %v2776, %v2775
    %v2778 = vrot.slane %v2758, 2
    %v2779 = vsel %vm436, %v2778, %v2777
    %v2780 = vrot.slane %v2759, 1
    %v2781 = vsel %vm439, %v2780, %v2779
    %v2783 = vsel %vm441, %v2781, 0.0
    %2784 = vadd.xlane.f32.xlu0 %v2783
    %v2785 = vpop.xlane.xlu0 %2784
    %v2786 = vmul.f32 %v2785, %v1420
    %v2787 = vadd.f32 %v2786, 1e-05
    %v2788 = vrsqrt.pop %v2787
    %v2790 = vrot.slane %v2788, 1
    %v2791 = vrot.slane %v2788, 2
    %v2792 = vrot.slane %v2788, 3
    %v2793 = vrot.slane %v2788, 4
    %v2794 = vrot.slane %v2788, 5
    %v2795 = vrot.slane %v2788, 6
    %v2796 = vrot.slane %v2788, 7
    %v2805 = vmul.f32 %v2744, %v2788
    %v2806 = vmul.f32 %v2745, %v2790
    %v2807 = vmul.f32 %v2746, %v2791
    %v2808 = vmul.f32 %v2747, %v2792
    %v2809 = vmul.f32 %v2748, %v2793
    %v2810 = vmul.f32 %v2749, %v2794
    %v2811 = vmul.f32 %v2750, %v2795
    %v2812 = vmul.f32 %v2751, %v2796
    %v2814 = vlaneseq
    %v2815 = vshrl.u32 %v2814, 7
    %v2816 = vsub.s32 0, %v2815
    %v2817 = vrot.slane %v330, %v2816
    %v2819 = vmul.f32 %v2805, %v2817
    %v2820 = vmul.f32 %v2806, %v2817
    %v2821 = vmul.f32 %v2807, %v2817
    %v2822 = vmul.f32 %v2808, %v2817
    %v2823 = vmul.f32 %v2809, %v2817
    %v2824 = vmul.f32 %v2810, %v2817
    %v2825 = vmul.f32 %v2811, %v2817
    %v2826 = vmul.f32 %v2812, %v2817
    %v2828 = vlaneseq
    %v2829 = vshrl.u32 %v2828, 7
    %v2830 = vsub.s32 0, %v2829
    %v2831 = vrot.slane %v331, %v2830
    %v2833 = vadd.f32 %v2819, %v2831
    %v2834 = vadd.f32 %v2820, %v2831
    %v2835 = vadd.f32 %v2821, %v2831
    %v2836 = vadd.f32 %v2822, %v2831
    %v2837 = vadd.f32 %v2823, %v2831
    %v2838 = vadd.f32 %v2824, %v2831
    %v2839 = vadd.f32 %v2825, %v2831
    %v2840 = vadd.f32 %v2826, %v2831
    %v2842 = vlaneseq
    %v2843 = vshrl.u32 %v2842, 7
    %v2844 = vsub.s32 0, %v2843
    %v2845 = vrot.slane %v318, %v2844
    %v2855 = vrot.slane %v2834, 7
    %v2856 = vsel %vm421, %v2855, %v2833
    %v2857 = vrot.slane %v2835, 6
    %v2858 = vsel %vm424, %v2857, %v2856
    %v2859 = vrot.slane %v2836, 5
    %v2860 = vsel %vm427, %v2859, %v2858
    %v2861 = vrot.slane %v2837, 4
    %v2862 = vsel %vm430, %v2861, %v2860
    %v2863 = vrot.slane %v2838, 3
    %v2864 = vsel %vm433, %v2863, %v2862
    %v2865 = vrot.slane %v2839, 2
    %v2866 = vsel %vm436, %v2865, %v2864
    %v2867 = vrot.slane %v2840, 1
    %v2868 = vsel %vm439, %v2867, %v2866
    %v2869 = vsel %vm441, %v2868, 0
    %2871 = vmatprep.subr.mxu0 0.0
    %2872 = vmatpush1.msra.mxu0 %v314
    %2873 = vmatprep.subr.mxu0 0.0
    %2874 = vmatpush1.msra.mxu0 %v315
    %2875 = vmatprep.subr.mxu0 0.0
    %2876 = vmatpush1.msra.mxu0 %v316
    %2877 = vmatprep.subr.mxu0 0.0
    %2878 = vmatpush1.msra.mxu0 %v317
    %2879 = vmatprep.subr.mxu0 0.0
    %2880 = vmatpush1.msra.mxu0 0.0
    %2881 = vmatprep.subr.mxu0 0.0
    %2882 = vmatpush1.msra.mxu0 0.0
    %2883 = vmatprep.subr.mxu0 0.0
    %2884 = vmatpush1.msra.mxu0 0.0
    %2885 = vmatprep.subr.mxu0 0.0
    %2886 = vmatpush1.msra.mxu0 0.0
    %2887 = vmatprep.subr.mxu0 0.0
    %2888 = vmatpush1.msra.mxu0 0.0
    %2889 = vmatprep.subr.mxu0 0.0
    %2890 = vmatpush1.msra.mxu0 0.0
    %2891 = vmatprep.subr.mxu0 0.0
    %2892 = vmatpush1.msra.mxu0 0.0
    %2893 = vmatprep.subr.mxu0 0.0
    %2894 = vmatpush1.msra.mxu0 0.0
    %2895 = vmatprep.subr.mxu0 0.0
    %2896 = vmatpush1.msra.mxu0 0.0
    %2897 = vmatprep.subr.mxu0 0.0
    %2898 = vmatpush1.msra.mxu0 0.0
    %2899 = vmatprep.subr.mxu0 0.0
    %2900 = vmatpush1.msra.mxu0 0.0
    %2901 = vmatprep.subr.mxu0 0.0
    %2902 = vmatpush1.msra.mxu0 0.0
    %2903 = vmatprep.subr.mxu0 0.0
    %2904 = vmatpush1.msra.mxu0 0.0
    %2905 = vmatprep.subr.mxu0 0.0
    %2906 = vmatpush1.msra.mxu0 0.0
    %2907 = vmatprep.subr.mxu0 0.0
    %2908 = vmatpush1.msra.mxu0 0.0
    %2909 = vmatprep.subr.mxu0 0.0
    %2910 = vmatpush1.msra.mxu0 0.0
    %2911 = vmatprep.subr.mxu0 0.0
    %2912 = vmatpush1.msra.mxu0 0.0
    %2913 = vmatprep.subr.mxu0 0.0
    %2914 = vmatpush1.msra.mxu0 0.0
    %2915 = vmatprep.subr.mxu0 0.0
    %2916 = vmatpush1.msra.mxu0 0.0
    %2917 = vmatprep.subr.mxu0 0.0
    %2918 = vmatpush1.msra.mxu0 0.0
    %2919 = vmatprep.subr.mxu0 0.0
    %2920 = vmatpush1.msra.mxu0 0.0
    %2921 = vmatprep.subr.mxu0 0.0
    %2922 = vmatpush1.msra.mxu0 0.0
    %2923 = vmatprep.subr.mxu0 0.0
    %2924 = vmatpush1.msra.mxu0 0.0
    %2925 = vmatprep.subr.mxu0 0.0
    %2926 = vmatpush1.msra.mxu0 0.0
    %2927 = vmatprep.subr.mxu0 0.0
    %2928 = vmatpush1.msra.mxu0 0.0
    %2929 = vmatprep.subr.mxu0 0.0
    %2930 = vmatpush1.msra.mxu0 0.0
    %2931 = vmatprep.subr.mxu0 0.0
    %2932 = vmatpush1.msra.mxu0 0.0
    %2933 = vmatprep.subr.mxu0 0.0
    %2934 = vmatpush1.msra.mxu0 0.0
    %2935 = vmatprep.mubr.f32.mxu0 0.0
    %2936 = vmatmul.mubr.f32.gmra.mrb[0].mxu0 %v2869
    %v2937 = vpop.f32.mrb[0].mxu0
    %v2938 = vadd.f32 %v2845, %v2937
    %v2939 = vpop.f32.mrb[0].mxu0
    %2940 = vdwg.mxu0
    %v2941 = vmax.f32 %v2938, 0.0
    %v2943 = vlaneseq
    %v2944 = vshrl.u32 %v2943, 7
    %v2945 = vsub.s32 0, %v2944
    %v2946 = vrot.slane %v327, %v2945
    %vm2948 = vcmask 523264
    %v2950 = vsel %vm2948, %v2941, 0
    %2952 = vmatprep.subr.mxu0 0.0
    %2953 = vmatpush1.msra.mxu0 %v319
    %2954 = vmatprep.subr.mxu0 0.0
    %2955 = vmatpush1.msra.mxu0 %v320
    %2956 = vmatprep.subr.mxu0 0.0
    %2957 = vmatpush1.msra.mxu0 %v321
    %2958 = vmatprep.subr.mxu0 0.0
    %2959 = vmatpush1.msra.mxu0 %v322
    %2960 = vmatprep.subr.mxu0 0.0
    %2961 = vmatpush1.msra.mxu0 %v323
    %2962 = vmatprep.subr.mxu0 0.0
    %2963 = vmatpush1.msra.mxu0 %v324
    %2964 = vmatprep.subr.mxu0 0.0
    %2965 = vmatpush1.msra.mxu0 %v325
    %2966 = vmatprep.subr.mxu0 0.0
    %2967 = vmatpush1.msra.mxu0 %v326
    %2968 = vmatprep.subr.mxu0 0.0
    %2969 = vmatpush1.msra.mxu0 0.0
    %2970 = vmatprep.subr.mxu0 0.0
    %2971 = vmatpush1.msra.mxu0 0.0
    %2972 = vmatprep.subr.mxu0 0.0
    %2973 = vmatpush1.msra.mxu0 0.0
    %2974 = vmatprep.subr.mxu0 0.0
    %2975 = vmatpush1.msra.mxu0 0.0
    %2976 = vmatprep.subr.mxu0 0.0
    %2977 = vmatpush1.msra.mxu0 0.0
    %2978 = vmatprep.subr.mxu0 0.0
    %2979 = vmatpush1.msra.mxu0 0.0
    %2980 = vmatprep.subr.mxu0 0.0
    %2981 = vmatpush1.msra.mxu0 0.0
    %2982 = vmatprep.subr.mxu0 0.0
    %2983 = vmatpush1.msra.mxu0 0.0
    %2984 = vmatprep.subr.mxu0 0.0
    %2985 = vmatpush1.msra.mxu0 0.0
    %2986 = vmatprep.subr.mxu0 0.0
    %2987 = vmatpush1.msra.mxu0 0.0
    %2988 = vmatprep.subr.mxu0 0.0
    %2989 = vmatpush1.msra.mxu0 0.0
    %2990 = vmatprep.subr.mxu0 0.0
    %2991 = vmatpush1.msra.mxu0 0.0
    %2992 = vmatprep.subr.mxu0 0.0
    %2993 = vmatpush1.msra.mxu0 0.0
    %2994 = vmatprep.subr.mxu0 0.0
    %2995 = vmatpush1.msra.mxu0 0.0
    %2996 = vmatprep.subr.mxu0 0.0
    %2997 = vmatpush1.msra.mxu0 0.0
    %2998 = vmatprep.subr.mxu0 0.0
    %2999 = vmatpush1.msra.mxu0 0.0
    %3000 = vmatprep.subr.mxu0 0.0
    %3001 = vmatpush1.msra.mxu0 0.0
    %3002 = vmatprep.subr.mxu0 0.0
    %3003 = vmatpush1.msra.mxu0 0.0
    %3004 = vmatprep.subr.mxu0 0.0
    %3005 = vmatpush1.msra.mxu0 0.0
    %3006 = vmatprep.subr.mxu0 0.0
    %3007 = vmatpush1.msra.mxu0 0.0
    %3008 = vmatprep.subr.mxu0 0.0
    %3009 = vmatpush1.msra.mxu0 0.0
    %3010 = vmatprep.subr.mxu0 0.0
    %3011 = vmatpush1.msra.mxu0 0.0
    %3012 = vmatprep.subr.mxu0 0.0
    %3013 = vmatpush1.msra.mxu0 0.0
    %3014 = vmatprep.subr.mxu0 0.0
    %3015 = vmatpush1.msra.mxu0 0.0
    %3016 = vmatprep.mubr.f32.mxu0 0.0
    %3017 = vmatmul.mubr.f32.gmra.mrb[0].mxu0 %v2950
    %v3018 = vpop.f32.mrb[0].mxu0
    %v3019 = vadd.f32 %v2946, %v3018
    %v3020 = vpop.f32.mrb[0].mxu0
    %3021 = vdwg.mxu0
    %v3023 = vrot.slane %v3019, 1
    %v3024 = vrot.slane %v3019, 2
    %v3025 = vrot.slane %v3019, 3
    %v3026 = vrot.slane %v3019, 4
    %v3027 = vrot.slane %v3019, 5
    %v3028 = vrot.slane %v3019, 6
    %v3029 = vrot.slane %v3019, 7
    %v3038 = vadd.f32 %v2833, %v3019
    %v3039 = vadd.f32 %v2834, %v3023
    %v3040 = vadd.f32 %v2835, %v3024
    %v3041 = vadd.f32 %v2836, %v3025
    %v3042 = vadd.f32 %v2837, %v3026
    %v3043 = vadd.f32 %v2838, %v3027
    %v3044 = vadd.f32 %v2839, %v3028
    %v3045 = vadd.f32 %v2840, %v3029
    %v3054 = vrot.slane %v3039, 7
    %v3055 = vsel %vm421, %v3054, %v3038
    %v3056 = vrot.slane %v3040, 6
    %v3057 = vsel %vm424, %v3056, %v3055
    %v3058 = vrot.slane %v3041, 5
    %v3059 = vsel %vm427, %v3058, %v3057
    %v3060 = vrot.slane %v3042, 4
    %v3061 = vsel %vm430, %v3060, %v3059
    %v3062 = vrot.slane %v3043, 3
    %v3063 = vsel %vm433, %v3062, %v3061
    %v3064 = vrot.slane %v3044, 2
    %v3065 = vsel %vm436, %v3064, %v3063
    %v3066 = vrot.slane %v3045, 1
    %v3067 = vsel %vm439, %v3066, %v3065
    %v3069 = vsel %vm441, %v3067, 0.0
    %3070 = vadd.xlane.f32.xlu0 %v3069
    %v3071 = vpop.xlane.xlu0 %3070
    %v3072 = vmul.f32 %v3071, %v1420
    %v3074 = vrot.slane %v3072, 1
    %v3075 = vrot.slane %v3072, 2
    %v3076 = vrot.slane %v3072, 3
    %v3077 = vrot.slane %v3072, 4
    %v3078 = vrot.slane %v3072, 5
    %v3079 = vrot.slane %v3072, 6
    %v3080 = vrot.slane %v3072, 7
    %v3089 = vsub.f32 %v3038, %v3072
    %v3090 = vsub.f32 %v3039, %v3074
    %v3091 = vsub.f32 %v3040, %v3075
    %v3092 = vsub.f32 %v3041, %v3076
    %v3093 = vsub.f32 %v3042, %v3077
    %v3094 = vsub.f32 %v3043, %v3078
    %v3095 = vsub.f32 %v3044, %v3079
    %v3096 = vsub.f32 %v3045, %v3080
    %v3097 = vmul.f32 %v3089, %v3089
    %v3098 = vmul.f32 %v3090, %v3090
    %v3099 = vmul.f32 %v3091, %v3091
    %v3100 = vmul.f32 %v3092, %v3092
    %v3101 = vmul.f32 %v3093, %v3093
    %v3102 = vmul.f32 %v3094, %v3094
    %v3103 = vmul.f32 %v3095, %v3095
    %v3104 = vmul.f32 %v3096, %v3096
    %v3113 = vrot.slane %v3098, 7
    %v3114 = vsel %vm421, %v3113, %v3097
    %v3115 = vrot.slane %v3099, 6
    %v3116 = vsel %vm424, %v3115, %v3114
    %v3117 = vrot.slane %v3100, 5
    %v3118 = vsel %vm427, %v3117, %v3116
    %v3119 = vrot.slane %v3101, 4
    %v3120 = vsel %vm430, %v3119, %v3118
    %v3121 = vrot.slane %v3102, 3
    %v3122 = vsel %vm433, %v3121, %v3120
    %v3123 = vrot.slane %v3103, 2
    %v3124 = vsel %vm436, %v3123, %v3122
    %v3125 = vrot.slane %v3104, 1
    %v3126 = vsel %vm439, %v3125, %v3124
    %v3128 = vsel %vm441, %v3126, 0.0
    %3129 = vadd.xlane.f32.xlu0 %v3128
    %v3130 = vpop.xlane.xlu0 %3129
    %v3131 = vmul.f32 %v3130, %v1420
    %v3132 = vadd.f32 %v3131, 1e-05
    %v3133 = vrsqrt.pop %v3132
    %v3135 = vrot.slane %v3133, 1
    %v3136 = vrot.slane %v3133, 2
    %v3137 = vrot.slane %v3133, 3
    %v3138 = vrot.slane %v3133, 4
    %v3139 = vrot.slane %v3133, 5
    %v3140 = vrot.slane %v3133, 6
    %v3141 = vrot.slane %v3133, 7
    %v3150 = vmul.f32 %v3089, %v3133
    %v3151 = vmul.f32 %v3090, %v3135
    %v3152 = vmul.f32 %v3091, %v3136
    %v3153 = vmul.f32 %v3092, %v3137
    %v3154 = vmul.f32 %v3093, %v3138
    %v3155 = vmul.f32 %v3094, %v3139
    %v3156 = vmul.f32 %v3095, %v3140
    %v3157 = vmul.f32 %v3096, %v3141
    %v3159 = vlaneseq
    %v3160 = vshrl.u32 %v3159, 7
    %v3161 = vsub.s32 0, %v3160
    %v3162 = vrot.slane %v332, %v3161
    %v3164 = vmul.f32 %v3150, %v3162
    %v3165 = vmul.f32 %v3151, %v3162
    %v3166 = vmul.f32 %v3152, %v3162
    %v3167 = vmul.f32 %v3153, %v3162
    %v3168 = vmul.f32 %v3154, %v3162
    %v3169 = vmul.f32 %v3155, %v3162
    %v3170 = vmul.f32 %v3156, %v3162
    %v3171 = vmul.f32 %v3157, %v3162
    %v3173 = vlaneseq
    %v3174 = vshrl.u32 %v3173, 7
    %v3175 = vsub.s32 0, %v3174
    %v3176 = vrot.slane %v333, %v3175
    %v3178 = vadd.f32 %v3164, %v3176
    %v3179 = vadd.f32 %v3165, %v3176
    %v3180 = vadd.f32 %v3166, %v3176
    %v3181 = vadd.f32 %v3167, %v3176
    %v3182 = vadd.f32 %v3168, %v3176
    %v3183 = vadd.f32 %v3169, %v3176
    %v3184 = vadd.f32 %v3170, %v3176
    %v3185 = vadd.f32 %v3171, %v3176
    %vm3186 = vcmask 253952
    %3187 = vst.msk [vmem:[#allocation26] sm:$0x1] %vm3186, %v3178
    %3188 = vst.msk [vmem:[#allocation26 + $0x2] sm:$0x1] %vm3186, %v3179
    %3189 = vst.msk [vmem:[#allocation26 + $0x4] sm:$0x1] %vm3186, %v3180
    %3190 = vst.msk [vmem:[#allocation26 + $0x6] sm:$0x1] %vm3186, %v3181
    %3191 = vst.msk [vmem:[#allocation26 + $0x8] sm:$0x1] %vm3186, %v3182
    %3192 = vst.msk [vmem:[#allocation26 + $0xa] sm:$0x1] %vm3186, %v3183
    %3193 = vst.msk [vmem:[#allocation26 + $0xc] sm:$0x1] %vm3186, %v3184
    %3194 = vst.msk [vmem:[#allocation26 + $0xe] sm:$0x1] %vm3186, %v3185
    %v3195 = vrot.slane %v366, 1
    %v3196 = vsel %vm421, %v367, %v3195
    %v3197 = vrot.slane %v368, 7
    %v3198 = vsel %vm424, %v3197, %v3196
    %v3199 = vrot.slane %v369, 6
    %v3200 = vsel %vm427, %v3199, %v3198
    %v3201 = vrot.slane %v370, 5
    %v3202 = vsel %vm430, %v3201, %v3200
    %v3203 = vrot.slane %v371, 4
    %v3204 = vsel %vm433, %v3203, %v3202
    %v3205 = vrot.slane %v372, 3
    %v3206 = vsel %vm436, %v3205, %v3204
    %v3207 = vrot.slane %v373, 2
    %v3208 = vsel %vm439, %v3207, %v3206
    %v3209 = vsel %vm441, %v3208, 0
    %3211 = vmatprep.subr.mxu0 0.0
    %3212 = vmatpush1.msra.mxu0 %v279
    %3213 = vmatprep.subr.mxu0 0.0
    %3214 = vmatpush1.msra.mxu0 %v280
    %3215 = vmatprep.subr.mxu0 0.0
    %3216 = vmatpush1.msra.mxu0 %v281
    %3217 = vmatprep.subr.mxu0 0.0
    %3218 = vmatpush1.msra.mxu0 %v282
    %3219 = vmatprep.subr.mxu0 0.0
    %3220 = vmatpush1.msra.mxu0 0.0
    %3221 = vmatprep.subr.mxu0 0.0
    %3222 = vmatpush1.msra.mxu0 0.0
    %3223 = vmatprep.subr.mxu0 0.0
    %3224 = vmatpush1.msra.mxu0 0.0
    %3225 = vmatprep.subr.mxu0 0.0
    %3226 = vmatpush1.msra.mxu0 0.0
    %3227 = vmatprep.subr.mxu0 0.0
    %3228 = vmatpush1.msra.mxu0 0.0
    %3229 = vmatprep.subr.mxu0 0.0
    %3230 = vmatpush1.msra.mxu0 0.0
    %3231 = vmatprep.subr.mxu0 0.0
    %3232 = vmatpush1.msra.mxu0 0.0
    %3233 = vmatprep.subr.mxu0 0.0
    %3234 = vmatpush1.msra.mxu0 0.0
    %3235 = vmatprep.subr.mxu0 0.0
    %3236 = vmatpush1.msra.mxu0 0.0
    %3237 = vmatprep.subr.mxu0 0.0
    %3238 = vmatpush1.msra.mxu0 0.0
    %3239 = vmatprep.subr.mxu0 0.0
    %3240 = vmatpush1.msra.mxu0 0.0
    %3241 = vmatprep.subr.mxu0 0.0
    %3242 = vmatpush1.msra.mxu0 0.0
    %3243 = vmatprep.subr.mxu0 0.0
    %3244 = vmatpush1.msra.mxu0 0.0
    %3245 = vmatprep.subr.mxu0 0.0
    %3246 = vmatpush1.msra.mxu0 0.0
    %3247 = vmatprep.subr.mxu0 0.0
    %3248 = vmatpush1.msra.mxu0 0.0
    %3249 = vmatprep.subr.mxu0 0.0
    %3250 = vmatpush1.msra.mxu0 0.0
    %3251 = vmatprep.subr.mxu0 0.0
    %3252 = vmatpush1.msra.mxu0 0.0
    %3253 = vmatprep.subr.mxu0 0.0
    %3254 = vmatpush1.msra.mxu0 0.0
    %3255 = vmatprep.subr.mxu0 0.0
    %3256 = vmatpush1.msra.mxu0 0.0
    %3257 = vmatprep.subr.mxu0 0.0
    %3258 = vmatpush1.msra.mxu0 0.0
    %3259 = vmatprep.subr.mxu0 0.0
    %3260 = vmatpush1.msra.mxu0 0.0
    %3261 = vmatprep.subr.mxu0 0.0
    %3262 = vmatpush1.msra.mxu0 0.0
    %3263 = vmatprep.subr.mxu0 0.0
    %3264 = vmatpush1.msra.mxu0 0.0
    %3265 = vmatprep.subr.mxu0 0.0
    %3266 = vmatpush1.msra.mxu0 0.0
    %3267 = vmatprep.subr.mxu0 0.0
    %3268 = vmatpush1.msra.mxu0 0.0
    %3269 = vmatprep.subr.mxu0 0.0
    %3270 = vmatpush1.msra.mxu0 0.0
    %3271 = vmatprep.subr.mxu0 0.0
    %3272 = vmatpush1.msra.mxu0 0.0
    %3273 = vmatprep.subr.mxu0 0.0
    %3274 = vmatpush1.msra.mxu0 0.0
    %3275 = vmatprep.mubr.f32.mxu0 0.0
    %3276 = vmatmul.mubr.f32.gmra.mrb[0].mxu0 %v3209
    %v3277 = vpop.f32.mrb[0].mxu0
    %v3278 = vadd.f32 %v410, %v3277
    %v3279 = vpop.f32.mrb[0].mxu0
    %3280 = vdwg.mxu0
    %v3281 = vmul.f32 %v3278, 0.35355338
    %v3282 = vrot.slane %v334, 1
    %v3283 = vsel %vm421, %v335, %v3282
    %v3284 = vrot.slane %v336, 7
    %v3285 = vsel %vm424, %v3284, %v3283
    %v3286 = vrot.slane %v337, 6
    %v3287 = vsel %vm427, %v3286, %v3285
    %v3288 = vrot.slane %v338, 5
    %v3289 = vsel %vm430, %v3288, %v3287
    %v3290 = vrot.slane %v339, 4
    %v3291 = vsel %vm433, %v3290, %v3289
    %v3292 = vrot.slane %v340, 3
    %v3293 = vsel %vm436, %v3292, %v3291
    %v3294 = vrot.slane %v341, 2
    %v3295 = vsel %vm439, %v3294, %v3293
    %v3296 = vsel %vm441, %v3295, 0
    %3298 = vmatprep.subr.mxu0 0.0
    %3299 = vmatpush1.msra.mxu0 %v284
    %3300 = vmatprep.subr.mxu0 0.0
    %3301 = vmatpush1.msra.mxu0 %v285
    %3302 = vmatprep.subr.mxu0 0.0
    %3303 = vmatpush1.msra.mxu0 %v286
    %3304 = vmatprep.subr.mxu0 0.0
    %3305 = vmatpush1.msra.mxu0 %v287
    %3306 = vmatprep.subr.mxu0 0.0
    %3307 = vmatpush1.msra.mxu0 0.0
    %3308 = vmatprep.subr.mxu0 0.0
    %3309 = vmatpush1.msra.mxu0 0.0
    %3310 = vmatprep.subr.mxu0 0.0
    %3311 = vmatpush1.msra.mxu0 0.0
    %3312 = vmatprep.subr.mxu0 0.0
    %3313 = vmatpush1.msra.mxu0 0.0
    %3314 = vmatprep.subr.mxu0 0.0
    %3315 = vmatpush1.msra.mxu0 0.0
    %3316 = vmatprep.subr.mxu0 0.0
    %3317 = vmatpush1.msra.mxu0 0.0
    %3318 = vmatprep.subr.mxu0 0.0
    %3319 = vmatpush1.msra.mxu0 0.0
    %3320 = vmatprep.subr.mxu0 0.0
    %3321 = vmatpush1.msra.mxu0 0.0
    %3322 = vmatprep.subr.mxu0 0.0
    %3323 = vmatpush1.msra.mxu0 0.0
    %3324 = vmatprep.subr.mxu0 0.0
    %3325 = vmatpush1.msra.mxu0 0.0
    %3326 = vmatprep.subr.mxu0 0.0
    %3327 = vmatpush1.msra.mxu0 0.0
    %3328 = vmatprep.subr.mxu0 0.0
    %3329 = vmatpush1.msra.mxu0 0.0
    %3330 = vmatprep.subr.mxu0 0.0
    %3331 = vmatpush1.msra.mxu0 0.0
    %3332 = vmatprep.subr.mxu0 0.0
    %3333 = vmatpush1.msra.mxu0 0.0
    %3334 = vmatprep.subr.mxu0 0.0
    %3335 = vmatpush1.msra.mxu0 0.0
    %3336 = vmatprep.subr.mxu0 0.0
    %3337 = vmatpush1.msra.mxu0 0.0
    %3338 = vmatprep.subr.mxu0 0.0
    %3339 = vmatpush1.msra.mxu0 0.0
    %3340 = vmatprep.subr.mxu0 0.0
    %3341 = vmatpush1.msra.mxu0 0.0
    %3342 = vmatprep.subr.mxu0 0.0
    %3343 = vmatpush1.msra.mxu0 0.0
    %3344 = vmatprep.subr.mxu0 0.0
    %3345 = vmatpush1.msra.mxu0 0.0
    %3346 = vmatprep.subr.mxu0 0.0
    %3347 = vmatpush1.msra.mxu0 0.0
    %3348 = vmatprep.subr.mxu0 0.0
    %3349 = vmatpush1.msra.mxu0 0.0
    %3350 = vmatprep.subr.mxu0 0.0
    %3351 = vmatpush1.msra.mxu0 0.0
    %3352 = vmatprep.subr.mxu0 0.0
    %3353 = vmatpush1.msra.mxu0 0.0
    %3354 = vmatprep.subr.mxu0 0.0
    %3355 = vmatpush1.msra.mxu0 0.0
    %3356 = vmatprep.subr.mxu0 0.0
    %3357 = vmatpush1.msra.mxu0 0.0
    %3358 = vmatprep.subr.mxu0 0.0
    %3359 = vmatpush1.msra.mxu0 0.0
    %3360 = vmatprep.subr.mxu0 0.0
    %3361 = vmatpush1.msra.mxu0 0.0
    %3362 = vmatprep.mubr.f32.mxu0 0.0
    %3363 = vmatmul.mubr.f32.gmra.mrb[0].mxu0 %v3296
    %v3364 = vpop.f32.mrb[0].mxu0
    %v3365 = vadd.f32 %v519, %v3364
    %v3366 = vpop.f32.mrb[0].mxu0
    %3367 = vdwg.mxu0
    %3369 = vrot.lane.b32.xlu0 %v3278, 96
    %v3370 = vpop.permute.xlu0 %3369
    %v3372 = vsel %vm618, %v3281, 0
    %v3374 = vsel %vm618, %v3370, 0
    %3376 = vmatprep.subr.mxu0 0.0
    %3377 = vmatpush1.xpose.msra.mxu0 %v3374
    %3378 = vmatprep.subr.mxu0 0.0
    %3379 = vmatpush1.xpose.msra.mxu0 0.0
    %3380 = vmatprep.subr.mxu0 0.0
    %3381 = vmatpush1.xpose.msra.mxu0 0.0
    %3382 = vmatprep.subr.mxu0 0.0
    %3383 = vmatpush1.xpose.msra.mxu0 0.0
    %3384 = vmatprep.subr.mxu0 0.0
    %3385 = vmatpush1.xpose.msra.mxu0 0.0
    %3386 = vmatprep.subr.mxu0 0.0
    %3387 = vmatpush1.xpose.msra.mxu0 0.0
    %3388 = vmatprep.subr.mxu0 0.0
    %3389 = vmatpush1.xpose.msra.mxu0 0.0
    %3390 = vmatprep.subr.mxu0 0.0
    %3391 = vmatpush1.xpose.msra.mxu0 0.0
    %3392 = vmatprep.subr.mxu0 0.0
    %3393 = vmatpush1.xpose.msra.mxu0 0.0
    %3394 = vmatprep.subr.mxu0 0.0
    %3395 = vmatpush1.xpose.msra.mxu0 0.0
    %3396 = vmatprep.subr.mxu0 0.0
    %3397 = vmatpush1.xpose.msra.mxu0 0.0
    %3398 = vmatprep.subr.mxu0 0.0
    %3399 = vmatpush1.xpose.msra.mxu0 0.0
    %3400 = vmatprep.subr.mxu0 0.0
    %3401 = vmatpush1.xpose.msra.mxu0 0.0
    %3402 = vmatprep.subr.mxu0 0.0
    %3403 = vmatpush1.xpose.msra.mxu0 0.0
    %3404 = vmatprep.subr.mxu0 0.0
    %3405 = vmatpush1.xpose.msra.mxu0 0.0
    %3406 = vmatprep.subr.mxu0 0.0
    %3407 = vmatpush1.xpose.msra.mxu0 0.0
    %3408 = vmatprep.subr.mxu0 0.0
    %3409 = vmatpush1.xpose.msra.mxu0 0.0
    %3410 = vmatprep.subr.mxu0 0.0
    %3411 = vmatpush1.xpose.msra.mxu0 0.0
    %3412 = vmatprep.subr.mxu0 0.0
    %3413 = vmatpush1.xpose.msra.mxu0 0.0
    %3414 = vmatprep.subr.mxu0 0.0
    %3415 = vmatpush1.xpose.msra.mxu0 0.0
    %3416 = vmatprep.subr.mxu0 0.0
    %3417 = vmatpush1.xpose.msra.mxu0 0.0
    %3418 = vmatprep.subr.mxu0 0.0
    %3419 = vmatpush1.xpose.msra.mxu0 0.0
    %3420 = vmatprep.subr.mxu0 0.0
    %3421 = vmatpush1.xpose.msra.mxu0 0.0
    %3422 = vmatprep.subr.mxu0 0.0
    %3423 = vmatpush1.xpose.msra.mxu0 0.0
    %3424 = vmatprep.subr.mxu0 0.0
    %3425 = vmatpush1.xpose.msra.mxu0 0.0
    %3426 = vmatprep.subr.mxu0 0.0
    %3427 = vmatpush1.xpose.msra.mxu0 0.0
    %3428 = vmatprep.subr.mxu0 0.0
    %3429 = vmatpush1.xpose.msra.mxu0 0.0
    %3430 = vmatprep.subr.mxu0 0.0
    %3431 = vmatpush1.xpose.msra.mxu0 0.0
    %3432 = vmatprep.subr.mxu0 0.0
    %3433 = vmatpush1.xpose.msra.mxu0 0.0
    %3434 = vmatprep.subr.mxu0 0.0
    %3435 = vmatpush1.xpose.msra.mxu0 0.0
    %3436 = vmatprep.subr.mxu0 0.0
    %3437 = vmatpush1.xpose.msra.mxu0 0.0
    %3438 = vmatprep.subr.mxu0 0.0
    %3439 = vmatpush1.xpose.msra.mxu0 0.0
    %3440 = vmatprep.mubr.f32.mxu0 0.0
    %3441 = vmatmul.mubr.f32.gmra.mrb[0].mxu0 %v3372
    %v3442 = vpop.f32.mrb[0].mxu0
    %v3443 = vadd.f32 0.0, %v3442
    %v3444 = vpop.f32.mrb[0].mxu0
    %3445 = vdwg.mxu0
    %v3446 = vsel %vm618, %v3443, -inf
    %3447 = vmax.xlane.f32.xlu0 %v3446
    %v3448 = vpop.xlane.xlu0 %3447
    %v3449 = vsub.f32 %v3443, %v3448
    %v3450 = vmul.f32 %v3449, 1.442695
    %v3451 = vpow.pop %v3450
    %v3452 = vsel %vm618, %v3451, 0.0
    %3453 = vadd.xlane.f32.xlu0 %v3452
    %v3454 = vpop.xlane.xlu0 %3453
    %v3455 = vrcp.pop %v3454
    %v3456 = vmul.f32 %v3451, %v3455
    %v3458 = vsel %vm618, %v3456, 0
    %3460 = vmatprep.subr.mxu0 0.0
    %3461 = vmatpush1.msra.mxu0 %v3365
    %3462 = vmatprep.subr.mxu0 0.0
    %3463 = vmatpush1.msra.mxu0 0.0
    %3464 = vmatprep.subr.mxu0 0.0
    %3465 = vmatpush1.msra.mxu0 0.0
    %3466 = vmatprep.subr.mxu0 0.0
    %3467 = vmatpush1.msra.mxu0 0.0
    %3468 = vmatprep.subr.mxu0 0.0
    %3469 = vmatpush1.msra.mxu0 0.0
    %3470 = vmatprep.subr.mxu0 0.0
    %3471 = vmatpush1.msra.mxu0 0.0
    %3472 = vmatprep.subr.mxu0 0.0
    %3473 = vmatpush1.msra.mxu0 0.0
    %3474 = vmatprep.subr.mxu0 0.0
    %3475 = vmatpush1.msra.mxu0 0.0
    %3476 = vmatprep.subr.mxu0 0.0
    %3477 = vmatpush1.msra.mxu0 0.0
    %3478 = vmatprep.subr.mxu0 0.0
    %3479 = vmatpush1.msra.mxu0 0.0
    %3480 = vmatprep.subr.mxu0 0.0
    %3481 = vmatpush1.msra.mxu0 0.0
    %3482 = vmatprep.subr.mxu0 0.0
    %3483 = vmatpush1.msra.mxu0 0.0
    %3484 = vmatprep.subr.mxu0 0.0
    %3485 = vmatpush1.msra.mxu0 0.0
    %3486 = vmatprep.subr.mxu0 0.0
    %3487 = vmatpush1.msra.mxu0 0.0
    %3488 = vmatprep.subr.mxu0 0.0
    %3489 = vmatpush1.msra.mxu0 0.0
    %3490 = vmatprep.subr.mxu0 0.0
    %3491 = vmatpush1.msra.mxu0 0.0
    %3492 = vmatprep.subr.mxu0 0.0
    %3493 = vmatpush1.msra.mxu0 0.0
    %3494 = vmatprep.subr.mxu0 0.0
    %3495 = vmatpush1.msra.mxu0 0.0
    %3496 = vmatprep.subr.mxu0 0.0
    %3497 = vmatpush1.msra.mxu0 0.0
    %3498 = vmatprep.subr.mxu0 0.0
    %3499 = vmatpush1.msra.mxu0 0.0
    %3500 = vmatprep.subr.mxu0 0.0
    %3501 = vmatpush1.msra.mxu0 0.0
    %3502 = vmatprep.subr.mxu0 0.0
    %3503 = vmatpush1.msra.mxu0 0.0
    %3504 = vmatprep.subr.mxu0 0.0
    %3505 = vmatpush1.msra.mxu0 0.0
    %3506 = vmatprep.subr.mxu0 0.0
    %3507 = vmatpush1.msra.mxu0 0.0
    %3508 = vmatprep.subr.mxu0 0.0
    %3509 = vmatpush1.msra.mxu0 0.0
    %3510 = vmatprep.subr.mxu0 0.0
    %3511 = vmatpush1.msra.mxu0 0.0
    %3512 = vmatprep.subr.mxu0 0.0
    %3513 = vmatpush1.msra.mxu0 0.0
    %3514 = vmatprep.subr.mxu0 0.0
    %3515 = vmatpush1.msra.mxu0 0.0
    %3516 = vmatprep.subr.mxu0 0.0
    %3517 = vmatpush1.msra.mxu0 0.0
    %3518 = vmatprep.subr.mxu0 0.0
    %3519 = vmatpush1.msra.mxu0 0.0
    %3520 = vmatprep.subr.mxu0 0.0
    %3521 = vmatpush1.msra.mxu0 0.0
    %3522 = vmatprep.subr.mxu0 0.0
    %3523 = vmatpush1.msra.mxu0 0.0
    %3524 = vmatprep.mubr.f32.mxu0 0.0
    %3525 = vmatmul.mubr.f32.gmra.mrb[0].mxu0 %v3458
    %v3526 = vpop.f32.mrb[0].mxu0
    %v3527 = vadd.f32 0.0, %v3526
    %v3528 = vpop.f32.mrb[0].mxu0
    %3529 = vdwg.mxu0
    %3530 = vrot.lane.b32.xlu0 %v3281, 120
    %v3531 = vpop.permute.xlu0 %3530
    %3532 = vrot.lane.b32.xlu0 %v3278, 88
    %v3533 = vpop.permute.xlu0 %3532
    %v3534 = vsel %vm618, %v3531, 0
    %v3536 = vsel %vm618, %v3533, 0
    %3538 = vmatprep.subr.mxu0 0.0
    %3539 = vmatpush1.xpose.msra.mxu0 %v3536
    %3540 = vmatprep.subr.mxu0 0.0
    %3541 = vmatpush1.xpose.msra.mxu0 0.0
    %3542 = vmatprep.subr.mxu0 0.0
    %3543 = vmatpush1.xpose.msra.mxu0 0.0
    %3544 = vmatprep.subr.mxu0 0.0
    %3545 = vmatpush1.xpose.msra.mxu0 0.0
    %3546 = vmatprep.subr.mxu0 0.0
    %3547 = vmatpush1.xpose.msra.mxu0 0.0
    %3548 = vmatprep.subr.mxu0 0.0
    %3549 = vmatpush1.xpose.msra.mxu0 0.0
    %3550 = vmatprep.subr.mxu0 0.0
    %3551 = vmatpush1.xpose.msra.mxu0 0.0
    %3552 = vmatprep.subr.mxu0 0.0
    %3553 = vmatpush1.xpose.msra.mxu0 0.0
    %3554 = vmatprep.subr.mxu0 0.0
    %3555 = vmatpush1.xpose.msra.mxu0 0.0
    %3556 = vmatprep.subr.mxu0 0.0
    %3557 = vmatpush1.xpose.msra.mxu0 0.0
    %3558 = vmatprep.subr.mxu0 0.0
    %3559 = vmatpush1.xpose.msra.mxu0 0.0
    %3560 = vmatprep.subr.mxu0 0.0
    %3561 = vmatpush1.xpose.msra.mxu0 0.0
    %3562 = vmatprep.subr.mxu0 0.0
    %3563 = vmatpush1.xpose.msra.mxu0 0.0
    %3564 = vmatprep.subr.mxu0 0.0
    %3565 = vmatpush1.xpose.msra.mxu0 0.0
    %3566 = vmatprep.subr.mxu0 0.0
    %3567 = vmatpush1.xpose.msra.mxu0 0.0
    %3568 = vmatprep.subr.mxu0 0.0
    %3569 = vmatpush1.xpose.msra.mxu0 0.0
    %3570 = vmatprep.subr.mxu0 0.0
    %3571 = vmatpush1.xpose.msra.mxu0 0.0
    %3572 = vmatprep.subr.mxu0 0.0
    %3573 = vmatpush1.xpose.msra.mxu0 0.0
    %3574 = vmatprep.subr.mxu0 0.0
    %3575 = vmatpush1.xpose.msra.mxu0 0.0
    %3576 = vmatprep.subr.mxu0 0.0
    %3577 = vmatpush1.xpose.msra.mxu0 0.0
    %3578 = vmatprep.subr.mxu0 0.0
    %3579 = vmatpush1.xpose.msra.mxu0 0.0
    %3580 = vmatprep.subr.mxu0 0.0
    %3581 = vmatpush1.xpose.msra.mxu0 0.0
    %3582 = vmatprep.subr.mxu0 0.0
    %3583 = vmatpush1.xpose.msra.mxu0 0.0
    %3584 = vmatprep.subr.mxu0 0.0
    %3585 = vmatpush1.xpose.msra.mxu0 0.0
    %3586 = vmatprep.subr.mxu0 0.0
    %3587 = vmatpush1.xpose.msra.mxu0 0.0
    %3588 = vmatprep.subr.mxu0 0.0
    %3589 = vmatpush1.xpose.msra.mxu0 0.0
    %3590 = vmatprep.subr.mxu0 0.0
    %3591 = vmatpush1.xpose.msra.mxu0 0.0
    %3592 = vmatprep.subr.mxu0 0.0
    %3593 = vmatpush1.xpose.msra.mxu0 0.0
    %3594 = vmatprep.subr.mxu0 0.0
    %3595 = vmatpush1.xpose.msra.mxu0 0.0
    %3596 = vmatprep.subr.mxu0 0.0
    %3597 = vmatpush1.xpose.msra.mxu0 0.0
    %3598 = vmatprep.subr.mxu0 0.0
    %3599 = vmatpush1.xpose.msra.mxu0 0.0
    %3600 = vmatprep.subr.mxu0 0.0
    %3601 = vmatpush1.xpose.msra.mxu0 0.0
    %3602 = vmatprep.mubr.f32.mxu0 0.0
    %3603 = vmatmul.mubr.f32.gmra.mrb[0].mxu0 %v3534
    %v3604 = vpop.f32.mrb[0].mxu0
    %v3605 = vadd.f32 0.0, %v3604
    %v3606 = vpop.f32.mrb[0].mxu0
    %3607 = vdwg.mxu0
    %v3608 = vsel %vm618, %v3605, -inf
    %3609 = vmax.xlane.f32.xlu0 %v3608
    %v3610 = vpop.xlane.xlu0 %3609
    %v3611 = vsub.f32 %v3605, %v3610
    %v3612 = vmul.f32 %v3611, 1.442695
    %v3613 = vpow.pop %v3612
    %v3614 = vsel %vm618, %v3613, 0.0
    %3615 = vadd.xlane.f32.xlu0 %v3614
    %v3616 = vpop.xlane.xlu0 %3615
    %v3617 = vrcp.pop %v3616
    %v3618 = vmul.f32 %v3613, %v3617
    %3620 = vrot.lane.b32.xlu0 %v3365, 120
    %v3621 = vpop.permute.xlu0 %3620
    %v3624 = vsel %vm618, %v3618, 0
    %3626 = vmatprep.subr.mxu0 0.0
    %3627 = vmatpush1.msra.mxu0 %v3621
    %3628 = vmatprep.subr.mxu0 0.0
    %3629 = vmatpush1.msra.mxu0 0.0
    %3630 = vmatprep.subr.mxu0 0.0
    %3631 = vmatpush1.msra.mxu0 0.0
    %3632 = vmatprep.subr.mxu0 0.0
    %3633 = vmatpush1.msra.mxu0 0.0
    %3634 = vmatprep.subr.mxu0 0.0
    %3635 = vmatpush1.msra.mxu0 0.0
    %3636 = vmatprep.subr.mxu0 0.0
    %3637 = vmatpush1.msra.mxu0 0.0
    %3638 = vmatprep.subr.mxu0 0.0
    %3639 = vmatpush1.msra.mxu0 0.0
    %3640 = vmatprep.subr.mxu0 0.0
    %3641 = vmatpush1.msra.mxu0 0.0
    %3642 = vmatprep.subr.mxu0 0.0
    %3643 = vmatpush1.msra.mxu0 0.0
    %3644 = vmatprep.subr.mxu0 0.0
    %3645 = vmatpush1.msra.mxu0 0.0
    %3646 = vmatprep.subr.mxu0 0.0
    %3647 = vmatpush1.msra.mxu0 0.0
    %3648 = vmatprep.subr.mxu0 0.0
    %3649 = vmatpush1.msra.mxu0 0.0
    %3650 = vmatprep.subr.mxu0 0.0
    %3651 = vmatpush1.msra.mxu0 0.0
    %3652 = vmatprep.subr.mxu0 0.0
    %3653 = vmatpush1.msra.mxu0 0.0
    %3654 = vmatprep.subr.mxu0 0.0
    %3655 = vmatpush1.msra.mxu0 0.0
    %3656 = vmatprep.subr.mxu0 0.0
    %3657 = vmatpush1.msra.mxu0 0.0
    %3658 = vmatprep.subr.mxu0 0.0
    %3659 = vmatpush1.msra.mxu0 0.0
    %3660 = vmatprep.subr.mxu0 0.0
    %3661 = vmatpush1.msra.mxu0 0.0
    %3662 = vmatprep.subr.mxu0 0.0
    %3663 = vmatpush1.msra.mxu0 0.0
    %3664 = vmatprep.subr.mxu0 0.0
    %3665 = vmatpush1.msra.mxu0 0.0
    %3666 = vmatprep.subr.mxu0 0.0
    %3667 = vmatpush1.msra.mxu0 0.0
    %3668 = vmatprep.subr.mxu0 0.0
    %3669 = vmatpush1.msra.mxu0 0.0
    %3670 = vmatprep.subr.mxu0 0.0
    %3671 = vmatpush1.msra.mxu0 0.0
    %3672 = vmatprep.subr.mxu0 0.0
    %3673 = vmatpush1.msra.mxu0 0.0
    %3674 = vmatprep.subr.mxu0 0.0
    %3675 = vmatpush1.msra.mxu0 0.0
    %3676 = vmatprep.subr.mxu0 0.0
    %3677 = vmatpush1.msra.mxu0 0.0
    %3678 = vmatprep.subr.mxu0 0.0
    %3679 = vmatpush1.msra.mxu0 0.0
    %3680 = vmatprep.subr.mxu0 0.0
    %3681 = vmatpush1.msra.mxu0 0.0
    %3682 = vmatprep.subr.mxu0 0.0
    %3683 = vmatpush1.msra.mxu0 0.0
    %3684 = vmatprep.subr.mxu0 0.0
    %3685 = vmatpush1.msra.mxu0 0.0
    %3686 = vmatprep.subr.mxu0 0.0
    %3687 = vmatpush1.msra.mxu0 0.0
    %3688 = vmatprep.subr.mxu0 0.0
    %3689 = vmatpush1.msra.mxu0 0.0
    %3690 = vmatprep.mubr.f32.mxu0 0.0
    %3691 = vmatmul.mubr.f32.gmra.mrb[0].mxu0 %v3624
    %v3692 = vpop.f32.mrb[0].mxu0
    %v3693 = vadd.f32 0.0, %v3692
    %v3694 = vpop.f32.mrb[0].mxu0
    %3695 = vdwg.mxu0
    %3696 = vrot.lane.b32.xlu0 %v3281, 112
    %v3697 = vpop.permute.xlu0 %3696
    %3698 = vrot.lane.b32.xlu0 %v3278, 80
    %v3699 = vpop.permute.xlu0 %3698
    %v3700 = vsel %vm618, %v3697, 0
    %v3702 = vsel %vm618, %v3699, 0
    %3704 = vmatprep.subr.mxu0 0.0
    %3705 = vmatpush1.xpose.msra.mxu0 %v3702
    %3706 = vmatprep.subr.mxu0 0.0
    %3707 = vmatpush1.xpose.msra.mxu0 0.0
    %3708 = vmatprep.subr.mxu0 0.0
    %3709 = vmatpush1.xpose.msra.mxu0 0.0
    %3710 = vmatprep.subr.mxu0 0.0
    %3711 = vmatpush1.xpose.msra.mxu0 0.0
    %3712 = vmatprep.subr.mxu0 0.0
    %3713 = vmatpush1.xpose.msra.mxu0 0.0
    %3714 = vmatprep.subr.mxu0 0.0
    %3715 = vmatpush1.xpose.msra.mxu0 0.0
    %3716 = vmatprep.subr.mxu0 0.0
    %3717 = vmatpush1.xpose.msra.mxu0 0.0
    %3718 = vmatprep.subr.mxu0 0.0
    %3719 = vmatpush1.xpose.msra.mxu0 0.0
    %3720 = vmatprep.subr.mxu0 0.0
    %3721 = vmatpush1.xpose.msra.mxu0 0.0
    %3722 = vmatprep.subr.mxu0 0.0
    %3723 = vmatpush1.xpose.msra.mxu0 0.0
    %3724 = vmatprep.subr.mxu0 0.0
    %3725 = vmatpush1.xpose.msra.mxu0 0.0
    %3726 = vmatprep.subr.mxu0 0.0
    %3727 = vmatpush1.xpose.msra.mxu0 0.0
    %3728 = vmatprep.subr.mxu0 0.0
    %3729 = vmatpush1.xpose.msra.mxu0 0.0
    %3730 = vmatprep.subr.mxu0 0.0
    %3731 = vmatpush1.xpose.msra.mxu0 0.0
    %3732 = vmatprep.subr.mxu0 0.0
    %3733 = vmatpush1.xpose.msra.mxu0 0.0
    %3734 = vmatprep.subr.mxu0 0.0
    %3735 = vmatpush1.xpose.msra.mxu0 0.0
    %3736 = vmatprep.subr.mxu0 0.0
    %3737 = vmatpush1.xpose.msra.mxu0 0.0
    %3738 = vmatprep.subr.mxu0 0.0
    %3739 = vmatpush1.xpose.msra.mxu0 0.0
    %3740 = vmatprep.subr.mxu0 0.0
    %3741 = vmatpush1.xpose.msra.mxu0 0.0
    %3742 = vmatprep.subr.mxu0 0.0
    %3743 = vmatpush1.xpose.msra.mxu0 0.0
    %3744 = vmatprep.subr.mxu0 0.0
    %3745 = vmatpush1.xpose.msra.mxu0 0.0
    %3746 = vmatprep.subr.mxu0 0.0
    %3747 = vmatpush1.xpose.msra.mxu0 0.0
    %3748 = vmatprep.subr.mxu0 0.0
    %3749 = vmatpush1.xpose.msra.mxu0 0.0
    %3750 = vmatprep.subr.mxu0 0.0
    %3751 = vmatpush1.xpose.msra.mxu0 0.0
    %3752 = vmatprep.subr.mxu0 0.0
    %3753 = vmatpush1.xpose.msra.mxu0 0.0
    %3754 = vmatprep.subr.mxu0 0.0
    %3755 = vmatpush1.xpose.msra.mxu0 0.0
    %3756 = vmatprep.subr.mxu0 0.0
    %3757 = vmatpush1.xpose.msra.mxu0 0.0
    %3758 = vmatprep.subr.mxu0 0.0
    %3759 = vmatpush1.xpose.msra.mxu0 0.0
    %3760 = vmatprep.subr.mxu0 0.0
    %3761 = vmatpush1.xpose.msra.mxu0 0.0
    %3762 = vmatprep.subr.mxu0 0.0
    %3763 = vmatpush1.xpose.msra.mxu0 0.0
    %3764 = vmatprep.subr.mxu0 0.0
    %3765 = vmatpush1.xpose.msra.mxu0 0.0
    %3766 = vmatprep.subr.mxu0 0.0
    %3767 = vmatpush1.xpose.msra.mxu0 0.0
    %3768 = vmatprep.mubr.f32.mxu0 0.0
    %3769 = vmatmul.mubr.f32.gmra.mrb[0].mxu0 %v3700
    %v3770 = vpop.f32.mrb[0].mxu0
    %v3771 = vadd.f32 0.0, %v3770
    %v3772 = vpop.f32.mrb[0].mxu0
    %3773 = vdwg.mxu0
    %v3774 = vsel %vm618, %v3771, -inf
    %3775 = vmax.xlane.f32.xlu0 %v3774
    %v3776 = vpop.xlane.xlu0 %3775
    %v3777 = vsub.f32 %v3771, %v3776
    %v3778 = vmul.f32 %v3777, 1.442695
    %v3779 = vpow.pop %v3778
    %v3780 = vsel %vm618, %v3779, 0.0
    %3781 = vadd.xlane.f32.xlu0 %v3780
    %v3782 = vpop.xlane.xlu0 %3781
    %v3783 = vrcp.pop %v3782
    %v3784 = vmul.f32 %v3779, %v3783
    %3785 = vrot.lane.b32.xlu0 %v3365, 112
    %v3786 = vpop.permute.xlu0 %3785
    %v3789 = vsel %vm618, %v3784, 0
    %3791 = vmatprep.subr.mxu0 0.0
    %3792 = vmatpush1.msra.mxu0 %v3786
    %3793 = vmatprep.subr.mxu0 0.0
    %3794 = vmatpush1.msra.mxu0 0.0
    %3795 = vmatprep.subr.mxu0 0.0
    %3796 = vmatpush1.msra.mxu0 0.0
    %3797 = vmatprep.subr.mxu0 0.0
    %3798 = vmatpush1.msra.mxu0 0.0
    %3799 = vmatprep.subr.mxu0 0.0
    %3800 = vmatpush1.msra.mxu0 0.0
    %3801 = vmatprep.subr.mxu0 0.0
    %3802 = vmatpush1.msra.mxu0 0.0
    %3803 = vmatprep.subr.mxu0 0.0
    %3804 = vmatpush1.msra.mxu0 0.0
    %3805 = vmatprep.subr.mxu0 0.0
    %3806 = vmatpush1.msra.mxu0 0.0
    %3807 = vmatprep.subr.mxu0 0.0
    %3808 = vmatpush1.msra.mxu0 0.0
    %3809 = vmatprep.subr.mxu0 0.0
    %3810 = vmatpush1.msra.mxu0 0.0
    %3811 = vmatprep.subr.mxu0 0.0
    %3812 = vmatpush1.msra.mxu0 0.0
    %3813 = vmatprep.subr.mxu0 0.0
    %3814 = vmatpush1.msra.mxu0 0.0
    %3815 = vmatprep.subr.mxu0 0.0
    %3816 = vmatpush1.msra.mxu0 0.0
    %3817 = vmatprep.subr.mxu0 0.0
    %3818 = vmatpush1.msra.mxu0 0.0
    %3819 = vmatprep.subr.mxu0 0.0
    %3820 = vmatpush1.msra.mxu0 0.0
    %3821 = vmatprep.subr.mxu0 0.0
    %3822 = vmatpush1.msra.mxu0 0.0
    %3823 = vmatprep.subr.mxu0 0.0
    %3824 = vmatpush1.msra.mxu0 0.0
    %3825 = vmatprep.subr.mxu0 0.0
    %3826 = vmatpush1.msra.mxu0 0.0
    %3827 = vmatprep.subr.mxu0 0.0
    %3828 = vmatpush1.msra.mxu0 0.0
    %3829 = vmatprep.subr.mxu0 0.0
    %3830 = vmatpush1.msra.mxu0 0.0
    %3831 = vmatprep.subr.mxu0 0.0
    %3832 = vmatpush1.msra.mxu0 0.0
    %3833 = vmatprep.subr.mxu0 0.0
    %3834 = vmatpush1.msra.mxu0 0.0
    %3835 = vmatprep.subr.mxu0 0.0
    %3836 = vmatpush1.msra.mxu0 0.0
    %3837 = vmatprep.subr.mxu0 0.0
    %3838 = vmatpush1.msra.mxu0 0.0
    %3839 = vmatprep.subr.mxu0 0.0
    %3840 = vmatpush1.msra.mxu0 0.0
    %3841 = vmatprep.subr.mxu0 0.0
    %3842 = vmatpush1.msra.mxu0 0.0
    %3843 = vmatprep.subr.mxu0 0.0
    %3844 = vmatpush1.msra.mxu0 0.0
    %3845 = vmatprep.subr.mxu0 0.0
    %3846 = vmatpush1.msra.mxu0 0.0
    %3847 = vmatprep.subr.mxu0 0.0
    %3848 = vmatpush1.msra.mxu0 0.0
    %3849 = vmatprep.subr.mxu0 0.0
    %3850 = vmatpush1.msra.mxu0 0.0
    %3851 = vmatprep.subr.mxu0 0.0
    %3852 = vmatpush1.msra.mxu0 0.0
    %3853 = vmatprep.subr.mxu0 0.0
    %3854 = vmatpush1.msra.mxu0 0.0
    %3855 = vmatprep.mubr.f32.mxu0 0.0
    %3856 = vmatmul.mubr.f32.gmra.mrb[0].mxu0 %v3789
    %v3857 = vpop.f32.mrb[0].mxu0
    %v3858 = vadd.f32 0.0, %v3857
    %v3859 = vpop.f32.mrb[0].mxu0
    %3860 = vdwg.mxu0
    %3861 = vrot.lane.b32.xlu0 %v3281, 104
    %v3862 = vpop.permute.xlu0 %3861
    %3863 = vrot.lane.b32.xlu0 %v3278, 72
    %v3864 = vpop.permute.xlu0 %3863
    %v3865 = vsel %vm618, %v3862, 0
    %v3867 = vsel %vm618, %v3864, 0
    %3869 = vmatprep.subr.mxu0 0.0
    %3870 = vmatpush1.xpose.msra.mxu0 %v3867
    %3871 = vmatprep.subr.mxu0 0.0
    %3872 = vmatpush1.xpose.msra.mxu0 0.0
    %3873 = vmatprep.subr.mxu0 0.0
    %3874 = vmatpush1.xpose.msra.mxu0 0.0
    %3875 = vmatprep.subr.mxu0 0.0
    %3876 = vmatpush1.xpose.msra.mxu0 0.0
    %3877 = vmatprep.subr.mxu0 0.0
    %3878 = vmatpush1.xpose.msra.mxu0 0.0
    %3879 = vmatprep.subr.mxu0 0.0
    %3880 = vmatpush1.xpose.msra.mxu0 0.0
    %3881 = vmatprep.subr.mxu0 0.0
    %3882 = vmatpush1.xpose.msra.mxu0 0.0
    %3883 = vmatprep.subr.mxu0 0.0
    %3884 = vmatpush1.xpose.msra.mxu0 0.0
    %3885 = vmatprep.subr.mxu0 0.0
    %3886 = vmatpush1.xpose.msra.mxu0 0.0
    %3887 = vmatprep.subr.mxu0 0.0
    %3888 = vmatpush1.xpose.msra.mxu0 0.0
    %3889 = vmatprep.subr.mxu0 0.0
    %3890 = vmatpush1.xpose.msra.mxu0 0.0
    %3891 = vmatprep.subr.mxu0 0.0
    %3892 = vmatpush1.xpose.msra.mxu0 0.0
    %3893 = vmatprep.subr.mxu0 0.0
    %3894 = vmatpush1.xpose.msra.mxu0 0.0
    %3895 = vmatprep.subr.mxu0 0.0
    %3896 = vmatpush1.xpose.msra.mxu0 0.0
    %3897 = vmatprep.subr.mxu0 0.0
    %3898 = vmatpush1.xpose.msra.mxu0 0.0
    %3899 = vmatprep.subr.mxu0 0.0
    %3900 = vmatpush1.xpose.msra.mxu0 0.0
    %3901 = vmatprep.subr.mxu0 0.0
    %3902 = vmatpush1.xpose.msra.mxu0 0.0
    %3903 = vmatprep.subr.mxu0 0.0
    %3904 = vmatpush1.xpose.msra.mxu0 0.0
    %3905 = vmatprep.subr.mxu0 0.0
    %3906 = vmatpush1.xpose.msra.mxu0 0.0
    %3907 = vmatprep.subr.mxu0 0.0
    %3908 = vmatpush1.xpose.msra.mxu0 0.0
    %3909 = vmatprep.subr.mxu0 0.0
    %3910 = vmatpush1.xpose.msra.mxu0 0.0
    %3911 = vmatprep.subr.mxu0 0.0
    %3912 = vmatpush1.xpose.msra.mxu0 0.0
    %3913 = vmatprep.subr.mxu0 0.0
    %3914 = vmatpush1.xpose.msra.mxu0 0.0
    %3915 = vmatprep.subr.mxu0 0.0
    %3916 = vmatpush1.xpose.msra.mxu0 0.0
    %3917 = vmatprep.subr.mxu0 0.0
    %3918 = vmatpush1.xpose.msra.mxu0 0.0
    %3919 = vmatprep.subr.mxu0 0.0
    %3920 = vmatpush1.xpose.msra.mxu0 0.0
    %3921 = vmatprep.subr.mxu0 0.0
    %3922 = vmatpush1.xpose.msra.mxu0 0.0
    %3923 = vmatprep.subr.mxu0 0.0
    %3924 = vmatpush1.xpose.msra.mxu0 0.0
    %3925 = vmatprep.subr.mxu0 0.0
    %3926 = vmatpush1.xpose.msra.mxu0 0.0
    %3927 = vmatprep.subr.mxu0 0.0
    %3928 = vmatpush1.xpose.msra.mxu0 0.0
    %3929 = vmatprep.subr.mxu0 0.0
    %3930 = vmatpush1.xpose.msra.mxu0 0.0
    %3931 = vmatprep.subr.mxu0 0.0
    %3932 = vmatpush1.xpose.msra.mxu0 0.0
    %3933 = vmatprep.mubr.f32.mxu0 0.0
    %3934 = vmatmul.mubr.f32.gmra.mrb[0].mxu0 %v3865
    %v3935 = vpop.f32.mrb[0].mxu0
    %v3936 = vadd.f32 0.0, %v3935
    %v3937 = vpop.f32.mrb[0].mxu0
    %3938 = vdwg.mxu0
    %v3939 = vsel %vm618, %v3936, -inf
    %3940 = vmax.xlane.f32.xlu0 %v3939
    %v3941 = vpop.xlane.xlu0 %3940
    %v3942 = vsub.f32 %v3936, %v3941
    %v3943 = vmul.f32 %v3942, 1.442695
    %v3944 = vpow.pop %v3943
    %v3945 = vsel %vm618, %v3944, 0.0
    %3946 = vadd.xlane.f32.xlu0 %v3945
    %v3947 = vpop.xlane.xlu0 %3946
    %v3948 = vrcp.pop %v3947
    %v3949 = vmul.f32 %v3944, %v3948
    %3950 = vrot.lane.b32.xlu0 %v3365, 104
    %v3951 = vpop.permute.xlu0 %3950
    %v3954 = vsel %vm618, %v3949, 0
    %3956 = vmatprep.subr.mxu0 0.0
    %3957 = vmatpush1.msra.mxu0 %v3951
    %3958 = vmatprep.subr.mxu0 0.0
    %3959 = vmatpush1.msra.mxu0 0.0
    %3960 = vmatprep.subr.mxu0 0.0
    %3961 = vmatpush1.msra.mxu0 0.0
    %3962 = vmatprep.subr.mxu0 0.0
    %3963 = vmatpush1.msra.mxu0 0.0
    %3964 = vmatprep.subr.mxu0 0.0
    %3965 = vmatpush1.msra.mxu0 0.0
    %3966 = vmatprep.subr.mxu0 0.0
    %3967 = vmatpush1.msra.mxu0 0.0
    %3968 = vmatprep.subr.mxu0 0.0
    %3969 = vmatpush1.msra.mxu0 0.0
    %3970 = vmatprep.subr.mxu0 0.0
    %3971 = vmatpush1.msra.mxu0 0.0
    %3972 = vmatprep.subr.mxu0 0.0
    %3973 = vmatpush1.msra.mxu0 0.0
    %3974 = vmatprep.subr.mxu0 0.0
    %3975 = vmatpush1.msra.mxu0 0.0
    %3976 = vmatprep.subr.mxu0 0.0
    %3977 = vmatpush1.msra.mxu0 0.0
    %3978 = vmatprep.subr.mxu0 0.0
    %3979 = vmatpush1.msra.mxu0 0.0
    %3980 = vmatprep.subr.mxu0 0.0
    %3981 = vmatpush1.msra.mxu0 0.0
    %3982 = vmatprep.subr.mxu0 0.0
    %3983 = vmatpush1.msra.mxu0 0.0
    %3984 = vmatprep.subr.mxu0 0.0
    %3985 = vmatpush1.msra.mxu0 0.0
    %3986 = vmatprep.subr.mxu0 0.0
    %3987 = vmatpush1.msra.mxu0 0.0
    %3988 = vmatprep.subr.mxu0 0.0
    %3989 = vmatpush1.msra.mxu0 0.0
    %3990 = vmatprep.subr.mxu0 0.0
    %3991 = vmatpush1.msra.mxu0 0.0
    %3992 = vmatprep.subr.mxu0 0.0
    %3993 = vmatpush1.msra.mxu0 0.0
    %3994 = vmatprep.subr.mxu0 0.0
    %3995 = vmatpush1.msra.mxu0 0.0
    %3996 = vmatprep.subr.mxu0 0.0
    %3997 = vmatpush1.msra.mxu0 0.0
    %3998 = vmatprep.subr.mxu0 0.0
    %3999 = vmatpush1.msra.mxu0 0.0
    %4000 = vmatprep.subr.mxu0 0.0
    %4001 = vmatpush1.msra.mxu0 0.0
    %4002 = vmatprep.subr.mxu0 0.0
    %4003 = vmatpush1.msra.mxu0 0.0
    %4004 = vmatprep.subr.mxu0 0.0
    %4005 = vmatpush1.msra.mxu0 0.0
    %4006 = vmatprep.subr.mxu0 0.0
    %4007 = vmatpush1.msra.mxu0 0.0
    %4008 = vmatprep.subr.mxu0 0.0
    %4009 = vmatpush1.msra.mxu0 0.0
    %4010 = vmatprep.subr.mxu0 0.0
    %4011 = vmatpush1.msra.mxu0 0.0
    %4012 = vmatprep.subr.mxu0 0.0
    %4013 = vmatpush1.msra.mxu0 0.0
    %4014 = vmatprep.subr.mxu0 0.0
    %4015 = vmatpush1.msra.mxu0 0.0
    %4016 = vmatprep.subr.mxu0 0.0
    %4017 = vmatpush1.msra.mxu0 0.0
    %4018 = vmatprep.subr.mxu0 0.0
    %4019 = vmatpush1.msra.mxu0 0.0
    %4020 = vmatprep.mubr.f32.mxu0 0.0
    %4021 = vmatmul.mubr.f32.gmra.mrb[0].mxu0 %v3954
    %v4022 = vpop.f32.mrb[0].mxu0
    %v4023 = vadd.f32 0.0, %v4022
    %v4024 = vpop.f32.mrb[0].mxu0
    %4025 = vdwg.mxu0
    %4027 = vrot.lane.b32.xlu0 %v3693, 8
    %v4028 = vpop.permute.xlu0 %4027
    %4031 = vrot.lane.b32.xlu0 %v3858, 16
    %v4032 = vpop.permute.xlu0 %4031
    %4035 = vrot.lane.b32.xlu0 %v4023, 24
    %v4036 = vpop.permute.xlu0 %4035
    %v4038 = vsel %vm618, %v3527, %v4028
    %v4039 = vsel %vm1287, %v4038, %v4032
    %v4040 = vsel %vm1289, %v4039, %v4036
    %v4042 = vsel %vm441, %v4040, 0
    %4044 = vmatprep.subr.mxu0 0.0
    %4045 = vmatpush1.msra.mxu0 %v289
    %4046 = vmatprep.subr.mxu0 0.0
    %4047 = vmatpush1.msra.mxu0 %v290
    %4048 = vmatprep.subr.mxu0 0.0
    %4049 = vmatpush1.msra.mxu0 %v291
    %4050 = vmatprep.subr.mxu0 0.0
    %4051 = vmatpush1.msra.mxu0 %v292
    %4052 = vmatprep.subr.mxu0 0.0
    %4053 = vmatpush1.msra.mxu0 0.0
    %4054 = vmatprep.subr.mxu0 0.0
    %4055 = vmatpush1.msra.mxu0 0.0
    %4056 = vmatprep.subr.mxu0 0.0
    %4057 = vmatpush1.msra.mxu0 0.0
    %4058 = vmatprep.subr.mxu0 0.0
    %4059 = vmatpush1.msra.mxu0 0.0
    %4060 = vmatprep.subr.mxu0 0.0
    %4061 = vmatpush1.msra.mxu0 0.0
    %4062 = vmatprep.subr.mxu0 0.0
    %4063 = vmatpush1.msra.mxu0 0.0
    %4064 = vmatprep.subr.mxu0 0.0
    %4065 = vmatpush1.msra.mxu0 0.0
    %4066 = vmatprep.subr.mxu0 0.0
    %4067 = vmatpush1.msra.mxu0 0.0
    %4068 = vmatprep.subr.mxu0 0.0
    %4069 = vmatpush1.msra.mxu0 0.0
    %4070 = vmatprep.subr.mxu0 0.0
    %4071 = vmatpush1.msra.mxu0 0.0
    %4072 = vmatprep.subr.mxu0 0.0
    %4073 = vmatpush1.msra.mxu0 0.0
    %4074 = vmatprep.subr.mxu0 0.0
    %4075 = vmatpush1.msra.mxu0 0.0
    %4076 = vmatprep.subr.mxu0 0.0
    %4077 = vmatpush1.msra.mxu0 0.0
    %4078 = vmatprep.subr.mxu0 0.0
    %4079 = vmatpush1.msra.mxu0 0.0
    %4080 = vmatprep.subr.mxu0 0.0
    %4081 = vmatpush1.msra.mxu0 0.0
    %4082 = vmatprep.subr.mxu0 0.0
    %4083 = vmatpush1.msra.mxu0 0.0
    %4084 = vmatprep.subr.mxu0 0.0
    %4085 = vmatpush1.msra.mxu0 0.0
    %4086 = vmatprep.subr.mxu0 0.0
    %4087 = vmatpush1.msra.mxu0 0.0
    %4088 = vmatprep.subr.mxu0 0.0
    %4089 = vmatpush1.msra.mxu0 0.0
    %4090 = vmatprep.subr.mxu0 0.0
    %4091 = vmatpush1.msra.mxu0 0.0
    %4092 = vmatprep.subr.mxu0 0.0
    %4093 = vmatpush1.msra.mxu0 0.0
    %4094 = vmatprep.subr.mxu0 0.0
    %4095 = vmatpush1.msra.mxu0 0.0
    %4096 = vmatprep.subr.mxu0 0.0
    %4097 = vmatpush1.msra.mxu0 0.0
    %4098 = vmatprep.subr.mxu0 0.0
    %4099 = vmatpush1.msra.mxu0 0.0
    %4100 = vmatprep.subr.mxu0 0.0
    %4101 = vmatpush1.msra.mxu0 0.0
    %4102 = vmatprep.subr.mxu0 0.0
    %4103 = vmatpush1.msra.mxu0 0.0
    %4104 = vmatprep.subr.mxu0 0.0
    %4105 = vmatpush1.msra.mxu0 0.0
    %4106 = vmatprep.subr.mxu0 0.0
    %4107 = vmatpush1.msra.mxu0 0.0
    %4108 = vmatprep.mubr.f32.mxu0 0.0
    %4109 = vmatmul.mubr.f32.gmra.mrb[0].mxu0 %v4042
    %v4110 = vpop.f32.mrb[0].mxu0
    %v4111 = vadd.f32 %v1295, %v4110
    %v4112 = vpop.f32.mrb[0].mxu0
    %4113 = vdwg.mxu0
    %v4115 = vrot.slane %v4111, 7
    %v4116 = vrot.slane %v4111, 1
    %v4117 = vrot.slane %v4111, 2
    %v4118 = vrot.slane %v4111, 3
    %v4119 = vrot.slane %v4111, 4
    %v4120 = vrot.slane %v4111, 5
    %v4121 = vrot.slane %v4111, 6
    %v4130 = vadd.f32 %v334, %v4115
    %v4131 = vadd.f32 %v335, %v4111
    %v4132 = vadd.f32 %v336, %v4116
    %v4133 = vadd.f32 %v337, %v4117
    %v4134 = vadd.f32 %v338, %v4118
    %v4135 = vadd.f32 %v339, %v4119
    %v4136 = vadd.f32 %v340, %v4120
    %v4137 = vadd.f32 %v341, %v4121
    %v4146 = vrot.slane %v4131, 7
    %v4147 = vsel %vm424, %v4146, %v4130
    %v4148 = vrot.slane %v4132, 6
    %v4149 = vsel %vm427, %v4148, %v4147
    %v4150 = vrot.slane %v4133, 5
    %v4151 = vsel %vm430, %v4150, %v4149
    %v4152 = vrot.slane %v4134, 4
    %v4153 = vsel %vm433, %v4152, %v4151
    %v4154 = vrot.slane %v4135, 3
    %v4155 = vsel %vm436, %v4154, %v4153
    %v4156 = vrot.slane %v4136, 2
    %v4157 = vsel %vm439, %v4156, %v4155
    %v4158 = vrot.slane %v4137, 1
    %vm4161 = vcmask 261121
    %v4162 = vsel %vm4161, %v4157, 0.0
    %4163 = vadd.xlane.f32.xlu0 %v4162
    %v4164 = vpop.xlane.xlu0 %4163
    %v4165 = vsel %vm3186, %v4158, 0.0
    %4166 = vadd.xlane.f32.xlu0 %v4165
    %v4167 = vpop.xlane.xlu0 %4166
    %v4168 = vmul.f32 %v4164, %v1420
    %v4169 = vmul.f32 %v4167, %v1420
    %v4172 = vrot.slane %v4168, 1
    %v4173 = vrot.slane %v4168, 2
    %v4174 = vrot.slane %v4168, 3
    %v4175 = vrot.slane %v4168, 4
    %v4176 = vrot.slane %v4168, 5
    %v4177 = vrot.slane %v4168, 6
    %v4178 = vrot.slane %v4169, 7
    %v4187 = vsub.f32 %v4130, %v4168
    %v4188 = vsub.f32 %v4131, %v4172
    %v4189 = vsub.f32 %v4132, %v4173
    %v4190 = vsub.f32 %v4133, %v4174
    %v4191 = vsub.f32 %v4134, %v4175
    %v4192 = vsub.f32 %v4135, %v4176
    %v4193 = vsub.f32 %v4136, %v4177
    %v4194 = vsub.f32 %v4137, %v4178
    %v4195 = vmul.f32 %v4187, %v4187
    %v4196 = vmul.f32 %v4188, %v4188
    %v4197 = vmul.f32 %v4189, %v4189
    %v4198 = vmul.f32 %v4190, %v4190
    %v4199 = vmul.f32 %v4191, %v4191
    %v4200 = vmul.f32 %v4192, %v4192
    %v4201 = vmul.f32 %v4193, %v4193
    %v4202 = vmul.f32 %v4194, %v4194
    %v4211 = vrot.slane %v4196, 7
    %v4212 = vsel %vm424, %v4211, %v4195
    %v4213 = vrot.slane %v4197, 6
    %v4214 = vsel %vm427, %v4213, %v4212
    %v4215 = vrot.slane %v4198, 5
    %v4216 = vsel %vm430, %v4215, %v4214
    %v4217 = vrot.slane %v4199, 4
    %v4218 = vsel %vm433, %v4217, %v4216
    %v4219 = vrot.slane %v4200, 3
    %v4220 = vsel %vm436, %v4219, %v4218
    %v4221 = vrot.slane %v4201, 2
    %v4222 = vsel %vm439, %v4221, %v4220
    %v4223 = vrot.slane %v4202, 1
    %v4226 = vsel %vm4161, %v4222, 0.0
    %4227 = vadd.xlane.f32.xlu0 %v4226
    %v4228 = vpop.xlane.xlu0 %4227
    %v4229 = vsel %vm3186, %v4223, 0.0
    %4230 = vadd.xlane.f32.xlu0 %v4229
    %v4231 = vpop.xlane.xlu0 %4230
    %v4232 = vmul.f32 %v4228, %v1420
    %v4233 = vmul.f32 %v4231, %v1420
    %v4234 = vadd.f32 %v4232, 1e-05
    %v4235 = vadd.f32 %v4233, 1e-05
    %v4236 = vrsqrt.pop %v4234
    %v4237 = vrsqrt.pop %v4235
    %v4240 = vrot.slane %v4236, 1
    %v4241 = vrot.slane %v4236, 2
    %v4242 = vrot.slane %v4236, 3
    %v4243 = vrot.slane %v4236, 4
    %v4244 = vrot.slane %v4236, 5
    %v4245 = vrot.slane %v4236, 6
    %v4246 = vrot.slane %v4237, 7
    %v4255 = vmul.f32 %v4187, %v4236
    %v4256 = vmul.f32 %v4188, %v4240
    %v4257 = vmul.f32 %v4189, %v4241
    %v4258 = vmul.f32 %v4190, %v4242
    %v4259 = vmul.f32 %v4191, %v4243
    %v4260 = vmul.f32 %v4192, %v4244
    %v4261 = vmul.f32 %v4193, %v4245
    %v4262 = vmul.f32 %v4194, %v4246
    %v4263 = vmul.f32 %v4255, %v1511
    %v4264 = vmul.f32 %v4256, %v1511
    %v4265 = vmul.f32 %v4257, %v1511
    %v4266 = vmul.f32 %v4258, %v1511
    %v4267 = vmul.f32 %v4259, %v1511
    %v4268 = vmul.f32 %v4260, %v1511
    %v4269 = vmul.f32 %v4261, %v1511
    %v4270 = vmul.f32 %v4262, %v1511
    %v4271 = vadd.f32 %v4263, %v1525
    %v4272 = vadd.f32 %v4264, %v1525
    %v4273 = vadd.f32 %v4265, %v1525
    %v4274 = vadd.f32 %v4266, %v1525
    %v4275 = vadd.f32 %v4267, %v1525
    %v4276 = vadd.f32 %v4268, %v1525
    %v4277 = vadd.f32 %v4269, %v1525
    %v4278 = vadd.f32 %v4270, %v1525
    %v4279 = vadd.f32 %v4271, %v358
    %v4280 = vadd.f32 %v4272, %v359
    %v4281 = vadd.f32 %v4273, %v360
    %v4282 = vadd.f32 %v4274, %v361
    %v4283 = vadd.f32 %v4275, %v362
    %v4284 = vadd.f32 %v4276, %v363
    %v4285 = vadd.f32 %v4277, %v364
    %v4286 = vadd.f32 %v4278, %v365
    %v4295 = vrot.slane %v4279, 1
    %v4296 = vsel %vm421, %v4280, %v4295
    %v4297 = vrot.slane %v4281, 7
    %v4298 = vsel %vm424, %v4297, %v4296
    %v4299 = vrot.slane %v4282, 6
    %v4300 = vsel %vm427, %v4299, %v4298
    %v4301 = vrot.slane %v4283, 5
    %v4302 = vsel %vm430, %v4301, %v4300
    %v4303 = vrot.slane %v4284, 4
    %v4304 = vsel %vm433, %v4303, %v4302
    %v4305 = vrot.slane %v4285, 3
    %v4306 = vsel %vm436, %v4305, %v4304
    %v4307 = vrot.slane %v4286, 2
    %v4308 = vsel %vm439, %v4307, %v4306
    %v4309 = vsel %vm441, %v4308, 0
    %4311 = vmatprep.subr.mxu0 0.0
    %4312 = vmatpush1.msra.mxu0 %v294
    %4313 = vmatprep.subr.mxu0 0.0
    %4314 = vmatpush1.msra.mxu0 %v295
    %4315 = vmatprep.subr.mxu0 0.0
    %4316 = vmatpush1.msra.mxu0 %v296
    %4317 = vmatprep.subr.mxu0 0.0
    %4318 = vmatpush1.msra.mxu0 %v297
    %4319 = vmatprep.subr.mxu0 0.0
    %4320 = vmatpush1.msra.mxu0 0.0
    %4321 = vmatprep.subr.mxu0 0.0
    %4322 = vmatpush1.msra.mxu0 0.0
    %4323 = vmatprep.subr.mxu0 0.0
    %4324 = vmatpush1.msra.mxu0 0.0
    %4325 = vmatprep.subr.mxu0 0.0
    %4326 = vmatpush1.msra.mxu0 0.0
    %4327 = vmatprep.subr.mxu0 0.0
    %4328 = vmatpush1.msra.mxu0 0.0
    %4329 = vmatprep.subr.mxu0 0.0
    %4330 = vmatpush1.msra.mxu0 0.0
    %4331 = vmatprep.subr.mxu0 0.0
    %4332 = vmatpush1.msra.mxu0 0.0
    %4333 = vmatprep.subr.mxu0 0.0
    %4334 = vmatpush1.msra.mxu0 0.0
    %4335 = vmatprep.subr.mxu0 0.0
    %4336 = vmatpush1.msra.mxu0 0.0
    %4337 = vmatprep.subr.mxu0 0.0
    %4338 = vmatpush1.msra.mxu0 0.0
    %4339 = vmatprep.subr.mxu0 0.0
    %4340 = vmatpush1.msra.mxu0 0.0
    %4341 = vmatprep.subr.mxu0 0.0
    %4342 = vmatpush1.msra.mxu0 0.0
    %4343 = vmatprep.subr.mxu0 0.0
    %4344 = vmatpush1.msra.mxu0 0.0
    %4345 = vmatprep.subr.mxu0 0.0
    %4346 = vmatpush1.msra.mxu0 0.0
    %4347 = vmatprep.subr.mxu0 0.0
    %4348 = vmatpush1.msra.mxu0 0.0
    %4349 = vmatprep.subr.mxu0 0.0
    %4350 = vmatpush1.msra.mxu0 0.0
    %4351 = vmatprep.subr.mxu0 0.0
    %4352 = vmatpush1.msra.mxu0 0.0
    %4353 = vmatprep.subr.mxu0 0.0
    %4354 = vmatpush1.msra.mxu0 0.0
    %4355 = vmatprep.subr.mxu0 0.0
    %4356 = vmatpush1.msra.mxu0 0.0
    %4357 = vmatprep.subr.mxu0 0.0
    %4358 = vmatpush1.msra.mxu0 0.0
    %4359 = vmatprep.subr.mxu0 0.0
    %4360 = vmatpush1.msra.mxu0 0.0
    %4361 = vmatprep.subr.mxu0 0.0
    %4362 = vmatpush1.msra.mxu0 0.0
    %4363 = vmatprep.subr.mxu0 0.0
    %4364 = vmatpush1.msra.mxu0 0.0
    %4365 = vmatprep.subr.mxu0 0.0
    %4366 = vmatpush1.msra.mxu0 0.0
    %4367 = vmatprep.subr.mxu0 0.0
    %4368 = vmatpush1.msra.mxu0 0.0
    %4369 = vmatprep.subr.mxu0 0.0
    %4370 = vmatpush1.msra.mxu0 0.0
    %4371 = vmatprep.subr.mxu0 0.0
    %4372 = vmatpush1.msra.mxu0 0.0
    %4373 = vmatprep.subr.mxu0 0.0
    %4374 = vmatpush1.msra.mxu0 0.0
    %4375 = vmatprep.mubr.f32.mxu0 0.0
    %4376 = vmatmul.mubr.f32.gmra.mrb[0].mxu0 %v4309
    %v4377 = vpop.f32.mrb[0].mxu0
    %v4378 = vadd.f32 %v1547, %v4377
    %v4379 = vpop.f32.mrb[0].mxu0
    %4380 = vdwg.mxu0
    %v4381 = vmul.f32 %v4378, 0.35355338
    %v4382 = vrot.slane %v390, 1
    %v4383 = vsel %vm421, %v391, %v4382
    %v4384 = vrot.slane %v392, 7
    %v4385 = vsel %vm424, %v4384, %v4383
    %v4386 = vrot.slane %v393, 6
    %v4387 = vsel %vm427, %v4386, %v4385
    %v4388 = vrot.slane %v394, 5
    %v4389 = vsel %vm430, %v4388, %v4387
    %v4390 = vrot.slane %v395, 4
    %v4391 = vsel %vm433, %v4390, %v4389
    %v4392 = vrot.slane %v396, 3
    %v4393 = vsel %vm436, %v4392, %v4391
    %v4394 = vrot.slane %v397, 2
    %v4395 = vsel %vm439, %v4394, %v4393
    %v4396 = vrot.slane %v398, 1
    %v4397 = vsel %vm421, %v399, %v4396
    %v4398 = vrot.slane %v400, 7
    %v4399 = vsel %vm424, %v4398, %v4397
    %v4400 = vrot.slane %v401, 6
    %v4401 = vsel %vm427, %v4400, %v4399
    %v4402 = vrot.slane %v402, 5
    %v4403 = vsel %vm430, %v4402, %v4401
    %v4404 = vrot.slane %v403, 4
    %v4405 = vsel %vm433, %v4404, %v4403
    %v4406 = vrot.slane %v404, 3
    %v4407 = vsel %vm436, %v4406, %v4405
    %v4408 = vrot.slane %v405, 2
    %v4409 = vsel %vm439, %v4408, %v4407
    %v4410 = vsel %vm441, %v4395, 0
    %v4412 = vsel %vm441, %v4409, 0
    %4414 = vmatprep.subr.mxu0 0.0
    %4415 = vmatpush1.msra.mxu0 %v299
    %4416 = vmatprep.subr.mxu0 0.0
    %4417 = vmatpush1.msra.mxu0 %v300
    %4418 = vmatprep.subr.mxu0 0.0
    %4419 = vmatpush1.msra.mxu0 %v301
    %4420 = vmatprep.subr.mxu0 0.0
    %4421 = vmatpush1.msra.mxu0 %v302
    %4422 = vmatprep.subr.mxu0 0.0
    %4423 = vmatpush1.msra.mxu0 0.0
    %4424 = vmatprep.subr.mxu0 0.0
    %4425 = vmatpush1.msra.mxu0 0.0
    %4426 = vmatprep.subr.mxu0 0.0
    %4427 = vmatpush1.msra.mxu0 0.0
    %4428 = vmatprep.subr.mxu0 0.0
    %4429 = vmatpush1.msra.mxu0 0.0
    %4430 = vmatprep.subr.mxu0 0.0
    %4431 = vmatpush1.msra.mxu0 0.0
    %4432 = vmatprep.subr.mxu0 0.0
    %4433 = vmatpush1.msra.mxu0 0.0
    %4434 = vmatprep.subr.mxu0 0.0
    %4435 = vmatpush1.msra.mxu0 0.0
    %4436 = vmatprep.subr.mxu0 0.0
    %4437 = vmatpush1.msra.mxu0 0.0
    %4438 = vmatprep.subr.mxu0 0.0
    %4439 = vmatpush1.msra.mxu0 0.0
    %4440 = vmatprep.subr.mxu0 0.0
    %4441 = vmatpush1.msra.mxu0 0.0
    %4442 = vmatprep.subr.mxu0 0.0
    %4443 = vmatpush1.msra.mxu0 0.0
    %4444 = vmatprep.subr.mxu0 0.0
    %4445 = vmatpush1.msra.mxu0 0.0
    %4446 = vmatprep.subr.mxu0 0.0
    %4447 = vmatpush1.msra.mxu0 0.0
    %4448 = vmatprep.subr.mxu0 0.0
    %4449 = vmatpush1.msra.mxu0 0.0
    %4450 = vmatprep.subr.mxu0 0.0
    %4451 = vmatpush1.msra.mxu0 0.0
    %4452 = vmatprep.subr.mxu0 0.0
    %4453 = vmatpush1.msra.mxu0 0.0
    %4454 = vmatprep.subr.mxu0 0.0
    %4455 = vmatpush1.msra.mxu0 0.0
    %4456 = vmatprep.subr.mxu0 0.0
    %4457 = vmatpush1.msra.mxu0 0.0
    %4458 = vmatprep.subr.mxu0 0.0
    %4459 = vmatpush1.msra.mxu0 0.0
    %4460 = vmatprep.subr.mxu0 0.0
    %4461 = vmatpush1.msra.mxu0 0.0
    %4462 = vmatprep.subr.mxu0 0.0
    %4463 = vmatpush1.msra.mxu0 0.0
    %4464 = vmatprep.subr.mxu0 0.0
    %4465 = vmatpush1.msra.mxu0 0.0
    %4466 = vmatprep.subr.mxu0 0.0
    %4467 = vmatpush1.msra.mxu0 0.0
    %4468 = vmatprep.subr.mxu0 0.0
    %4469 = vmatpush1.msra.mxu0 0.0
    %4470 = vmatprep.subr.mxu0 0.0
    %4471 = vmatpush1.msra.mxu0 0.0
    %4472 = vmatprep.subr.mxu0 0.0
    %4473 = vmatpush1.msra.mxu0 0.0
    %4474 = vmatprep.subr.mxu0 0.0
    %4475 = vmatpush1.msra.mxu0 0.0
    %4476 = vmatprep.subr.mxu0 0.0
    %4477 = vmatpush1.msra.mxu0 0.0
    %4478 = vmatprep.mubr.f32.mxu0 0.0
    %4479 = vmatmul.mubr.f32.gmra.mrb[0].mxu0 %v4410
    %v4480 = vpop.f32.mrb[0].mxu0
    %v4481 = vadd.f32 %v1648, %v4480
    %v4482 = vpop.f32.mrb[0].mxu0
    %4483 = vmatprep.mubr.f32.mxu0 0.0
    %4484 = vmatmul.mubr.f32.gmra.mrb[0].mxu0 %v4412
    %v4485 = vpop.f32.mrb[0].mxu0
    %v4486 = vadd.f32 %v1648, %v4485
    %v4487 = vpop.f32.mrb[0].mxu0
    %4488 = vdwg.mxu0
    %v4489 = vrot.slane %v342, 1
    %v4490 = vsel %vm421, %v343, %v4489
    %v4491 = vrot.slane %v344, 7
    %v4492 = vsel %vm424, %v4491, %v4490
    %v4493 = vrot.slane %v345, 6
    %v4494 = vsel %vm427, %v4493, %v4492
    %v4495 = vrot.slane %v346, 5
    %v4496 = vsel %vm430, %v4495, %v4494
    %v4497 = vrot.slane %v347, 4
    %v4498 = vsel %vm433, %v4497, %v4496
    %v4499 = vrot.slane %v348, 3
    %v4500 = vsel %vm436, %v4499, %v4498
    %v4501 = vrot.slane %v349, 2
    %v4502 = vsel %vm439, %v4501, %v4500
    %v4503 = vrot.slane %v350, 1
    %v4504 = vsel %vm421, %v351, %v4503
    %v4505 = vrot.slane %v352, 7
    %v4506 = vsel %vm424, %v4505, %v4504
    %v4507 = vrot.slane %v353, 6
    %v4508 = vsel %vm427, %v4507, %v4506
    %v4509 = vrot.slane %v354, 5
    %v4510 = vsel %vm430, %v4509, %v4508
    %v4511 = vrot.slane %v355, 4
    %v4512 = vsel %vm433, %v4511, %v4510
    %v4513 = vrot.slane %v356, 3
    %v4514 = vsel %vm436, %v4513, %v4512
    %v4515 = vrot.slane %v357, 2
    %v4516 = vsel %vm439, %v4515, %v4514
    %v4517 = vsel %vm441, %v4502, 0
    %v4519 = vsel %vm441, %v4516, 0
    %4521 = vmatprep.subr.mxu0 0.0
    %4522 = vmatpush1.msra.mxu0 %v304
    %4523 = vmatprep.subr.mxu0 0.0
    %4524 = vmatpush1.msra.mxu0 %v305
    %4525 = vmatprep.subr.mxu0 0.0
    %4526 = vmatpush1.msra.mxu0 %v306
    %4527 = vmatprep.subr.mxu0 0.0
    %4528 = vmatpush1.msra.mxu0 %v307
    %4529 = vmatprep.subr.mxu0 0.0
    %4530 = vmatpush1.msra.mxu0 0.0
    %4531 = vmatprep.subr.mxu0 0.0
    %4532 = vmatpush1.msra.mxu0 0.0
    %4533 = vmatprep.subr.mxu0 0.0
    %4534 = vmatpush1.msra.mxu0 0.0
    %4535 = vmatprep.subr.mxu0 0.0
    %4536 = vmatpush1.msra.mxu0 0.0
    %4537 = vmatprep.subr.mxu0 0.0
    %4538 = vmatpush1.msra.mxu0 0.0
    %4539 = vmatprep.subr.mxu0 0.0
    %4540 = vmatpush1.msra.mxu0 0.0
    %4541 = vmatprep.subr.mxu0 0.0
    %4542 = vmatpush1.msra.mxu0 0.0
    %4543 = vmatprep.subr.mxu0 0.0
    %4544 = vmatpush1.msra.mxu0 0.0
    %4545 = vmatprep.subr.mxu0 0.0
    %4546 = vmatpush1.msra.mxu0 0.0
    %4547 = vmatprep.subr.mxu0 0.0
    %4548 = vmatpush1.msra.mxu0 0.0
    %4549 = vmatprep.subr.mxu0 0.0
    %4550 = vmatpush1.msra.mxu0 0.0
    %4551 = vmatprep.subr.mxu0 0.0
    %4552 = vmatpush1.msra.mxu0 0.0
    %4553 = vmatprep.subr.mxu0 0.0
    %4554 = vmatpush1.msra.mxu0 0.0
    %4555 = vmatprep.subr.mxu0 0.0
    %4556 = vmatpush1.msra.mxu0 0.0
    %4557 = vmatprep.subr.mxu0 0.0
    %4558 = vmatpush1.msra.mxu0 0.0
    %4559 = vmatprep.subr.mxu0 0.0
    %4560 = vmatpush1.msra.mxu0 0.0
    %4561 = vmatprep.subr.mxu0 0.0
    %4562 = vmatpush1.msra.mxu0 0.0
    %4563 = vmatprep.subr.mxu0 0.0
    %4564 = vmatpush1.msra.mxu0 0.0
    %4565 = vmatprep.subr.mxu0 0.0
    %4566 = vmatpush1.msra.mxu0 0.0
    %4567 = vmatprep.subr.mxu0 0.0
    %4568 = vmatpush1.msra.mxu0 0.0
    %4569 = vmatprep.subr.mxu0 0.0
    %4570 = vmatpush1.msra.mxu0 0.0
    %4571 = vmatprep.subr.mxu0 0.0
    %4572 = vmatpush1.msra.mxu0 0.0
    %4573 = vmatprep.subr.mxu0 0.0
    %4574 = vmatpush1.msra.mxu0 0.0
    %4575 = vmatprep.subr.mxu0 0.0
    %4576 = vmatpush1.msra.mxu0 0.0
    %4577 = vmatprep.subr.mxu0 0.0
    %4578 = vmatpush1.msra.mxu0 0.0
    %4579 = vmatprep.subr.mxu0 0.0
    %4580 = vmatpush1.msra.mxu0 0.0
    %4581 = vmatprep.subr.mxu0 0.0
    %4582 = vmatpush1.msra.mxu0 0.0
    %4583 = vmatprep.subr.mxu0 0.0
    %4584 = vmatpush1.msra.mxu0 0.0
    %4585 = vmatprep.mubr.f32.mxu0 0.0
    %4586 = vmatmul.mubr.f32.gmra.mrb[0].mxu0 %v4517
    %v4587 = vpop.f32.mrb[0].mxu0
    %v4588 = vadd.f32 %v1777, %v4587
    %v4589 = vpop.f32.mrb[0].mxu0
    %4590 = vmatprep.mubr.f32.mxu0 0.0
    %4591 = vmatmul.mubr.f32.gmra.mrb[0].mxu0 %v4519
    %v4592 = vpop.f32.mrb[0].mxu0
    %v4593 = vadd.f32 %v1777, %v4592
    %v4594 = vpop.f32.mrb[0].mxu0
    %4595 = vdwg.mxu0
    %v4597 = vsel %vm618, %v4381, 0
    %v4600 = vsel %vm618, %v4481, 0
    %v4603 = vsel %vm618, %v4486, 0
    %4605 = vmatprep.subr.mxu0 0.0
    %4606 = vmatpush1.xpose.msra.mxu0 %v4600
    %4607 = vmatprep.subr.mxu0 0.0
    %4608 = vmatpush1.xpose.msra.mxu0 %v4603
    %4609 = vmatprep.subr.mxu0 0.0
    %4610 = vmatpush1.xpose.msra.mxu0 0.0
    %4611 = vmatprep.subr.mxu0 0.0
    %4612 = vmatpush1.xpose.msra.mxu0 0.0
    %4613 = vmatprep.subr.mxu0 0.0
    %4614 = vmatpush1.xpose.msra.mxu0 0.0
    %4615 = vmatprep.subr.mxu0 0.0
    %4616 = vmatpush1.xpose.msra.mxu0 0.0
    %4617 = vmatprep.subr.mxu0 0.0
    %4618 = vmatpush1.xpose.msra.mxu0 0.0
    %4619 = vmatprep.subr.mxu0 0.0
    %4620 = vmatpush1.xpose.msra.mxu0 0.0
    %4621 = vmatprep.subr.mxu0 0.0
    %4622 = vmatpush1.xpose.msra.mxu0 0.0
    %4623 = vmatprep.subr.mxu0 0.0
    %4624 = vmatpush1.xpose.msra.mxu0 0.0
    %4625 = vmatprep.subr.mxu0 0.0
    %4626 = vmatpush1.xpose.msra.mxu0 0.0
    %4627 = vmatprep.subr.mxu0 0.0
    %4628 = vmatpush1.xpose.msra.mxu0 0.0
    %4629 = vmatprep.subr.mxu0 0.0
    %4630 = vmatpush1.xpose.msra.mxu0 0.0
    %4631 = vmatprep.subr.mxu0 0.0
    %4632 = vmatpush1.xpose.msra.mxu0 0.0
    %4633 = vmatprep.subr.mxu0 0.0
    %4634 = vmatpush1.xpose.msra.mxu0 0.0
    %4635 = vmatprep.subr.mxu0 0.0
    %4636 = vmatpush1.xpose.msra.mxu0 0.0
    %4637 = vmatprep.subr.mxu0 0.0
    %4638 = vmatpush1.xpose.msra.mxu0 0.0
    %4639 = vmatprep.subr.mxu0 0.0
    %4640 = vmatpush1.xpose.msra.mxu0 0.0
    %4641 = vmatprep.subr.mxu0 0.0
    %4642 = vmatpush1.xpose.msra.mxu0 0.0
    %4643 = vmatprep.subr.mxu0 0.0
    %4644 = vmatpush1.xpose.msra.mxu0 0.0
    %4645 = vmatprep.subr.mxu0 0.0
    %4646 = vmatpush1.xpose.msra.mxu0 0.0
    %4647 = vmatprep.subr.mxu0 0.0
    %4648 = vmatpush1.xpose.msra.mxu0 0.0
    %4649 = vmatprep.subr.mxu0 0.0
    %4650 = vmatpush1.xpose.msra.mxu0 0.0
    %4651 = vmatprep.subr.mxu0 0.0
    %4652 = vmatpush1.xpose.msra.mxu0 0.0
    %4653 = vmatprep.subr.mxu0 0.0
    %4654 = vmatpush1.xpose.msra.mxu0 0.0
    %4655 = vmatprep.subr.mxu0 0.0
    %4656 = vmatpush1.xpose.msra.mxu0 0.0
    %4657 = vmatprep.subr.mxu0 0.0
    %4658 = vmatpush1.xpose.msra.mxu0 0.0
    %4659 = vmatprep.subr.mxu0 0.0
    %4660 = vmatpush1.xpose.msra.mxu0 0.0
    %4661 = vmatprep.subr.mxu0 0.0
    %4662 = vmatpush1.xpose.msra.mxu0 0.0
    %4663 = vmatprep.subr.mxu0 0.0
    %4664 = vmatpush1.xpose.msra.mxu0 0.0
    %4665 = vmatprep.subr.mxu0 0.0
    %4666 = vmatpush1.xpose.msra.mxu0 0.0
    %4667 = vmatprep.subr.mxu0 0.0
    %4668 = vmatpush1.xpose.msra.mxu0 0.0
    %4669 = vmatprep.mubr.f32.mxu0 0.0
    %4670 = vmatmul.mubr.f32.gmra.mrb[0].mxu0 %v4597
    %v4671 = vpop.f32.mrb[0].mxu0
    %v4672 = vadd.f32 0.0, %v4671
    %v4673 = vpop.f32.mrb[0].mxu0
    %4674 = vdwg.mxu0
    %v4675 = vsel %vm1287, %v4672, -inf
    %4676 = vmax.xlane.f32.xlu0 %v4675
    %v4677 = vpop.xlane.xlu0 %4676
    %v4678 = vsub.f32 %v4672, %v4677
    %v4679 = vmul.f32 %v4678, 1.442695
    %v4680 = vpow.pop %v4679
    %v4681 = vsel %vm1287, %v4680, 0.0
    %4682 = vadd.xlane.f32.xlu0 %v4681
    %v4683 = vpop.xlane.xlu0 %4682
    %v4684 = vrcp.pop %v4683
    %v4685 = vmul.f32 %v4680, %v4684
    %v4687 = vsel %vm1287, %v4685, 0
    %4689 = vmatprep.subr.mxu0 0.0
    %4690 = vmatpush1.msra.mxu0 %v4588
    %4691 = vmatprep.subr.mxu0 0.0
    %4692 = vmatpush1.msra.mxu0 %v4593
    %4693 = vmatprep.subr.mxu0 0.0
    %4694 = vmatpush1.msra.mxu0 0.0
    %4695 = vmatprep.subr.mxu0 0.0
    %4696 = vmatpush1.msra.mxu0 0.0
    %4697 = vmatprep.subr.mxu0 0.0
    %4698 = vmatpush1.msra.mxu0 0.0
    %4699 = vmatprep.subr.mxu0 0.0
    %4700 = vmatpush1.msra.mxu0 0.0
    %4701 = vmatprep.subr.mxu0 0.0
    %4702 = vmatpush1.msra.mxu0 0.0
    %4703 = vmatprep.subr.mxu0 0.0
    %4704 = vmatpush1.msra.mxu0 0.0
    %4705 = vmatprep.subr.mxu0 0.0
    %4706 = vmatpush1.msra.mxu0 0.0
    %4707 = vmatprep.subr.mxu0 0.0
    %4708 = vmatpush1.msra.mxu0 0.0
    %4709 = vmatprep.subr.mxu0 0.0
    %4710 = vmatpush1.msra.mxu0 0.0
    %4711 = vmatprep.subr.mxu0 0.0
    %4712 = vmatpush1.msra.mxu0 0.0
    %4713 = vmatprep.subr.mxu0 0.0
    %4714 = vmatpush1.msra.mxu0 0.0
    %4715 = vmatprep.subr.mxu0 0.0
    %4716 = vmatpush1.msra.mxu0 0.0
    %4717 = vmatprep.subr.mxu0 0.0
    %4718 = vmatpush1.msra.mxu0 0.0
    %4719 = vmatprep.subr.mxu0 0.0
    %4720 = vmatpush1.msra.mxu0 0.0
    %4721 = vmatprep.subr.mxu0 0.0
    %4722 = vmatpush1.msra.mxu0 0.0
    %4723 = vmatprep.subr.mxu0 0.0
    %4724 = vmatpush1.msra.mxu0 0.0
    %4725 = vmatprep.subr.mxu0 0.0
    %4726 = vmatpush1.msra.mxu0 0.0
    %4727 = vmatprep.subr.mxu0 0.0
    %4728 = vmatpush1.msra.mxu0 0.0
    %4729 = vmatprep.subr.mxu0 0.0
    %4730 = vmatpush1.msra.mxu0 0.0
    %4731 = vmatprep.subr.mxu0 0.0
    %4732 = vmatpush1.msra.mxu0 0.0
    %4733 = vmatprep.subr.mxu0 0.0
    %4734 = vmatpush1.msra.mxu0 0.0
    %4735 = vmatprep.subr.mxu0 0.0
    %4736 = vmatpush1.msra.mxu0 0.0
    %4737 = vmatprep.subr.mxu0 0.0
    %4738 = vmatpush1.msra.mxu0 0.0
    %4739 = vmatprep.subr.mxu0 0.0
    %4740 = vmatpush1.msra.mxu0 0.0
    %4741 = vmatprep.subr.mxu0 0.0
    %4742 = vmatpush1.msra.mxu0 0.0
    %4743 = vmatprep.subr.mxu0 0.0
    %4744 = vmatpush1.msra.mxu0 0.0
    %4745 = vmatprep.subr.mxu0 0.0
    %4746 = vmatpush1.msra.mxu0 0.0
    %4747 = vmatprep.subr.mxu0 0.0
    %4748 = vmatpush1.msra.mxu0 0.0
    %4749 = vmatprep.subr.mxu0 0.0
    %4750 = vmatpush1.msra.mxu0 0.0
    %4751 = vmatprep.subr.mxu0 0.0
    %4752 = vmatpush1.msra.mxu0 0.0
    %4753 = vmatprep.mubr.f32.mxu0 0.0
    %4754 = vmatmul.mubr.f32.gmra.mrb[0].mxu0 %v4687
    %v4755 = vpop.f32.mrb[0].mxu0
    %v4756 = vadd.f32 0.0, %v4755
    %v4757 = vpop.f32.mrb[0].mxu0
    %4758 = vdwg.mxu0
    %4759 = vrot.lane.b32.xlu0 %v4381, 120
    %v4760 = vpop.permute.xlu0 %4759
    %4761 = vrot.lane.b32.xlu0 %v4481, 120
    %v4762 = vpop.permute.xlu0 %4761
    %4763 = vrot.lane.b32.xlu0 %v4486, 120
    %v4764 = vpop.permute.xlu0 %4763
    %v4765 = vsel %vm618, %v4760, 0
    %v4767 = vsel %vm618, %v4762, 0
    %v4769 = vsel %vm618, %v4764, 0
    %4771 = vmatprep.subr.mxu0 0.0
    %4772 = vmatpush1.xpose.msra.mxu0 %v4767
    %4773 = vmatprep.subr.mxu0 0.0
    %4774 = vmatpush1.xpose.msra.mxu0 %v4769
    %4775 = vmatprep.subr.mxu0 0.0
    %4776 = vmatpush1.xpose.msra.mxu0 0.0
    %4777 = vmatprep.subr.mxu0 0.0
    %4778 = vmatpush1.xpose.msra.mxu0 0.0
    %4779 = vmatprep.subr.mxu0 0.0
    %4780 = vmatpush1.xpose.msra.mxu0 0.0
    %4781 = vmatprep.subr.mxu0 0.0
    %4782 = vmatpush1.xpose.msra.mxu0 0.0
    %4783 = vmatprep.subr.mxu0 0.0
    %4784 = vmatpush1.xpose.msra.mxu0 0.0
    %4785 = vmatprep.subr.mxu0 0.0
    %4786 = vmatpush1.xpose.msra.mxu0 0.0
    %4787 = vmatprep.subr.mxu0 0.0
    %4788 = vmatpush1.xpose.msra.mxu0 0.0
    %4789 = vmatprep.subr.mxu0 0.0
    %4790 = vmatpush1.xpose.msra.mxu0 0.0
    %4791 = vmatprep.subr.mxu0 0.0
    %4792 = vmatpush1.xpose.msra.mxu0 0.0
    %4793 = vmatprep.subr.mxu0 0.0
    %4794 = vmatpush1.xpose.msra.mxu0 0.0
    %4795 = vmatprep.subr.mxu0 0.0
    %4796 = vmatpush1.xpose.msra.mxu0 0.0
    %4797 = vmatprep.subr.mxu0 0.0
    %4798 = vmatpush1.xpose.msra.mxu0 0.0
    %4799 = vmatprep.subr.mxu0 0.0
    %4800 = vmatpush1.xpose.msra.mxu0 0.0
    %4801 = vmatprep.subr.mxu0 0.0
    %4802 = vmatpush1.xpose.msra.mxu0 0.0
    %4803 = vmatprep.subr.mxu0 0.0
    %4804 = vmatpush1.xpose.msra.mxu0 0.0
    %4805 = vmatprep.subr.mxu0 0.0
    %4806 = vmatpush1.xpose.msra.mxu0 0.0
    %4807 = vmatprep.subr.mxu0 0.0
    %4808 = vmatpush1.xpose.msra.mxu0 0.0
    %4809 = vmatprep.subr.mxu0 0.0
    %4810 = vmatpush1.xpose.msra.mxu0 0.0
    %4811 = vmatprep.subr.mxu0 0.0
    %4812 = vmatpush1.xpose.msra.mxu0 0.0
    %4813 = vmatprep.subr.mxu0 0.0
    %4814 = vmatpush1.xpose.msra.mxu0 0.0
    %4815 = vmatprep.subr.mxu0 0.0
    %4816 = vmatpush1.xpose.msra.mxu0 0.0
    %4817 = vmatprep.subr.mxu0 0.0
    %4818 = vmatpush1.xpose.msra.mxu0 0.0
    %4819 = vmatprep.subr.mxu0 0.0
    %4820 = vmatpush1.xpose.msra.mxu0 0.0
    %4821 = vmatprep.subr.mxu0 0.0
    %4822 = vmatpush1.xpose.msra.mxu0 0.0
    %4823 = vmatprep.subr.mxu0 0.0
    %4824 = vmatpush1.xpose.msra.mxu0 0.0
    %4825 = vmatprep.subr.mxu0 0.0
    %4826 = vmatpush1.xpose.msra.mxu0 0.0
    %4827 = vmatprep.subr.mxu0 0.0
    %4828 = vmatpush1.xpose.msra.mxu0 0.0
    %4829 = vmatprep.subr.mxu0 0.0
    %4830 = vmatpush1.xpose.msra.mxu0 0.0
    %4831 = vmatprep.subr.mxu0 0.0
    %4832 = vmatpush1.xpose.msra.mxu0 0.0
    %4833 = vmatprep.subr.mxu0 0.0
    %4834 = vmatpush1.xpose.msra.mxu0 0.0
    %4835 = vmatprep.mubr.f32.mxu0 0.0
    %4836 = vmatmul.mubr.f32.gmra.mrb[0].mxu0 %v4765
    %v4837 = vpop.f32.mrb[0].mxu0
    %v4838 = vadd.f32 0.0, %v4837
    %v4839 = vpop.f32.mrb[0].mxu0
    %4840 = vdwg.mxu0
    %v4841 = vsel %vm1287, %v4838, -inf
    %4842 = vmax.xlane.f32.xlu0 %v4841
    %v4843 = vpop.xlane.xlu0 %4842
    %v4844 = vsub.f32 %v4838, %v4843
    %v4845 = vmul.f32 %v4844, 1.442695
    %v4846 = vpow.pop %v4845
    %v4847 = vsel %vm1287, %v4846, 0.0
    %4848 = vadd.xlane.f32.xlu0 %v4847
    %v4849 = vpop.xlane.xlu0 %4848
    %v4850 = vrcp.pop %v4849
    %v4851 = vmul.f32 %v4846, %v4850
    %4854 = vrot.lane.b32.xlu0 %v4588, 120
    %v4855 = vpop.permute.xlu0 %4854
    %4856 = vrot.lane.b32.xlu0 %v4593, 120
    %v4857 = vpop.permute.xlu0 %4856
    %v4861 = vsel %vm1287, %v4851, 0
    %4863 = vmatprep.subr.mxu0 0.0
    %4864 = vmatpush1.msra.mxu0 %v4855
    %4865 = vmatprep.subr.mxu0 0.0
    %4866 = vmatpush1.msra.mxu0 %v4857
    %4867 = vmatprep.subr.mxu0 0.0
    %4868 = vmatpush1.msra.mxu0 0.0
    %4869 = vmatprep.subr.mxu0 0.0
    %4870 = vmatpush1.msra.mxu0 0.0
    %4871 = vmatprep.subr.mxu0 0.0
    %4872 = vmatpush1.msra.mxu0 0.0
    %4873 = vmatprep.subr.mxu0 0.0
    %4874 = vmatpush1.msra.mxu0 0.0
    %4875 = vmatprep.subr.mxu0 0.0
    %4876 = vmatpush1.msra.mxu0 0.0
    %4877 = vmatprep.subr.mxu0 0.0
    %4878 = vmatpush1.msra.mxu0 0.0
    %4879 = vmatprep.subr.mxu0 0.0
    %4880 = vmatpush1.msra.mxu0 0.0
    %4881 = vmatprep.subr.mxu0 0.0
    %4882 = vmatpush1.msra.mxu0 0.0
    %4883 = vmatprep.subr.mxu0 0.0
    %4884 = vmatpush1.msra.mxu0 0.0
    %4885 = vmatprep.subr.mxu0 0.0
    %4886 = vmatpush1.msra.mxu0 0.0
    %4887 = vmatprep.subr.mxu0 0.0
    %4888 = vmatpush1.msra.mxu0 0.0
    %4889 = vmatprep.subr.mxu0 0.0
    %4890 = vmatpush1.msra.mxu0 0.0
    %4891 = vmatprep.subr.mxu0 0.0
    %4892 = vmatpush1.msra.mxu0 0.0
    %4893 = vmatprep.subr.mxu0 0.0
    %4894 = vmatpush1.msra.mxu0 0.0
    %4895 = vmatprep.subr.mxu0 0.0
    %4896 = vmatpush1.msra.mxu0 0.0
    %4897 = vmatprep.subr.mxu0 0.0
    %4898 = vmatpush1.msra.mxu0 0.0
    %4899 = vmatprep.subr.mxu0 0.0
    %4900 = vmatpush1.msra.mxu0 0.0
    %4901 = vmatprep.subr.mxu0 0.0
    %4902 = vmatpush1.msra.mxu0 0.0
    %4903 = vmatprep.subr.mxu0 0.0
    %4904 = vmatpush1.msra.mxu0 0.0
    %4905 = vmatprep.subr.mxu0 0.0
    %4906 = vmatpush1.msra.mxu0 0.0
    %4907 = vmatprep.subr.mxu0 0.0
    %4908 = vmatpush1.msra.mxu0 0.0
    %4909 = vmatprep.subr.mxu0 0.0
    %4910 = vmatpush1.msra.mxu0 0.0
    %4911 = vmatprep.subr.mxu0 0.0
    %4912 = vmatpush1.msra.mxu0 0.0
    %4913 = vmatprep.subr.mxu0 0.0
    %4914 = vmatpush1.msra.mxu0 0.0
    %4915 = vmatprep.subr.mxu0 0.0
    %4916 = vmatpush1.msra.mxu0 0.0
    %4917 = vmatprep.subr.mxu0 0.0
    %4918 = vmatpush1.msra.mxu0 0.0
    %4919 = vmatprep.subr.mxu0 0.0
    %4920 = vmatpush1.msra.mxu0 0.0
    %4921 = vmatprep.subr.mxu0 0.0
    %4922 = vmatpush1.msra.mxu0 0.0
    %4923 = vmatprep.subr.mxu0 0.0
    %4924 = vmatpush1.msra.mxu0 0.0
    %4925 = vmatprep.subr.mxu0 0.0
    %4926 = vmatpush1.msra.mxu0 0.0
    %4927 = vmatprep.mubr.f32.mxu0 0.0
    %4928 = vmatmul.mubr.f32.gmra.mrb[0].mxu0 %v4861
    %v4929 = vpop.f32.mrb[0].mxu0
    %v4930 = vadd.f32 0.0, %v4929
    %v4931 = vpop.f32.mrb[0].mxu0
    %4932 = vdwg.mxu0
    %4933 = vrot.lane.b32.xlu0 %v4381, 112
    %v4934 = vpop.permute.xlu0 %4933
    %4935 = vrot.lane.b32.xlu0 %v4481, 112
    %v4936 = vpop.permute.xlu0 %4935
    %4937 = vrot.lane.b32.xlu0 %v4486, 112
    %v4938 = vpop.permute.xlu0 %4937
    %v4939 = vsel %vm618, %v4934, 0
    %v4941 = vsel %vm618, %v4936, 0
    %v4943 = vsel %vm618, %v4938, 0
    %4945 = vmatprep.subr.mxu0 0.0
    %4946 = vmatpush1.xpose.msra.mxu0 %v4941
    %4947 = vmatprep.subr.mxu0 0.0
    %4948 = vmatpush1.xpose.msra.mxu0 %v4943
    %4949 = vmatprep.subr.mxu0 0.0
    %4950 = vmatpush1.xpose.msra.mxu0 0.0
    %4951 = vmatprep.subr.mxu0 0.0
    %4952 = vmatpush1.xpose.msra.mxu0 0.0
    %4953 = vmatprep.subr.mxu0 0.0
    %4954 = vmatpush1.xpose.msra.mxu0 0.0
    %4955 = vmatprep.subr.mxu0 0.0
    %4956 = vmatpush1.xpose.msra.mxu0 0.0
    %4957 = vmatprep.subr.mxu0 0.0
    %4958 = vmatpush1.xpose.msra.mxu0 0.0
    %4959 = vmatprep.subr.mxu0 0.0
    %4960 = vmatpush1.xpose.msra.mxu0 0.0
    %4961 = vmatprep.subr.mxu0 0.0
    %4962 = vmatpush1.xpose.msra.mxu0 0.0
    %4963 = vmatprep.subr.mxu0 0.0
    %4964 = vmatpush1.xpose.msra.mxu0 0.0
    %4965 = vmatprep.subr.mxu0 0.0
    %4966 = vmatpush1.xpose.msra.mxu0 0.0
    %4967 = vmatprep.subr.mxu0 0.0
    %4968 = vmatpush1.xpose.msra.mxu0 0.0
    %4969 = vmatprep.subr.mxu0 0.0
    %4970 = vmatpush1.xpose.msra.mxu0 0.0
    %4971 = vmatprep.subr.mxu0 0.0
    %4972 = vmatpush1.xpose.msra.mxu0 0.0
    %4973 = vmatprep.subr.mxu0 0.0
    %4974 = vmatpush1.xpose.msra.mxu0 0.0
    %4975 = vmatprep.subr.mxu0 0.0
    %4976 = vmatpush1.xpose.msra.mxu0 0.0
    %4977 = vmatprep.subr.mxu0 0.0
    %4978 = vmatpush1.xpose.msra.mxu0 0.0
    %4979 = vmatprep.subr.mxu0 0.0
    %4980 = vmatpush1.xpose.msra.mxu0 0.0
    %4981 = vmatprep.subr.mxu0 0.0
    %4982 = vmatpush1.xpose.msra.mxu0 0.0
    %4983 = vmatprep.subr.mxu0 0.0
    %4984 = vmatpush1.xpose.msra.mxu0 0.0
    %4985 = vmatprep.subr.mxu0 0.0
    %4986 = vmatpush1.xpose.msra.mxu0 0.0
    %4987 = vmatprep.subr.mxu0 0.0
    %4988 = vmatpush1.xpose.msra.mxu0 0.0
    %4989 = vmatprep.subr.mxu0 0.0
    %4990 = vmatpush1.xpose.msra.mxu0 0.0
    %4991 = vmatprep.subr.mxu0 0.0
    %4992 = vmatpush1.xpose.msra.mxu0 0.0
    %4993 = vmatprep.subr.mxu0 0.0
    %4994 = vmatpush1.xpose.msra.mxu0 0.0
    %4995 = vmatprep.subr.mxu0 0.0
    %4996 = vmatpush1.xpose.msra.mxu0 0.0
    %4997 = vmatprep.subr.mxu0 0.0
    %4998 = vmatpush1.xpose.msra.mxu0 0.0
    %4999 = vmatprep.subr.mxu0 0.0
    %5000 = vmatpush1.xpose.msra.mxu0 0.0
    %5001 = vmatprep.subr.mxu0 0.0
    %5002 = vmatpush1.xpose.msra.mxu0 0.0
    %5003 = vmatprep.subr.mxu0 0.0
    %5004 = vmatpush1.xpose.msra.mxu0 0.0
    %5005 = vmatprep.subr.mxu0 0.0
    %5006 = vmatpush1.xpose.msra.mxu0 0.0
    %5007 = vmatprep.subr.mxu0 0.0
    %5008 = vmatpush1.xpose.msra.mxu0 0.0
    %5009 = vmatprep.mubr.f32.mxu0 0.0
    %5010 = vmatmul.mubr.f32.gmra.mrb[0].mxu0 %v4939
    %v5011 = vpop.f32.mrb[0].mxu0
    %v5012 = vadd.f32 0.0, %v5011
    %v5013 = vpop.f32.mrb[0].mxu0
    %5014 = vdwg.mxu0
    %v5015 = vsel %vm1287, %v5012, -inf
    %5016 = vmax.xlane.f32.xlu0 %v5015
    %v5017 = vpop.xlane.xlu0 %5016
    %v5018 = vsub.f32 %v5012, %v5017
    %v5019 = vmul.f32 %v5018, 1.442695
    %v5020 = vpow.pop %v5019
    %v5021 = vsel %vm1287, %v5020, 0.0
    %5022 = vadd.xlane.f32.xlu0 %v5021
    %v5023 = vpop.xlane.xlu0 %5022
    %v5024 = vrcp.pop %v5023
    %v5025 = vmul.f32 %v5020, %v5024
    %5026 = vrot.lane.b32.xlu0 %v4588, 112
    %v5027 = vpop.permute.xlu0 %5026
    %5028 = vrot.lane.b32.xlu0 %v4593, 112
    %v5029 = vpop.permute.xlu0 %5028
    %v5033 = vsel %vm1287, %v5025, 0
    %5035 = vmatprep.subr.mxu0 0.0
    %5036 = vmatpush1.msra.mxu0 %v5027
    %5037 = vmatprep.subr.mxu0 0.0
    %5038 = vmatpush1.msra.mxu0 %v5029
    %5039 = vmatprep.subr.mxu0 0.0
    %5040 = vmatpush1.msra.mxu0 0.0
    %5041 = vmatprep.subr.mxu0 0.0
    %5042 = vmatpush1.msra.mxu0 0.0
    %5043 = vmatprep.subr.mxu0 0.0
    %5044 = vmatpush1.msra.mxu0 0.0
    %5045 = vmatprep.subr.mxu0 0.0
    %5046 = vmatpush1.msra.mxu0 0.0
    %5047 = vmatprep.subr.mxu0 0.0
    %5048 = vmatpush1.msra.mxu0 0.0
    %5049 = vmatprep.subr.mxu0 0.0
    %5050 = vmatpush1.msra.mxu0 0.0
    %5051 = vmatprep.subr.mxu0 0.0
    %5052 = vmatpush1.msra.mxu0 0.0
    %5053 = vmatprep.subr.mxu0 0.0
    %5054 = vmatpush1.msra.mxu0 0.0
    %5055 = vmatprep.subr.mxu0 0.0
    %5056 = vmatpush1.msra.mxu0 0.0
    %5057 = vmatprep.subr.mxu0 0.0
    %5058 = vmatpush1.msra.mxu0 0.0
    %5059 = vmatprep.subr.mxu0 0.0
    %5060 = vmatpush1.msra.mxu0 0.0
    %5061 = vmatprep.subr.mxu0 0.0
    %5062 = vmatpush1.msra.mxu0 0.0
    %5063 = vmatprep.subr.mxu0 0.0
    %5064 = vmatpush1.msra.mxu0 0.0
    %5065 = vmatprep.subr.mxu0 0.0
    %5066 = vmatpush1.msra.mxu0 0.0
    %5067 = vmatprep.subr.mxu0 0.0
    %5068 = vmatpush1.msra.mxu0 0.0
    %5069 = vmatprep.subr.mxu0 0.0
    %5070 = vmatpush1.msra.mxu0 0.0
    %5071 = vmatprep.subr.mxu0 0.0
    %5072 = vmatpush1.msra.mxu0 0.0
    %5073 = vmatprep.subr.mxu0 0.0
    %5074 = vmatpush1.msra.mxu0 0.0
    %5075 = vmatprep.subr.mxu0 0.0
    %5076 = vmatpush1.msra.mxu0 0.0
    %5077 = vmatprep.subr.mxu0 0.0
    %5078 = vmatpush1.msra.mxu0 0.0
    %5079 = vmatprep.subr.mxu0 0.0
    %5080 = vmatpush1.msra.mxu0 0.0
    %5081 = vmatprep.subr.mxu0 0.0
    %5082 = vmatpush1.msra.mxu0 0.0
    %5083 = vmatprep.subr.mxu0 0.0
    %5084 = vmatpush1.msra.mxu0 0.0
    %5085 = vmatprep.subr.mxu0 0.0
    %5086 = vmatpush1.msra.mxu0 0.0
    %5087 = vmatprep.subr.mxu0 0.0
    %5088 = vmatpush1.msra.mxu0 0.0
    %5089 = vmatprep.subr.mxu0 0.0
    %5090 = vmatpush1.msra.mxu0 0.0
    %5091 = vmatprep.subr.mxu0 0.0
    %5092 = vmatpush1.msra.mxu0 0.0
    %5093 = vmatprep.subr.mxu0 0.0
    %5094 = vmatpush1.msra.mxu0 0.0
    %5095 = vmatprep.subr.mxu0 0.0
    %5096 = vmatpush1.msra.mxu0 0.0
    %5097 = vmatprep.subr.mxu0 0.0
    %5098 = vmatpush1.msra.mxu0 0.0
    %5099 = vmatprep.mubr.f32.mxu0 0.0
    %5100 = vmatmul.mubr.f32.gmra.mrb[0].mxu0 %v5033
    %v5101 = vpop.f32.mrb[0].mxu0
    %v5102 = vadd.f32 0.0, %v5101
    %v5103 = vpop.f32.mrb[0].mxu0
    %5104 = vdwg.mxu0
    %5105 = vrot.lane.b32.xlu0 %v4381, 104
    %v5106 = vpop.permute.xlu0 %5105
    %5107 = vrot.lane.b32.xlu0 %v4481, 104
    %v5108 = vpop.permute.xlu0 %5107
    %5109 = vrot.lane.b32.xlu0 %v4486, 104
    %v5110 = vpop.permute.xlu0 %5109
    %v5111 = vsel %vm618, %v5106, 0
    %v5113 = vsel %vm618, %v5108, 0
    %v5115 = vsel %vm618, %v5110, 0
    %5117 = vmatprep.subr.mxu0 0.0
    %5118 = vmatpush1.xpose.msra.mxu0 %v5113
    %5119 = vmatprep.subr.mxu0 0.0
    %5120 = vmatpush1.xpose.msra.mxu0 %v5115
    %5121 = vmatprep.subr.mxu0 0.0
    %5122 = vmatpush1.xpose.msra.mxu0 0.0
    %5123 = vmatprep.subr.mxu0 0.0
    %5124 = vmatpush1.xpose.msra.mxu0 0.0
    %5125 = vmatprep.subr.mxu0 0.0
    %5126 = vmatpush1.xpose.msra.mxu0 0.0
    %5127 = vmatprep.subr.mxu0 0.0
    %5128 = vmatpush1.xpose.msra.mxu0 0.0
    %5129 = vmatprep.subr.mxu0 0.0
    %5130 = vmatpush1.xpose.msra.mxu0 0.0
    %5131 = vmatprep.subr.mxu0 0.0
    %5132 = vmatpush1.xpose.msra.mxu0 0.0
    %5133 = vmatprep.subr.mxu0 0.0
    %5134 = vmatpush1.xpose.msra.mxu0 0.0
    %5135 = vmatprep.subr.mxu0 0.0
    %5136 = vmatpush1.xpose.msra.mxu0 0.0
    %5137 = vmatprep.subr.mxu0 0.0
    %5138 = vmatpush1.xpose.msra.mxu0 0.0
    %5139 = vmatprep.subr.mxu0 0.0
    %5140 = vmatpush1.xpose.msra.mxu0 0.0
    %5141 = vmatprep.subr.mxu0 0.0
    %5142 = vmatpush1.xpose.msra.mxu0 0.0
    %5143 = vmatprep.subr.mxu0 0.0
    %5144 = vmatpush1.xpose.msra.mxu0 0.0
    %5145 = vmatprep.subr.mxu0 0.0
    %5146 = vmatpush1.xpose.msra.mxu0 0.0
    %5147 = vmatprep.subr.mxu0 0.0
    %5148 = vmatpush1.xpose.msra.mxu0 0.0
    %5149 = vmatprep.subr.mxu0 0.0
    %5150 = vmatpush1.xpose.msra.mxu0 0.0
    %5151 = vmatprep.subr.mxu0 0.0
    %5152 = vmatpush1.xpose.msra.mxu0 0.0
    %5153 = vmatprep.subr.mxu0 0.0
    %5154 = vmatpush1.xpose.msra.mxu0 0.0
    %5155 = vmatprep.subr.mxu0 0.0
    %5156 = vmatpush1.xpose.msra.mxu0 0.0
    %5157 = vmatprep.subr.mxu0 0.0
    %5158 = vmatpush1.xpose.msra.mxu0 0.0
    %5159 = vmatprep.subr.mxu0 0.0
    %5160 = vmatpush1.xpose.msra.mxu0 0.0
    %5161 = vmatprep.subr.mxu0 0.0
    %5162 = vmatpush1.xpose.msra.mxu0 0.0
    %5163 = vmatprep.subr.mxu0 0.0
    %5164 = vmatpush1.xpose.msra.mxu0 0.0
    %5165 = vmatprep.subr.mxu0 0.0
    %5166 = vmatpush1.xpose.msra.mxu0 0.0
    %5167 = vmatprep.subr.mxu0 0.0
    %5168 = vmatpush1.xpose.msra.mxu0 0.0
    %5169 = vmatprep.subr.mxu0 0.0
    %5170 = vmatpush1.xpose.msra.mxu0 0.0
    %5171 = vmatprep.subr.mxu0 0.0
    %5172 = vmatpush1.xpose.msra.mxu0 0.0
    %5173 = vmatprep.subr.mxu0 0.0
    %5174 = vmatpush1.xpose.msra.mxu0 0.0
    %5175 = vmatprep.subr.mxu0 0.0
    %5176 = vmatpush1.xpose.msra.mxu0 0.0
    %5177 = vmatprep.subr.mxu0 0.0
    %5178 = vmatpush1.xpose.msra.mxu0 0.0
    %5179 = vmatprep.subr.mxu0 0.0
    %5180 = vmatpush1.xpose.msra.mxu0 0.0
    %5181 = vmatprep.mubr.f32.mxu0 0.0
    %5182 = vmatmul.mubr.f32.gmra.mrb[0].mxu0 %v5111
    %v5183 = vpop.f32.mrb[0].mxu0
    %v5184 = vadd.f32 0.0, %v5183
    %v5185 = vpop.f32.mrb[0].mxu0
    %5186 = vdwg.mxu0
    %v5187 = vsel %vm1287, %v5184, -inf
    %5188 = vmax.xlane.f32.xlu0 %v5187
    %v5189 = vpop.xlane.xlu0 %5188
    %v5190 = vsub.f32 %v5184, %v5189
    %v5191 = vmul.f32 %v5190, 1.442695
    %v5192 = vpow.pop %v5191
    %v5193 = vsel %vm1287, %v5192, 0.0
    %5194 = vadd.xlane.f32.xlu0 %v5193
    %v5195 = vpop.xlane.xlu0 %5194
    %v5196 = vrcp.pop %v5195
    %v5197 = vmul.f32 %v5192, %v5196
    %5198 = vrot.lane.b32.xlu0 %v4588, 104
    %v5199 = vpop.permute.xlu0 %5198
    %5200 = vrot.lane.b32.xlu0 %v4593, 104
    %v5201 = vpop.permute.xlu0 %5200
    %v5205 = vsel %vm1287, %v5197, 0
    %5207 = vmatprep.subr.mxu0 0.0
    %5208 = vmatpush1.msra.mxu0 %v5199
    %5209 = vmatprep.subr.mxu0 0.0
    %5210 = vmatpush1.msra.mxu0 %v5201
    %5211 = vmatprep.subr.mxu0 0.0
    %5212 = vmatpush1.msra.mxu0 0.0
    %5213 = vmatprep.subr.mxu0 0.0
    %5214 = vmatpush1.msra.mxu0 0.0
    %5215 = vmatprep.subr.mxu0 0.0
    %5216 = vmatpush1.msra.mxu0 0.0
    %5217 = vmatprep.subr.mxu0 0.0
    %5218 = vmatpush1.msra.mxu0 0.0
    %5219 = vmatprep.subr.mxu0 0.0
    %5220 = vmatpush1.msra.mxu0 0.0
    %5221 = vmatprep.subr.mxu0 0.0
    %5222 = vmatpush1.msra.mxu0 0.0
    %5223 = vmatprep.subr.mxu0 0.0
    %5224 = vmatpush1.msra.mxu0 0.0
    %5225 = vmatprep.subr.mxu0 0.0
    %5226 = vmatpush1.msra.mxu0 0.0
    %5227 = vmatprep.subr.mxu0 0.0
    %5228 = vmatpush1.msra.mxu0 0.0
    %5229 = vmatprep.subr.mxu0 0.0
    %5230 = vmatpush1.msra.mxu0 0.0
    %5231 = vmatprep.subr.mxu0 0.0
    %5232 = vmatpush1.msra.mxu0 0.0
    %5233 = vmatprep.subr.mxu0 0.0
    %5234 = vmatpush1.msra.mxu0 0.0
    %5235 = vmatprep.subr.mxu0 0.0
    %5236 = vmatpush1.msra.mxu0 0.0
    %5237 = vmatprep.subr.mxu0 0.0
    %5238 = vmatpush1.msra.mxu0 0.0
    %5239 = vmatprep.subr.mxu0 0.0
    %5240 = vmatpush1.msra.mxu0 0.0
    %5241 = vmatprep.subr.mxu0 0.0
    %5242 = vmatpush1.msra.mxu0 0.0
    %5243 = vmatprep.subr.mxu0 0.0
    %5244 = vmatpush1.msra.mxu0 0.0
    %5245 = vmatprep.subr.mxu0 0.0
    %5246 = vmatpush1.msra.mxu0 0.0
    %5247 = vmatprep.subr.mxu0 0.0
    %5248 = vmatpush1.msra.mxu0 0.0
    %5249 = vmatprep.subr.mxu0 0.0
    %5250 = vmatpush1.msra.mxu0 0.0
    %5251 = vmatprep.subr.mxu0 0.0
    %5252 = vmatpush1.msra.mxu0 0.0
    %5253 = vmatprep.subr.mxu0 0.0
    %5254 = vmatpush1.msra.mxu0 0.0
    %5255 = vmatprep.subr.mxu0 0.0
    %5256 = vmatpush1.msra.mxu0 0.0
    %5257 = vmatprep.subr.mxu0 0.0
    %5258 = vmatpush1.msra.mxu0 0.0
    %5259 = vmatprep.subr.mxu0 0.0
    %5260 = vmatpush1.msra.mxu0 0.0
    %5261 = vmatprep.subr.mxu0 0.0
    %5262 = vmatpush1.msra.mxu0 0.0
    %5263 = vmatprep.subr.mxu0 0.0
    %5264 = vmatpush1.msra.mxu0 0.0
    %5265 = vmatprep.subr.mxu0 0.0
    %5266 = vmatpush1.msra.mxu0 0.0
    %5267 = vmatprep.subr.mxu0 0.0
    %5268 = vmatpush1.msra.mxu0 0.0
    %5269 = vmatprep.subr.mxu0 0.0
    %5270 = vmatpush1.msra.mxu0 0.0
    %5271 = vmatprep.mubr.f32.mxu0 0.0
    %5272 = vmatmul.mubr.f32.gmra.mrb[0].mxu0 %v5205
    %v5273 = vpop.f32.mrb[0].mxu0
    %v5274 = vadd.f32 0.0, %v5273
    %v5275 = vpop.f32.mrb[0].mxu0
    %5276 = vdwg.mxu0
    %5278 = vrot.lane.b32.xlu0 %v4930, 8
    %v5279 = vpop.permute.xlu0 %5278
    %5282 = vrot.lane.b32.xlu0 %v5102, 16
    %v5283 = vpop.permute.xlu0 %5282
    %5286 = vrot.lane.b32.xlu0 %v5274, 24
    %v5287 = vpop.permute.xlu0 %5286
    %v5289 = vsel %vm618, %v4756, %v5279
    %v5290 = vsel %vm1287, %v5289, %v5283
    %v5291 = vsel %vm1289, %v5290, %v5287
    %v5293 = vsel %vm441, %v5291, 0
    %5295 = vmatprep.subr.mxu0 0.0
    %5296 = vmatpush1.msra.mxu0 %v309
    %5297 = vmatprep.subr.mxu0 0.0
    %5298 = vmatpush1.msra.mxu0 %v310
    %5299 = vmatprep.subr.mxu0 0.0
    %5300 = vmatpush1.msra.mxu0 %v311
    %5301 = vmatprep.subr.mxu0 0.0
    %5302 = vmatpush1.msra.mxu0 %v312
    %5303 = vmatprep.subr.mxu0 0.0
    %5304 = vmatpush1.msra.mxu0 0.0
    %5305 = vmatprep.subr.mxu0 0.0
    %5306 = vmatpush1.msra.mxu0 0.0
    %5307 = vmatprep.subr.mxu0 0.0
    %5308 = vmatpush1.msra.mxu0 0.0
    %5309 = vmatprep.subr.mxu0 0.0
    %5310 = vmatpush1.msra.mxu0 0.0
    %5311 = vmatprep.subr.mxu0 0.0
    %5312 = vmatpush1.msra.mxu0 0.0
    %5313 = vmatprep.subr.mxu0 0.0
    %5314 = vmatpush1.msra.mxu0 0.0
    %5315 = vmatprep.subr.mxu0 0.0
    %5316 = vmatpush1.msra.mxu0 0.0
    %5317 = vmatprep.subr.mxu0 0.0
    %5318 = vmatpush1.msra.mxu0 0.0
    %5319 = vmatprep.subr.mxu0 0.0
    %5320 = vmatpush1.msra.mxu0 0.0
    %5321 = vmatprep.subr.mxu0 0.0
    %5322 = vmatpush1.msra.mxu0 0.0
    %5323 = vmatprep.subr.mxu0 0.0
    %5324 = vmatpush1.msra.mxu0 0.0
    %5325 = vmatprep.subr.mxu0 0.0
    %5326 = vmatpush1.msra.mxu0 0.0
    %5327 = vmatprep.subr.mxu0 0.0
    %5328 = vmatpush1.msra.mxu0 0.0
    %5329 = vmatprep.subr.mxu0 0.0
    %5330 = vmatpush1.msra.mxu0 0.0
    %5331 = vmatprep.subr.mxu0 0.0
    %5332 = vmatpush1.msra.mxu0 0.0
    %5333 = vmatprep.subr.mxu0 0.0
    %5334 = vmatpush1.msra.mxu0 0.0
    %5335 = vmatprep.subr.mxu0 0.0
    %5336 = vmatpush1.msra.mxu0 0.0
    %5337 = vmatprep.subr.mxu0 0.0
    %5338 = vmatpush1.msra.mxu0 0.0
    %5339 = vmatprep.subr.mxu0 0.0
    %5340 = vmatpush1.msra.mxu0 0.0
    %5341 = vmatprep.subr.mxu0 0.0
    %5342 = vmatpush1.msra.mxu0 0.0
    %5343 = vmatprep.subr.mxu0 0.0
    %5344 = vmatpush1.msra.mxu0 0.0
    %5345 = vmatprep.subr.mxu0 0.0
    %5346 = vmatpush1.msra.mxu0 0.0
    %5347 = vmatprep.subr.mxu0 0.0
    %5348 = vmatpush1.msra.mxu0 0.0
    %5349 = vmatprep.subr.mxu0 0.0
    %5350 = vmatpush1.msra.mxu0 0.0
    %5351 = vmatprep.subr.mxu0 0.0
    %5352 = vmatpush1.msra.mxu0 0.0
    %5353 = vmatprep.subr.mxu0 0.0
    %5354 = vmatpush1.msra.mxu0 0.0
    %5355 = vmatprep.subr.mxu0 0.0
    %5356 = vmatpush1.msra.mxu0 0.0
    %5357 = vmatprep.subr.mxu0 0.0
    %5358 = vmatpush1.msra.mxu0 0.0
    %5359 = vmatprep.mubr.f32.mxu0 0.0
    %5360 = vmatmul.mubr.f32.gmra.mrb[0].mxu0 %v5293
    %v5361 = vpop.f32.mrb[0].mxu0
    %v5362 = vadd.f32 %v2602, %v5361
    %v5363 = vpop.f32.mrb[0].mxu0
    %5364 = vdwg.mxu0
    %v5366 = vrot.slane %v5362, 7
    %v5367 = vrot.slane %v5362, 1
    %v5368 = vrot.slane %v5362, 2
    %v5369 = vrot.slane %v5362, 3
    %v5370 = vrot.slane %v5362, 4
    %v5371 = vrot.slane %v5362, 5
    %v5372 = vrot.slane %v5362, 6
    %v5381 = vadd.f32 %v4271, %v5366
    %v5382 = vadd.f32 %v4272, %v5362
    %v5383 = vadd.f32 %v4273, %v5367
    %v5384 = vadd.f32 %v4274, %v5368
    %v5385 = vadd.f32 %v4275, %v5369
    %v5386 = vadd.f32 %v4276, %v5370
    %v5387 = vadd.f32 %v4277, %v5371
    %v5388 = vadd.f32 %v4278, %v5372
    %v5397 = vrot.slane %v5382, 7
    %v5398 = vsel %vm424, %v5397, %v5381
    %v5399 = vrot.slane %v5383, 6
    %v5400 = vsel %vm427, %v5399, %v5398
    %v5401 = vrot.slane %v5384, 5
    %v5402 = vsel %vm430, %v5401, %v5400
    %v5403 = vrot.slane %v5385, 4
    %v5404 = vsel %vm433, %v5403, %v5402
    %v5405 = vrot.slane %v5386, 3
    %v5406 = vsel %vm436, %v5405, %v5404
    %v5407 = vrot.slane %v5387, 2
    %v5408 = vsel %vm439, %v5407, %v5406
    %v5409 = vrot.slane %v5388, 1
    %v5412 = vsel %vm4161, %v5408, 0.0
    %5413 = vadd.xlane.f32.xlu0 %v5412
    %v5414 = vpop.xlane.xlu0 %5413
    %v5415 = vsel %vm3186, %v5409, 0.0
    %5416 = vadd.xlane.f32.xlu0 %v5415
    %v5417 = vpop.xlane.xlu0 %5416
    %v5418 = vmul.f32 %v5414, %v1420
    %v5419 = vmul.f32 %v5417, %v1420
    %v5422 = vrot.slane %v5418, 1
    %v5423 = vrot.slane %v5418, 2
    %v5424 = vrot.slane %v5418, 3
    %v5425 = vrot.slane %v5418, 4
    %v5426 = vrot.slane %v5418, 5
    %v5427 = vrot.slane %v5418, 6
    %v5428 = vrot.slane %v5419, 7
    %v5437 = vsub.f32 %v5381, %v5418
    %v5438 = vsub.f32 %v5382, %v5422
    %v5439 = vsub.f32 %v5383, %v5423
    %v5440 = vsub.f32 %v5384, %v5424
    %v5441 = vsub.f32 %v5385, %v5425
    %v5442 = vsub.f32 %v5386, %v5426
    %v5443 = vsub.f32 %v5387, %v5427
    %v5444 = vsub.f32 %v5388, %v5428
    %v5445 = vmul.f32 %v5437, %v5437
    %v5446 = vmul.f32 %v5438, %v5438
    %v5447 = vmul.f32 %v5439, %v5439
    %v5448 = vmul.f32 %v5440, %v5440
    %v5449 = vmul.f32 %v5441, %v5441
    %v5450 = vmul.f32 %v5442, %v5442
    %v5451 = vmul.f32 %v5443, %v5443
    %v5452 = vmul.f32 %v5444, %v5444
    %v5461 = vrot.slane %v5446, 7
    %v5462 = vsel %vm424, %v5461, %v5445
    %v5463 = vrot.slane %v5447, 6
    %v5464 = vsel %vm427, %v5463, %v5462
    %v5465 = vrot.slane %v5448, 5
    %v5466 = vsel %vm430, %v5465, %v5464
    %v5467 = vrot.slane %v5449, 4
    %v5468 = vsel %vm433, %v5467, %v5466
    %v5469 = vrot.slane %v5450, 3
    %v5470 = vsel %vm436, %v5469, %v5468
    %v5471 = vrot.slane %v5451, 2
    %v5472 = vsel %vm439, %v5471, %v5470
    %v5473 = vrot.slane %v5452, 1
    %v5476 = vsel %vm4161, %v5472, 0.0
    %5477 = vadd.xlane.f32.xlu0 %v5476
    %v5478 = vpop.xlane.xlu0 %5477
    %v5479 = vsel %vm3186, %v5473, 0.0
    %5480 = vadd.xlane.f32.xlu0 %v5479
    %v5481 = vpop.xlane.xlu0 %5480
    %v5482 = vmul.f32 %v5478, %v1420
    %v5483 = vmul.f32 %v5481, %v1420
    %v5484 = vadd.f32 %v5482, 1e-05
    %v5485 = vadd.f32 %v5483, 1e-05
    %v5486 = vrsqrt.pop %v5484
    %v5487 = vrsqrt.pop %v5485
    %v5490 = vrot.slane %v5486, 1
    %v5491 = vrot.slane %v5486, 2
    %v5492 = vrot.slane %v5486, 3
    %v5493 = vrot.slane %v5486, 4
    %v5494 = vrot.slane %v5486, 5
    %v5495 = vrot.slane %v5486, 6
    %v5496 = vrot.slane %v5487, 7
    %v5505 = vmul.f32 %v5437, %v5486
    %v5506 = vmul.f32 %v5438, %v5490
    %v5507 = vmul.f32 %v5439, %v5491
    %v5508 = vmul.f32 %v5440, %v5492
    %v5509 = vmul.f32 %v5441, %v5493
    %v5510 = vmul.f32 %v5442, %v5494
    %v5511 = vmul.f32 %v5443, %v5495
    %v5512 = vmul.f32 %v5444, %v5496
    %v5513 = vmul.f32 %v5505, %v2817
    %v5514 = vmul.f32 %v5506, %v2817
    %v5515 = vmul.f32 %v5507, %v2817
    %v5516 = vmul.f32 %v5508, %v2817
    %v5517 = vmul.f32 %v5509, %v2817
    %v5518 = vmul.f32 %v5510, %v2817
    %v5519 = vmul.f32 %v5511, %v2817
    %v5520 = vmul.f32 %v5512, %v2817
    %v5521 = vadd.f32 %v5513, %v2831
    %v5522 = vadd.f32 %v5514, %v2831
    %v5523 = vadd.f32 %v5515, %v2831
    %v5524 = vadd.f32 %v5516, %v2831
    %v5525 = vadd.f32 %v5517, %v2831
    %v5526 = vadd.f32 %v5518, %v2831
    %v5527 = vadd.f32 %v5519, %v2831
    %v5528 = vadd.f32 %v5520, %v2831
    %v5537 = vrot.slane %v5521, 1
    %v5538 = vsel %vm421, %v5522, %v5537
    %v5539 = vrot.slane %v5523, 7
    %v5540 = vsel %vm424, %v5539, %v5538
    %v5541 = vrot.slane %v5524, 6
    %v5542 = vsel %vm427, %v5541, %v5540
    %v5543 = vrot.slane %v5525, 5
    %v5544 = vsel %vm430, %v5543, %v5542
    %v5545 = vrot.slane %v5526, 4
    %v5546 = vsel %vm433, %v5545, %v5544
    %v5547 = vrot.slane %v5527, 3
    %v5548 = vsel %vm436, %v5547, %v5546
    %v5549 = vrot.slane %v5528, 2
    %v5550 = vsel %vm439, %v5549, %v5548
    %v5551 = vsel %vm441, %v5550, 0
    %5553 = vmatprep.subr.mxu0 0.0
    %5554 = vmatpush1.msra.mxu0 %v314
    %5555 = vmatprep.subr.mxu0 0.0
    %5556 = vmatpush1.msra.mxu0 %v315
    %5557 = vmatprep.subr.mxu0 0.0
    %5558 = vmatpush1.msra.mxu0 %v316
    %5559 = vmatprep.subr.mxu0 0.0
    %5560 = vmatpush1.msra.mxu0 %v317
    %5561 = vmatprep.subr.mxu0 0.0
    %5562 = vmatpush1.msra.mxu0 0.0
    %5563 = vmatprep.subr.mxu0 0.0
    %5564 = vmatpush1.msra.mxu0 0.0
    %5565 = vmatprep.subr.mxu0 0.0
    %5566 = vmatpush1.msra.mxu0 0.0
    %5567 = vmatprep.subr.mxu0 0.0
    %5568 = vmatpush1.msra.mxu0 0.0
    %5569 = vmatprep.subr.mxu0 0.0
    %5570 = vmatpush1.msra.mxu0 0.0
    %5571 = vmatprep.subr.mxu0 0.0
    %5572 = vmatpush1.msra.mxu0 0.0
    %5573 = vmatprep.subr.mxu0 0.0
    %5574 = vmatpush1.msra.mxu0 0.0
    %5575 = vmatprep.subr.mxu0 0.0
    %5576 = vmatpush1.msra.mxu0 0.0
    %5577 = vmatprep.subr.mxu0 0.0
    %5578 = vmatpush1.msra.mxu0 0.0
    %5579 = vmatprep.subr.mxu0 0.0
    %5580 = vmatpush1.msra.mxu0 0.0
    %5581 = vmatprep.subr.mxu0 0.0
    %5582 = vmatpush1.msra.mxu0 0.0
    %5583 = vmatprep.subr.mxu0 0.0
    %5584 = vmatpush1.msra.mxu0 0.0
    %5585 = vmatprep.subr.mxu0 0.0
    %5586 = vmatpush1.msra.mxu0 0.0
    %5587 = vmatprep.subr.mxu0 0.0
    %5588 = vmatpush1.msra.mxu0 0.0
    %5589 = vmatprep.subr.mxu0 0.0
    %5590 = vmatpush1.msra.mxu0 0.0
    %5591 = vmatprep.subr.mxu0 0.0
    %5592 = vmatpush1.msra.mxu0 0.0
    %5593 = vmatprep.subr.mxu0 0.0
    %5594 = vmatpush1.msra.mxu0 0.0
    %5595 = vmatprep.subr.mxu0 0.0
    %5596 = vmatpush1.msra.mxu0 0.0
    %5597 = vmatprep.subr.mxu0 0.0
    %5598 = vmatpush1.msra.mxu0 0.0
    %5599 = vmatprep.subr.mxu0 0.0
    %5600 = vmatpush1.msra.mxu0 0.0
    %5601 = vmatprep.subr.mxu0 0.0
    %5602 = vmatpush1.msra.mxu0 0.0
    %5603 = vmatprep.subr.mxu0 0.0
    %5604 = vmatpush1.msra.mxu0 0.0
    %5605 = vmatprep.subr.mxu0 0.0
    %5606 = vmatpush1.msra.mxu0 0.0
    %5607 = vmatprep.subr.mxu0 0.0
    %5608 = vmatpush1.msra.mxu0 0.0
    %5609 = vmatprep.subr.mxu0 0.0
    %5610 = vmatpush1.msra.mxu0 0.0
    %5611 = vmatprep.subr.mxu0 0.0
    %5612 = vmatpush1.msra.mxu0 0.0
    %5613 = vmatprep.subr.mxu0 0.0
    %5614 = vmatpush1.msra.mxu0 0.0
    %5615 = vmatprep.subr.mxu0 0.0
    %5616 = vmatpush1.msra.mxu0 0.0
    %5617 = vmatprep.mubr.f32.mxu0 0.0
    %5618 = vmatmul.mubr.f32.gmra.mrb[0].mxu0 %v5551
    %v5619 = vpop.f32.mrb[0].mxu0
    %v5620 = vadd.f32 %v2845, %v5619
    %v5621 = vpop.f32.mrb[0].mxu0
    %5622 = vdwg.mxu0
    %v5623 = vmax.f32 %v5620, 0.0
    %v5625 = vsel %vm2948, %v5623, 0
    %5627 = vmatprep.subr.mxu0 0.0
    %5628 = vmatpush1.msra.mxu0 %v319
    %5629 = vmatprep.subr.mxu0 0.0
    %5630 = vmatpush1.msra.mxu0 %v320
    %5631 = vmatprep.subr.mxu0 0.0
    %5632 = vmatpush1.msra.mxu0 %v321
    %5633 = vmatprep.subr.mxu0 0.0
    %5634 = vmatpush1.msra.mxu0 %v322
    %5635 = vmatprep.subr.mxu0 0.0
    %5636 = vmatpush1.msra.mxu0 %v323
    %5637 = vmatprep.subr.mxu0 0.0
    %5638 = vmatpush1.msra.mxu0 %v324
    %5639 = vmatprep.subr.mxu0 0.0
    %5640 = vmatpush1.msra.mxu0 %v325
    %5641 = vmatprep.subr.mxu0 0.0
    %5642 = vmatpush1.msra.mxu0 %v326
    %5643 = vmatprep.subr.mxu0 0.0
    %5644 = vmatpush1.msra.mxu0 0.0
    %5645 = vmatprep.subr.mxu0 0.0
    %5646 = vmatpush1.msra.mxu0 0.0
    %5647 = vmatprep.subr.mxu0 0.0
    %5648 = vmatpush1.msra.mxu0 0.0
    %5649 = vmatprep.subr.mxu0 0.0
    %5650 = vmatpush1.msra.mxu0 0.0
    %5651 = vmatprep.subr.mxu0 0.0
    %5652 = vmatpush1.msra.mxu0 0.0
    %5653 = vmatprep.subr.mxu0 0.0
    %5654 = vmatpush1.msra.mxu0 0.0
    %5655 = vmatprep.subr.mxu0 0.0
    %5656 = vmatpush1.msra.mxu0 0.0
    %5657 = vmatprep.subr.mxu0 0.0
    %5658 = vmatpush1.msra.mxu0 0.0
    %5659 = vmatprep.subr.mxu0 0.0
    %5660 = vmatpush1.msra.mxu0 0.0
    %5661 = vmatprep.subr.mxu0 0.0
    %5662 = vmatpush1.msra.mxu0 0.0
    %5663 = vmatprep.subr.mxu0 0.0
    %5664 = vmatpush1.msra.mxu0 0.0
    %5665 = vmatprep.subr.mxu0 0.0
    %5666 = vmatpush1.msra.mxu0 0.0
    %5667 = vmatprep.subr.mxu0 0.0
    %5668 = vmatpush1.msra.mxu0 0.0
    %5669 = vmatprep.subr.mxu0 0.0
    %5670 = vmatpush1.msra.mxu0 0.0
    %5671 = vmatprep.subr.mxu0 0.0
    %5672 = vmatpush1.msra.mxu0 0.0
    %5673 = vmatprep.subr.mxu0 0.0
    %5674 = vmatpush1.msra.mxu0 0.0
    %5675 = vmatprep.subr.mxu0 0.0
    %5676 = vmatpush1.msra.mxu0 0.0
    %5677 = vmatprep.subr.mxu0 0.0
    %5678 = vmatpush1.msra.mxu0 0.0
    %5679 = vmatprep.subr.mxu0 0.0
    %5680 = vmatpush1.msra.mxu0 0.0
    %5681 = vmatprep.subr.mxu0 0.0
    %5682 = vmatpush1.msra.mxu0 0.0
    %5683 = vmatprep.subr.mxu0 0.0
    %5684 = vmatpush1.msra.mxu0 0.0
    %5685 = vmatprep.subr.mxu0 0.0
    %5686 = vmatpush1.msra.mxu0 0.0
    %5687 = vmatprep.subr.mxu0 0.0
    %5688 = vmatpush1.msra.mxu0 0.0
    %5689 = vmatprep.subr.mxu0 0.0
    %5690 = vmatpush1.msra.mxu0 0.0
    %5691 = vmatprep.mubr.f32.mxu0 0.0
    %5692 = vmatmul.mubr.f32.gmra.mrb[0].mxu0 %v5625
    %v5693 = vpop.f32.mrb[0].mxu0
    %v5694 = vadd.f32 %v2946, %v5693
    %v5695 = vpop.f32.mrb[0].mxu0
    %5696 = vdwg.mxu0
    %v5698 = vrot.slane %v5694, 7
    %v5699 = vrot.slane %v5694, 1
    %v5700 = vrot.slane %v5694, 2
    %v5701 = vrot.slane %v5694, 3
    %v5702 = vrot.slane %v5694, 4
    %v5703 = vrot.slane %v5694, 5
    %v5704 = vrot.slane %v5694, 6
    %v5713 = vadd.f32 %v5521, %v5698
    %v5714 = vadd.f32 %v5522, %v5694
    %v5715 = vadd.f32 %v5523, %v5699
    %v5716 = vadd.f32 %v5524, %v5700
    %v5717 = vadd.f32 %v5525, %v5701
    %v5718 = vadd.f32 %v5526, %v5702
    %v5719 = vadd.f32 %v5527, %v5703
    %v5720 = vadd.f32 %v5528, %v5704
    %v5729 = vrot.slane %v5714, 7
    %v5730 = vsel %vm424, %v5729, %v5713
    %v5731 = vrot.slane %v5715, 6
    %v5732 = vsel %vm427, %v5731, %v5730
    %v5733 = vrot.slane %v5716, 5
    %v5734 = vsel %vm430, %v5733, %v5732
    %v5735 = vrot.slane %v5717, 4
    %v5736 = vsel %vm433, %v5735, %v5734
    %v5737 = vrot.slane %v5718, 3
    %v5738 = vsel %vm436, %v5737, %v5736
    %v5739 = vrot.slane %v5719, 2
    %v5740 = vsel %vm439, %v5739, %v5738
    %v5741 = vrot.slane %v5720, 1
    %v5744 = vsel %vm4161, %v5740, 0.0
    %5745 = vadd.xlane.f32.xlu0 %v5744
    %v5746 = vpop.xlane.xlu0 %5745
    %v5747 = vsel %vm3186, %v5741, 0.0
    %5748 = vadd.xlane.f32.xlu0 %v5747
    %v5749 = vpop.xlane.xlu0 %5748
    %v5750 = vmul.f32 %v5746, %v1420
    %v5751 = vmul.f32 %v5749, %v1420
    %v5754 = vrot.slane %v5750, 1
    %v5755 = vrot.slane %v5750, 2
    %v5756 = vrot.slane %v5750, 3
    %v5757 = vrot.slane %v5750, 4
    %v5758 = vrot.slane %v5750, 5
    %v5759 = vrot.slane %v5750, 6
    %v5760 = vrot.slane %v5751, 7
    %v5769 = vsub.f32 %v5713, %v5750
    %v5770 = vsub.f32 %v5714, %v5754
    %v5771 = vsub.f32 %v5715, %v5755
    %v5772 = vsub.f32 %v5716, %v5756
    %v5773 = vsub.f32 %v5717, %v5757
    %v5774 = vsub.f32 %v5718, %v5758
    %v5775 = vsub.f32 %v5719, %v5759
    %v5776 = vsub.f32 %v5720, %v5760
    %v5777 = vmul.f32 %v5769, %v5769
    %v5778 = vmul.f32 %v5770, %v5770
    %v5779 = vmul.f32 %v5771, %v5771
    %v5780 = vmul.f32 %v5772, %v5772
    %v5781 = vmul.f32 %v5773, %v5773
    %v5782 = vmul.f32 %v5774, %v5774
    %v5783 = vmul.f32 %v5775, %v5775
    %v5784 = vmul.f32 %v5776, %v5776
    %v5793 = vrot.slane %v5778, 7
    %v5794 = vsel %vm424, %v5793, %v5777
    %v5795 = vrot.slane %v5779, 6
    %v5796 = vsel %vm427, %v5795, %v5794
    %v5797 = vrot.slane %v5780, 5
    %v5798 = vsel %vm430, %v5797, %v5796
    %v5799 = vrot.slane %v5781, 4
    %v5800 = vsel %vm433, %v5799, %v5798
    %v5801 = vrot.slane %v5782, 3
    %v5802 = vsel %vm436, %v5801, %v5800
    %v5803 = vrot.slane %v5783, 2
    %v5804 = vsel %vm439, %v5803, %v5802
    %v5805 = vrot.slane %v5784, 1
    %v5808 = vsel %vm4161, %v5804, 0.0
    %5809 = vadd.xlane.f32.xlu0 %v5808
    %v5810 = vpop.xlane.xlu0 %5809
    %v5811 = vsel %vm3186, %v5805, 0.0
    %5812 = vadd.xlane.f32.xlu0 %v5811
    %v5813 = vpop.xlane.xlu0 %5812
    %v5814 = vmul.f32 %v5810, %v1420
    %v5815 = vmul.f32 %v5813, %v1420
    %v5816 = vadd.f32 %v5814, 1e-05
    %v5817 = vadd.f32 %v5815, 1e-05
    %v5818 = vrsqrt.pop %v5816
    %v5819 = vrsqrt.pop %v5817
    %v5822 = vrot.slane %v5818, 1
    %v5823 = vrot.slane %v5818, 2
    %v5824 = vrot.slane %v5818, 3
    %v5825 = vrot.slane %v5818, 4
    %v5826 = vrot.slane %v5818, 5
    %v5827 = vrot.slane %v5818, 6
    %v5828 = vrot.slane %v5819, 7
    %v5837 = vmul.f32 %v5769, %v5818
    %v5838 = vmul.f32 %v5770, %v5822
    %v5839 = vmul.f32 %v5771, %v5823
    %v5840 = vmul.f32 %v5772, %v5824
    %v5841 = vmul.f32 %v5773, %v5825
    %v5842 = vmul.f32 %v5774, %v5826
    %v5843 = vmul.f32 %v5775, %v5827
    %v5844 = vmul.f32 %v5776, %v5828
    %v5845 = vmul.f32 %v5837, %v3162
    %v5846 = vmul.f32 %v5838, %v3162
    %v5847 = vmul.f32 %v5839, %v3162
    %v5848 = vmul.f32 %v5840, %v3162
    %v5849 = vmul.f32 %v5841, %v3162
    %v5850 = vmul.f32 %v5842, %v3162
    %v5851 = vmul.f32 %v5843, %v3162
    %v5852 = vmul.f32 %v5844, %v3162
    %v5853 = vadd.f32 %v5845, %v3176
    %v5854 = vadd.f32 %v5846, %v3176
    %v5855 = vadd.f32 %v5847, %v3176
    %v5856 = vadd.f32 %v5848, %v3176
    %v5857 = vadd.f32 %v5849, %v3176
    %v5858 = vadd.f32 %v5850, %v3176
    %v5859 = vadd.f32 %v5851, %v3176
    %v5860 = vadd.f32 %v5852, %v3176
    %vm5861 = vcmask 254977
    %5862 = vst.msk [vmem:[#allocation26] sm:$0x2] %vm5861, %v5853
    %5863 = vst.msk [vmem:[#allocation26 + $0x2] sm:$0x2] %vm5861, %v5854
    %5864 = vst.msk [vmem:[#allocation26 + $0x4] sm:$0x2] %vm5861, %v5855
    %5865 = vst.msk [vmem:[#allocation26 + $0x6] sm:$0x2] %vm5861, %v5856
    %5866 = vst.msk [vmem:[#allocation26 + $0x8] sm:$0x2] %vm5861, %v5857
    %5867 = vst.msk [vmem:[#allocation26 + $0xa] sm:$0x2] %vm5861, %v5858
    %5868 = vst.msk [vmem:[#allocation26 + $0xc] sm:$0x2] %vm5861, %v5859
    %5869 = vst.msk [vmem:[#allocation26 + $0xe] sm:$0x2] %vm5861, %v5860
    // Predicated region
    $region174: #{tpu_custom_call.1} parent=1 // pred_check
      _
    $region175: #{tpu_custom_call.1} parent=1 // pred_check_branch
      %5871 = sbr.rel (0) target = $region177
    $region176: #{tpu_custom_call.1} parent=1 // pred_region
      %s5873 = ssub.s32 256, 256
      %5874 = vsyncadd [#allocation4], %s5873
      %s5875 = sshll.u32 [#allocation26], 4
      %s5876 = int_to_ptr.vmem [resolvable:$true] %s5875
      %5881 = dma.vmem_to_hbm [thread:$0]  %s5876, 256, %s28, [#allocation4], 32, 32, 2
    $region177: #{tpu_custom_call.1} parent=1 // pred_fallthru
      _
    // Predicated region
    $region178: #{tpu_custom_call.1} parent=1 // pred_check
      _
    $region179: #{tpu_custom_call.1} parent=1 // pred_check_branch
      %5883 = sbr.rel (0) target = $region181
    $region180: #{tpu_custom_call.1} parent=1 // pred_region
      %5884 = dma.done [#allocation4], 256
    $region181: #{tpu_custom_call.1} parent=1 // pred_fallthru
      _
    %5885 = vsyncpa [#allocation3], 1
    %5886 = vsyncpa [#allocation6], 1
    %5887 = vsyncpa [#allocation9], 1
    %5888 = vsyncpa [#allocation12], 1
    %5889 = vsyncpa [#allocation15], 1
    %5890 = vsyncpa [#allocation18], 1
    %5891 = vsyncpa [#allocation21], 1
    %5892 = vsyncpa [#allocation24], 1
    %5893 = vsyncpa [#allocation4], 1

</llo_original>
